<compile_context>
chip_gen: v6e
topology: v6e:2x2x1
jax: 0.10.0
libtpu: 0.0.40
codegen_flags: <defaults>
</compile_context>

<pallas_src>
import jax
import jax.numpy as jnp
from jax.experimental import pallas as pl
from jax.experimental.pallas import tpu as pltpu


def _round_up(v, m):
    return ((v + m - 1) // m) * m


def _make_aspp_kernel(W, rates, maxr, tH, Cip, Cp):
    """Builds the per-(image, row-tile) kernel body."""
    R = len(rates)
    f32 = jnp.float32
    # Distinct vertical band offsets (in the padded image) needed by this tile.
    band_offs = sorted({maxr + (ky - 1) * r for r in rates for ky in range(3)}
                       | {maxr})

    def kernel(xp_ref, xm_ref, w0_ref, b0_ref, w3_ref, b3_ref, wp_ref, bp_ref,
               o_ref):
        # xp_ref: (1, Hp, Wp, Cip) bf16  zero-padded image (resident per image)
        # xm_ref: (1, 1, Cip)      bf16  global-average-pooled feature
        # w0/wp : (Cip, Cp) bf16,  b0/bp: (1, Cp) f32
        # w3    : (R, 9*Cip, Cp) bf16,   b3: (R, 1, Cp) f32
        # o_ref : (1, tH, W, (R+2)*Cp) f32  (row tile of the output)
        row0 = pl.multiple_of(pl.program_id(1) * tH, tH)

        # Load each distinct tH-row band of the padded image exactly once
        # (bf16, full padded width, all channels).
        bands = {off: xp_ref[0, pl.ds(row0 + off, tH), :, :]
                 for off in band_offs}

        def tap(oy, ox):
            # shift the W window by ox inside band oy, flatten to (tH*W, Cip)
            return bands[oy][:, ox:ox + W, :].reshape(tH * W, Cip)

        # Center tap is shared by c0 and the center of every dilated branch.
        center = tap(maxr, maxr)

        # --- branch 0: 1x1 conv (+ folded BN) + ReLU ----------------------
        y0 = jnp.dot(center, w0_ref[...], preferred_element_type=f32)
        y0 = jnp.maximum(y0 + b0_ref[...], 0.0)
        o_ref[0, :, :, 0:Cp] = y0.reshape(tH, W, Cp)

        # --- branches 1..R: dilated 3x3 conv, 9 taps fused into one matmul -
        for i, r in enumerate(rates):
            taps = []
            for ky in range(3):
                oy = maxr + (ky - 1) * r
                for kx in range(3):
                    ox = maxr + (kx - 1) * r
                    taps.append(center if (ky == 1 and kx == 1)
                                else tap(oy, ox))
            xcat = jnp.concatenate(taps, axis=-1)          # (tH*W, 9*Cip) bf16
            y = jnp.dot(xcat, w3_ref[i], preferred_element_type=f32)
            y = jnp.maximum(y + b3_ref[i], 0.0)
            o_ref[0, :, :, (i + 1) * Cp:(i + 2) * Cp] = y.reshape(tH, W, Cp)

        # --- image-pool branch: 1x1 conv on the global mean, broadcast -----
        yp = jnp.dot(xm_ref[0], wp_ref[...], preferred_element_type=f32)
        yp = jnp.maximum(yp + bp_ref[...], 0.0)            # (1, Cp)
        o_ref[0, :, :, (R + 1) * Cp:(R + 2) * Cp] = jnp.broadcast_to(
            yp.reshape(1, 1, Cp), (tH, W, Cp))

    return kernel


def aspp_cat_pallas(x_nhwc, w0, b0, w3, b3, wp, bp, rates, *, tile_h=8):
    """x_nhwc: (N, H, W, Cin) f32. Returns (N, H, W, (len(rates)+2)*Cout) f32.

    w0/wp: (Cin, Cout), b0/bp: (Cout,), w3: (R, 3, 3, Cin, Cout), b3: (R, Cout)
    (all BN-folded).
    """
    N, H, W, Cin = x_nhwc.shape
    Cout = w0.shape[-1]
    R = len(rates)
    B = R + 2
    maxr = max(rates)

    Cp = _round_up(Cout, 128)      # lane-dense output channels per branch
    Cip = _round_up(Cin, 128)      # lane-dense input channels

    tH = tile_h if (tile_h > 0 and H % tile_h == 0) else H
    nH = H // tH

    f32, bf16 = jnp.float32, jnp.bfloat16

    # --- activations: bf16, channel-padded, spatially zero-padded by maxr ---
    xb = x_nhwc.astype(bf16)
    xm = jnp.mean(xb.astype(f32), axis=(1, 2))                       # (N, Cin)
    xm = jnp.pad(xm, ((0, 0), (0, Cip - Cin))).astype(bf16)[:, None, :]
    xp = jnp.pad(xb, ((0, 0), (maxr, maxr), (maxr, maxr), (0, Cip - Cin)))
    Hp, Wp = H + 2 * maxr, W + 2 * maxr

    # --- weights: bf16 padded to (Cip, Cp); biases f32 padded to Cp ---------
    w0p = jnp.pad(w0, ((0, Cip - Cin), (0, Cp - Cout))).astype(bf16)
    wpp = jnp.pad(wp, ((0, Cip - Cin), (0, Cp - Cout))).astype(bf16)
    w3p = jnp.pad(w3, ((0, 0), (0, 0), (0, 0),
                       (0, Cip - Cin), (0, Cp - Cout)))
    w3p = w3p.reshape(R, 9 * Cip, Cp).astype(bf16)
    b0p = jnp.pad(b0.reshape(1, Cout), ((0, 0), (0, Cp - Cout))).astype(f32)
    bpp = jnp.pad(bp.reshape(1, Cout), ((0, 0), (0, Cp - Cout))).astype(f32)
    b3p = jnp.pad(b3.reshape(R, 1, Cout),
                  ((0, 0), (0, 0), (0, Cp - Cout))).astype(f32)

    kernel = _make_aspp_kernel(W, tuple(rates), maxr, tH, Cip, Cp)

    out = pl.pallas_call(
        kernel,
        out_shape=jax.ShapeDtypeStruct((N, H, W, B * Cp), f32),
        grid=(N, nH),
        in_specs=[
            pl.BlockSpec((1, Hp, Wp, Cip), lambda n, h: (n, 0, 0, 0)),  # image
            pl.BlockSpec((1, 1, Cip),      lambda n, h: (n, 0, 0)),     # pooled
            pl.BlockSpec((Cip, Cp),        lambda n, h: (0, 0)),        # w0
            pl.BlockSpec((1, Cp),          lambda n, h: (0, 0)),        # b0
            pl.BlockSpec((R, 9 * Cip, Cp), lambda n, h: (0, 0, 0)),     # w3
            pl.BlockSpec((R, 1, Cp),       lambda n, h: (0, 0, 0)),     # b3
            pl.BlockSpec((Cip, Cp),        lambda n, h: (0, 0)),        # wp
            pl.BlockSpec((1, Cp),          lambda n, h: (0, 0)),        # bp
        ],
        out_specs=pl.BlockSpec((1, tH, W, B * Cp), lambda n, h: (n, h, 0, 0)),
        compiler_params=pltpu.CompilerParams(
            dimension_semantics=("parallel", "parallel"),
            vmem_limit_bytes=32 * 1024 * 1024),
    )(xp, xm, w0p, b0p, w3p, b3p, wpp, bpp)

    # strip lane padding; restore PyTorch concat channel order [c0, c1.., pool]
    out = out.reshape(N, H, W, B, Cp)[..., :Cout].reshape(N, H, W, B * Cout)
    return out


# ----------------------- parameter construction (glue) ----------------------

def _conv_bn_folded(key, c_in, c_out, ksize):
    """Deterministic Conv2d(bias=False) + BatchNorm2d(eval) folded to (W, b)."""
    k1, k2, k3, k4, k5 = jax.random.split(key, 5)
    w = 0.1 * jax.random.normal(k1, (ksize, ksize, c_in, c_out), jnp.float32)
    gamma = 1.0 + 0.1 * jax.random.normal(k2, (c_out,), jnp.float32)
    beta = 0.1 * jax.random.normal(k3, (c_out,), jnp.float32)
    mean = 0.1 * jax.random.normal(k4, (c_out,), jnp.float32)
    var = jnp.abs(jax.random.normal(k5, (c_out,), jnp.float32)) + 0.5
    eps = 1e-5
    scale = gamma / jnp.sqrt(var + eps)
    return w * scale, beta - mean * scale


# --------------------------- pure-JAX reference ------------------------------

def aspp_cat_ref(x, w0, b0, w3, b3, wp, bp, rates):
    """Reference mirroring the kernel's bf16 quantization of x / weights."""
    f32 = jnp.float32
    hp = jax.lax.Precision.HIGHEST
    dn = ("NHWC", "HWIO", "NHWC")
    Cin, Cout = w0.shape
    xq = x.astype(jnp.bfloat16).astype(f32)
    outs = []

    w0q = w0.astype(jnp.bfloat16).astype(f32)
    y0 = jax.lax.conv_general_dilated(
        xq, w0q.reshape(1, 1, Cin, Cout), (1, 1), "VALID",
        dimension_numbers=dn, precision=hp)
    outs.append(jnp.maximum(y0 + b0.reshape(1, 1, 1, -1), 0.0))

    for i, r in enumerate(rates):
        wq = w3[i].astype(jnp.bfloat16).astype(f32)
        y = jax.lax.conv_general_dilated(
            xq, wq, (1, 1), [(r, r), (r, r)], rhs_dilation=(r, r),
            dimension_numbers=dn, precision=hp)
        outs.append(jnp.maximum(y + b3[i].reshape(1, 1, 1, -1), 0.0))

    xm = jnp.mean(xq, axis=(1, 2))                                   # (N, Cin)
    xmq = xm.astype(jnp.bfloat16).astype(f32)
    wpq = wp.astype(jnp.bfloat16).astype(f32)
    yp = jnp.maximum(jnp.dot(xmq, wpq, precision=hp) + bp.reshape(1, -1), 0.0)
    outs.append(jnp.broadcast_to(yp[:, None, None, :], x.shape[:3] + (Cout,)))
    return jnp.concatenate(outs, axis=-1)


if __name__ == "__main__":
    N, Cin, Cout, H, W = 2, 8, 8, 16, 16
    rates = (1, 2, 3)

    root = jax.random.PRNGKey(0)
    kx, k0, kr1, kr2, kr3, kp = jax.random.split(root, 6)
    x = jax.random.normal(kx, (N, H, W, Cin), jnp.float32)

    # c0: 1x1 conv + BN + ReLU
    w0_hwio, b0 = _conv_bn_folded(k0, Cin, Cout, 1)
    w0 = w0_hwio.reshape(Cin, Cout)

    # c1..c3: 3x3 dilated conv + BN + ReLU
    ws, bs = [], []
    for kk in (kr1, kr2, kr3):
        w, b = _conv_bn_folded(kk, Cin, Cout, 3)
        ws.append(w)
        bs.append(b)
    w3 = jnp.stack(ws)            # (R, 3, 3, Cin, Cout)
    b3 = jnp.stack(bs)            # (R, Cout)

    # imagepool: 1x1 conv + BN + ReLU on the global-averaged feature
    wp_hwio, bp = _conv_bn_folded(kp, Cin, Cout, 1)
    wp = wp_hwio.reshape(Cin, Cout)

    out = aspp_cat_pallas(x, w0, b0, w3, b3, wp, bp, rates)
    out = jax.block_until_ready(out)

    ref = aspp_cat_ref(x, w0, b0, w3, b3, wp, bp, rates)
    assert out.shape == (N, H, W, (len(rates) + 2) * Cout), out.shape
    err = float(jnp.max(jnp.abs(out - ref)))
    assert err < 2e-3, err
    print("KERNEL_OK")
</pallas_src>

<mosaic_0001>
module attributes {stable_mosaic.version = 11 : i64} {
  func.func @kernel(%arg0: i32, %arg1: i32, %arg2: memref<1x22x22x128xbf16, #tpu.memory_space<vmem>>, %arg3: memref<1x1x128xbf16, #tpu.memory_space<vmem>>, %arg4: memref<128x128xbf16, #tpu.memory_space<vmem>>, %arg5: memref<1x128xf32, #tpu.memory_space<vmem>>, %arg6: memref<3x1152x128xbf16, #tpu.memory_space<vmem>>, %arg7: memref<3x1x128xf32, #tpu.memory_space<vmem>>, %arg8: memref<128x128xbf16, #tpu.memory_space<vmem>>, %arg9: memref<1x128xf32, #tpu.memory_space<vmem>>, %arg10: memref<1x8x16x640xf32, #tpu.memory_space<vmem>>) attributes {dimension_semantics = [#tpu.dimension_semantics<parallel>, #tpu.dimension_semantics<parallel>], iteration_bounds = array<i64: 2, 2>, scalar_prefetch = 0 : i64, scratch_operands = 0 : i64, tpu.core_type = #tpu.core_type<tc>, window_params = [{transform_indices = @transform_0, window_bounds = array<i64: 1, 22, 22, 128>}, {transform_indices = @transform_1, window_bounds = array<i64: 1, 1, 128>}, {pipeline_mode = #tpu.pipeline_mode<synchronous>, transform_indices = @transform_2, window_bounds = array<i64: 128, 128>}, {pipeline_mode = #tpu.pipeline_mode<synchronous>, transform_indices = @transform_3, window_bounds = array<i64: 1, 128>}, {pipeline_mode = #tpu.pipeline_mode<synchronous>, transform_indices = @transform_4, window_bounds = array<i64: 3, 1152, 128>}, {pipeline_mode = #tpu.pipeline_mode<synchronous>, transform_indices = @transform_5, window_bounds = array<i64: 3, 1, 128>}, {pipeline_mode = #tpu.pipeline_mode<synchronous>, transform_indices = @transform_6, window_bounds = array<i64: 128, 128>}, {pipeline_mode = #tpu.pipeline_mode<synchronous>, transform_indices = @transform_7, window_bounds = array<i64: 1, 128>}, {transform_indices = @transform_8, window_bounds = array<i64: 1, 8, 16, 640>}]} {
    %c8_i32 = arith.constant 8 : i32
    %0 = arith.muli %arg1, %c8_i32 : i32
    %1 = tpu.assume_multiple %0, 8 : i32
    %c0_i32 = arith.constant 0 : i32
    %2 = arith.addi %1, %c0_i32 : i32
    %c0 = arith.constant 0 : index
    %3 = arith.index_cast %2 : i32 to index
    %c0_0 = arith.constant 0 : index
    %c0_1 = arith.constant 0 : index
    %4 = vector.load %arg2[%c0, %3, %c0_0, %c0_1] : memref<1x22x22x128xbf16, #tpu.memory_space<vmem>>, vector<1x8x22x128xbf16>
    %5 = vector.shape_cast %4 : vector<1x8x22x128xbf16> to vector<8x22x128xbf16>
    %c1_i32 = arith.constant 1 : i32
    %6 = arith.addi %1, %c1_i32 : i32
    %c0_2 = arith.constant 0 : index
    %7 = arith.index_cast %6 : i32 to index
    %c0_3 = arith.constant 0 : index
    %c0_4 = arith.constant 0 : index
    %8 = vector.load %arg2[%c0_2, %7, %c0_3, %c0_4] : memref<1x22x22x128xbf16, #tpu.memory_space<vmem>>, vector<1x8x22x128xbf16>
    %9 = vector.shape_cast %8 : vector<1x8x22x128xbf16> to vector<8x22x128xbf16>
    %c2_i32 = arith.constant 2 : i32
    %10 = arith.addi %1, %c2_i32 : i32
    %c0_5 = arith.constant 0 : index
    %11 = arith.index_cast %10 : i32 to index
    %c0_6 = arith.constant 0 : index
    %c0_7 = arith.constant 0 : index
    %12 = vector.load %arg2[%c0_5, %11, %c0_6, %c0_7] : memref<1x22x22x128xbf16, #tpu.memory_space<vmem>>, vector<1x8x22x128xbf16>
    %13 = vector.shape_cast %12 : vector<1x8x22x128xbf16> to vector<8x22x128xbf16>
    %c3_i32 = arith.constant 3 : i32
    %14 = arith.addi %1, %c3_i32 : i32
    %c0_8 = arith.constant 0 : index
    %15 = arith.index_cast %14 : i32 to index
    %c0_9 = arith.constant 0 : index
    %c0_10 = arith.constant 0 : index
    %16 = vector.load %arg2[%c0_8, %15, %c0_9, %c0_10] : memref<1x22x22x128xbf16, #tpu.memory_space<vmem>>, vector<1x8x22x128xbf16>
    %17 = vector.shape_cast %16 : vector<1x8x22x128xbf16> to vector<8x22x128xbf16>
    %c4_i32 = arith.constant 4 : i32
    %18 = arith.addi %1, %c4_i32 : i32
    %c0_11 = arith.constant 0 : index
    %19 = arith.index_cast %18 : i32 to index
    %c0_12 = arith.constant 0 : index
    %c0_13 = arith.constant 0 : index
    %20 = vector.load %arg2[%c0_11, %19, %c0_12, %c0_13] : memref<1x22x22x128xbf16, #tpu.memory_space<vmem>>, vector<1x8x22x128xbf16>
    %21 = vector.shape_cast %20 : vector<1x8x22x128xbf16> to vector<8x22x128xbf16>
    %c5_i32 = arith.constant 5 : i32
    %22 = arith.addi %1, %c5_i32 : i32
    %c0_14 = arith.constant 0 : index
    %23 = arith.index_cast %22 : i32 to index
    %c0_15 = arith.constant 0 : index
    %c0_16 = arith.constant 0 : index
    %24 = vector.load %arg2[%c0_14, %23, %c0_15, %c0_16] : memref<1x22x22x128xbf16, #tpu.memory_space<vmem>>, vector<1x8x22x128xbf16>
    %25 = vector.shape_cast %24 : vector<1x8x22x128xbf16> to vector<8x22x128xbf16>
    %c6_i32 = arith.constant 6 : i32
    %26 = arith.addi %1, %c6_i32 : i32
    %c0_17 = arith.constant 0 : index
    %27 = arith.index_cast %26 : i32 to index
    %c0_18 = arith.constant 0 : index
    %c0_19 = arith.constant 0 : index
    %28 = vector.load %arg2[%c0_17, %27, %c0_18, %c0_19] : memref<1x22x22x128xbf16, #tpu.memory_space<vmem>>, vector<1x8x22x128xbf16>
    %29 = vector.shape_cast %28 : vector<1x8x22x128xbf16> to vector<8x22x128xbf16>
    %30 = vector.extract_strided_slice %17 {offsets = [0, 3, 0], sizes = [8, 16, 128], strides = [1, 1, 1]} : vector<8x22x128xbf16> to vector<8x16x128xbf16>
    %31 = vector.shape_cast %30 : vector<8x16x128xbf16> to vector<128x128xbf16>
    %c0_20 = arith.constant 0 : index
    %c0_21 = arith.constant 0 : index
    %32 = vector.load %arg4[%c0_20, %c0_21] : memref<128x128xbf16, #tpu.memory_space<vmem>>, vector<128x128xbf16>
    %cst = arith.constant dense<0.000000e+00> : vector<128x128xf32>
    %33 = tpu.matmul %31, %32, %cst {dimension_numbers = #tpu.dot_dimension_numbers<[1], [0], [0], [1], [0, 0, 1, 1], [], []>} : vector<128x128xbf16>, vector<128x128xbf16>, vector<128x128xf32> -> vector<128x128xf32>
    %c0_22 = arith.constant 0 : index
    %c0_23 = arith.constant 0 : index
    %34 = vector.load %arg5[%c0_22, %c0_23] : memref<1x128xf32, #tpu.memory_space<vmem>>, vector<1x128xf32>
    %35 = vector.broadcast %34 : vector<1x128xf32> to vector<128x128xf32>
    %36 = arith.addf %33, %35 : vector<128x128xf32>
    %cst_24 = arith.constant 0.000000e+00 : f32
    %37 = vector.broadcast %cst_24 : f32 to vector<128x128xf32>
    %38 = arith.maximumf %36, %37 : vector<128x128xf32>
    %39 = vector.shape_cast %38 : vector<128x128xf32> to vector<8x16x128xf32>
    %c0_25 = arith.constant 0 : index
    %c0_26 = arith.constant 0 : index
    %c0_27 = arith.constant 0 : index
    %c0_28 = arith.constant 0 : index
    %40 = vector.load %arg10[%c0_25, %c0_26, %c0_27, %c0_28] : memref<1x8x16x640xf32, #tpu.memory_space<vmem>>, vector<1x8x16x128xf32>
    %41 = vector.shape_cast %40 : vector<1x8x16x128xf32> to vector<8x16x128xf32>
    %42 = vector.shape_cast %39 : vector<8x16x128xf32> to vector<1x8x16x128xf32>
    tpu.vector_store %arg10[%c0_25, %c0_26, %c0_27, %c0_28], %42 {strides = array<i32>} : memref<1x8x16x640xf32, #tpu.memory_space<vmem>>, vector<1x8x16x128xf32>,
    %43 = vector.extract_strided_slice %13 {offsets = [0, 2, 0], sizes = [8, 16, 128], strides = [1, 1, 1]} : vector<8x22x128xbf16> to vector<8x16x128xbf16>
    %44 = vector.shape_cast %43 : vector<8x16x128xbf16> to vector<128x128xbf16>
    %45 = vector.extract_strided_slice %13 {offsets = [0, 3, 0], sizes = [8, 16, 128], strides = [1, 1, 1]} : vector<8x22x128xbf16> to vector<8x16x128xbf16>
    %46 = vector.shape_cast %45 : vector<8x16x128xbf16> to vector<128x128xbf16>
    %47 = vector.extract_strided_slice %13 {offsets = [0, 4, 0], sizes = [8, 16, 128], strides = [1, 1, 1]} : vector<8x22x128xbf16> to vector<8x16x128xbf16>
    %48 = vector.shape_cast %47 : vector<8x16x128xbf16> to vector<128x128xbf16>
    %49 = vector.extract_strided_slice %17 {offsets = [0, 2, 0], sizes = [8, 16, 128], strides = [1, 1, 1]} : vector<8x22x128xbf16> to vector<8x16x128xbf16>
    %50 = vector.shape_cast %49 : vector<8x16x128xbf16> to vector<128x128xbf16>
    %51 = vector.extract_strided_slice %17 {offsets = [0, 4, 0], sizes = [8, 16, 128], strides = [1, 1, 1]} : vector<8x22x128xbf16> to vector<8x16x128xbf16>
    %52 = vector.shape_cast %51 : vector<8x16x128xbf16> to vector<128x128xbf16>
    %53 = vector.extract_strided_slice %21 {offsets = [0, 2, 0], sizes = [8, 16, 128], strides = [1, 1, 1]} : vector<8x22x128xbf16> to vector<8x16x128xbf16>
    %54 = vector.shape_cast %53 : vector<8x16x128xbf16> to vector<128x128xbf16>
    %55 = vector.extract_strided_slice %21 {offsets = [0, 3, 0], sizes = [8, 16, 128], strides = [1, 1, 1]} : vector<8x22x128xbf16> to vector<8x16x128xbf16>
    %56 = vector.shape_cast %55 : vector<8x16x128xbf16> to vector<128x128xbf16>
    %57 = vector.extract_strided_slice %21 {offsets = [0, 4, 0], sizes = [8, 16, 128], strides = [1, 1, 1]} : vector<8x22x128xbf16> to vector<8x16x128xbf16>
    %58 = vector.shape_cast %57 : vector<8x16x128xbf16> to vector<128x128xbf16>
    %59 = tpu.concatenate %44, %46, %48, %50, %31, %52, %54, %56, %58 in 1 : vector<128x128xbf16>, vector<128x128xbf16>, vector<128x128xbf16>, vector<128x128xbf16>, vector<128x128xbf16>, vector<128x128xbf16>, vector<128x128xbf16>, vector<128x128xbf16>, vector<128x128xbf16> -> vector<128x1152xbf16>
    %c0_29 = arith.constant 0 : index
    %c0_30 = arith.constant 0 : index
    %c0_31 = arith.constant 0 : index
    %60 = vector.load %arg6[%c0_29, %c0_30, %c0_31] : memref<3x1152x128xbf16, #tpu.memory_space<vmem>>, vector<1x1152x128xbf16>
    %61 = vector.shape_cast %60 : vector<1x1152x128xbf16> to vector<1152x128xbf16>
    %cst_32 = arith.constant dense<0.000000e+00> : vector<128x128xf32>
    %62 = tpu.matmul %59, %61, %cst_32 {dimension_numbers = #tpu.dot_dimension_numbers<[1], [0], [0], [1], [0, 0, 1, 1], [], []>} : vector<128x1152xbf16>, vector<1152x128xbf16>, vector<128x128xf32> -> vector<128x128xf32>
    %c0_33 = arith.constant 0 : index
    %c0_34 = arith.constant 0 : index
    %c0_35 = arith.constant 0 : index
    %63 = vector.load %arg7[%c0_33, %c0_34, %c0_35] : memref<3x1x128xf32, #tpu.memory_space<vmem>>, vector<1x1x128xf32>
    %64 = vector.shape_cast %63 : vector<1x1x128xf32> to vector<1x128xf32>
    %65 = vector.broadcast %64 : vector<1x128xf32> to vector<128x128xf32>
    %66 = arith.addf %62, %65 : vector<128x128xf32>
    %cst_36 = arith.constant 0.000000e+00 : f32
    %67 = vector.broadcast %cst_36 : f32 to vector<128x128xf32>
    %68 = arith.maximumf %66, %67 : vector<128x128xf32>
    %69 = vector.shape_cast %68 : vector<128x128xf32> to vector<8x16x128xf32>
    %c0_37 = arith.constant 0 : index
    %c0_38 = arith.constant 0 : index
    %c0_39 = arith.constant 0 : index
    %c128 = arith.constant 128 : index
    %70 = vector.load %arg10[%c0_37, %c0_38, %c0_39, %c128] : memref<1x8x16x640xf32, #tpu.memory_space<vmem>>, vector<1x8x16x128xf32>
    %71 = vector.shape_cast %70 : vector<1x8x16x128xf32> to vector<8x16x128xf32>
    %72 = vector.shape_cast %69 : vector<8x16x128xf32> to vector<1x8x16x128xf32>
    tpu.vector_store %arg10[%c0_37, %c0_38, %c0_39, %c128], %72 {strides = array<i32>} : memref<1x8x16x640xf32, #tpu.memory_space<vmem>>, vector<1x8x16x128xf32>,
    %73 = vector.extract_strided_slice %9 {offsets = [0, 1, 0], sizes = [8, 16, 128], strides = [1, 1, 1]} : vector<8x22x128xbf16> to vector<8x16x128xbf16>
    %74 = vector.shape_cast %73 : vector<8x16x128xbf16> to vector<128x128xbf16>
    %75 = vector.extract_strided_slice %9 {offsets = [0, 3, 0], sizes = [8, 16, 128], strides = [1, 1, 1]} : vector<8x22x128xbf16> to vector<8x16x128xbf16>
    %76 = vector.shape_cast %75 : vector<8x16x128xbf16> to vector<128x128xbf16>
    %77 = vector.extract_strided_slice %9 {offsets = [0, 5, 0], sizes = [8, 16, 128], strides = [1, 1, 1]} : vector<8x22x128xbf16> to vector<8x16x128xbf16>
    %78 = vector.shape_cast %77 : vector<8x16x128xbf16> to vector<128x128xbf16>
    %79 = vector.extract_strided_slice %17 {offsets = [0, 1, 0], sizes = [8, 16, 128], strides = [1, 1, 1]} : vector<8x22x128xbf16> to vector<8x16x128xbf16>
    %80 = vector.shape_cast %79 : vector<8x16x128xbf16> to vector<128x128xbf16>
    %81 = vector.extract_strided_slice %17 {offsets = [0, 5, 0], sizes = [8, 16, 128], strides = [1, 1, 1]} : vector<8x22x128xbf16> to vector<8x16x128xbf16>
    %82 = vector.shape_cast %81 : vector<8x16x128xbf16> to vector<128x128xbf16>
    %83 = vector.extract_strided_slice %25 {offsets = [0, 1, 0], sizes = [8, 16, 128], strides = [1, 1, 1]} : vector<8x22x128xbf16> to vector<8x16x128xbf16>
    %84 = vector.shape_cast %83 : vector<8x16x128xbf16> to vector<128x128xbf16>
    %85 = vector.extract_strided_slice %25 {offsets = [0, 3, 0], sizes = [8, 16, 128], strides = [1, 1, 1]} : vector<8x22x128xbf16> to vector<8x16x128xbf16>
    %86 = vector.shape_cast %85 : vector<8x16x128xbf16> to vector<128x128xbf16>
    %87 = vector.extract_strided_slice %25 {offsets = [0, 5, 0], sizes = [8, 16, 128], strides = [1, 1, 1]} : vector<8x22x128xbf16> to vector<8x16x128xbf16>
    %88 = vector.shape_cast %87 : vector<8x16x128xbf16> to vector<128x128xbf16>
    %89 = tpu.concatenate %74, %76, %78, %80, %31, %82, %84, %86, %88 in 1 : vector<128x128xbf16>, vector<128x128xbf16>, vector<128x128xbf16>, vector<128x128xbf16>, vector<128x128xbf16>, vector<128x128xbf16>, vector<128x128xbf16>, vector<128x128xbf16>, vector<128x128xbf16> -> vector<128x1152xbf16>
    %c1 = arith.constant 1 : index
    %c0_40 = arith.constant 0 : index
    %c0_41 = arith.constant 0 : index
    %90 = vector.load %arg6[%c1, %c0_40, %c0_41] : memref<3x1152x128xbf16, #tpu.memory_space<vmem>>, vector<1x1152x128xbf16>
    %91 = vector.shape_cast %90 : vector<1x1152x128xbf16> to vector<1152x128xbf16>
    %cst_42 = arith.constant dense<0.000000e+00> : vector<128x128xf32>
    %92 = tpu.matmul %89, %91, %cst_42 {dimension_numbers = #tpu.dot_dimension_numbers<[1], [0], [0], [1], [0, 0, 1, 1], [], []>} : vector<128x1152xbf16>, vector<1152x128xbf16>, vector<128x128xf32> -> vector<128x128xf32>
    %c1_43 = arith.constant 1 : index
    %c0_44 = arith.constant 0 : index
    %c0_45 = arith.constant 0 : index
    %93 = vector.load %arg7[%c1_43, %c0_44, %c0_45] : memref<3x1x128xf32, #tpu.memory_space<vmem>>, vector<1x1x128xf32>
    %94 = vector.shape_cast %93 : vector<1x1x128xf32> to vector<1x128xf32>
    %95 = vector.broadcast %94 : vector<1x128xf32> to vector<128x128xf32>
    %96 = arith.addf %92, %95 : vector<128x128xf32>
    %cst_46 = arith.constant 0.000000e+00 : f32
    %97 = vector.broadcast %cst_46 : f32 to vector<128x128xf32>
    %98 = arith.maximumf %96, %97 : vector<128x128xf32>
    %99 = vector.shape_cast %98 : vector<128x128xf32> to vector<8x16x128xf32>
    %c0_47 = arith.constant 0 : index
    %c0_48 = arith.constant 0 : index
    %c0_49 = arith.constant 0 : index
    %c256 = arith.constant 256 : index
    %100 = vector.load %arg10[%c0_47, %c0_48, %c0_49, %c256] : memref<1x8x16x640xf32, #tpu.memory_space<vmem>>, vector<1x8x16x128xf32>
    %101 = vector.shape_cast %100 : vector<1x8x16x128xf32> to vector<8x16x128xf32>
    %102 = vector.shape_cast %99 : vector<8x16x128xf32> to vector<1x8x16x128xf32>
    tpu.vector_store %arg10[%c0_47, %c0_48, %c0_49, %c256], %102 {strides = array<i32>} : memref<1x8x16x640xf32, #tpu.memory_space<vmem>>, vector<1x8x16x128xf32>,
    %103 = vector.extract_strided_slice %5 {offsets = [0, 0, 0], sizes = [8, 16, 128], strides = [1, 1, 1]} : vector<8x22x128xbf16> to vector<8x16x128xbf16>
    %104 = vector.shape_cast %103 : vector<8x16x128xbf16> to vector<128x128xbf16>
    %105 = vector.extract_strided_slice %5 {offsets = [0, 3, 0], sizes = [8, 16, 128], strides = [1, 1, 1]} : vector<8x22x128xbf16> to vector<8x16x128xbf16>
    %106 = vector.shape_cast %105 : vector<8x16x128xbf16> to vector<128x128xbf16>
    %107 = vector.extract_strided_slice %5 {offsets = [0, 6, 0], sizes = [8, 16, 128], strides = [1, 1, 1]} : vector<8x22x128xbf16> to vector<8x16x128xbf16>
    %108 = vector.shape_cast %107 : vector<8x16x128xbf16> to vector<128x128xbf16>
    %109 = vector.extract_strided_slice %17 {offsets = [0, 0, 0], sizes = [8, 16, 128], strides = [1, 1, 1]} : vector<8x22x128xbf16> to vector<8x16x128xbf16>
    %110 = vector.shape_cast %109 : vector<8x16x128xbf16> to vector<128x128xbf16>
    %111 = vector.extract_strided_slice %17 {offsets = [0, 6, 0], sizes = [8, 16, 128], strides = [1, 1, 1]} : vector<8x22x128xbf16> to vector<8x16x128xbf16>
    %112 = vector.shape_cast %111 : vector<8x16x128xbf16> to vector<128x128xbf16>
    %113 = vector.extract_strided_slice %29 {offsets = [0, 0, 0], sizes = [8, 16, 128], strides = [1, 1, 1]} : vector<8x22x128xbf16> to vector<8x16x128xbf16>
    %114 = vector.shape_cast %113 : vector<8x16x128xbf16> to vector<128x128xbf16>
    %115 = vector.extract_strided_slice %29 {offsets = [0, 3, 0], sizes = [8, 16, 128], strides = [1, 1, 1]} : vector<8x22x128xbf16> to vector<8x16x128xbf16>
    %116 = vector.shape_cast %115 : vector<8x16x128xbf16> to vector<128x128xbf16>
    %117 = vector.extract_strided_slice %29 {offsets = [0, 6, 0], sizes = [8, 16, 128], strides = [1, 1, 1]} : vector<8x22x128xbf16> to vector<8x16x128xbf16>
    %118 = vector.shape_cast %117 : vector<8x16x128xbf16> to vector<128x128xbf16>
    %119 = tpu.concatenate %104, %106, %108, %110, %31, %112, %114, %116, %118 in 1 : vector<128x128xbf16>, vector<128x128xbf16>, vector<128x128xbf16>, vector<128x128xbf16>, vector<128x128xbf16>, vector<128x128xbf16>, vector<128x128xbf16>, vector<128x128xbf16>, vector<128x128xbf16> -> vector<128x1152xbf16>
    %c2 = arith.constant 2 : index
    %c0_50 = arith.constant 0 : index
    %c0_51 = arith.constant 0 : index
    %120 = vector.load %arg6[%c2, %c0_50, %c0_51] : memref<3x1152x128xbf16, #tpu.memory_space<vmem>>, vector<1x1152x128xbf16>
    %121 = vector.shape_cast %120 : vector<1x1152x128xbf16> to vector<1152x128xbf16>
    %cst_52 = arith.constant dense<0.000000e+00> : vector<128x128xf32>
    %122 = tpu.matmul %119, %121, %cst_52 {dimension_numbers = #tpu.dot_dimension_numbers<[1], [0], [0], [1], [0, 0, 1, 1], [], []>} : vector<128x1152xbf16>, vector<1152x128xbf16>, vector<128x128xf32> -> vector<128x128xf32>
    %c2_53 = arith.constant 2 : index
    %c0_54 = arith.constant 0 : index
    %c0_55 = arith.constant 0 : index
    %123 = vector.load %arg7[%c2_53, %c0_54, %c0_55] : memref<3x1x128xf32, #tpu.memory_space<vmem>>, vector<1x1x128xf32>
    %124 = vector.shape_cast %123 : vector<1x1x128xf32> to vector<1x128xf32>
    %125 = vector.broadcast %124 : vector<1x128xf32> to vector<128x128xf32>
    %126 = arith.addf %122, %125 : vector<128x128xf32>
    %cst_56 = arith.constant 0.000000e+00 : f32
    %127 = vector.broadcast %cst_56 : f32 to vector<128x128xf32>
    %128 = arith.maximumf %126, %127 : vector<128x128xf32>
    %129 = vector.shape_cast %128 : vector<128x128xf32> to vector<8x16x128xf32>
    %c0_57 = arith.constant 0 : index
    %c0_58 = arith.constant 0 : index
    %c0_59 = arith.constant 0 : index
    %c384 = arith.constant 384 : index
    %130 = vector.load %arg10[%c0_57, %c0_58, %c0_59, %c384] : memref<1x8x16x640xf32, #tpu.memory_space<vmem>>, vector<1x8x16x128xf32>
    %131 = vector.shape_cast %130 : vector<1x8x16x128xf32> to vector<8x16x128xf32>
    %132 = vector.shape_cast %129 : vector<8x16x128xf32> to vector<1x8x16x128xf32>
    tpu.vector_store %arg10[%c0_57, %c0_58, %c0_59, %c384], %132 {strides = array<i32>} : memref<1x8x16x640xf32, #tpu.memory_space<vmem>>, vector<1x8x16x128xf32>,
    %c0_60 = arith.constant 0 : index
    %c0_61 = arith.constant 0 : index
    %c0_62 = arith.constant 0 : index
    %133 = vector.load %arg3[%c0_60, %c0_61, %c0_62] : memref<1x1x128xbf16, #tpu.memory_space<vmem>>, vector<1x1x128xbf16>
    %134 = vector.shape_cast %133 : vector<1x1x128xbf16> to vector<1x128xbf16>
    %c0_63 = arith.constant 0 : index
    %c0_64 = arith.constant 0 : index
    %135 = vector.load %arg8[%c0_63, %c0_64] : memref<128x128xbf16, #tpu.memory_space<vmem>>, vector<128x128xbf16>
    %cst_65 = arith.constant dense<0.000000e+00> : vector<1x128xf32>
    %136 = tpu.matmul %134, %135, %cst_65 {dimension_numbers = #tpu.dot_dimension_numbers<[1], [0], [0], [1], [0, 0, 1, 1], [], []>} : vector<1x128xbf16>, vector<128x128xbf16>, vector<1x128xf32> -> vector<1x128xf32>
    %c0_66 = arith.constant 0 : index
    %c0_67 = arith.constant 0 : index
    %137 = vector.load %arg9[%c0_66, %c0_67] : memref<1x128xf32, #tpu.memory_space<vmem>>, vector<1x128xf32>
    %138 = arith.addf %136, %137 : vector<1x128xf32>
    %cst_68 = arith.constant 0.000000e+00 : f32
    %139 = vector.broadcast %cst_68 : f32 to vector<1x128xf32>
    %140 = arith.maximumf %138, %139 : vector<1x128xf32>
    %141 = vector.shape_cast %140 : vector<1x128xf32> to vector<1x1x128xf32>
    %142 = vector.shape_cast %141 : vector<1x1x128xf32> to vector<1x1x128xf32>
    %143 = vector.broadcast %142 : vector<1x1x128xf32> to vector<8x16x128xf32>
    %c0_69 = arith.constant 0 : index
    %c0_70 = arith.constant 0 : index
    %c0_71 = arith.constant 0 : index
    %c512 = arith.constant 512 : index
    %144 = vector.load %arg10[%c0_69, %c0_70, %c0_71, %c512] : memref<1x8x16x640xf32, #tpu.memory_space<vmem>>, vector<1x8x16x128xf32>
    %145 = vector.shape_cast %144 : vector<1x8x16x128xf32> to vector<8x16x128xf32>
    %146 = vector.shape_cast %143 : vector<8x16x128xf32> to vector<1x8x16x128xf32>
    tpu.vector_store %arg10[%c0_69, %c0_70, %c0_71, %c512], %146 {strides = array<i32>} : memref<1x8x16x640xf32, #tpu.memory_space<vmem>>, vector<1x8x16x128xf32>,
    return
  }
  func.func @transform_0(%arg0: i32, %arg1: i32) -> (i32, i32, i32, i32) {
    %c0_i32 = arith.constant 0 : i32
    %c0_i32_0 = arith.constant 0 : i32
    %c0_i32_1 = arith.constant 0 : i32
    %c0_i32_2 = arith.constant 0 : i32
    return %arg0, %c0_i32, %c0_i32_0, %c0_i32_1 : i32, i32, i32, i32
  }
  func.func @transform_1(%arg0: i32, %arg1: i32) -> (i32, i32, i32) {
    %c0_i32 = arith.constant 0 : i32
    %c0_i32_0 = arith.constant 0 : i32
    %c0_i32_1 = arith.constant 0 : i32
    return %arg0, %c0_i32, %c0_i32_0 : i32, i32, i32
  }
  func.func @transform_2(%arg0: i32, %arg1: i32) -> (i32, i32) {
    %c0_i32 = arith.constant 0 : i32
    %c0_i32_0 = arith.constant 0 : i32
    %c0_i32_1 = arith.constant 0 : i32
    return %c0_i32, %c0_i32_0 : i32, i32
  }
  func.func @transform_3(%arg0: i32, %arg1: i32) -> (i32, i32) {
    %c0_i32 = arith.constant 0 : i32
    %c0_i32_0 = arith.constant 0 : i32
    %c0_i32_1 = arith.constant 0 : i32
    return %c0_i32, %c0_i32_0 : i32, i32
  }
  func.func @transform_4(%arg0: i32, %arg1: i32) -> (i32, i32, i32) {
    %c0_i32 = arith.constant 0 : i32
    %c0_i32_0 = arith.constant 0 : i32
    %c0_i32_1 = arith.constant 0 : i32
    %c0_i32_2 = arith.constant 0 : i32
    return %c0_i32, %c0_i32_0, %c0_i32_1 : i32, i32, i32
  }
  func.func @transform_5(%arg0: i32, %arg1: i32) -> (i32, i32, i32) {
    %c0_i32 = arith.constant 0 : i32
    %c0_i32_0 = arith.constant 0 : i32
    %c0_i32_1 = arith.constant 0 : i32
    %c0_i32_2 = arith.constant 0 : i32
    return %c0_i32, %c0_i32_0, %c0_i32_1 : i32, i32, i32
  }
  func.func @transform_6(%arg0: i32, %arg1: i32) -> (i32, i32) {
    %c0_i32 = arith.constant 0 : i32
    %c0_i32_0 = arith.constant 0 : i32
    %c0_i32_1 = arith.constant 0 : i32
    return %c0_i32, %c0_i32_0 : i32, i32
  }
  func.func @transform_7(%arg0: i32, %arg1: i32) -> (i32, i32) {
    %c0_i32 = arith.constant 0 : i32
    %c0_i32_0 = arith.constant 0 : i32
    %c0_i32_1 = arith.constant 0 : i32
    return %c0_i32, %c0_i32_0 : i32, i32
  }
  func.func @transform_8(%arg0: i32, %arg1: i32) -> (i32, i32, i32, i32) {
    %c0_i32 = arith.constant 0 : i32
    %c0_i32_0 = arith.constant 0 : i32
    %c0_i32_1 = arith.constant 0 : i32
    return %arg0, %arg1, %c0_i32, %c0_i32_0 : i32, i32, i32, i32
  }
}

</mosaic_0001>

<llo_original>
// kernel: tpu_custom_call.1
$region0: #{tpu_custom_call.1}
  #allocation0 [shape = 'u32[]', space=smem, size = 0x4, offset = 0x4, fixed_abs, tag = 'smem constant byte address 0x4 - core index']
  #allocation1 [shape = 'u32[144,128]{1,0:T(1,128)}', space=vmem, size = 0x12000, scoped, tag = 'internal scratch']
  %s0 = inlined_call_operand.vmem [shape: bf16[2,22,22,128], index: 0, kind: input, shape index: {}]
  %s1 = inlined_call_operand.vmem [shape: bf16[2,1,128], index: 1, kind: input, shape index: {}]
  %s2 = inlined_call_operand.hbm [shape: bf16[128,128], index: 2, kind: input, shape index: {}]
  %s3 = inlined_call_operand.hbm [shape: f32[1,128], index: 3, kind: input, shape index: {}]
  %s4 = inlined_call_operand.hbm [shape: bf16[3,1152,128], index: 4, kind: input, shape index: {}]
  %s5 = inlined_call_operand.hbm [shape: f32[3,1,128], index: 5, kind: input, shape index: {}]
  %s6 = inlined_call_operand.hbm [shape: bf16[128,128], index: 6, kind: input, shape index: {}]
  %s7 = inlined_call_operand.hbm [shape: f32[1,128], index: 7, kind: input, shape index: {}]
  %s8 = inlined_call_operand.hbm [shape: f32[2,16,16,640], index: 8, kind: output, shape index: {}]
  %s9 = sld [smem:[#allocation0]]
  $region89: #{tpu_custom_call.1} parent=0
    _
  %s11 = ssub.s32 1, %s9
  %s12 = scalar_select 0, %s11, %s9
  $region1: #{tpu_custom_call.1} parent=0
    #allocation2 [shape = 'u8[32768]{0}', space=vmem, size = 0x8000, scoped, tag = 'input window, operand 2, single buffered']
    #allocation3 [shape = 's32[2]{0}', space=sflag, size = 0x8, scoped, tag = 'scoped memory for tpu_custom_call.1']
    #allocation4 [shape = 's32[2]{0}', space=sflag, size = 0x8, scoped, tag = 'scoped memory for tpu_custom_call.1']
    #allocation5 [shape = 'u8[512]{0}', space=vmem, size = 0x400, scoped, tag = 'input window, operand 3, single buffered']
    #allocation6 [shape = 's32[1]{0}', space=sflag, size = 0x4, scoped, tag = 'scoped memory for tpu_custom_call.1']
    #allocation7 [shape = 'u8[884736]{0}', space=vmem, size = 0xd8000, scoped, tag = 'input window, operand 4, single buffered']
    #allocation8 [shape = 'u8[1536]{0}', space=vmem, size = 0x800, scoped, tag = 'input window, operand 5, single buffered']
    #allocation9 [shape = 's32[1]{0}', space=sflag, size = 0x4, scoped, tag = 'scoped memory for tpu_custom_call.1']
    #allocation10 [shape = 'u8[32768]{0}', space=vmem, size = 0x8000, scoped, tag = 'input window, operand 6, single buffered']
    #allocation11 [shape = 'u8[512]{0}', space=vmem, size = 0x400, scoped, tag = 'input window, operand 7, single buffered']
    #allocation12 [shape = 's32[1]{0}', space=sflag, size = 0x4, scoped, tag = 'scoped memory for tpu_custom_call.1']
    #allocation13 [shape = 'u8[655360]{0}', space=vmem, size = 0xa0000, scoped, tag = 'output window, operand 0']
    %13 = vsyncpa [#allocation3], 0
    %14 = vsyncpa [#allocation6], 0
    %15 = vsyncpa [#allocation9], 0
    %16 = vsyncpa [#allocation12], 0
    %17 = vsyncpa [#allocation4], 0
    %s18 = scalar_lea.sflag [#allocation4], 1
    %19 = vsyncpa %s18, 0
    loop: start=0, step=1, limit=6
    $region2: #{tpu_custom_call.1} parent=1 // loop_pre_header
      _
    $region3: #{tpu_custom_call.1} parent=1 // loop_header
      %s21 = sphi 0, %s25
      %p22 = scmp.ge.s32.totalorder %s21, 6
      %s28 = sphi 0, %s40
      %s29 = sphi 0, %s36
      %s30 = sphi 0, %s28
      %s31 = sphi 0, %s29
      %s32 = sphi 0, %s30
      %s33 = sphi 0, %s31
      %s43 = sphi 0, %s45
      %s46 = sphi 0, %s43
      %s47 = sphi 0, %s46
      %s63 = sphi 0, %s47
      %s69 = sphi 0, %s71
      %s72 = sphi 0, %s69
      %s73 = sphi 0, %s72
      %s89 = sphi 0, %s73
      %s93 = sphi 0, %s93
      %s95 = sphi 0, %s93
      %s96 = sphi 0, %s95
      %s110 = sphi 0, %s96
      %s114 = sphi 0, %s114
      %s116 = sphi 0, %s114
      %s117 = sphi 0, %s116
      %s131 = sphi 0, %s117
      %s135 = sphi 0, %s135
      %s137 = sphi 0, %s135
      %s138 = sphi 0, %s137
      %s152 = sphi 0, %s138
      %s156 = sphi 0, %s156
      %s158 = sphi 0, %s156
      %s159 = sphi 0, %s158
      %s173 = sphi 0, %s159
      %s177 = sphi 0, %s177
      %s179 = sphi 0, %s177
      %s180 = sphi 0, %s179
      %s194 = sphi 0, %s180
      %s198 = sphi 0, %s198
      %s200 = sphi 0, %s198
      %s201 = sphi 0, %s200
      %s215 = sphi 0, %s201
      %s223 = sphi 0, %s225
      %s226 = sphi 0, %s223
      %s227 = sphi 0, %s226
      %s243 = sphi 0, %s227
    $region4: #{tpu_custom_call.1} parent=1 // loop_header_branch
      %24 = sbr.rel (%p22) target = $region8
    $region5: #{tpu_custom_call.1} parent=1 // loop_body
      %s26 = ssub.s32 %s21, 1
      %s27 = ssub.s32 %s21, 2
      %s34 = sadd.s32 1, %s29
      %p35 = scmp.ge.s32.totalorder %s34, 2
      %s36 = scalar_select %p35, 0, %s34
      %s37 = sadd.s32 1, %s28
      %s38 = scalar_select %p35, %s37, %s28
      %p39 = scmp.ge.s32.totalorder %s38, 2
      %s40 = scalar_select %p39, 0, %s38
      %s41 = ssub.s32 %s28, %s40
      %p42 = scmp.eq.s32.totalorder %s41, 0
      %s44 = sadd.s32 %s43, 1
      %s45 = scalar_select %p42, %s43, %s44
      %p48 = pneg %p42
      %p49 = scmp.eq.s32.totalorder %s21, 3
      %p50 = por %p48, %p49
      %p51 = scmp.ne.s32.totalorder %s43, %s46
      %p52 = scmp.eq.s32.totalorder %s21, 0
      %p53 = por %p51, %p52
      %p54 = scmp.ne.s32.totalorder %s43, %s46
      %p55 = scmp.eq.s32.totalorder %s26, 3
      %p56 = por %p54, %p55
      %p57 = scmp.ne.s32.totalorder %s46, %s47
      %p58 = scmp.eq.s32.totalorder %s26, 0
      %p59 = por %p57, %p58
      %p60 = scmp.ne.s32.totalorder %s46, %s47
      %p61 = scmp.eq.s32.totalorder %s27, 3
      %p62 = por %p60, %p61
      %p64 = scmp.ne.s32.totalorder %s47, %s63
      %p65 = scmp.eq.s32.totalorder %s27, 0
      %p66 = por %p64, %p65
      %s67 = ssub.s32 %s28, %s40
      %p68 = scmp.eq.s32.totalorder %s67, 0
      %s70 = sadd.s32 %s69, 1
      %s71 = scalar_select %p68, %s69, %s70
      %p74 = pneg %p68
      %p75 = scmp.eq.s32.totalorder %s21, 3
      %p76 = por %p74, %p75
      %p77 = scmp.ne.s32.totalorder %s69, %s72
      %p78 = scmp.eq.s32.totalorder %s21, 0
      %p79 = por %p77, %p78
      %p80 = scmp.ne.s32.totalorder %s69, %s72
      %p81 = scmp.eq.s32.totalorder %s26, 3
      %p82 = por %p80, %p81
      %p83 = scmp.ne.s32.totalorder %s72, %s73
      %p84 = scmp.eq.s32.totalorder %s26, 0
      %p85 = por %p83, %p84
      %p86 = scmp.ne.s32.totalorder %s72, %s73
      %p87 = scmp.eq.s32.totalorder %s27, 3
      %p88 = por %p86, %p87
      %p90 = scmp.ne.s32.totalorder %s73, %s89
      %p91 = scmp.eq.s32.totalorder %s27, 0
      %p92 = por %p90, %p91
      %s94 = sadd.s32 %s93, 1
      %p97 = scmp.eq.s32.totalorder %s21, 3
      %p98 = scmp.ne.s32.totalorder %s93, %s95
      %p99 = scmp.eq.s32.totalorder %s21, 0
      %p100 = por %p98, %p99
      %p101 = scmp.ne.s32.totalorder %s93, %s95
      %p102 = scmp.eq.s32.totalorder %s26, 3
      %p103 = por %p101, %p102
      %p104 = scmp.ne.s32.totalorder %s95, %s96
      %p105 = scmp.eq.s32.totalorder %s26, 0
      %p106 = por %p104, %p105
      %p107 = scmp.ne.s32.totalorder %s95, %s96
      %p108 = scmp.eq.s32.totalorder %s27, 3
      %p109 = por %p107, %p108
      %p111 = scmp.ne.s32.totalorder %s96, %s110
      %p112 = scmp.eq.s32.totalorder %s27, 0
      %p113 = por %p111, %p112
      %s115 = sadd.s32 %s114, 1
      %p118 = scmp.eq.s32.totalorder %s21, 3
      %p119 = scmp.ne.s32.totalorder %s114, %s116
      %p120 = scmp.eq.s32.totalorder %s21, 0
      %p121 = por %p119, %p120
      %p122 = scmp.ne.s32.totalorder %s114, %s116
      %p123 = scmp.eq.s32.totalorder %s26, 3
      %p124 = por %p122, %p123
      %p125 = scmp.ne.s32.totalorder %s116, %s117
      %p126 = scmp.eq.s32.totalorder %s26, 0
      %p127 = por %p125, %p126
      %p128 = scmp.ne.s32.totalorder %s116, %s117
      %p129 = scmp.eq.s32.totalorder %s27, 3
      %p130 = por %p128, %p129
      %p132 = scmp.ne.s32.totalorder %s117, %s131
      %p133 = scmp.eq.s32.totalorder %s27, 0
      %p134 = por %p132, %p133
      %s136 = sadd.s32 %s135, 1
      %p139 = scmp.eq.s32.totalorder %s21, 3
      %p140 = scmp.ne.s32.totalorder %s135, %s137
      %p141 = scmp.eq.s32.totalorder %s21, 0
      %p142 = por %p140, %p141
      %p143 = scmp.ne.s32.totalorder %s135, %s137
      %p144 = scmp.eq.s32.totalorder %s26, 3
      %p145 = por %p143, %p144
      %p146 = scmp.ne.s32.totalorder %s137, %s138
      %p147 = scmp.eq.s32.totalorder %s26, 0
      %p148 = por %p146, %p147
      %p149 = scmp.ne.s32.totalorder %s137, %s138
      %p150 = scmp.eq.s32.totalorder %s27, 3
      %p151 = por %p149, %p150
      %p153 = scmp.ne.s32.totalorder %s138, %s152
      %p154 = scmp.eq.s32.totalorder %s27, 0
      %p155 = por %p153, %p154
      %s157 = sadd.s32 %s156, 1
      %p160 = scmp.eq.s32.totalorder %s21, 3
      %p161 = scmp.ne.s32.totalorder %s156, %s158
      %p162 = scmp.eq.s32.totalorder %s21, 0
      %p163 = por %p161, %p162
      %p164 = scmp.ne.s32.totalorder %s156, %s158
      %p165 = scmp.eq.s32.totalorder %s26, 3
      %p166 = por %p164, %p165
      %p167 = scmp.ne.s32.totalorder %s158, %s159
      %p168 = scmp.eq.s32.totalorder %s26, 0
      %p169 = por %p167, %p168
      %p170 = scmp.ne.s32.totalorder %s158, %s159
      %p171 = scmp.eq.s32.totalorder %s27, 3
      %p172 = por %p170, %p171
      %p174 = scmp.ne.s32.totalorder %s159, %s173
      %p175 = scmp.eq.s32.totalorder %s27, 0
      %p176 = por %p174, %p175
      %s178 = sadd.s32 %s177, 1
      %p181 = scmp.eq.s32.totalorder %s21, 3
      %p182 = scmp.ne.s32.totalorder %s177, %s179
      %p183 = scmp.eq.s32.totalorder %s21, 0
      %p184 = por %p182, %p183
      %p185 = scmp.ne.s32.totalorder %s177, %s179
      %p186 = scmp.eq.s32.totalorder %s26, 3
      %p187 = por %p185, %p186
      %p188 = scmp.ne.s32.totalorder %s179, %s180
      %p189 = scmp.eq.s32.totalorder %s26, 0
      %p190 = por %p188, %p189
      %p191 = scmp.ne.s32.totalorder %s179, %s180
      %p192 = scmp.eq.s32.totalorder %s27, 3
      %p193 = por %p191, %p192
      %p195 = scmp.ne.s32.totalorder %s180, %s194
      %p196 = scmp.eq.s32.totalorder %s27, 0
      %p197 = por %p195, %p196
      %s199 = sadd.s32 %s198, 1
      %p202 = scmp.eq.s32.totalorder %s21, 3
      %p203 = scmp.ne.s32.totalorder %s198, %s200
      %p204 = scmp.eq.s32.totalorder %s21, 0
      %p205 = por %p203, %p204
      %p206 = scmp.ne.s32.totalorder %s198, %s200
      %p207 = scmp.eq.s32.totalorder %s26, 3
      %p208 = por %p206, %p207
      %p209 = scmp.ne.s32.totalorder %s200, %s201
      %p210 = scmp.eq.s32.totalorder %s26, 0
      %p211 = por %p209, %p210
      %p212 = scmp.ne.s32.totalorder %s200, %s201
      %p213 = scmp.eq.s32.totalorder %s27, 3
      %p214 = por %p212, %p213
      %p216 = scmp.ne.s32.totalorder %s201, %s215
      %p217 = scmp.eq.s32.totalorder %s27, 0
      %p218 = por %p216, %p217
      %s219 = ssub.s32 %s28, %s40
      %s220 = ssub.s32 %s29, %s36
      %s221 = sor.u32 %s219, %s220
      %p222 = scmp.eq.s32.totalorder %s221, 0
      %s224 = sadd.s32 %s223, 1
      %s225 = scalar_select %p222, %s223, %s224
      %p228 = pneg %p222
      %p229 = scmp.eq.s32.totalorder %s21, 3
      %p230 = por %p228, %p229
      %p231 = scmp.ne.s32.totalorder %s223, %s226
      %p232 = scmp.eq.s32.totalorder %s21, 0
      %p233 = por %p231, %p232
      %p234 = scmp.ne.s32.totalorder %s223, %s226
      %p235 = scmp.eq.s32.totalorder %s26, 3
      %p236 = por %p234, %p235
      %p237 = scmp.ne.s32.totalorder %s226, %s227
      %p238 = scmp.eq.s32.totalorder %s26, 0
      %p239 = por %p237, %p238
      %p240 = scmp.ne.s32.totalorder %s226, %s227
      %p241 = scmp.eq.s32.totalorder %s27, 3
      %p242 = por %p240, %p241
      %p244 = scmp.ne.s32.totalorder %s227, %s243
      %p245 = scmp.eq.s32.totalorder %s27, 0
      %p246 = por %p244, %p245
      %p247 = scmp.le.s32.totalorder 1, %s21
      %p248 = scmp.lt.s32.totalorder %s21, 5
      %p249 = pnand %p247, %p248
      %p250 = pneg %p249
      // Predicated region
      $region9: #{tpu_custom_call.1} parent=5 // pred_check
        _
      $region10: #{tpu_custom_call.1} parent=5 // pred_check_branch
        %252 = sbr.rel (%p249) target = $region12
      $region11: #{tpu_custom_call.1} parent=5 // pred_region
        %s253 = ssub.s32 %s21, 1
        // Predicated region
        $region13: #{tpu_custom_call.1} parent=11 // pred_check
          %p254 = pneg %p106
        $region14: #{tpu_custom_call.1} parent=11 // pred_check_branch
          %256 = sbr.rel (%p254) target = $region16
        $region15: #{tpu_custom_call.1} parent=11 // pred_region
          %s258 = ssub.s32 1024, 1024
          %259 = vsyncadd [#allocation3], %s258
          %s260 = sshll.u32 [#allocation2], 4
          %s261 = int_to_ptr.vmem [resolvable:$true] %s260
          %266 = dma.hbm_to_vmem [thread:$0]  %s2, 1024, %s261, [#allocation3], 64, 64, 4
        $region16: #{tpu_custom_call.1} parent=11 // pred_fallthru
          _
        // Predicated region
        $region17: #{tpu_custom_call.1} parent=11 // pred_check
          %p267 = pneg %p127
        $region18: #{tpu_custom_call.1} parent=11 // pred_check_branch
          %269 = sbr.rel (%p267) target = $region20
        $region19: #{tpu_custom_call.1} parent=11 // pred_region
          %s271 = ssub.s32 16, 16
          %272 = vsyncadd [#allocation6], %s271
          %s274 = sshll.u32 [#allocation5], 4
          %s275 = int_to_ptr.vmem [resolvable:$true] %s274
          %277 = dma.hbm_to_vmem [thread:$0]  %s3, 16, %s275, [#allocation6]
        $region20: #{tpu_custom_call.1} parent=11 // pred_fallthru
          _
        // Predicated region
        $region21: #{tpu_custom_call.1} parent=11 // pred_check
          %p278 = pneg %p148
        $region22: #{tpu_custom_call.1} parent=11 // pred_check_branch
          %280 = sbr.rel (%p278) target = $region24
        $region23: #{tpu_custom_call.1} parent=11 // pred_region
          %s282 = ssub.s32 27648, 27648
          %283 = vsyncadd [#allocation6], %s282
          %s284 = sshll.u32 [#allocation7], 4
          %s285 = int_to_ptr.vmem [resolvable:$true] %s284
          %290 = dma.hbm_to_vmem [thread:$0]  %s4, 27648, %s285, [#allocation6], 64, 64, 4
        $region24: #{tpu_custom_call.1} parent=11 // pred_fallthru
          _
        // Predicated region
        $region25: #{tpu_custom_call.1} parent=11 // pred_check
          %p291 = pneg %p169
        $region26: #{tpu_custom_call.1} parent=11 // pred_check_branch
          %293 = sbr.rel (%p291) target = $region28
        $region27: #{tpu_custom_call.1} parent=11 // pred_region
          %s295 = ssub.s32 48, 48
          %296 = vsyncadd [#allocation9], %s295
          %s297 = sshll.u32 [#allocation8], 4
          %s298 = int_to_ptr.vmem [resolvable:$true] %s297
          %303 = dma.hbm_to_vmem [thread:$0]  %s5, 48, %s298, [#allocation9], 16, 16, 1
        $region28: #{tpu_custom_call.1} parent=11 // pred_fallthru
          _
        // Predicated region
        $region29: #{tpu_custom_call.1} parent=11 // pred_check
          %p304 = pneg %p190
        $region30: #{tpu_custom_call.1} parent=11 // pred_check_branch
          %306 = sbr.rel (%p304) target = $region32
        $region31: #{tpu_custom_call.1} parent=11 // pred_region
          %s308 = ssub.s32 1024, 1024
          %309 = vsyncadd [#allocation9], %s308
          %s310 = sshll.u32 [#allocation10], 4
          %s311 = int_to_ptr.vmem [resolvable:$true] %s310
          %316 = dma.hbm_to_vmem [thread:$0]  %s6, 1024, %s311, [#allocation9], 64, 64, 4
        $region32: #{tpu_custom_call.1} parent=11 // pred_fallthru
          _
        // Predicated region
        $region33: #{tpu_custom_call.1} parent=11 // pred_check
          %p317 = pneg %p211
        $region34: #{tpu_custom_call.1} parent=11 // pred_check_branch
          %319 = sbr.rel (%p317) target = $region36
        $region35: #{tpu_custom_call.1} parent=11 // pred_region
          %s321 = ssub.s32 16, 16
          %322 = vsyncadd [#allocation12], %s321
          %s324 = sshll.u32 [#allocation11], 4
          %s325 = int_to_ptr.vmem [resolvable:$true] %s324
          %327 = dma.hbm_to_vmem [thread:$0]  %s7, 16, %s325, [#allocation12]
        $region36: #{tpu_custom_call.1} parent=11 // pred_fallthru
          _
      $region12: #{tpu_custom_call.1} parent=5 // pred_fallthru
        _
      %p328 = scmp.lt.s32.totalorder %s21, 4
      // Predicated region
      $region37: #{tpu_custom_call.1} parent=5 // pred_check
        %p329 = pneg %p328
      $region38: #{tpu_custom_call.1} parent=5 // pred_check_branch
        %331 = sbr.rel (%p329) target = $region40
      $region39: #{tpu_custom_call.1} parent=5 // pred_region
        // Predicated region
        $region41: #{tpu_custom_call.1} parent=39 // pred_check
          %p332 = pneg %p53
        $region42: #{tpu_custom_call.1} parent=39 // pred_check_branch
          %334 = sbr.rel (%p332) target = $region44
        $region43: #{tpu_custom_call.1} parent=39 // pred_region
          %p335 = scmp.lt.s32.totalorder %s28, 1
          %s336 = scalar_select %p335, %s28, 1
          %s337 = smul.addr %s336, 66
          %s338 = smul.addr %s337, 4
          %s339 = scalar_lea.vmem %s0, %s338
        $region44: #{tpu_custom_call.1} parent=39 // pred_fallthru
          _
        // Predicated region
        $region45: #{tpu_custom_call.1} parent=39 // pred_check
          %p340 = pneg %p79
        $region46: #{tpu_custom_call.1} parent=39 // pred_check_branch
          %342 = sbr.rel (%p340) target = $region48
        $region47: #{tpu_custom_call.1} parent=39 // pred_region
          %p343 = scmp.lt.s32.totalorder %s28, 1
          %s344 = scalar_select %p343, %s28, 1
          %s345 = scalar_lea.vmem %s1, %s344
        $region48: #{tpu_custom_call.1} parent=39 // pred_fallthru
          _
      $region40: #{tpu_custom_call.1} parent=5 // pred_fallthru
        _
      %p346 = scmp.le.s32.totalorder 1, %s21
      %p347 = scmp.lt.s32.totalorder %s21, 5
      %p348 = pnand %p346, %p347
      %p349 = pneg %p348
      // Predicated region
      $region49: #{tpu_custom_call.1} parent=5 // pred_check
        _
      $region50: #{tpu_custom_call.1} parent=5 // pred_check_branch
        %351 = sbr.rel (%p348) target = $region52
      $region51: #{tpu_custom_call.1} parent=5 // pred_region
        %s352 = ssub.s32 %s21, 1
        // Predicated region
        $region53: #{tpu_custom_call.1} parent=51 // pred_check
          %p353 = pneg %p106
        $region54: #{tpu_custom_call.1} parent=51 // pred_check_branch
          %355 = sbr.rel (%p353) target = $region56
        $region55: #{tpu_custom_call.1} parent=51 // pred_region
          %356 = dma.done [#allocation3], 1024
        $region56: #{tpu_custom_call.1} parent=51 // pred_fallthru
          _
        // Predicated region
        $region57: #{tpu_custom_call.1} parent=51 // pred_check
          %p357 = pneg %p127
        $region58: #{tpu_custom_call.1} parent=51 // pred_check_branch
          %359 = sbr.rel (%p357) target = $region60
        $region59: #{tpu_custom_call.1} parent=51 // pred_region
          %360 = dma.done [#allocation6], 16
        $region60: #{tpu_custom_call.1} parent=51 // pred_fallthru
          _
        // Predicated region
        $region61: #{tpu_custom_call.1} parent=51 // pred_check
          %p361 = pneg %p148
        $region62: #{tpu_custom_call.1} parent=51 // pred_check_branch
          %363 = sbr.rel (%p361) target = $region64
        $region63: #{tpu_custom_call.1} parent=51 // pred_region
          %364 = dma.done [#allocation6], 27648
        $region64: #{tpu_custom_call.1} parent=51 // pred_fallthru
          _
        // Predicated region
        $region65: #{tpu_custom_call.1} parent=51 // pred_check
          %p365 = pneg %p169
        $region66: #{tpu_custom_call.1} parent=51 // pred_check_branch
          %367 = sbr.rel (%p365) target = $region68
        $region67: #{tpu_custom_call.1} parent=51 // pred_region
          %368 = dma.done [#allocation9], 48
        $region68: #{tpu_custom_call.1} parent=51 // pred_fallthru
          _
        // Predicated region
        $region69: #{tpu_custom_call.1} parent=51 // pred_check
          %p369 = pneg %p190
        $region70: #{tpu_custom_call.1} parent=51 // pred_check_branch
          %371 = sbr.rel (%p369) target = $region72
        $region71: #{tpu_custom_call.1} parent=51 // pred_region
          %372 = dma.done [#allocation9], 1024
        $region72: #{tpu_custom_call.1} parent=51 // pred_fallthru
          _
        // Predicated region
        $region73: #{tpu_custom_call.1} parent=51 // pred_check
          %p373 = pneg %p211
        $region74: #{tpu_custom_call.1} parent=51 // pred_check_branch
          %375 = sbr.rel (%p373) target = $region76
        $region75: #{tpu_custom_call.1} parent=51 // pred_region
          %376 = dma.done [#allocation12], 16
        $region76: #{tpu_custom_call.1} parent=51 // pred_fallthru
          _
        %p377 = scmp.lt.s32.totalorder %s30, 1
        %s378 = scalar_select %p377, %s30, 1
        %s379 = smul.addr %s378, 66
        %s380 = smul.addr %s379, 4
        %s381 = scalar_lea.vmem %s0, %s380
        %p382 = pneg %p59
        %p383 = pneg %p56
        %p384 = scmp.lt.s32.totalorder %s30, 1
        %s385 = scalar_select %p384, %s30, 1
        %s386 = scalar_lea.vmem %s1, %s385
        %p387 = pneg %p85
        %p388 = pneg %p82
        %p389 = pneg %p106
        %p390 = pneg %p103
        %p391 = pneg %p127
        %p392 = pneg %p124
        %p393 = pneg %p148
        %p394 = pneg %p145
        %p395 = pneg %p169
        %p396 = pneg %p166
        %p397 = pneg %p190
        %p398 = pneg %p187
        %p399 = pneg %p211
        %p400 = pneg %p208
        %p401 = pneg %p239
        %p402 = pneg %p236
        %s403 = sand.u32 %s226, 1
        %s404 = scalar_lea.sflag [#allocation4], %s403
        %s405 = sand.u32 %s226, 1
        %s406 = smul.addr %s405, 640
        %s407 = scalar_lea.vmem [#allocation13], %s406
        %p408 = scmp.lt.s32.totalorder %s30, 1
        %s409 = scalar_select %p408, %s30, 1
        %s410 = smul.addr %s409, 66
        %s411 = smul.addr %s410, 4
        %s412 = scalar_lea.vmem %s0, %s411
        %p413 = scmp.lt.s32.totalorder %s30, 1
        %s414 = scalar_select %p413, %s30, 1
        %s415 = scalar_lea.vmem %s1, %s414
        %s416 = smul.u32 8, %s31
        %s418 = smul.u32 %s31, 8
        %s419 = smul.u32 %s418, 3
        %s420 = smul.addr %s419, 4
        %s421 = scalar_lea.vmem %s412, %s420
        %v422 = vld [vmem:[%s421] sm:$0xf]
        %v423 = vld [vmem:[%s421 + $0x4] sm:$0xf]
        %v424 = vld [vmem:[%s421 + $0x8] sm:$0x7]
        %v425 = vld [vmem:[%s421 + $0xc] sm:$0xf]
        %v426 = vld [vmem:[%s421 + $0x10] sm:$0xf]
        %v427 = vld [vmem:[%s421 + $0x14] sm:$0x7]
        %v428 = vld [vmem:[%s421 + $0x18] sm:$0xf]
        %v429 = vld [vmem:[%s421 + $0x1c] sm:$0xf]
        %v430 = vld [vmem:[%s421 + $0x20] sm:$0x7]
        %v431 = vld [vmem:[%s421 + $0x24] sm:$0xf]
        %v432 = vld [vmem:[%s421 + $0x28] sm:$0xf]
        %v433 = vld [vmem:[%s421 + $0x2c] sm:$0x7]
        %v434 = vld [vmem:[%s421 + $0x30] sm:$0xf]
        %v435 = vld [vmem:[%s421 + $0x34] sm:$0xf]
        %v436 = vld [vmem:[%s421 + $0x38] sm:$0x7]
        %v437 = vld [vmem:[%s421 + $0x3c] sm:$0xf]
        %v438 = vld [vmem:[%s421 + $0x40] sm:$0xf]
        %v439 = vld [vmem:[%s421 + $0x44] sm:$0x7]
        %v440 = vld [vmem:[%s421 + $0x48] sm:$0xf]
        %v441 = vld [vmem:[%s421 + $0x4c] sm:$0xf]
        %v442 = vld [vmem:[%s421 + $0x50] sm:$0x7]
        %v443 = vld [vmem:[%s421 + $0x54] sm:$0xf]
        %v444 = vld [vmem:[%s421 + $0x58] sm:$0xf]
        %v445 = vld [vmem:[%s421 + $0x5c] sm:$0x7]
        %s446 = sadd.s32 %s418, 1
        %s447 = smul.u32 %s446, 3
        %s448 = smul.addr %s447, 4
        %s449 = scalar_lea.vmem %s412, %s448
        %v450 = vld [vmem:[%s449] sm:$0xf]
        %v451 = vld [vmem:[%s449 + $0x4] sm:$0xf]
        %v452 = vld [vmem:[%s449 + $0x8] sm:$0x7]
        %v453 = vld [vmem:[%s449 + $0xc] sm:$0xf]
        %v454 = vld [vmem:[%s449 + $0x10] sm:$0xf]
        %v455 = vld [vmem:[%s449 + $0x14] sm:$0x7]
        %v456 = vld [vmem:[%s449 + $0x18] sm:$0xf]
        %v457 = vld [vmem:[%s449 + $0x1c] sm:$0xf]
        %v458 = vld [vmem:[%s449 + $0x20] sm:$0x7]
        %v459 = vld [vmem:[%s449 + $0x24] sm:$0xf]
        %v460 = vld [vmem:[%s449 + $0x28] sm:$0xf]
        %v461 = vld [vmem:[%s449 + $0x2c] sm:$0x7]
        %v462 = vld [vmem:[%s449 + $0x30] sm:$0xf]
        %v463 = vld [vmem:[%s449 + $0x34] sm:$0xf]
        %v464 = vld [vmem:[%s449 + $0x38] sm:$0x7]
        %v465 = vld [vmem:[%s449 + $0x3c] sm:$0xf]
        %v466 = vld [vmem:[%s449 + $0x40] sm:$0xf]
        %v467 = vld [vmem:[%s449 + $0x44] sm:$0x7]
        %v468 = vld [vmem:[%s449 + $0x48] sm:$0xf]
        %v469 = vld [vmem:[%s449 + $0x4c] sm:$0xf]
        %v470 = vld [vmem:[%s449 + $0x50] sm:$0x7]
        %v471 = vld [vmem:[%s449 + $0x54] sm:$0xf]
        %v472 = vld [vmem:[%s449 + $0x58] sm:$0xf]
        %v473 = vld [vmem:[%s449 + $0x5c] sm:$0x7]
        %s474 = sadd.s32 %s418, 2
        %s475 = smul.u32 %s474, 3
        %s476 = smul.addr %s475, 4
        %s477 = scalar_lea.vmem %s412, %s476
        %v478 = vld [vmem:[%s477] sm:$0xf]
        %v479 = vld [vmem:[%s477 + $0x4] sm:$0xf]
        %v480 = vld [vmem:[%s477 + $0x8] sm:$0x7]
        %v481 = vld [vmem:[%s477 + $0xc] sm:$0xf]
        %v482 = vld [vmem:[%s477 + $0x10] sm:$0xf]
        %v483 = vld [vmem:[%s477 + $0x14] sm:$0x7]
        %v484 = vld [vmem:[%s477 + $0x18] sm:$0xf]
        %v485 = vld [vmem:[%s477 + $0x1c] sm:$0xf]
        %v486 = vld [vmem:[%s477 + $0x20] sm:$0x7]
        %v487 = vld [vmem:[%s477 + $0x24] sm:$0xf]
        %v488 = vld [vmem:[%s477 + $0x28] sm:$0xf]
        %v489 = vld [vmem:[%s477 + $0x2c] sm:$0x7]
        %v490 = vld [vmem:[%s477 + $0x30] sm:$0xf]
        %v491 = vld [vmem:[%s477 + $0x34] sm:$0xf]
        %v492 = vld [vmem:[%s477 + $0x38] sm:$0x7]
        %v493 = vld [vmem:[%s477 + $0x3c] sm:$0xf]
        %v494 = vld [vmem:[%s477 + $0x40] sm:$0xf]
        %v495 = vld [vmem:[%s477 + $0x44] sm:$0x7]
        %v496 = vld [vmem:[%s477 + $0x48] sm:$0xf]
        %v497 = vld [vmem:[%s477 + $0x4c] sm:$0xf]
        %v498 = vld [vmem:[%s477 + $0x50] sm:$0x7]
        %v499 = vld [vmem:[%s477 + $0x54] sm:$0xf]
        %v500 = vld [vmem:[%s477 + $0x58] sm:$0xf]
        %v501 = vld [vmem:[%s477 + $0x5c] sm:$0x7]
        %s502 = sadd.s32 %s418, 3
        %s503 = smul.u32 %s502, 3
        %s504 = smul.addr %s503, 4
        %s505 = scalar_lea.vmem %s412, %s504
        %v506 = vld [vmem:[%s505] sm:$0xf]
        %v507 = vld [vmem:[%s505 + $0x4] sm:$0xf]
        %v508 = vld [vmem:[%s505 + $0x8] sm:$0x7]
        %v509 = vld [vmem:[%s505 + $0xc] sm:$0xf]
        %v510 = vld [vmem:[%s505 + $0x10] sm:$0xf]
        %v511 = vld [vmem:[%s505 + $0x14] sm:$0x7]
        %v512 = vld [vmem:[%s505 + $0x18] sm:$0xf]
        %v513 = vld [vmem:[%s505 + $0x1c] sm:$0xf]
        %v514 = vld [vmem:[%s505 + $0x20] sm:$0x7]
        %v515 = vld [vmem:[%s505 + $0x24] sm:$0xf]
        %v516 = vld [vmem:[%s505 + $0x28] sm:$0xf]
        %v517 = vld [vmem:[%s505 + $0x2c] sm:$0x7]
        %v518 = vld [vmem:[%s505 + $0x30] sm:$0xf]
        %v519 = vld [vmem:[%s505 + $0x34] sm:$0xf]
        %v520 = vld [vmem:[%s505 + $0x38] sm:$0x7]
        %v521 = vld [vmem:[%s505 + $0x3c] sm:$0xf]
        %v522 = vld [vmem:[%s505 + $0x40] sm:$0xf]
        %v523 = vld [vmem:[%s505 + $0x44] sm:$0x7]
        %v524 = vld [vmem:[%s505 + $0x48] sm:$0xf]
        %v525 = vld [vmem:[%s505 + $0x4c] sm:$0xf]
        %v526 = vld [vmem:[%s505 + $0x50] sm:$0x7]
        %v527 = vld [vmem:[%s505 + $0x54] sm:$0xf]
        %v528 = vld [vmem:[%s505 + $0x58] sm:$0xf]
        %v529 = vld [vmem:[%s505 + $0x5c] sm:$0x7]
        %s530 = sadd.s32 %s418, 4
        %s531 = smul.u32 %s530, 3
        %s532 = smul.addr %s531, 4
        %s533 = scalar_lea.vmem %s412, %s532
        %v534 = vld [vmem:[%s533] sm:$0xf]
        %v535 = vld [vmem:[%s533 + $0x4] sm:$0xf]
        %v536 = vld [vmem:[%s533 + $0x8] sm:$0x7]
        %v537 = vld [vmem:[%s533 + $0xc] sm:$0xf]
        %v538 = vld [vmem:[%s533 + $0x10] sm:$0xf]
        %v539 = vld [vmem:[%s533 + $0x14] sm:$0x7]
        %v540 = vld [vmem:[%s533 + $0x18] sm:$0xf]
        %v541 = vld [vmem:[%s533 + $0x1c] sm:$0xf]
        %v542 = vld [vmem:[%s533 + $0x20] sm:$0x7]
        %v543 = vld [vmem:[%s533 + $0x24] sm:$0xf]
        %v544 = vld [vmem:[%s533 + $0x28] sm:$0xf]
        %v545 = vld [vmem:[%s533 + $0x2c] sm:$0x7]
        %v546 = vld [vmem:[%s533 + $0x30] sm:$0xf]
        %v547 = vld [vmem:[%s533 + $0x34] sm:$0xf]
        %v548 = vld [vmem:[%s533 + $0x38] sm:$0x7]
        %v549 = vld [vmem:[%s533 + $0x3c] sm:$0xf]
        %v550 = vld [vmem:[%s533 + $0x40] sm:$0xf]
        %v551 = vld [vmem:[%s533 + $0x44] sm:$0x7]
        %v552 = vld [vmem:[%s533 + $0x48] sm:$0xf]
        %v553 = vld [vmem:[%s533 + $0x4c] sm:$0xf]
        %v554 = vld [vmem:[%s533 + $0x50] sm:$0x7]
        %v555 = vld [vmem:[%s533 + $0x54] sm:$0xf]
        %v556 = vld [vmem:[%s533 + $0x58] sm:$0xf]
        %v557 = vld [vmem:[%s533 + $0x5c] sm:$0x7]
        %s558 = sadd.s32 %s418, 5
        %s559 = smul.u32 %s558, 3
        %s560 = smul.addr %s559, 4
        %s561 = scalar_lea.vmem %s412, %s560
        %v562 = vld [vmem:[%s561] sm:$0xf]
        %v563 = vld [vmem:[%s561 + $0x4] sm:$0xf]
        %v564 = vld [vmem:[%s561 + $0x8] sm:$0x7]
        %v565 = vld [vmem:[%s561 + $0xc] sm:$0xf]
        %v566 = vld [vmem:[%s561 + $0x10] sm:$0xf]
        %v567 = vld [vmem:[%s561 + $0x14] sm:$0x7]
        %v568 = vld [vmem:[%s561 + $0x18] sm:$0xf]
        %v569 = vld [vmem:[%s561 + $0x1c] sm:$0xf]
        %v570 = vld [vmem:[%s561 + $0x20] sm:$0x7]
        %v571 = vld [vmem:[%s561 + $0x24] sm:$0xf]
        %v572 = vld [vmem:[%s561 + $0x28] sm:$0xf]
        %v573 = vld [vmem:[%s561 + $0x2c] sm:$0x7]
        %v574 = vld [vmem:[%s561 + $0x30] sm:$0xf]
        %v575 = vld [vmem:[%s561 + $0x34] sm:$0xf]
        %v576 = vld [vmem:[%s561 + $0x38] sm:$0x7]
        %v577 = vld [vmem:[%s561 + $0x3c] sm:$0xf]
        %v578 = vld [vmem:[%s561 + $0x40] sm:$0xf]
        %v579 = vld [vmem:[%s561 + $0x44] sm:$0x7]
        %v580 = vld [vmem:[%s561 + $0x48] sm:$0xf]
        %v581 = vld [vmem:[%s561 + $0x4c] sm:$0xf]
        %v582 = vld [vmem:[%s561 + $0x50] sm:$0x7]
        %v583 = vld [vmem:[%s561 + $0x54] sm:$0xf]
        %v584 = vld [vmem:[%s561 + $0x58] sm:$0xf]
        %v585 = vld [vmem:[%s561 + $0x5c] sm:$0x7]
        %s586 = sadd.s32 %s418, 6
        %s587 = smul.u32 %s586, 3
        %s588 = smul.addr %s587, 4
        %s589 = scalar_lea.vmem %s412, %s588
        %v590 = vld [vmem:[%s589] sm:$0xf]
        %v591 = vld [vmem:[%s589 + $0x4] sm:$0xf]
        %v592 = vld [vmem:[%s589 + $0x8] sm:$0x7]
        %v593 = vld [vmem:[%s589 + $0xc] sm:$0xf]
        %v594 = vld [vmem:[%s589 + $0x10] sm:$0xf]
        %v595 = vld [vmem:[%s589 + $0x14] sm:$0x7]
        %v596 = vld [vmem:[%s589 + $0x18] sm:$0xf]
        %v597 = vld [vmem:[%s589 + $0x1c] sm:$0xf]
        %v598 = vld [vmem:[%s589 + $0x20] sm:$0x7]
        %v599 = vld [vmem:[%s589 + $0x24] sm:$0xf]
        %v600 = vld [vmem:[%s589 + $0x28] sm:$0xf]
        %v601 = vld [vmem:[%s589 + $0x2c] sm:$0x7]
        %v602 = vld [vmem:[%s589 + $0x30] sm:$0xf]
        %v603 = vld [vmem:[%s589 + $0x34] sm:$0xf]
        %v604 = vld [vmem:[%s589 + $0x38] sm:$0x7]
        %v605 = vld [vmem:[%s589 + $0x3c] sm:$0xf]
        %v606 = vld [vmem:[%s589 + $0x40] sm:$0xf]
        %v607 = vld [vmem:[%s589 + $0x44] sm:$0x7]
        %v608 = vld [vmem:[%s589 + $0x48] sm:$0xf]
        %v609 = vld [vmem:[%s589 + $0x4c] sm:$0xf]
        %v610 = vld [vmem:[%s589 + $0x50] sm:$0x7]
        %v611 = vld [vmem:[%s589 + $0x54] sm:$0xf]
        %v612 = vld [vmem:[%s589 + $0x58] sm:$0xf]
        %v613 = vld [vmem:[%s589 + $0x5c] sm:$0x7]
        %vm614 = vsmask.f32 2304
        %vm615 = vsmask.f32 6416
        %vm616 = vmor %vm614, %vm615
        %v618 = vshrl.u32 %v506, 16
        %v620 = vrot.slane %v618, 5
        %v621 = vshll.u32 %v506, 16
        %v623 = vrot.slane %v621, 6
        %v624 = vor.u32 %v620, %v623
        %v625 = vrot.slane %v624, 4
        %v627 = vshrl.u32 %v507, 16
        %v629 = vrot.slane %v627, 5
        %v630 = vshll.u32 %v507, 16
        %v632 = vrot.slane %v630, 6
        %v633 = vor.u32 %v629, %v632
        %v634 = vsel %vm616, %v625, %v633
        %v635 = vrot.slane %v633, 4
        %v637 = vshrl.u32 %v508, 16
        %v639 = vrot.slane %v637, 5
        %v640 = vshll.u32 %v508, 16
        %v642 = vrot.slane %v640, 6
        %v643 = vor.u32 %v639, %v642
        %v644 = vsel %vm616, %v635, %v643
        %v646 = vshrl.u32 %v509, 16
        %v648 = vrot.slane %v646, 5
        %v649 = vshll.u32 %v509, 16
        %v651 = vrot.slane %v649, 6
        %v652 = vor.u32 %v648, %v651
        %v653 = vrot.slane %v652, 4
        %v655 = vshrl.u32 %v510, 16
        %v657 = vrot.slane %v655, 5
        %v658 = vshll.u32 %v510, 16
        %v660 = vrot.slane %v658, 6
        %v661 = vor.u32 %v657, %v660
        %v662 = vsel %vm616, %v653, %v661
        %v663 = vrot.slane %v661, 4
        %v665 = vshrl.u32 %v511, 16
        %v667 = vrot.slane %v665, 5
        %v668 = vshll.u32 %v511, 16
        %v670 = vrot.slane %v668, 6
        %v671 = vor.u32 %v667, %v670
        %v672 = vsel %vm616, %v663, %v671
        %v674 = vshrl.u32 %v512, 16
        %v676 = vrot.slane %v674, 5
        %v677 = vshll.u32 %v512, 16
        %v679 = vrot.slane %v677, 6
        %v680 = vor.u32 %v676, %v679
        %v681 = vrot.slane %v680, 4
        %v683 = vshrl.u32 %v513, 16
        %v685 = vrot.slane %v683, 5
        %v686 = vshll.u32 %v513, 16
        %v688 = vrot.slane %v686, 6
        %v689 = vor.u32 %v685, %v688
        %v690 = vsel %vm616, %v681, %v689
        %v691 = vrot.slane %v689, 4
        %v693 = vshrl.u32 %v514, 16
        %v695 = vrot.slane %v693, 5
        %v696 = vshll.u32 %v514, 16
        %v698 = vrot.slane %v696, 6
        %v699 = vor.u32 %v695, %v698
        %v700 = vsel %vm616, %v691, %v699
        %v702 = vshrl.u32 %v515, 16
        %v704 = vrot.slane %v702, 5
        %v705 = vshll.u32 %v515, 16
        %v707 = vrot.slane %v705, 6
        %v708 = vor.u32 %v704, %v707
        %v709 = vrot.slane %v708, 4
        %v711 = vshrl.u32 %v516, 16
        %v713 = vrot.slane %v711, 5
        %v714 = vshll.u32 %v516, 16
        %v716 = vrot.slane %v714, 6
        %v717 = vor.u32 %v713, %v716
        %v718 = vsel %vm616, %v709, %v717
        %v719 = vrot.slane %v717, 4
        %v721 = vshrl.u32 %v517, 16
        %v723 = vrot.slane %v721, 5
        %v724 = vshll.u32 %v517, 16
        %v726 = vrot.slane %v724, 6
        %v727 = vor.u32 %v723, %v726
        %v728 = vsel %vm616, %v719, %v727
        %v730 = vshrl.u32 %v518, 16
        %v732 = vrot.slane %v730, 5
        %v733 = vshll.u32 %v518, 16
        %v735 = vrot.slane %v733, 6
        %v736 = vor.u32 %v732, %v735
        %v737 = vrot.slane %v736, 4
        %v739 = vshrl.u32 %v519, 16
        %v741 = vrot.slane %v739, 5
        %v742 = vshll.u32 %v519, 16
        %v744 = vrot.slane %v742, 6
        %v745 = vor.u32 %v741, %v744
        %v746 = vsel %vm616, %v737, %v745
        %v747 = vrot.slane %v745, 4
        %v749 = vshrl.u32 %v520, 16
        %v751 = vrot.slane %v749, 5
        %v752 = vshll.u32 %v520, 16
        %v754 = vrot.slane %v752, 6
        %v755 = vor.u32 %v751, %v754
        %v756 = vsel %vm616, %v747, %v755
        %v758 = vshrl.u32 %v521, 16
        %v760 = vrot.slane %v758, 5
        %v761 = vshll.u32 %v521, 16
        %v763 = vrot.slane %v761, 6
        %v764 = vor.u32 %v760, %v763
        %v765 = vrot.slane %v764, 4
        %v767 = vshrl.u32 %v522, 16
        %v769 = vrot.slane %v767, 5
        %v770 = vshll.u32 %v522, 16
        %v772 = vrot.slane %v770, 6
        %v773 = vor.u32 %v769, %v772
        %v774 = vsel %vm616, %v765, %v773
        %v775 = vrot.slane %v773, 4
        %v777 = vshrl.u32 %v523, 16
        %v779 = vrot.slane %v777, 5
        %v780 = vshll.u32 %v523, 16
        %v782 = vrot.slane %v780, 6
        %v783 = vor.u32 %v779, %v782
        %v784 = vsel %vm616, %v775, %v783
        %v786 = vshrl.u32 %v524, 16
        %v788 = vrot.slane %v786, 5
        %v789 = vshll.u32 %v524, 16
        %v791 = vrot.slane %v789, 6
        %v792 = vor.u32 %v788, %v791
        %v793 = vrot.slane %v792, 4
        %v795 = vshrl.u32 %v525, 16
        %v797 = vrot.slane %v795, 5
        %v798 = vshll.u32 %v525, 16
        %v800 = vrot.slane %v798, 6
        %v801 = vor.u32 %v797, %v800
        %v802 = vsel %vm616, %v793, %v801
        %v803 = vrot.slane %v801, 4
        %v805 = vshrl.u32 %v526, 16
        %v807 = vrot.slane %v805, 5
        %v808 = vshll.u32 %v526, 16
        %v810 = vrot.slane %v808, 6
        %v811 = vor.u32 %v807, %v810
        %v812 = vsel %vm616, %v803, %v811
        %v814 = vshrl.u32 %v527, 16
        %v816 = vrot.slane %v814, 5
        %v817 = vshll.u32 %v527, 16
        %v819 = vrot.slane %v817, 6
        %v820 = vor.u32 %v816, %v819
        %v821 = vrot.slane %v820, 4
        %v823 = vshrl.u32 %v528, 16
        %v825 = vrot.slane %v823, 5
        %v826 = vshll.u32 %v528, 16
        %v828 = vrot.slane %v826, 6
        %v829 = vor.u32 %v825, %v828
        %v830 = vsel %vm616, %v821, %v829
        %v831 = vrot.slane %v829, 4
        %v833 = vshrl.u32 %v529, 16
        %v835 = vrot.slane %v833, 5
        %v836 = vshll.u32 %v529, 16
        %v838 = vrot.slane %v836, 6
        %v839 = vor.u32 %v835, %v838
        %v840 = vsel %vm616, %v831, %v839
        %v841 = vld [vmem:[#allocation2] sm:$0xf]
        %v842 = vld [vmem:[#allocation2 + $0x4] sm:$0xf]
        %v843 = vld [vmem:[#allocation2 + $0x8] sm:$0xf]
        %v844 = vld [vmem:[#allocation2 + $0xc] sm:$0xf]
        %v845 = vld [vmem:[#allocation2 + $0x10] sm:$0xf]
        %v846 = vld [vmem:[#allocation2 + $0x14] sm:$0xf]
        %v847 = vld [vmem:[#allocation2 + $0x18] sm:$0xf]
        %v848 = vld [vmem:[#allocation2 + $0x1c] sm:$0xf]
        %v849 = vld [vmem:[#allocation2 + $0x20] sm:$0xf]
        %v850 = vld [vmem:[#allocation2 + $0x24] sm:$0xf]
        %v851 = vld [vmem:[#allocation2 + $0x28] sm:$0xf]
        %v852 = vld [vmem:[#allocation2 + $0x2c] sm:$0xf]
        %v853 = vld [vmem:[#allocation2 + $0x30] sm:$0xf]
        %v854 = vld [vmem:[#allocation2 + $0x34] sm:$0xf]
        %v855 = vld [vmem:[#allocation2 + $0x38] sm:$0xf]
        %v856 = vld [vmem:[#allocation2 + $0x3c] sm:$0xf]
        %v857 = vld [vmem:[#allocation5] sm:$0x1]
        %v859 = vlaneseq
        %v860 = vshrl.u32 %v859, 7
        %v861 = vsub.s32 0, %v860
        %v862 = vrot.slane %v857, %v861
        %v864 = vunpack.c.l.b16 %v634
        %v865 = vunpack.c.l.b16 %v644
        %v866 = vunpack.c.l.b16 %v662
        %v867 = vunpack.c.l.b16 %v672
        %v868 = vunpack.c.l.b16 %v690
        %v869 = vunpack.c.l.b16 %v700
        %v870 = vunpack.c.l.b16 %v718
        %v871 = vunpack.c.l.b16 %v728
        %v872 = vunpack.c.l.b16 %v746
        %v873 = vunpack.c.l.b16 %v756
        %v874 = vunpack.c.l.b16 %v774
        %v875 = vunpack.c.l.b16 %v784
        %v876 = vunpack.c.l.b16 %v802
        %v877 = vunpack.c.l.b16 %v812
        %v878 = vunpack.c.l.b16 %v830
        %v879 = vunpack.c.l.b16 %v840
        %v880 = vpack.c.b16 %v865, %v864
        %v881 = vpack.c.b16 %v867, %v866
        %v882 = vpack.c.b16 %v869, %v868
        %v883 = vpack.c.b16 %v871, %v870
        %v884 = vpack.c.b16 %v873, %v872
        %v885 = vpack.c.b16 %v875, %v874
        %v886 = vpack.c.b16 %v877, %v876
        %v887 = vpack.c.b16 %v879, %v878
        %v912 = vunpack.c.l.b16 %v841
        %v913 = vunpack.c.l.b16 %v842
        %v914 = vunpack.c.l.b16 %v843
        %v915 = vunpack.c.l.b16 %v844
        %v916 = vunpack.c.l.b16 %v845
        %v917 = vunpack.c.l.b16 %v846
        %v918 = vunpack.c.l.b16 %v847
        %v919 = vunpack.c.l.b16 %v848
        %v920 = vunpack.c.l.b16 %v849
        %v921 = vunpack.c.l.b16 %v850
        %v922 = vunpack.c.l.b16 %v851
        %v923 = vunpack.c.l.b16 %v852
        %v924 = vunpack.c.l.b16 %v853
        %v925 = vunpack.c.l.b16 %v854
        %v926 = vunpack.c.l.b16 %v855
        %v927 = vunpack.c.l.b16 %v856
        %v928 = vpack.c.b16 %v913, %v912
        %v929 = vpack.c.b16 %v915, %v914
        %v930 = vpack.c.b16 %v917, %v916
        %v931 = vpack.c.b16 %v919, %v918
        %v932 = vpack.c.b16 %v921, %v920
        %v933 = vpack.c.b16 %v923, %v922
        %v934 = vpack.c.b16 %v925, %v924
        %v935 = vpack.c.b16 %v927, %v926
        %944 = vmatprep.subr.bf16.mxu0 0
        %945 = vmatpush1.bf16.msra.mxu0 %v935
        %946 = vmatprep.subr.bf16.mxu0 0
        %947 = vmatpush1.bf16.msra.mxu0 %v934
        %948 = vmatprep.subr.bf16.mxu0 0
        %949 = vmatpush1.bf16.msra.mxu0 %v933
        %950 = vmatprep.subr.bf16.mxu0 0
        %951 = vmatpush1.bf16.msra.mxu0 %v932
        %952 = vmatprep.subr.bf16.mxu0 0
        %953 = vmatpush1.bf16.msra.mxu0 %v931
        %954 = vmatprep.subr.bf16.mxu0 0
        %955 = vmatpush1.bf16.msra.mxu0 %v930
        %956 = vmatprep.subr.bf16.mxu0 0
        %957 = vmatpush1.bf16.msra.mxu0 %v929
        %958 = vmatprep.subr.bf16.mxu0 0
        %959 = vmatpush1.bf16.msra.mxu0 %v928
        %960 = vmatprep.subr.bf16.mxu0 0
        %961 = vmatpush2.bf16.msra.mxu0 0
        %962 = vmatprep.subr.bf16.mxu0 0
        %963 = vmatpush2.bf16.msra.mxu0 0
        %964 = vmatprep.subr.bf16.mxu0 0
        %965 = vmatpush2.bf16.msra.mxu0 0
        %966 = vmatprep.subr.bf16.mxu0 0
        %967 = vmatpush2.bf16.msra.mxu0 0
        %968 = vmatprep.subr.bf16.mxu0 0
        %969 = vmatpush2.bf16.msra.mxu0 0
        %970 = vmatprep.subr.bf16.mxu0 0
        %971 = vmatpush2.bf16.msra.mxu0 0
        %972 = vmatprep.subr.bf16.mxu0 0
        %973 = vmatpush2.bf16.msra.mxu0 0
        %974 = vmatprep.subr.bf16.mxu0 0
        %975 = vmatpush2.bf16.msra.mxu0 0
        %976 = vmatprep.mubr.bf16.mxu0 0
        %977 = vmatmul.mubr.bf16.gmra.mxu0 %v880
        %v978 = vpop.f32.mrf.mxu0
        %v979 = vadd.f32 %v862, %v978
        %v980 = vpop.f32.mrf.mxu0
        %v981 = vpop.f32.mrf.mxu0
        %v982 = vadd.f32 %v862, %v981
        %v983 = vpop.f32.mrf.mxu0
        %984 = vmatprep.mubr.bf16.mxu0 0
        %985 = vmatmul.mubr.bf16.gmra.mxu0 %v881
        %v986 = vpop.f32.mrf.mxu0
        %v987 = vadd.f32 %v862, %v986
        %v988 = vpop.f32.mrf.mxu0
        %v989 = vpop.f32.mrf.mxu0
        %v990 = vadd.f32 %v862, %v989
        %v991 = vpop.f32.mrf.mxu0
        %992 = vmatprep.mubr.bf16.mxu0 0
        %993 = vmatmul.mubr.bf16.gmra.mxu0 %v882
        %v994 = vpop.f32.mrf.mxu0
        %v995 = vadd.f32 %v862, %v994
        %v996 = vpop.f32.mrf.mxu0
        %v997 = vpop.f32.mrf.mxu0
        %v998 = vadd.f32 %v862, %v997
        %v999 = vpop.f32.mrf.mxu0
        %1000 = vmatprep.mubr.bf16.mxu0 0
        %1001 = vmatmul.mubr.bf16.gmra.mxu0 %v883
        %v1002 = vpop.f32.mrf.mxu0
        %v1003 = vadd.f32 %v862, %v1002
        %v1004 = vpop.f32.mrf.mxu0
        %v1005 = vpop.f32.mrf.mxu0
        %v1006 = vadd.f32 %v862, %v1005
        %v1007 = vpop.f32.mrf.mxu0
        %1008 = vmatprep.mubr.bf16.mxu0 0
        %1009 = vmatmul.mubr.bf16.gmra.mxu0 %v884
        %v1010 = vpop.f32.mrf.mxu0
        %v1011 = vadd.f32 %v862, %v1010
        %v1012 = vpop.f32.mrf.mxu0
        %v1013 = vpop.f32.mrf.mxu0
        %v1014 = vadd.f32 %v862, %v1013
        %v1015 = vpop.f32.mrf.mxu0
        %1016 = vmatprep.mubr.bf16.mxu0 0
        %1017 = vmatmul.mubr.bf16.gmra.mxu0 %v885
        %v1018 = vpop.f32.mrf.mxu0
        %v1019 = vadd.f32 %v862, %v1018
        %v1020 = vpop.f32.mrf.mxu0
        %v1021 = vpop.f32.mrf.mxu0
        %v1022 = vadd.f32 %v862, %v1021
        %v1023 = vpop.f32.mrf.mxu0
        %1024 = vmatprep.mubr.bf16.mxu0 0
        %1025 = vmatmul.mubr.bf16.gmra.mxu0 %v886
        %v1026 = vpop.f32.mrf.mxu0
        %v1027 = vadd.f32 %v862, %v1026
        %v1028 = vpop.f32.mrf.mxu0
        %v1029 = vpop.f32.mrf.mxu0
        %v1030 = vadd.f32 %v862, %v1029
        %v1031 = vpop.f32.mrf.mxu0
        %1032 = vmatprep.mubr.bf16.mxu0 0
        %1033 = vmatmul.mubr.bf16.gmra.mxu0 %v887
        %v1034 = vpop.f32.mrf.mxu0
        %v1035 = vadd.f32 %v862, %v1034
        %v1036 = vpop.f32.mrf.mxu0
        %v1037 = vpop.f32.mrf.mxu0
        %v1038 = vadd.f32 %v862, %v1037
        %v1039 = vpop.f32.mrf.mxu0
        %1040 = vdwg.mxu0
        %v1041 = vmax.f32 %v979, 0.0
        %v1042 = vmax.f32 %v982, 0.0
        %v1043 = vmax.f32 %v987, 0.0
        %v1044 = vmax.f32 %v990, 0.0
        %v1045 = vmax.f32 %v995, 0.0
        %v1046 = vmax.f32 %v998, 0.0
        %v1047 = vmax.f32 %v1003, 0.0
        %v1048 = vmax.f32 %v1006, 0.0
        %v1049 = vmax.f32 %v1011, 0.0
        %v1050 = vmax.f32 %v1014, 0.0
        %v1051 = vmax.f32 %v1019, 0.0
        %v1052 = vmax.f32 %v1022, 0.0
        %v1053 = vmax.f32 %v1027, 0.0
        %v1054 = vmax.f32 %v1030, 0.0
        %v1055 = vmax.f32 %v1035, 0.0
        %v1056 = vmax.f32 %v1038, 0.0
        %1057 = vst [vmem:[%s407] sm:$0xff] %v1041
        %1058 = vst [vmem:[%s407 + $0x28] sm:$0xff] %v1042
        %1059 = vst [vmem:[%s407 + $0x50] sm:$0xff] %v1043
        %1060 = vst [vmem:[%s407 + $0x78] sm:$0xff] %v1044
        %1061 = vst [vmem:[%s407 + $0xa0] sm:$0xff] %v1045
        %1062 = vst [vmem:[%s407 + $0xc8] sm:$0xff] %v1046
        %1063 = vst [vmem:[%s407 + $0xf0] sm:$0xff] %v1047
        %1064 = vst [vmem:[%s407 + $0x118] sm:$0xff] %v1048
        %1065 = vst [vmem:[%s407 + $0x140] sm:$0xff] %v1049
        %1066 = vst [vmem:[%s407 + $0x168] sm:$0xff] %v1050
        %1067 = vst [vmem:[%s407 + $0x190] sm:$0xff] %v1051
        %1068 = vst [vmem:[%s407 + $0x1b8] sm:$0xff] %v1052
        %1069 = vst [vmem:[%s407 + $0x1e0] sm:$0xff] %v1053
        %1070 = vst [vmem:[%s407 + $0x208] sm:$0xff] %v1054
        %1071 = vst [vmem:[%s407 + $0x230] sm:$0xff] %v1055
        %1072 = vst [vmem:[%s407 + $0x258] sm:$0xff] %v1056
        %vm1097 = vcmask 1042432
        %vm1098 = vcmask 1046532
        %vm1099 = vmor %vm1097, %vm1098
        %v1100 = vrot.slane %v478, 5
        %v1101 = vrot.slane %v1100, 4
        %v1102 = vrot.slane %v479, 5
        %v1103 = vsel %vm1099, %v1101, %v1102
        %v1104 = vrot.slane %v1102, 4
        %v1105 = vrot.slane %v480, 5
        %v1106 = vsel %vm1099, %v1104, %v1105
        %v1107 = vrot.slane %v481, 5
        %v1108 = vrot.slane %v1107, 4
        %v1109 = vrot.slane %v482, 5
        %v1110 = vsel %vm1099, %v1108, %v1109
        %v1111 = vrot.slane %v1109, 4
        %v1112 = vrot.slane %v483, 5
        %v1113 = vsel %vm1099, %v1111, %v1112
        %v1114 = vrot.slane %v484, 5
        %v1115 = vrot.slane %v1114, 4
        %v1116 = vrot.slane %v485, 5
        %v1117 = vsel %vm1099, %v1115, %v1116
        %v1118 = vrot.slane %v1116, 4
        %v1119 = vrot.slane %v486, 5
        %v1120 = vsel %vm1099, %v1118, %v1119
        %v1121 = vrot.slane %v487, 5
        %v1122 = vrot.slane %v1121, 4
        %v1123 = vrot.slane %v488, 5
        %v1124 = vsel %vm1099, %v1122, %v1123
        %v1125 = vrot.slane %v1123, 4
        %v1126 = vrot.slane %v489, 5
        %v1127 = vsel %vm1099, %v1125, %v1126
        %v1128 = vrot.slane %v490, 5
        %v1129 = vrot.slane %v1128, 4
        %v1130 = vrot.slane %v491, 5
        %v1131 = vsel %vm1099, %v1129, %v1130
        %v1132 = vrot.slane %v1130, 4
        %v1133 = vrot.slane %v492, 5
        %v1134 = vsel %vm1099, %v1132, %v1133
        %v1135 = vrot.slane %v493, 5
        %v1136 = vrot.slane %v1135, 4
        %v1137 = vrot.slane %v494, 5
        %v1138 = vsel %vm1099, %v1136, %v1137
        %v1139 = vrot.slane %v1137, 4
        %v1140 = vrot.slane %v495, 5
        %v1141 = vsel %vm1099, %v1139, %v1140
        %v1142 = vrot.slane %v496, 5
        %v1143 = vrot.slane %v1142, 4
        %v1144 = vrot.slane %v497, 5
        %v1145 = vsel %vm1099, %v1143, %v1144
        %v1146 = vrot.slane %v1144, 4
        %v1147 = vrot.slane %v498, 5
        %v1148 = vsel %vm1099, %v1146, %v1147
        %v1149 = vrot.slane %v499, 5
        %v1150 = vrot.slane %v1149, 4
        %v1151 = vrot.slane %v500, 5
        %v1152 = vsel %vm1099, %v1150, %v1151
        %v1153 = vrot.slane %v1151, 4
        %v1154 = vrot.slane %v501, 5
        %v1155 = vsel %vm1099, %v1153, %v1154
        %v1157 = vshrl.u32 %v478, 16
        %v1159 = vrot.slane %v1157, 5
        %v1160 = vshll.u32 %v478, 16
        %v1162 = vrot.slane %v1160, 6
        %v1163 = vor.u32 %v1159, %v1162
        %v1164 = vrot.slane %v1163, 4
        %v1166 = vshrl.u32 %v479, 16
        %v1168 = vrot.slane %v1166, 5
        %v1169 = vshll.u32 %v479, 16
        %v1171 = vrot.slane %v1169, 6
        %v1172 = vor.u32 %v1168, %v1171
        %v1173 = vsel %vm616, %v1164, %v1172
        %v1174 = vrot.slane %v1172, 4
        %v1176 = vshrl.u32 %v480, 16
        %v1178 = vrot.slane %v1176, 5
        %v1179 = vshll.u32 %v480, 16
        %v1181 = vrot.slane %v1179, 6
        %v1182 = vor.u32 %v1178, %v1181
        %v1183 = vsel %vm616, %v1174, %v1182
        %v1185 = vshrl.u32 %v481, 16
        %v1187 = vrot.slane %v1185, 5
        %v1188 = vshll.u32 %v481, 16
        %v1190 = vrot.slane %v1188, 6
        %v1191 = vor.u32 %v1187, %v1190
        %v1192 = vrot.slane %v1191, 4
        %v1194 = vshrl.u32 %v482, 16
        %v1196 = vrot.slane %v1194, 5
        %v1197 = vshll.u32 %v482, 16
        %v1199 = vrot.slane %v1197, 6
        %v1200 = vor.u32 %v1196, %v1199
        %v1201 = vsel %vm616, %v1192, %v1200
        %v1202 = vrot.slane %v1200, 4
        %v1204 = vshrl.u32 %v483, 16
        %v1206 = vrot.slane %v1204, 5
        %v1207 = vshll.u32 %v483, 16
        %v1209 = vrot.slane %v1207, 6
        %v1210 = vor.u32 %v1206, %v1209
        %v1211 = vsel %vm616, %v1202, %v1210
        %v1213 = vshrl.u32 %v484, 16
        %v1215 = vrot.slane %v1213, 5
        %v1216 = vshll.u32 %v484, 16
        %v1218 = vrot.slane %v1216, 6
        %v1219 = vor.u32 %v1215, %v1218
        %v1220 = vrot.slane %v1219, 4
        %v1222 = vshrl.u32 %v485, 16
        %v1224 = vrot.slane %v1222, 5
        %v1225 = vshll.u32 %v485, 16
        %v1227 = vrot.slane %v1225, 6
        %v1228 = vor.u32 %v1224, %v1227
        %v1229 = vsel %vm616, %v1220, %v1228
        %v1230 = vrot.slane %v1228, 4
        %v1232 = vshrl.u32 %v486, 16
        %v1234 = vrot.slane %v1232, 5
        %v1235 = vshll.u32 %v486, 16
        %v1237 = vrot.slane %v1235, 6
        %v1238 = vor.u32 %v1234, %v1237
        %v1239 = vsel %vm616, %v1230, %v1238
        %v1241 = vshrl.u32 %v487, 16
        %v1243 = vrot.slane %v1241, 5
        %v1244 = vshll.u32 %v487, 16
        %v1246 = vrot.slane %v1244, 6
        %v1247 = vor.u32 %v1243, %v1246
        %v1248 = vrot.slane %v1247, 4
        %v1250 = vshrl.u32 %v488, 16
        %v1252 = vrot.slane %v1250, 5
        %v1253 = vshll.u32 %v488, 16
        %v1255 = vrot.slane %v1253, 6
        %v1256 = vor.u32 %v1252, %v1255
        %v1257 = vsel %vm616, %v1248, %v1256
        %v1258 = vrot.slane %v1256, 4
        %v1260 = vshrl.u32 %v489, 16
        %v1262 = vrot.slane %v1260, 5
        %v1263 = vshll.u32 %v489, 16
        %v1265 = vrot.slane %v1263, 6
        %v1266 = vor.u32 %v1262, %v1265
        %v1267 = vsel %vm616, %v1258, %v1266
        %v1269 = vshrl.u32 %v490, 16
        %v1271 = vrot.slane %v1269, 5
        %v1272 = vshll.u32 %v490, 16
        %v1274 = vrot.slane %v1272, 6
        %v1275 = vor.u32 %v1271, %v1274
        %v1276 = vrot.slane %v1275, 4
        %v1278 = vshrl.u32 %v491, 16
        %v1280 = vrot.slane %v1278, 5
        %v1281 = vshll.u32 %v491, 16
        %v1283 = vrot.slane %v1281, 6
        %v1284 = vor.u32 %v1280, %v1283
        %v1285 = vsel %vm616, %v1276, %v1284
        %v1286 = vrot.slane %v1284, 4
        %v1288 = vshrl.u32 %v492, 16
        %v1290 = vrot.slane %v1288, 5
        %v1291 = vshll.u32 %v492, 16
        %v1293 = vrot.slane %v1291, 6
        %v1294 = vor.u32 %v1290, %v1293
        %v1295 = vsel %vm616, %v1286, %v1294
        %v1297 = vshrl.u32 %v493, 16
        %v1299 = vrot.slane %v1297, 5
        %v1300 = vshll.u32 %v493, 16
        %v1302 = vrot.slane %v1300, 6
        %v1303 = vor.u32 %v1299, %v1302
        %v1304 = vrot.slane %v1303, 4
        %v1306 = vshrl.u32 %v494, 16
        %v1308 = vrot.slane %v1306, 5
        %v1309 = vshll.u32 %v494, 16
        %v1311 = vrot.slane %v1309, 6
        %v1312 = vor.u32 %v1308, %v1311
        %v1313 = vsel %vm616, %v1304, %v1312
        %v1314 = vrot.slane %v1312, 4
        %v1316 = vshrl.u32 %v495, 16
        %v1318 = vrot.slane %v1316, 5
        %v1319 = vshll.u32 %v495, 16
        %v1321 = vrot.slane %v1319, 6
        %v1322 = vor.u32 %v1318, %v1321
        %v1323 = vsel %vm616, %v1314, %v1322
        %v1325 = vshrl.u32 %v496, 16
        %v1327 = vrot.slane %v1325, 5
        %v1328 = vshll.u32 %v496, 16
        %v1330 = vrot.slane %v1328, 6
        %v1331 = vor.u32 %v1327, %v1330
        %v1332 = vrot.slane %v1331, 4
        %v1334 = vshrl.u32 %v497, 16
        %v1336 = vrot.slane %v1334, 5
        %v1337 = vshll.u32 %v497, 16
        %v1339 = vrot.slane %v1337, 6
        %v1340 = vor.u32 %v1336, %v1339
        %v1341 = vsel %vm616, %v1332, %v1340
        %v1342 = vrot.slane %v1340, 4
        %v1344 = vshrl.u32 %v498, 16
        %v1346 = vrot.slane %v1344, 5
        %v1347 = vshll.u32 %v498, 16
        %v1349 = vrot.slane %v1347, 6
        %v1350 = vor.u32 %v1346, %v1349
        %v1351 = vsel %vm616, %v1342, %v1350
        %v1353 = vshrl.u32 %v499, 16
        %v1355 = vrot.slane %v1353, 5
        %v1356 = vshll.u32 %v499, 16
        %v1358 = vrot.slane %v1356, 6
        %v1359 = vor.u32 %v1355, %v1358
        %v1360 = vrot.slane %v1359, 4
        %v1362 = vshrl.u32 %v500, 16
        %v1364 = vrot.slane %v1362, 5
        %v1365 = vshll.u32 %v500, 16
        %v1367 = vrot.slane %v1365, 6
        %v1368 = vor.u32 %v1364, %v1367
        %v1369 = vsel %vm616, %v1360, %v1368
        %v1370 = vrot.slane %v1368, 4
        %v1372 = vshrl.u32 %v501, 16
        %v1374 = vrot.slane %v1372, 5
        %v1375 = vshll.u32 %v501, 16
        %v1377 = vrot.slane %v1375, 6
        %v1378 = vor.u32 %v1374, %v1377
        %v1379 = vsel %vm616, %v1370, %v1378
        %vm1380 = vcmask 1041408
        %vm1381 = vcmask 1045508
        %vm1382 = vmor %vm1380, %vm1381
        %v1383 = vrot.slane %v478, 6
        %v1384 = vrot.slane %v1383, 4
        %v1385 = vrot.slane %v479, 6
        %v1386 = vsel %vm1382, %v1384, %v1385
        %v1387 = vrot.slane %v1385, 4
        %v1388 = vrot.slane %v480, 6
        %v1389 = vsel %vm1382, %v1387, %v1388
        %v1390 = vrot.slane %v481, 6
        %v1391 = vrot.slane %v1390, 4
        %v1392 = vrot.slane %v482, 6
        %v1393 = vsel %vm1382, %v1391, %v1392
        %v1394 = vrot.slane %v1392, 4
        %v1395 = vrot.slane %v483, 6
        %v1396 = vsel %vm1382, %v1394, %v1395
        %v1397 = vrot.slane %v484, 6
        %v1398 = vrot.slane %v1397, 4
        %v1399 = vrot.slane %v485, 6
        %v1400 = vsel %vm1382, %v1398, %v1399
        %v1401 = vrot.slane %v1399, 4
        %v1402 = vrot.slane %v486, 6
        %v1403 = vsel %vm1382, %v1401, %v1402
        %v1404 = vrot.slane %v487, 6
        %v1405 = vrot.slane %v1404, 4
        %v1406 = vrot.slane %v488, 6
        %v1407 = vsel %vm1382, %v1405, %v1406
        %v1408 = vrot.slane %v1406, 4
        %v1409 = vrot.slane %v489, 6
        %v1410 = vsel %vm1382, %v1408, %v1409
        %v1411 = vrot.slane %v490, 6
        %v1412 = vrot.slane %v1411, 4
        %v1413 = vrot.slane %v491, 6
        %v1414 = vsel %vm1382, %v1412, %v1413
        %v1415 = vrot.slane %v1413, 4
        %v1416 = vrot.slane %v492, 6
        %v1417 = vsel %vm1382, %v1415, %v1416
        %v1418 = vrot.slane %v493, 6
        %v1419 = vrot.slane %v1418, 4
        %v1420 = vrot.slane %v494, 6
        %v1421 = vsel %vm1382, %v1419, %v1420
        %v1422 = vrot.slane %v1420, 4
        %v1423 = vrot.slane %v495, 6
        %v1424 = vsel %vm1382, %v1422, %v1423
        %v1425 = vrot.slane %v496, 6
        %v1426 = vrot.slane %v1425, 4
        %v1427 = vrot.slane %v497, 6
        %v1428 = vsel %vm1382, %v1426, %v1427
        %v1429 = vrot.slane %v1427, 4
        %v1430 = vrot.slane %v498, 6
        %v1431 = vsel %vm1382, %v1429, %v1430
        %v1432 = vrot.slane %v499, 6
        %v1433 = vrot.slane %v1432, 4
        %v1434 = vrot.slane %v500, 6
        %v1435 = vsel %vm1382, %v1433, %v1434
        %v1436 = vrot.slane %v1434, 4
        %v1437 = vrot.slane %v501, 6
        %v1438 = vsel %vm1382, %v1436, %v1437
        %v1463 = vrot.slane %v506, 5
        %v1464 = vrot.slane %v1463, 4
        %v1465 = vrot.slane %v507, 5
        %v1466 = vsel %vm1099, %v1464, %v1465
        %v1467 = vrot.slane %v1465, 4
        %v1468 = vrot.slane %v508, 5
        %v1469 = vsel %vm1099, %v1467, %v1468
        %v1470 = vrot.slane %v509, 5
        %v1471 = vrot.slane %v1470, 4
        %v1472 = vrot.slane %v510, 5
        %v1473 = vsel %vm1099, %v1471, %v1472
        %v1474 = vrot.slane %v1472, 4
        %v1475 = vrot.slane %v511, 5
        %v1476 = vsel %vm1099, %v1474, %v1475
        %v1477 = vrot.slane %v512, 5
        %v1478 = vrot.slane %v1477, 4
        %v1479 = vrot.slane %v513, 5
        %v1480 = vsel %vm1099, %v1478, %v1479
        %v1481 = vrot.slane %v1479, 4
        %v1482 = vrot.slane %v514, 5
        %v1483 = vsel %vm1099, %v1481, %v1482
        %v1484 = vrot.slane %v515, 5
        %v1485 = vrot.slane %v1484, 4
        %v1486 = vrot.slane %v516, 5
        %v1487 = vsel %vm1099, %v1485, %v1486
        %v1488 = vrot.slane %v1486, 4
        %v1489 = vrot.slane %v517, 5
        %v1490 = vsel %vm1099, %v1488, %v1489
        %v1491 = vrot.slane %v518, 5
        %v1492 = vrot.slane %v1491, 4
        %v1493 = vrot.slane %v519, 5
        %v1494 = vsel %vm1099, %v1492, %v1493
        %v1495 = vrot.slane %v1493, 4
        %v1496 = vrot.slane %v520, 5
        %v1497 = vsel %vm1099, %v1495, %v1496
        %v1498 = vrot.slane %v521, 5
        %v1499 = vrot.slane %v1498, 4
        %v1500 = vrot.slane %v522, 5
        %v1501 = vsel %vm1099, %v1499, %v1500
        %v1502 = vrot.slane %v1500, 4
        %v1503 = vrot.slane %v523, 5
        %v1504 = vsel %vm1099, %v1502, %v1503
        %v1505 = vrot.slane %v524, 5
        %v1506 = vrot.slane %v1505, 4
        %v1507 = vrot.slane %v525, 5
        %v1508 = vsel %vm1099, %v1506, %v1507
        %v1509 = vrot.slane %v1507, 4
        %v1510 = vrot.slane %v526, 5
        %v1511 = vsel %vm1099, %v1509, %v1510
        %v1512 = vrot.slane %v527, 5
        %v1513 = vrot.slane %v1512, 4
        %v1514 = vrot.slane %v528, 5
        %v1515 = vsel %vm1099, %v1513, %v1514
        %v1516 = vrot.slane %v1514, 4
        %v1517 = vrot.slane %v529, 5
        %v1518 = vsel %vm1099, %v1516, %v1517
        %v1519 = vrot.slane %v506, 6
        %v1520 = vrot.slane %v1519, 4
        %v1521 = vrot.slane %v507, 6
        %v1522 = vsel %vm1382, %v1520, %v1521
        %v1523 = vrot.slane %v1521, 4
        %v1524 = vrot.slane %v508, 6
        %v1525 = vsel %vm1382, %v1523, %v1524
        %v1526 = vrot.slane %v509, 6
        %v1527 = vrot.slane %v1526, 4
        %v1528 = vrot.slane %v510, 6
        %v1529 = vsel %vm1382, %v1527, %v1528
        %v1530 = vrot.slane %v1528, 4
        %v1531 = vrot.slane %v511, 6
        %v1532 = vsel %vm1382, %v1530, %v1531
        %v1533 = vrot.slane %v512, 6
        %v1534 = vrot.slane %v1533, 4
        %v1535 = vrot.slane %v513, 6
        %v1536 = vsel %vm1382, %v1534, %v1535
        %v1537 = vrot.slane %v1535, 4
        %v1538 = vrot.slane %v514, 6
        %v1539 = vsel %vm1382, %v1537, %v1538
        %v1540 = vrot.slane %v515, 6
        %v1541 = vrot.slane %v1540, 4
        %v1542 = vrot.slane %v516, 6
        %v1543 = vsel %vm1382, %v1541, %v1542
        %v1544 = vrot.slane %v1542, 4
        %v1545 = vrot.slane %v517, 6
        %v1546 = vsel %vm1382, %v1544, %v1545
        %v1547 = vrot.slane %v518, 6
        %v1548 = vrot.slane %v1547, 4
        %v1549 = vrot.slane %v519, 6
        %v1550 = vsel %vm1382, %v1548, %v1549
        %v1551 = vrot.slane %v1549, 4
        %v1552 = vrot.slane %v520, 6
        %v1553 = vsel %vm1382, %v1551, %v1552
        %v1554 = vrot.slane %v521, 6
        %v1555 = vrot.slane %v1554, 4
        %v1556 = vrot.slane %v522, 6
        %v1557 = vsel %vm1382, %v1555, %v1556
        %v1558 = vrot.slane %v1556, 4
        %v1559 = vrot.slane %v523, 6
        %v1560 = vsel %vm1382, %v1558, %v1559
        %v1561 = vrot.slane %v524, 6
        %v1562 = vrot.slane %v1561, 4
        %v1563 = vrot.slane %v525, 6
        %v1564 = vsel %vm1382, %v1562, %v1563
        %v1565 = vrot.slane %v1563, 4
        %v1566 = vrot.slane %v526, 6
        %v1567 = vsel %vm1382, %v1565, %v1566
        %v1568 = vrot.slane %v527, 6
        %v1569 = vrot.slane %v1568, 4
        %v1570 = vrot.slane %v528, 6
        %v1571 = vsel %vm1382, %v1569, %v1570
        %v1572 = vrot.slane %v1570, 4
        %v1573 = vrot.slane %v529, 6
        %v1574 = vsel %vm1382, %v1572, %v1573
        %v1599 = vrot.slane %v534, 5
        %v1600 = vrot.slane %v1599, 4
        %v1601 = vrot.slane %v535, 5
        %v1602 = vsel %vm1099, %v1600, %v1601
        %v1603 = vrot.slane %v1601, 4
        %v1604 = vrot.slane %v536, 5
        %v1605 = vsel %vm1099, %v1603, %v1604
        %v1606 = vrot.slane %v537, 5
        %v1607 = vrot.slane %v1606, 4
        %v1608 = vrot.slane %v538, 5
        %v1609 = vsel %vm1099, %v1607, %v1608
        %v1610 = vrot.slane %v1608, 4
        %v1611 = vrot.slane %v539, 5
        %v1612 = vsel %vm1099, %v1610, %v1611
        %v1613 = vrot.slane %v540, 5
        %v1614 = vrot.slane %v1613, 4
        %v1615 = vrot.slane %v541, 5
        %v1616 = vsel %vm1099, %v1614, %v1615
        %v1617 = vrot.slane %v1615, 4
        %v1618 = vrot.slane %v542, 5
        %v1619 = vsel %vm1099, %v1617, %v1618
        %v1620 = vrot.slane %v543, 5
        %v1621 = vrot.slane %v1620, 4
        %v1622 = vrot.slane %v544, 5
        %v1623 = vsel %vm1099, %v1621, %v1622
        %v1624 = vrot.slane %v1622, 4
        %v1625 = vrot.slane %v545, 5
        %v1626 = vsel %vm1099, %v1624, %v1625
        %v1627 = vrot.slane %v546, 5
        %v1628 = vrot.slane %v1627, 4
        %v1629 = vrot.slane %v547, 5
        %v1630 = vsel %vm1099, %v1628, %v1629
        %v1631 = vrot.slane %v1629, 4
        %v1632 = vrot.slane %v548, 5
        %v1633 = vsel %vm1099, %v1631, %v1632
        %v1634 = vrot.slane %v549, 5
        %v1635 = vrot.slane %v1634, 4
        %v1636 = vrot.slane %v550, 5
        %v1637 = vsel %vm1099, %v1635, %v1636
        %v1638 = vrot.slane %v1636, 4
        %v1639 = vrot.slane %v551, 5
        %v1640 = vsel %vm1099, %v1638, %v1639
        %v1641 = vrot.slane %v552, 5
        %v1642 = vrot.slane %v1641, 4
        %v1643 = vrot.slane %v553, 5
        %v1644 = vsel %vm1099, %v1642, %v1643
        %v1645 = vrot.slane %v1643, 4
        %v1646 = vrot.slane %v554, 5
        %v1647 = vsel %vm1099, %v1645, %v1646
        %v1648 = vrot.slane %v555, 5
        %v1649 = vrot.slane %v1648, 4
        %v1650 = vrot.slane %v556, 5
        %v1651 = vsel %vm1099, %v1649, %v1650
        %v1652 = vrot.slane %v1650, 4
        %v1653 = vrot.slane %v557, 5
        %v1654 = vsel %vm1099, %v1652, %v1653
        %v1656 = vshrl.u32 %v534, 16
        %v1658 = vrot.slane %v1656, 5
        %v1659 = vshll.u32 %v534, 16
        %v1661 = vrot.slane %v1659, 6
        %v1662 = vor.u32 %v1658, %v1661
        %v1663 = vrot.slane %v1662, 4
        %v1665 = vshrl.u32 %v535, 16
        %v1667 = vrot.slane %v1665, 5
        %v1668 = vshll.u32 %v535, 16
        %v1670 = vrot.slane %v1668, 6
        %v1671 = vor.u32 %v1667, %v1670
        %v1672 = vsel %vm616, %v1663, %v1671
        %v1673 = vrot.slane %v1671, 4
        %v1675 = vshrl.u32 %v536, 16
        %v1677 = vrot.slane %v1675, 5
        %v1678 = vshll.u32 %v536, 16
        %v1680 = vrot.slane %v1678, 6
        %v1681 = vor.u32 %v1677, %v1680
        %v1682 = vsel %vm616, %v1673, %v1681
        %v1684 = vshrl.u32 %v537, 16
        %v1686 = vrot.slane %v1684, 5
        %v1687 = vshll.u32 %v537, 16
        %v1689 = vrot.slane %v1687, 6
        %v1690 = vor.u32 %v1686, %v1689
        %v1691 = vrot.slane %v1690, 4
        %v1693 = vshrl.u32 %v538, 16
        %v1695 = vrot.slane %v1693, 5
        %v1696 = vshll.u32 %v538, 16
        %v1698 = vrot.slane %v1696, 6
        %v1699 = vor.u32 %v1695, %v1698
        %v1700 = vsel %vm616, %v1691, %v1699
        %v1701 = vrot.slane %v1699, 4
        %v1703 = vshrl.u32 %v539, 16
        %v1705 = vrot.slane %v1703, 5
        %v1706 = vshll.u32 %v539, 16
        %v1708 = vrot.slane %v1706, 6
        %v1709 = vor.u32 %v1705, %v1708
        %v1710 = vsel %vm616, %v1701, %v1709
        %v1712 = vshrl.u32 %v540, 16
        %v1714 = vrot.slane %v1712, 5
        %v1715 = vshll.u32 %v540, 16
        %v1717 = vrot.slane %v1715, 6
        %v1718 = vor.u32 %v1714, %v1717
        %v1719 = vrot.slane %v1718, 4
        %v1721 = vshrl.u32 %v541, 16
        %v1723 = vrot.slane %v1721, 5
        %v1724 = vshll.u32 %v541, 16
        %v1726 = vrot.slane %v1724, 6
        %v1727 = vor.u32 %v1723, %v1726
        %v1728 = vsel %vm616, %v1719, %v1727
        %v1729 = vrot.slane %v1727, 4
        %v1731 = vshrl.u32 %v542, 16
        %v1733 = vrot.slane %v1731, 5
        %v1734 = vshll.u32 %v542, 16
        %v1736 = vrot.slane %v1734, 6
        %v1737 = vor.u32 %v1733, %v1736
        %v1738 = vsel %vm616, %v1729, %v1737
        %v1740 = vshrl.u32 %v543, 16
        %v1742 = vrot.slane %v1740, 5
        %v1743 = vshll.u32 %v543, 16
        %v1745 = vrot.slane %v1743, 6
        %v1746 = vor.u32 %v1742, %v1745
        %v1747 = vrot.slane %v1746, 4
        %v1749 = vshrl.u32 %v544, 16
        %v1751 = vrot.slane %v1749, 5
        %v1752 = vshll.u32 %v544, 16
        %v1754 = vrot.slane %v1752, 6
        %v1755 = vor.u32 %v1751, %v1754
        %v1756 = vsel %vm616, %v1747, %v1755
        %v1757 = vrot.slane %v1755, 4
        %v1759 = vshrl.u32 %v545, 16
        %v1761 = vrot.slane %v1759, 5
        %v1762 = vshll.u32 %v545, 16
        %v1764 = vrot.slane %v1762, 6
        %v1765 = vor.u32 %v1761, %v1764
        %v1766 = vsel %vm616, %v1757, %v1765
        %v1768 = vshrl.u32 %v546, 16
        %v1770 = vrot.slane %v1768, 5
        %v1771 = vshll.u32 %v546, 16
        %v1773 = vrot.slane %v1771, 6
        %v1774 = vor.u32 %v1770, %v1773
        %v1775 = vrot.slane %v1774, 4
        %v1777 = vshrl.u32 %v547, 16
        %v1779 = vrot.slane %v1777, 5
        %v1780 = vshll.u32 %v547, 16
        %v1782 = vrot.slane %v1780, 6
        %v1783 = vor.u32 %v1779, %v1782
        %v1784 = vsel %vm616, %v1775, %v1783
        %v1785 = vrot.slane %v1783, 4
        %v1787 = vshrl.u32 %v548, 16
        %v1789 = vrot.slane %v1787, 5
        %v1790 = vshll.u32 %v548, 16
        %v1792 = vrot.slane %v1790, 6
        %v1793 = vor.u32 %v1789, %v1792
        %v1794 = vsel %vm616, %v1785, %v1793
        %v1796 = vshrl.u32 %v549, 16
        %v1798 = vrot.slane %v1796, 5
        %v1799 = vshll.u32 %v549, 16
        %v1801 = vrot.slane %v1799, 6
        %v1802 = vor.u32 %v1798, %v1801
        %v1803 = vrot.slane %v1802, 4
        %v1805 = vshrl.u32 %v550, 16
        %v1807 = vrot.slane %v1805, 5
        %v1808 = vshll.u32 %v550, 16
        %v1810 = vrot.slane %v1808, 6
        %v1811 = vor.u32 %v1807, %v1810
        %v1812 = vsel %vm616, %v1803, %v1811
        %v1813 = vrot.slane %v1811, 4
        %v1815 = vshrl.u32 %v551, 16
        %v1817 = vrot.slane %v1815, 5
        %v1818 = vshll.u32 %v551, 16
        %v1820 = vrot.slane %v1818, 6
        %v1821 = vor.u32 %v1817, %v1820
        %v1822 = vsel %vm616, %v1813, %v1821
        %v1824 = vshrl.u32 %v552, 16
        %v1826 = vrot.slane %v1824, 5
        %v1827 = vshll.u32 %v552, 16
        %v1829 = vrot.slane %v1827, 6
        %v1830 = vor.u32 %v1826, %v1829
        %v1831 = vrot.slane %v1830, 4
        %v1833 = vshrl.u32 %v553, 16
        %v1835 = vrot.slane %v1833, 5
        %v1836 = vshll.u32 %v553, 16
        %v1838 = vrot.slane %v1836, 6
        %v1839 = vor.u32 %v1835, %v1838
        %v1840 = vsel %vm616, %v1831, %v1839
        %v1841 = vrot.slane %v1839, 4
        %v1843 = vshrl.u32 %v554, 16
        %v1845 = vrot.slane %v1843, 5
        %v1846 = vshll.u32 %v554, 16
        %v1848 = vrot.slane %v1846, 6
        %v1849 = vor.u32 %v1845, %v1848
        %v1850 = vsel %vm616, %v1841, %v1849
        %v1852 = vshrl.u32 %v555, 16
        %v1854 = vrot.slane %v1852, 5
        %v1855 = vshll.u32 %v555, 16
        %v1857 = vrot.slane %v1855, 6
        %v1858 = vor.u32 %v1854, %v1857
        %v1859 = vrot.slane %v1858, 4
        %v1861 = vshrl.u32 %v556, 16
        %v1863 = vrot.slane %v1861, 5
        %v1864 = vshll.u32 %v556, 16
        %v1866 = vrot.slane %v1864, 6
        %v1867 = vor.u32 %v1863, %v1866
        %v1868 = vsel %vm616, %v1859, %v1867
        %v1869 = vrot.slane %v1867, 4
        %v1871 = vshrl.u32 %v557, 16
        %v1873 = vrot.slane %v1871, 5
        %v1874 = vshll.u32 %v557, 16
        %v1876 = vrot.slane %v1874, 6
        %v1877 = vor.u32 %v1873, %v1876
        %v1878 = vsel %vm616, %v1869, %v1877
        %v1879 = vrot.slane %v534, 6
        %v1880 = vrot.slane %v1879, 4
        %v1881 = vrot.slane %v535, 6
        %v1882 = vsel %vm1382, %v1880, %v1881
        %v1883 = vrot.slane %v1881, 4
        %v1884 = vrot.slane %v536, 6
        %v1885 = vsel %vm1382, %v1883, %v1884
        %v1886 = vrot.slane %v537, 6
        %v1887 = vrot.slane %v1886, 4
        %v1888 = vrot.slane %v538, 6
        %v1889 = vsel %vm1382, %v1887, %v1888
        %v1890 = vrot.slane %v1888, 4
        %v1891 = vrot.slane %v539, 6
        %v1892 = vsel %vm1382, %v1890, %v1891
        %v1893 = vrot.slane %v540, 6
        %v1894 = vrot.slane %v1893, 4
        %v1895 = vrot.slane %v541, 6
        %v1896 = vsel %vm1382, %v1894, %v1895
        %v1897 = vrot.slane %v1895, 4
        %v1898 = vrot.slane %v542, 6
        %v1899 = vsel %vm1382, %v1897, %v1898
        %v1900 = vrot.slane %v543, 6
        %v1901 = vrot.slane %v1900, 4
        %v1902 = vrot.slane %v544, 6
        %v1903 = vsel %vm1382, %v1901, %v1902
        %v1904 = vrot.slane %v1902, 4
        %v1905 = vrot.slane %v545, 6
        %v1906 = vsel %vm1382, %v1904, %v1905
        %v1907 = vrot.slane %v546, 6
        %v1908 = vrot.slane %v1907, 4
        %v1909 = vrot.slane %v547, 6
        %v1910 = vsel %vm1382, %v1908, %v1909
        %v1911 = vrot.slane %v1909, 4
        %v1912 = vrot.slane %v548, 6
        %v1913 = vsel %vm1382, %v1911, %v1912
        %v1914 = vrot.slane %v549, 6
        %v1915 = vrot.slane %v1914, 4
        %v1916 = vrot.slane %v550, 6
        %v1917 = vsel %vm1382, %v1915, %v1916
        %v1918 = vrot.slane %v1916, 4
        %v1919 = vrot.slane %v551, 6
        %v1920 = vsel %vm1382, %v1918, %v1919
        %v1921 = vrot.slane %v552, 6
        %v1922 = vrot.slane %v1921, 4
        %v1923 = vrot.slane %v553, 6
        %v1924 = vsel %vm1382, %v1922, %v1923
        %v1925 = vrot.slane %v1923, 4
        %v1926 = vrot.slane %v554, 6
        %v1927 = vsel %vm1382, %v1925, %v1926
        %v1928 = vrot.slane %v555, 6
        %v1929 = vrot.slane %v1928, 4
        %v1930 = vrot.slane %v556, 6
        %v1931 = vsel %vm1382, %v1929, %v1930
        %v1932 = vrot.slane %v1930, 4
        %v1933 = vrot.slane %v557, 6
        %v1934 = vsel %vm1382, %v1932, %v1933
        %v1935 = vunpack.c.l.b16 %v1103
        %v1936 = vunpack.c.l.b16 %v1106
        %v1937 = vunpack.c.l.b16 %v1110
        %v1938 = vunpack.c.l.b16 %v1113
        %v1939 = vunpack.c.l.b16 %v1117
        %v1940 = vunpack.c.l.b16 %v1120
        %v1941 = vunpack.c.l.b16 %v1124
        %v1942 = vunpack.c.l.b16 %v1127
        %v1943 = vunpack.c.l.b16 %v1131
        %v1944 = vunpack.c.l.b16 %v1134
        %v1945 = vunpack.c.l.b16 %v1138
        %v1946 = vunpack.c.l.b16 %v1141
        %v1947 = vunpack.c.l.b16 %v1145
        %v1948 = vunpack.c.l.b16 %v1148
        %v1949 = vunpack.c.l.b16 %v1152
        %v1950 = vunpack.c.l.b16 %v1155
        %v1951 = vpack.c.b16 %v1936, %v1935
        %v1952 = vpack.c.b16 %v1938, %v1937
        %v1953 = vpack.c.b16 %v1940, %v1939
        %v1954 = vpack.c.b16 %v1942, %v1941
        %v1955 = vpack.c.b16 %v1944, %v1943
        %v1956 = vpack.c.b16 %v1946, %v1945
        %v1957 = vpack.c.b16 %v1948, %v1947
        %v1958 = vpack.c.b16 %v1950, %v1949
        %v1967 = vunpack.c.l.b16 %v1173
        %v1968 = vunpack.c.l.b16 %v1183
        %v1969 = vunpack.c.l.b16 %v1201
        %v1970 = vunpack.c.l.b16 %v1211
        %v1971 = vunpack.c.l.b16 %v1229
        %v1972 = vunpack.c.l.b16 %v1239
        %v1973 = vunpack.c.l.b16 %v1257
        %v1974 = vunpack.c.l.b16 %v1267
        %v1975 = vunpack.c.l.b16 %v1285
        %v1976 = vunpack.c.l.b16 %v1295
        %v1977 = vunpack.c.l.b16 %v1313
        %v1978 = vunpack.c.l.b16 %v1323
        %v1979 = vunpack.c.l.b16 %v1341
        %v1980 = vunpack.c.l.b16 %v1351
        %v1981 = vunpack.c.l.b16 %v1369
        %v1982 = vunpack.c.l.b16 %v1379
        %v1983 = vpack.c.b16 %v1968, %v1967
        %v1984 = vpack.c.b16 %v1970, %v1969
        %v1985 = vpack.c.b16 %v1972, %v1971
        %v1986 = vpack.c.b16 %v1974, %v1973
        %v1987 = vpack.c.b16 %v1976, %v1975
        %v1988 = vpack.c.b16 %v1978, %v1977
        %v1989 = vpack.c.b16 %v1980, %v1979
        %v1990 = vpack.c.b16 %v1982, %v1981
        %v1999 = vunpack.c.l.b16 %v1386
        %v2000 = vunpack.c.l.b16 %v1389
        %v2001 = vunpack.c.l.b16 %v1393
        %v2002 = vunpack.c.l.b16 %v1396
        %v2003 = vunpack.c.l.b16 %v1400
        %v2004 = vunpack.c.l.b16 %v1403
        %v2005 = vunpack.c.l.b16 %v1407
        %v2006 = vunpack.c.l.b16 %v1410
        %v2007 = vunpack.c.l.b16 %v1414
        %v2008 = vunpack.c.l.b16 %v1417
        %v2009 = vunpack.c.l.b16 %v1421
        %v2010 = vunpack.c.l.b16 %v1424
        %v2011 = vunpack.c.l.b16 %v1428
        %v2012 = vunpack.c.l.b16 %v1431
        %v2013 = vunpack.c.l.b16 %v1435
        %v2014 = vunpack.c.l.b16 %v1438
        %v2015 = vpack.c.b16 %v2000, %v1999
        %v2016 = vpack.c.b16 %v2002, %v2001
        %v2017 = vpack.c.b16 %v2004, %v2003
        %v2018 = vpack.c.b16 %v2006, %v2005
        %v2019 = vpack.c.b16 %v2008, %v2007
        %v2020 = vpack.c.b16 %v2010, %v2009
        %v2021 = vpack.c.b16 %v2012, %v2011
        %v2022 = vpack.c.b16 %v2014, %v2013
        %v2031 = vunpack.c.l.b16 %v1466
        %v2032 = vunpack.c.l.b16 %v1469
        %v2033 = vunpack.c.l.b16 %v1473
        %v2034 = vunpack.c.l.b16 %v1476
        %v2035 = vunpack.c.l.b16 %v1480
        %v2036 = vunpack.c.l.b16 %v1483
        %v2037 = vunpack.c.l.b16 %v1487
        %v2038 = vunpack.c.l.b16 %v1490
        %v2039 = vunpack.c.l.b16 %v1494
        %v2040 = vunpack.c.l.b16 %v1497
        %v2041 = vunpack.c.l.b16 %v1501
        %v2042 = vunpack.c.l.b16 %v1504
        %v2043 = vunpack.c.l.b16 %v1508
        %v2044 = vunpack.c.l.b16 %v1511
        %v2045 = vunpack.c.l.b16 %v1515
        %v2046 = vunpack.c.l.b16 %v1518
        %v2047 = vpack.c.b16 %v2032, %v2031
        %v2048 = vpack.c.b16 %v2034, %v2033
        %v2049 = vpack.c.b16 %v2036, %v2035
        %v2050 = vpack.c.b16 %v2038, %v2037
        %v2051 = vpack.c.b16 %v2040, %v2039
        %v2052 = vpack.c.b16 %v2042, %v2041
        %v2053 = vpack.c.b16 %v2044, %v2043
        %v2054 = vpack.c.b16 %v2046, %v2045
        %v2063 = vunpack.c.l.b16 %v1522
        %v2064 = vunpack.c.l.b16 %v1525
        %v2065 = vunpack.c.l.b16 %v1529
        %v2066 = vunpack.c.l.b16 %v1532
        %v2067 = vunpack.c.l.b16 %v1536
        %v2068 = vunpack.c.l.b16 %v1539
        %v2069 = vunpack.c.l.b16 %v1543
        %v2070 = vunpack.c.l.b16 %v1546
        %v2071 = vunpack.c.l.b16 %v1550
        %v2072 = vunpack.c.l.b16 %v1553
        %v2073 = vunpack.c.l.b16 %v1557
        %v2074 = vunpack.c.l.b16 %v1560
        %v2075 = vunpack.c.l.b16 %v1564
        %v2076 = vunpack.c.l.b16 %v1567
        %v2077 = vunpack.c.l.b16 %v1571
        %v2078 = vunpack.c.l.b16 %v1574
        %v2079 = vpack.c.b16 %v2064, %v2063
        %v2080 = vpack.c.b16 %v2066, %v2065
        %v2081 = vpack.c.b16 %v2068, %v2067
        %v2082 = vpack.c.b16 %v2070, %v2069
        %v2083 = vpack.c.b16 %v2072, %v2071
        %v2084 = vpack.c.b16 %v2074, %v2073
        %v2085 = vpack.c.b16 %v2076, %v2075
        %v2086 = vpack.c.b16 %v2078, %v2077
        %v2095 = vunpack.c.l.b16 %v1602
        %v2096 = vunpack.c.l.b16 %v1605
        %v2097 = vunpack.c.l.b16 %v1609
        %v2098 = vunpack.c.l.b16 %v1612
        %v2099 = vunpack.c.l.b16 %v1616
        %v2100 = vunpack.c.l.b16 %v1619
        %v2101 = vunpack.c.l.b16 %v1623
        %v2102 = vunpack.c.l.b16 %v1626
        %v2103 = vunpack.c.l.b16 %v1630
        %v2104 = vunpack.c.l.b16 %v1633
        %v2105 = vunpack.c.l.b16 %v1637
        %v2106 = vunpack.c.l.b16 %v1640
        %v2107 = vunpack.c.l.b16 %v1644
        %v2108 = vunpack.c.l.b16 %v1647
        %v2109 = vunpack.c.l.b16 %v1651
        %v2110 = vunpack.c.l.b16 %v1654
        %v2111 = vpack.c.b16 %v2096, %v2095
        %v2112 = vpack.c.b16 %v2098, %v2097
        %v2113 = vpack.c.b16 %v2100, %v2099
        %v2114 = vpack.c.b16 %v2102, %v2101
        %v2115 = vpack.c.b16 %v2104, %v2103
        %v2116 = vpack.c.b16 %v2106, %v2105
        %v2117 = vpack.c.b16 %v2108, %v2107
        %v2118 = vpack.c.b16 %v2110, %v2109
        %v2127 = vunpack.c.l.b16 %v1672
        %v2128 = vunpack.c.l.b16 %v1682
        %v2129 = vunpack.c.l.b16 %v1700
        %v2130 = vunpack.c.l.b16 %v1710
        %v2131 = vunpack.c.l.b16 %v1728
        %v2132 = vunpack.c.l.b16 %v1738
        %v2133 = vunpack.c.l.b16 %v1756
        %v2134 = vunpack.c.l.b16 %v1766
        %v2135 = vunpack.c.l.b16 %v1784
        %v2136 = vunpack.c.l.b16 %v1794
        %v2137 = vunpack.c.l.b16 %v1812
        %v2138 = vunpack.c.l.b16 %v1822
        %v2139 = vunpack.c.l.b16 %v1840
        %v2140 = vunpack.c.l.b16 %v1850
        %v2141 = vunpack.c.l.b16 %v1868
        %v2142 = vunpack.c.l.b16 %v1878
        %v2143 = vpack.c.b16 %v2128, %v2127
        %v2144 = vpack.c.b16 %v2130, %v2129
        %v2145 = vpack.c.b16 %v2132, %v2131
        %v2146 = vpack.c.b16 %v2134, %v2133
        %v2147 = vpack.c.b16 %v2136, %v2135
        %v2148 = vpack.c.b16 %v2138, %v2137
        %v2149 = vpack.c.b16 %v2140, %v2139
        %v2150 = vpack.c.b16 %v2142, %v2141
        %v2159 = vunpack.c.l.b16 %v1882
        %v2160 = vunpack.c.l.b16 %v1885
        %v2161 = vunpack.c.l.b16 %v1889
        %v2162 = vunpack.c.l.b16 %v1892
        %v2163 = vunpack.c.l.b16 %v1896
        %v2164 = vunpack.c.l.b16 %v1899
        %v2165 = vunpack.c.l.b16 %v1903
        %v2166 = vunpack.c.l.b16 %v1906
        %v2167 = vunpack.c.l.b16 %v1910
        %v2168 = vunpack.c.l.b16 %v1913
        %v2169 = vunpack.c.l.b16 %v1917
        %v2170 = vunpack.c.l.b16 %v1920
        %v2171 = vunpack.c.l.b16 %v1924
        %v2172 = vunpack.c.l.b16 %v1927
        %v2173 = vunpack.c.l.b16 %v1931
        %v2174 = vunpack.c.l.b16 %v1934
        %v2175 = vpack.c.b16 %v2160, %v2159
        %v2176 = vpack.c.b16 %v2162, %v2161
        %v2177 = vpack.c.b16 %v2164, %v2163
        %v2178 = vpack.c.b16 %v2166, %v2165
        %v2179 = vpack.c.b16 %v2168, %v2167
        %v2180 = vpack.c.b16 %v2170, %v2169
        %v2181 = vpack.c.b16 %v2172, %v2171
        %v2182 = vpack.c.b16 %v2174, %v2173
        %v2191 = vld [vmem:[#allocation7] sm:$0xf]
        %v2192 = vld [vmem:[#allocation7 + $0x4] sm:$0xf]
        %v2193 = vld [vmem:[#allocation7 + $0x8] sm:$0xf]
        %v2194 = vld [vmem:[#allocation7 + $0xc] sm:$0xf]
        %v2195 = vld [vmem:[#allocation7 + $0x10] sm:$0xf]
        %v2196 = vld [vmem:[#allocation7 + $0x14] sm:$0xf]
        %v2197 = vld [vmem:[#allocation7 + $0x18] sm:$0xf]
        %v2198 = vld [vmem:[#allocation7 + $0x1c] sm:$0xf]
        %v2199 = vld [vmem:[#allocation7 + $0x20] sm:$0xf]
        %v2200 = vld [vmem:[#allocation7 + $0x24] sm:$0xf]
        %v2201 = vld [vmem:[#allocation7 + $0x28] sm:$0xf]
        %v2202 = vld [vmem:[#allocation7 + $0x2c] sm:$0xf]
        %v2203 = vld [vmem:[#allocation7 + $0x30] sm:$0xf]
        %v2204 = vld [vmem:[#allocation7 + $0x34] sm:$0xf]
        %v2205 = vld [vmem:[#allocation7 + $0x38] sm:$0xf]
        %v2206 = vld [vmem:[#allocation7 + $0x3c] sm:$0xf]
        %v2207 = vld [vmem:[#allocation7 + $0x40] sm:$0xf]
        %v2208 = vld [vmem:[#allocation7 + $0x44] sm:$0xf]
        %v2209 = vld [vmem:[#allocation7 + $0x48] sm:$0xf]
        %v2210 = vld [vmem:[#allocation7 + $0x4c] sm:$0xf]
        %v2211 = vld [vmem:[#allocation7 + $0x50] sm:$0xf]
        %v2212 = vld [vmem:[#allocation7 + $0x54] sm:$0xf]
        %v2213 = vld [vmem:[#allocation7 + $0x58] sm:$0xf]
        %v2214 = vld [vmem:[#allocation7 + $0x5c] sm:$0xf]
        %v2215 = vld [vmem:[#allocation7 + $0x60] sm:$0xf]
        %v2216 = vld [vmem:[#allocation7 + $0x64] sm:$0xf]
        %v2217 = vld [vmem:[#allocation7 + $0x68] sm:$0xf]
        %v2218 = vld [vmem:[#allocation7 + $0x6c] sm:$0xf]
        %v2219 = vld [vmem:[#allocation7 + $0x70] sm:$0xf]
        %v2220 = vld [vmem:[#allocation7 + $0x74] sm:$0xf]
        %v2221 = vld [vmem:[#allocation7 + $0x78] sm:$0xf]
        %v2222 = vld [vmem:[#allocation7 + $0x7c] sm:$0xf]
        %v2223 = vld [vmem:[#allocation7 + $0x80] sm:$0xf]
        %v2224 = vld [vmem:[#allocation7 + $0x84] sm:$0xf]
        %v2225 = vld [vmem:[#allocation7 + $0x88] sm:$0xf]
        %v2226 = vld [vmem:[#allocation7 + $0x8c] sm:$0xf]
        %v2227 = vld [vmem:[#allocation7 + $0x90] sm:$0xf]
        %v2228 = vld [vmem:[#allocation7 + $0x94] sm:$0xf]
        %v2229 = vld [vmem:[#allocation7 + $0x98] sm:$0xf]
        %v2230 = vld [vmem:[#allocation7 + $0x9c] sm:$0xf]
        %v2231 = vld [vmem:[#allocation7 + $0xa0] sm:$0xf]
        %v2232 = vld [vmem:[#allocation7 + $0xa4] sm:$0xf]
        %v2233 = vld [vmem:[#allocation7 + $0xa8] sm:$0xf]
        %v2234 = vld [vmem:[#allocation7 + $0xac] sm:$0xf]
        %v2235 = vld [vmem:[#allocation7 + $0xb0] sm:$0xf]
        %v2236 = vld [vmem:[#allocation7 + $0xb4] sm:$0xf]
        %v2237 = vld [vmem:[#allocation7 + $0xb8] sm:$0xf]
        %v2238 = vld [vmem:[#allocation7 + $0xbc] sm:$0xf]
        %v2239 = vld [vmem:[#allocation7 + $0xc0] sm:$0xf]
        %v2240 = vld [vmem:[#allocation7 + $0xc4] sm:$0xf]
        %v2241 = vld [vmem:[#allocation7 + $0xc8] sm:$0xf]
        %v2242 = vld [vmem:[#allocation7 + $0xcc] sm:$0xf]
        %v2243 = vld [vmem:[#allocation7 + $0xd0] sm:$0xf]
        %v2244 = vld [vmem:[#allocation7 + $0xd4] sm:$0xf]
        %v2245 = vld [vmem:[#allocation7 + $0xd8] sm:$0xf]
        %v2246 = vld [vmem:[#allocation7 + $0xdc] sm:$0xf]
        %v2247 = vld [vmem:[#allocation7 + $0xe0] sm:$0xf]
        %v2248 = vld [vmem:[#allocation7 + $0xe4] sm:$0xf]
        %v2249 = vld [vmem:[#allocation7 + $0xe8] sm:$0xf]
        %v2250 = vld [vmem:[#allocation7 + $0xec] sm:$0xf]
        %v2251 = vld [vmem:[#allocation7 + $0xf0] sm:$0xf]
        %v2252 = vld [vmem:[#allocation7 + $0xf4] sm:$0xf]
        %v2253 = vld [vmem:[#allocation7 + $0xf8] sm:$0xf]
        %v2254 = vld [vmem:[#allocation7 + $0xfc] sm:$0xf]
        %v2255 = vld [vmem:[#allocation7 + $0x100] sm:$0xf]
        %v2256 = vld [vmem:[#allocation7 + $0x104] sm:$0xf]
        %v2257 = vld [vmem:[#allocation7 + $0x108] sm:$0xf]
        %v2258 = vld [vmem:[#allocation7 + $0x10c] sm:$0xf]
        %v2259 = vld [vmem:[#allocation7 + $0x110] sm:$0xf]
        %v2260 = vld [vmem:[#allocation7 + $0x114] sm:$0xf]
        %v2261 = vld [vmem:[#allocation7 + $0x118] sm:$0xf]
        %v2262 = vld [vmem:[#allocation7 + $0x11c] sm:$0xf]
        %v2263 = vld [vmem:[#allocation7 + $0x120] sm:$0xf]
        %v2264 = vld [vmem:[#allocation7 + $0x124] sm:$0xf]
        %v2265 = vld [vmem:[#allocation7 + $0x128] sm:$0xf]
        %v2266 = vld [vmem:[#allocation7 + $0x12c] sm:$0xf]
        %v2267 = vld [vmem:[#allocation7 + $0x130] sm:$0xf]
        %v2268 = vld [vmem:[#allocation7 + $0x134] sm:$0xf]
        %v2269 = vld [vmem:[#allocation7 + $0x138] sm:$0xf]
        %v2270 = vld [vmem:[#allocation7 + $0x13c] sm:$0xf]
        %v2271 = vld [vmem:[#allocation7 + $0x140] sm:$0xf]
        %v2272 = vld [vmem:[#allocation7 + $0x144] sm:$0xf]
        %v2273 = vld [vmem:[#allocation7 + $0x148] sm:$0xf]
        %v2274 = vld [vmem:[#allocation7 + $0x14c] sm:$0xf]
        %v2275 = vld [vmem:[#allocation7 + $0x150] sm:$0xf]
        %v2276 = vld [vmem:[#allocation7 + $0x154] sm:$0xf]
        %v2277 = vld [vmem:[#allocation7 + $0x158] sm:$0xf]
        %v2278 = vld [vmem:[#allocation7 + $0x15c] sm:$0xf]
        %v2279 = vld [vmem:[#allocation7 + $0x160] sm:$0xf]
        %v2280 = vld [vmem:[#allocation7 + $0x164] sm:$0xf]
        %v2281 = vld [vmem:[#allocation7 + $0x168] sm:$0xf]
        %v2282 = vld [vmem:[#allocation7 + $0x16c] sm:$0xf]
        %v2283 = vld [vmem:[#allocation7 + $0x170] sm:$0xf]
        %v2284 = vld [vmem:[#allocation7 + $0x174] sm:$0xf]
        %v2285 = vld [vmem:[#allocation7 + $0x178] sm:$0xf]
        %v2286 = vld [vmem:[#allocation7 + $0x17c] sm:$0xf]
        %v2287 = vld [vmem:[#allocation7 + $0x180] sm:$0xf]
        %v2288 = vld [vmem:[#allocation7 + $0x184] sm:$0xf]
        %v2289 = vld [vmem:[#allocation7 + $0x188] sm:$0xf]
        %v2290 = vld [vmem:[#allocation7 + $0x18c] sm:$0xf]
        %v2291 = vld [vmem:[#allocation7 + $0x190] sm:$0xf]
        %v2292 = vld [vmem:[#allocation7 + $0x194] sm:$0xf]
        %v2293 = vld [vmem:[#allocation7 + $0x198] sm:$0xf]
        %v2294 = vld [vmem:[#allocation7 + $0x19c] sm:$0xf]
        %v2295 = vld [vmem:[#allocation7 + $0x1a0] sm:$0xf]
        %v2296 = vld [vmem:[#allocation7 + $0x1a4] sm:$0xf]
        %v2297 = vld [vmem:[#allocation7 + $0x1a8] sm:$0xf]
        %v2298 = vld [vmem:[#allocation7 + $0x1ac] sm:$0xf]
        %v2299 = vld [vmem:[#allocation7 + $0x1b0] sm:$0xf]
        %v2300 = vld [vmem:[#allocation7 + $0x1b4] sm:$0xf]
        %v2301 = vld [vmem:[#allocation7 + $0x1b8] sm:$0xf]
        %v2302 = vld [vmem:[#allocation7 + $0x1bc] sm:$0xf]
        %v2303 = vld [vmem:[#allocation7 + $0x1c0] sm:$0xf]
        %v2304 = vld [vmem:[#allocation7 + $0x1c4] sm:$0xf]
        %v2305 = vld [vmem:[#allocation7 + $0x1c8] sm:$0xf]
        %v2306 = vld [vmem:[#allocation7 + $0x1cc] sm:$0xf]
        %v2307 = vld [vmem:[#allocation7 + $0x1d0] sm:$0xf]
        %v2308 = vld [vmem:[#allocation7 + $0x1d4] sm:$0xf]
        %v2309 = vld [vmem:[#allocation7 + $0x1d8] sm:$0xf]
        %v2310 = vld [vmem:[#allocation7 + $0x1dc] sm:$0xf]
        %v2311 = vld [vmem:[#allocation7 + $0x1e0] sm:$0xf]
        %v2312 = vld [vmem:[#allocation7 + $0x1e4] sm:$0xf]
        %v2313 = vld [vmem:[#allocation7 + $0x1e8] sm:$0xf]
        %v2314 = vld [vmem:[#allocation7 + $0x1ec] sm:$0xf]
        %v2315 = vld [vmem:[#allocation7 + $0x1f0] sm:$0xf]
        %v2316 = vld [vmem:[#allocation7 + $0x1f4] sm:$0xf]
        %v2317 = vld [vmem:[#allocation7 + $0x1f8] sm:$0xf]
        %v2318 = vld [vmem:[#allocation7 + $0x1fc] sm:$0xf]
        %v2319 = vld [vmem:[#allocation7 + $0x200] sm:$0xf]
        %v2320 = vld [vmem:[#allocation7 + $0x204] sm:$0xf]
        %v2321 = vld [vmem:[#allocation7 + $0x208] sm:$0xf]
        %v2322 = vld [vmem:[#allocation7 + $0x20c] sm:$0xf]
        %v2323 = vld [vmem:[#allocation7 + $0x210] sm:$0xf]
        %v2324 = vld [vmem:[#allocation7 + $0x214] sm:$0xf]
        %v2325 = vld [vmem:[#allocation7 + $0x218] sm:$0xf]
        %v2326 = vld [vmem:[#allocation7 + $0x21c] sm:$0xf]
        %v2327 = vld [vmem:[#allocation7 + $0x220] sm:$0xf]
        %v2328 = vld [vmem:[#allocation7 + $0x224] sm:$0xf]
        %v2329 = vld [vmem:[#allocation7 + $0x228] sm:$0xf]
        %v2330 = vld [vmem:[#allocation7 + $0x22c] sm:$0xf]
        %v2331 = vld [vmem:[#allocation7 + $0x230] sm:$0xf]
        %v2332 = vld [vmem:[#allocation7 + $0x234] sm:$0xf]
        %v2333 = vld [vmem:[#allocation7 + $0x238] sm:$0xf]
        %v2334 = vld [vmem:[#allocation7 + $0x23c] sm:$0xf]
        %v2335 = vld [vmem:[#allocation8] sm:$0x1]
        %v2337 = vlaneseq
        %v2338 = vshrl.u32 %v2337, 7
        %v2339 = vsub.s32 0, %v2338
        %v2340 = vrot.slane %v2335, %v2339
        %v2486 = vunpack.c.l.b16 %v2191
        %v2487 = vunpack.c.l.b16 %v2192
        %v2488 = vunpack.c.l.b16 %v2193
        %v2489 = vunpack.c.l.b16 %v2194
        %v2490 = vunpack.c.l.b16 %v2195
        %v2491 = vunpack.c.l.b16 %v2196
        %v2492 = vunpack.c.l.b16 %v2197
        %v2493 = vunpack.c.l.b16 %v2198
        %v2494 = vunpack.c.l.b16 %v2199
        %v2495 = vunpack.c.l.b16 %v2200
        %v2496 = vunpack.c.l.b16 %v2201
        %v2497 = vunpack.c.l.b16 %v2202
        %v2498 = vunpack.c.l.b16 %v2203
        %v2499 = vunpack.c.l.b16 %v2204
        %v2500 = vunpack.c.l.b16 %v2205
        %v2501 = vunpack.c.l.b16 %v2206
        %v2502 = vunpack.c.l.b16 %v2207
        %v2503 = vunpack.c.l.b16 %v2208
        %v2504 = vunpack.c.l.b16 %v2209
        %v2505 = vunpack.c.l.b16 %v2210
        %v2506 = vunpack.c.l.b16 %v2211
        %v2507 = vunpack.c.l.b16 %v2212
        %v2508 = vunpack.c.l.b16 %v2213
        %v2509 = vunpack.c.l.b16 %v2214
        %v2510 = vunpack.c.l.b16 %v2215
        %v2511 = vunpack.c.l.b16 %v2216
        %v2512 = vunpack.c.l.b16 %v2217
        %v2513 = vunpack.c.l.b16 %v2218
        %v2514 = vunpack.c.l.b16 %v2219
        %v2515 = vunpack.c.l.b16 %v2220
        %v2516 = vunpack.c.l.b16 %v2221
        %v2517 = vunpack.c.l.b16 %v2222
        %v2518 = vunpack.c.l.b16 %v2223
        %v2519 = vunpack.c.l.b16 %v2224
        %v2520 = vunpack.c.l.b16 %v2225
        %v2521 = vunpack.c.l.b16 %v2226
        %v2522 = vunpack.c.l.b16 %v2227
        %v2523 = vunpack.c.l.b16 %v2228
        %v2524 = vunpack.c.l.b16 %v2229
        %v2525 = vunpack.c.l.b16 %v2230
        %v2526 = vunpack.c.l.b16 %v2231
        %v2527 = vunpack.c.l.b16 %v2232
        %v2528 = vunpack.c.l.b16 %v2233
        %v2529 = vunpack.c.l.b16 %v2234
        %v2530 = vunpack.c.l.b16 %v2235
        %v2531 = vunpack.c.l.b16 %v2236
        %v2532 = vunpack.c.l.b16 %v2237
        %v2533 = vunpack.c.l.b16 %v2238
        %v2534 = vunpack.c.l.b16 %v2239
        %v2535 = vunpack.c.l.b16 %v2240
        %v2536 = vunpack.c.l.b16 %v2241
        %v2537 = vunpack.c.l.b16 %v2242
        %v2538 = vunpack.c.l.b16 %v2243
        %v2539 = vunpack.c.l.b16 %v2244
        %v2540 = vunpack.c.l.b16 %v2245
        %v2541 = vunpack.c.l.b16 %v2246
        %v2542 = vunpack.c.l.b16 %v2247
        %v2543 = vunpack.c.l.b16 %v2248
        %v2544 = vunpack.c.l.b16 %v2249
        %v2545 = vunpack.c.l.b16 %v2250
        %v2546 = vunpack.c.l.b16 %v2251
        %v2547 = vunpack.c.l.b16 %v2252
        %v2548 = vunpack.c.l.b16 %v2253
        %v2549 = vunpack.c.l.b16 %v2254
        %v2550 = vunpack.c.l.b16 %v2255
        %v2551 = vunpack.c.l.b16 %v2256
        %v2552 = vunpack.c.l.b16 %v2257
        %v2553 = vunpack.c.l.b16 %v2258
        %v2554 = vunpack.c.l.b16 %v2259
        %v2555 = vunpack.c.l.b16 %v2260
        %v2556 = vunpack.c.l.b16 %v2261
        %v2557 = vunpack.c.l.b16 %v2262
        %v2558 = vunpack.c.l.b16 %v2263
        %v2559 = vunpack.c.l.b16 %v2264
        %v2560 = vunpack.c.l.b16 %v2265
        %v2561 = vunpack.c.l.b16 %v2266
        %v2562 = vunpack.c.l.b16 %v2267
        %v2563 = vunpack.c.l.b16 %v2268
        %v2564 = vunpack.c.l.b16 %v2269
        %v2565 = vunpack.c.l.b16 %v2270
        %v2566 = vunpack.c.l.b16 %v2271
        %v2567 = vunpack.c.l.b16 %v2272
        %v2568 = vunpack.c.l.b16 %v2273
        %v2569 = vunpack.c.l.b16 %v2274
        %v2570 = vunpack.c.l.b16 %v2275
        %v2571 = vunpack.c.l.b16 %v2276
        %v2572 = vunpack.c.l.b16 %v2277
        %v2573 = vunpack.c.l.b16 %v2278
        %v2574 = vunpack.c.l.b16 %v2279
        %v2575 = vunpack.c.l.b16 %v2280
        %v2576 = vunpack.c.l.b16 %v2281
        %v2577 = vunpack.c.l.b16 %v2282
        %v2578 = vunpack.c.l.b16 %v2283
        %v2579 = vunpack.c.l.b16 %v2284
        %v2580 = vunpack.c.l.b16 %v2285
        %v2581 = vunpack.c.l.b16 %v2286
        %v2582 = vunpack.c.l.b16 %v2287
        %v2583 = vunpack.c.l.b16 %v2288
        %v2584 = vunpack.c.l.b16 %v2289
        %v2585 = vunpack.c.l.b16 %v2290
        %v2586 = vunpack.c.l.b16 %v2291
        %v2587 = vunpack.c.l.b16 %v2292
        %v2588 = vunpack.c.l.b16 %v2293
        %v2589 = vunpack.c.l.b16 %v2294
        %v2590 = vunpack.c.l.b16 %v2295
        %v2591 = vunpack.c.l.b16 %v2296
        %v2592 = vunpack.c.l.b16 %v2297
        %v2593 = vunpack.c.l.b16 %v2298
        %v2594 = vunpack.c.l.b16 %v2299
        %v2595 = vunpack.c.l.b16 %v2300
        %v2596 = vunpack.c.l.b16 %v2301
        %v2597 = vunpack.c.l.b16 %v2302
        %v2598 = vunpack.c.l.b16 %v2303
        %v2599 = vunpack.c.l.b16 %v2304
        %v2600 = vunpack.c.l.b16 %v2305
        %v2601 = vunpack.c.l.b16 %v2306
        %v2602 = vunpack.c.l.b16 %v2307
        %v2603 = vunpack.c.l.b16 %v2308
        %v2604 = vunpack.c.l.b16 %v2309
        %v2605 = vunpack.c.l.b16 %v2310
        %v2606 = vunpack.c.l.b16 %v2311
        %v2607 = vunpack.c.l.b16 %v2312
        %v2608 = vunpack.c.l.b16 %v2313
        %v2609 = vunpack.c.l.b16 %v2314
        %v2610 = vunpack.c.l.b16 %v2315
        %v2611 = vunpack.c.l.b16 %v2316
        %v2612 = vunpack.c.l.b16 %v2317
        %v2613 = vunpack.c.l.b16 %v2318
        %v2614 = vunpack.c.l.b16 %v2319
        %v2615 = vunpack.c.l.b16 %v2320
        %v2616 = vunpack.c.l.b16 %v2321
        %v2617 = vunpack.c.l.b16 %v2322
        %v2618 = vunpack.c.l.b16 %v2323
        %v2619 = vunpack.c.l.b16 %v2324
        %v2620 = vunpack.c.l.b16 %v2325
        %v2621 = vunpack.c.l.b16 %v2326
        %v2622 = vunpack.c.l.b16 %v2327
        %v2623 = vunpack.c.l.b16 %v2328
        %v2624 = vunpack.c.l.b16 %v2329
        %v2625 = vunpack.c.l.b16 %v2330
        %v2626 = vunpack.c.l.b16 %v2331
        %v2627 = vunpack.c.l.b16 %v2332
        %v2628 = vunpack.c.l.b16 %v2333
        %v2629 = vunpack.c.l.b16 %v2334
        %v2630 = vpack.c.b16 %v2487, %v2486
        %v2631 = vpack.c.b16 %v2489, %v2488
        %v2632 = vpack.c.b16 %v2491, %v2490
        %v2633 = vpack.c.b16 %v2493, %v2492
        %v2634 = vpack.c.b16 %v2495, %v2494
        %v2635 = vpack.c.b16 %v2497, %v2496
        %v2636 = vpack.c.b16 %v2499, %v2498
        %v2637 = vpack.c.b16 %v2501, %v2500
        %v2638 = vpack.c.b16 %v2503, %v2502
        %v2639 = vpack.c.b16 %v2505, %v2504
        %v2640 = vpack.c.b16 %v2507, %v2506
        %v2641 = vpack.c.b16 %v2509, %v2508
        %v2642 = vpack.c.b16 %v2511, %v2510
        %v2643 = vpack.c.b16 %v2513, %v2512
        %v2644 = vpack.c.b16 %v2515, %v2514
        %v2645 = vpack.c.b16 %v2517, %v2516
        %v2646 = vpack.c.b16 %v2519, %v2518
        %v2647 = vpack.c.b16 %v2521, %v2520
        %v2648 = vpack.c.b16 %v2523, %v2522
        %v2649 = vpack.c.b16 %v2525, %v2524
        %v2650 = vpack.c.b16 %v2527, %v2526
        %v2651 = vpack.c.b16 %v2529, %v2528
        %v2652 = vpack.c.b16 %v2531, %v2530
        %v2653 = vpack.c.b16 %v2533, %v2532
        %v2654 = vpack.c.b16 %v2535, %v2534
        %v2655 = vpack.c.b16 %v2537, %v2536
        %v2656 = vpack.c.b16 %v2539, %v2538
        %v2657 = vpack.c.b16 %v2541, %v2540
        %v2658 = vpack.c.b16 %v2543, %v2542
        %v2659 = vpack.c.b16 %v2545, %v2544
        %v2660 = vpack.c.b16 %v2547, %v2546
        %v2661 = vpack.c.b16 %v2549, %v2548
        %v2662 = vpack.c.b16 %v2551, %v2550
        %v2663 = vpack.c.b16 %v2553, %v2552
        %v2664 = vpack.c.b16 %v2555, %v2554
        %v2665 = vpack.c.b16 %v2557, %v2556
        %v2666 = vpack.c.b16 %v2559, %v2558
        %v2667 = vpack.c.b16 %v2561, %v2560
        %v2668 = vpack.c.b16 %v2563, %v2562
        %v2669 = vpack.c.b16 %v2565, %v2564
        %v2670 = vpack.c.b16 %v2567, %v2566
        %v2671 = vpack.c.b16 %v2569, %v2568
        %v2672 = vpack.c.b16 %v2571, %v2570
        %v2673 = vpack.c.b16 %v2573, %v2572
        %v2674 = vpack.c.b16 %v2575, %v2574
        %v2675 = vpack.c.b16 %v2577, %v2576
        %v2676 = vpack.c.b16 %v2579, %v2578
        %v2677 = vpack.c.b16 %v2581, %v2580
        %v2678 = vpack.c.b16 %v2583, %v2582
        %v2679 = vpack.c.b16 %v2585, %v2584
        %v2680 = vpack.c.b16 %v2587, %v2586
        %v2681 = vpack.c.b16 %v2589, %v2588
        %v2682 = vpack.c.b16 %v2591, %v2590
        %v2683 = vpack.c.b16 %v2593, %v2592
        %v2684 = vpack.c.b16 %v2595, %v2594
        %v2685 = vpack.c.b16 %v2597, %v2596
        %v2686 = vpack.c.b16 %v2599, %v2598
        %v2687 = vpack.c.b16 %v2601, %v2600
        %v2688 = vpack.c.b16 %v2603, %v2602
        %v2689 = vpack.c.b16 %v2605, %v2604
        %v2690 = vpack.c.b16 %v2607, %v2606
        %v2691 = vpack.c.b16 %v2609, %v2608
        %v2692 = vpack.c.b16 %v2611, %v2610
        %v2693 = vpack.c.b16 %v2613, %v2612
        %v2694 = vpack.c.b16 %v2615, %v2614
        %v2695 = vpack.c.b16 %v2617, %v2616
        %v2696 = vpack.c.b16 %v2619, %v2618
        %v2697 = vpack.c.b16 %v2621, %v2620
        %v2698 = vpack.c.b16 %v2623, %v2622
        %v2699 = vpack.c.b16 %v2625, %v2624
        %v2700 = vpack.c.b16 %v2627, %v2626
        %v2701 = vpack.c.b16 %v2629, %v2628
        %2774 = vmatprep.subr.bf16.mxu0 0
        %2775 = vmatpush1.bf16.msra.mxu0 %v2637
        %2776 = vmatprep.subr.bf16.mxu0 0
        %2777 = vmatpush1.bf16.msra.mxu0 %v2636
        %2778 = vmatprep.subr.bf16.mxu0 0
        %2779 = vmatpush1.bf16.msra.mxu0 %v2635
        %2780 = vmatprep.subr.bf16.mxu0 0
        %2781 = vmatpush1.bf16.msra.mxu0 %v2634
        %2782 = vmatprep.subr.bf16.mxu0 0
        %2783 = vmatpush1.bf16.msra.mxu0 %v2633
        %2784 = vmatprep.subr.bf16.mxu0 0
        %2785 = vmatpush1.bf16.msra.mxu0 %v2632
        %2786 = vmatprep.subr.bf16.mxu0 0
        %2787 = vmatpush1.bf16.msra.mxu0 %v2631
        %2788 = vmatprep.subr.bf16.mxu0 0
        %2789 = vmatpush1.bf16.msra.mxu0 %v2630
        %2790 = vmatprep.subr.bf16.mxu0 0
        %2791 = vmatpush2.bf16.msra.mxu0 %v2645
        %2792 = vmatprep.subr.bf16.mxu0 0
        %2793 = vmatpush2.bf16.msra.mxu0 %v2644
        %2794 = vmatprep.subr.bf16.mxu0 0
        %2795 = vmatpush2.bf16.msra.mxu0 %v2643
        %2796 = vmatprep.subr.bf16.mxu0 0
        %2797 = vmatpush2.bf16.msra.mxu0 %v2642
        %2798 = vmatprep.subr.bf16.mxu0 0
        %2799 = vmatpush2.bf16.msra.mxu0 %v2641
        %2800 = vmatprep.subr.bf16.mxu0 0
        %2801 = vmatpush2.bf16.msra.mxu0 %v2640
        %2802 = vmatprep.subr.bf16.mxu0 0
        %2803 = vmatpush2.bf16.msra.mxu0 %v2639
        %2804 = vmatprep.subr.bf16.mxu0 0
        %2805 = vmatpush2.bf16.msra.mxu0 %v2638
        %2806 = vmatprep.mubr.bf16.mxu0 %v1983
        %2807 = vmatmul.mubr.bf16.gmra.mxu0 %v1951
        %v2808 = vpop.f32.mrf.mxu0
        %v2809 = vadd.f32 %v2340, %v2808
        %v2810 = vpop.f32.mrf.mxu0
        %v2811 = vpop.f32.mrf.mxu0
        %v2812 = vadd.f32 %v2340, %v2811
        %v2813 = vpop.f32.mrf.mxu0
        %2814 = vmatprep.mubr.bf16.mxu0 %v1984
        %2815 = vmatmul.mubr.bf16.gmra.mxu0 %v1952
        %v2816 = vpop.f32.mrf.mxu0
        %v2817 = vadd.f32 %v2340, %v2816
        %v2818 = vpop.f32.mrf.mxu0
        %v2819 = vpop.f32.mrf.mxu0
        %v2820 = vadd.f32 %v2340, %v2819
        %v2821 = vpop.f32.mrf.mxu0
        %2822 = vmatprep.mubr.bf16.mxu0 %v1985
        %2823 = vmatmul.mubr.bf16.gmra.mxu0 %v1953
        %v2824 = vpop.f32.mrf.mxu0
        %v2825 = vadd.f32 %v2340, %v2824
        %v2826 = vpop.f32.mrf.mxu0
        %v2827 = vpop.f32.mrf.mxu0
        %v2828 = vadd.f32 %v2340, %v2827
        %v2829 = vpop.f32.mrf.mxu0
        %2830 = vmatprep.mubr.bf16.mxu0 %v1986
        %2831 = vmatmul.mubr.bf16.gmra.mxu0 %v1954
        %v2832 = vpop.f32.mrf.mxu0
        %v2833 = vadd.f32 %v2340, %v2832
        %v2834 = vpop.f32.mrf.mxu0
        %v2835 = vpop.f32.mrf.mxu0
        %v2836 = vadd.f32 %v2340, %v2835
        %v2837 = vpop.f32.mrf.mxu0
        %2838 = vmatprep.mubr.bf16.mxu0 %v1987
        %2839 = vmatmul.mubr.bf16.gmra.mxu0 %v1955
        %v2840 = vpop.f32.mrf.mxu0
        %v2841 = vadd.f32 %v2340, %v2840
        %v2842 = vpop.f32.mrf.mxu0
        %v2843 = vpop.f32.mrf.mxu0
        %v2844 = vadd.f32 %v2340, %v2843
        %v2845 = vpop.f32.mrf.mxu0
        %2846 = vmatprep.mubr.bf16.mxu0 %v1988
        %2847 = vmatmul.mubr.bf16.gmra.mxu0 %v1956
        %v2848 = vpop.f32.mrf.mxu0
        %v2849 = vadd.f32 %v2340, %v2848
        %v2850 = vpop.f32.mrf.mxu0
        %v2851 = vpop.f32.mrf.mxu0
        %v2852 = vadd.f32 %v2340, %v2851
        %v2853 = vpop.f32.mrf.mxu0
        %2854 = vmatprep.mubr.bf16.mxu0 %v1989
        %2855 = vmatmul.mubr.bf16.gmra.mxu0 %v1957
        %v2856 = vpop.f32.mrf.mxu0
        %v2857 = vadd.f32 %v2340, %v2856
        %v2858 = vpop.f32.mrf.mxu0
        %v2859 = vpop.f32.mrf.mxu0
        %v2860 = vadd.f32 %v2340, %v2859
        %v2861 = vpop.f32.mrf.mxu0
        %2862 = vmatprep.mubr.bf16.mxu0 %v1990
        %2863 = vmatmul.mubr.bf16.gmra.mxu0 %v1958
        %v2864 = vpop.f32.mrf.mxu0
        %v2865 = vadd.f32 %v2340, %v2864
        %v2866 = vpop.f32.mrf.mxu0
        %v2867 = vpop.f32.mrf.mxu0
        %v2868 = vadd.f32 %v2340, %v2867
        %v2869 = vpop.f32.mrf.mxu0
        %2870 = vdwg.mxu0
        %2871 = vmatprep.subr.bf16.mxu0 0
        %2872 = vmatpush1.bf16.msra.mxu0 %v2653
        %2873 = vmatprep.subr.bf16.mxu0 0
        %2874 = vmatpush1.bf16.msra.mxu0 %v2652
        %2875 = vmatprep.subr.bf16.mxu0 0
        %2876 = vmatpush1.bf16.msra.mxu0 %v2651
        %2877 = vmatprep.subr.bf16.mxu0 0
        %2878 = vmatpush1.bf16.msra.mxu0 %v2650
        %2879 = vmatprep.subr.bf16.mxu0 0
        %2880 = vmatpush1.bf16.msra.mxu0 %v2649
        %2881 = vmatprep.subr.bf16.mxu0 0
        %2882 = vmatpush1.bf16.msra.mxu0 %v2648
        %2883 = vmatprep.subr.bf16.mxu0 0
        %2884 = vmatpush1.bf16.msra.mxu0 %v2647
        %2885 = vmatprep.subr.bf16.mxu0 0
        %2886 = vmatpush1.bf16.msra.mxu0 %v2646
        %2887 = vmatprep.subr.bf16.mxu0 0
        %2888 = vmatpush2.bf16.msra.mxu0 %v2661
        %2889 = vmatprep.subr.bf16.mxu0 0
        %2890 = vmatpush2.bf16.msra.mxu0 %v2660
        %2891 = vmatprep.subr.bf16.mxu0 0
        %2892 = vmatpush2.bf16.msra.mxu0 %v2659
        %2893 = vmatprep.subr.bf16.mxu0 0
        %2894 = vmatpush2.bf16.msra.mxu0 %v2658
        %2895 = vmatprep.subr.bf16.mxu0 0
        %2896 = vmatpush2.bf16.msra.mxu0 %v2657
        %2897 = vmatprep.subr.bf16.mxu0 0
        %2898 = vmatpush2.bf16.msra.mxu0 %v2656
        %2899 = vmatprep.subr.bf16.mxu0 0
        %2900 = vmatpush2.bf16.msra.mxu0 %v2655
        %2901 = vmatprep.subr.bf16.mxu0 0
        %2902 = vmatpush2.bf16.msra.mxu0 %v2654
        %2903 = vmatprep.mubr.bf16.mxu0 %v2047
        %2904 = vmatmul.mubr.bf16.gmra.mxu0 %v2015
        %v2905 = vpop.f32.mrf.mxu0
        %v2906 = vadd.f32 %v2809, %v2905
        %v2907 = vpop.f32.mrf.mxu0
        %v2908 = vpop.f32.mrf.mxu0
        %v2909 = vadd.f32 %v2812, %v2908
        %v2910 = vpop.f32.mrf.mxu0
        %2911 = vmatprep.mubr.bf16.mxu0 %v2048
        %2912 = vmatmul.mubr.bf16.gmra.mxu0 %v2016
        %v2913 = vpop.f32.mrf.mxu0
        %v2914 = vadd.f32 %v2817, %v2913
        %v2915 = vpop.f32.mrf.mxu0
        %v2916 = vpop.f32.mrf.mxu0
        %v2917 = vadd.f32 %v2820, %v2916
        %v2918 = vpop.f32.mrf.mxu0
        %2919 = vmatprep.mubr.bf16.mxu0 %v2049
        %2920 = vmatmul.mubr.bf16.gmra.mxu0 %v2017
        %v2921 = vpop.f32.mrf.mxu0
        %v2922 = vadd.f32 %v2825, %v2921
        %v2923 = vpop.f32.mrf.mxu0
        %v2924 = vpop.f32.mrf.mxu0
        %v2925 = vadd.f32 %v2828, %v2924
        %v2926 = vpop.f32.mrf.mxu0
        %2927 = vmatprep.mubr.bf16.mxu0 %v2050
        %2928 = vmatmul.mubr.bf16.gmra.mxu0 %v2018
        %v2929 = vpop.f32.mrf.mxu0
        %v2930 = vadd.f32 %v2833, %v2929
        %v2931 = vpop.f32.mrf.mxu0
        %v2932 = vpop.f32.mrf.mxu0
        %v2933 = vadd.f32 %v2836, %v2932
        %v2934 = vpop.f32.mrf.mxu0
        %2935 = vmatprep.mubr.bf16.mxu0 %v2051
        %2936 = vmatmul.mubr.bf16.gmra.mxu0 %v2019
        %v2937 = vpop.f32.mrf.mxu0
        %v2938 = vadd.f32 %v2841, %v2937
        %v2939 = vpop.f32.mrf.mxu0
        %v2940 = vpop.f32.mrf.mxu0
        %v2941 = vadd.f32 %v2844, %v2940
        %v2942 = vpop.f32.mrf.mxu0
        %2943 = vmatprep.mubr.bf16.mxu0 %v2052
        %2944 = vmatmul.mubr.bf16.gmra.mxu0 %v2020
        %v2945 = vpop.f32.mrf.mxu0
        %v2946 = vadd.f32 %v2849, %v2945
        %v2947 = vpop.f32.mrf.mxu0
        %v2948 = vpop.f32.mrf.mxu0
        %v2949 = vadd.f32 %v2852, %v2948
        %v2950 = vpop.f32.mrf.mxu0
        %2951 = vmatprep.mubr.bf16.mxu0 %v2053
        %2952 = vmatmul.mubr.bf16.gmra.mxu0 %v2021
        %v2953 = vpop.f32.mrf.mxu0
        %v2954 = vadd.f32 %v2857, %v2953
        %v2955 = vpop.f32.mrf.mxu0
        %v2956 = vpop.f32.mrf.mxu0
        %v2957 = vadd.f32 %v2860, %v2956
        %v2958 = vpop.f32.mrf.mxu0
        %2959 = vmatprep.mubr.bf16.mxu0 %v2054
        %2960 = vmatmul.mubr.bf16.gmra.mxu0 %v2022
        %v2961 = vpop.f32.mrf.mxu0
        %v2962 = vadd.f32 %v2865, %v2961
        %v2963 = vpop.f32.mrf.mxu0
        %v2964 = vpop.f32.mrf.mxu0
        %v2965 = vadd.f32 %v2868, %v2964
        %v2966 = vpop.f32.mrf.mxu0
        %2967 = vdwg.mxu0
        %2968 = vmatprep.subr.bf16.mxu0 0
        %2969 = vmatpush1.bf16.msra.mxu0 %v2669
        %2970 = vmatprep.subr.bf16.mxu0 0
        %2971 = vmatpush1.bf16.msra.mxu0 %v2668
        %2972 = vmatprep.subr.bf16.mxu0 0
        %2973 = vmatpush1.bf16.msra.mxu0 %v2667
        %2974 = vmatprep.subr.bf16.mxu0 0
        %2975 = vmatpush1.bf16.msra.mxu0 %v2666
        %2976 = vmatprep.subr.bf16.mxu0 0
        %2977 = vmatpush1.bf16.msra.mxu0 %v2665
        %2978 = vmatprep.subr.bf16.mxu0 0
        %2979 = vmatpush1.bf16.msra.mxu0 %v2664
        %2980 = vmatprep.subr.bf16.mxu0 0
        %2981 = vmatpush1.bf16.msra.mxu0 %v2663
        %2982 = vmatprep.subr.bf16.mxu0 0
        %2983 = vmatpush1.bf16.msra.mxu0 %v2662
        %2984 = vmatprep.subr.bf16.mxu0 0
        %2985 = vmatpush2.bf16.msra.mxu0 %v2677
        %2986 = vmatprep.subr.bf16.mxu0 0
        %2987 = vmatpush2.bf16.msra.mxu0 %v2676
        %2988 = vmatprep.subr.bf16.mxu0 0
        %2989 = vmatpush2.bf16.msra.mxu0 %v2675
        %2990 = vmatprep.subr.bf16.mxu0 0
        %2991 = vmatpush2.bf16.msra.mxu0 %v2674
        %2992 = vmatprep.subr.bf16.mxu0 0
        %2993 = vmatpush2.bf16.msra.mxu0 %v2673
        %2994 = vmatprep.subr.bf16.mxu0 0
        %2995 = vmatpush2.bf16.msra.mxu0 %v2672
        %2996 = vmatprep.subr.bf16.mxu0 0
        %2997 = vmatpush2.bf16.msra.mxu0 %v2671
        %2998 = vmatprep.subr.bf16.mxu0 0
        %2999 = vmatpush2.bf16.msra.mxu0 %v2670
        %3000 = vmatprep.mubr.bf16.mxu0 %v2079
        %3001 = vmatmul.mubr.bf16.gmra.mxu0 %v880
        %v3002 = vpop.f32.mrf.mxu0
        %v3003 = vadd.f32 %v2906, %v3002
        %v3004 = vpop.f32.mrf.mxu0
        %v3005 = vpop.f32.mrf.mxu0
        %v3006 = vadd.f32 %v2909, %v3005
        %v3007 = vpop.f32.mrf.mxu0
        %3008 = vmatprep.mubr.bf16.mxu0 %v2080
        %3009 = vmatmul.mubr.bf16.gmra.mxu0 %v881
        %v3010 = vpop.f32.mrf.mxu0
        %v3011 = vadd.f32 %v2914, %v3010
        %v3012 = vpop.f32.mrf.mxu0
        %v3013 = vpop.f32.mrf.mxu0
        %v3014 = vadd.f32 %v2917, %v3013
        %v3015 = vpop.f32.mrf.mxu0
        %3016 = vmatprep.mubr.bf16.mxu0 %v2081
        %3017 = vmatmul.mubr.bf16.gmra.mxu0 %v882
        %v3018 = vpop.f32.mrf.mxu0
        %v3019 = vadd.f32 %v2922, %v3018
        %v3020 = vpop.f32.mrf.mxu0
        %v3021 = vpop.f32.mrf.mxu0
        %v3022 = vadd.f32 %v2925, %v3021
        %v3023 = vpop.f32.mrf.mxu0
        %3024 = vmatprep.mubr.bf16.mxu0 %v2082
        %3025 = vmatmul.mubr.bf16.gmra.mxu0 %v883
        %v3026 = vpop.f32.mrf.mxu0
        %v3027 = vadd.f32 %v2930, %v3026
        %v3028 = vpop.f32.mrf.mxu0
        %v3029 = vpop.f32.mrf.mxu0
        %v3030 = vadd.f32 %v2933, %v3029
        %v3031 = vpop.f32.mrf.mxu0
        %3032 = vmatprep.mubr.bf16.mxu0 %v2083
        %3033 = vmatmul.mubr.bf16.gmra.mxu0 %v884
        %v3034 = vpop.f32.mrf.mxu0
        %v3035 = vadd.f32 %v2938, %v3034
        %v3036 = vpop.f32.mrf.mxu0
        %v3037 = vpop.f32.mrf.mxu0
        %v3038 = vadd.f32 %v2941, %v3037
        %v3039 = vpop.f32.mrf.mxu0
        %3040 = vmatprep.mubr.bf16.mxu0 %v2084
        %3041 = vmatmul.mubr.bf16.gmra.mxu0 %v885
        %v3042 = vpop.f32.mrf.mxu0
        %v3043 = vadd.f32 %v2946, %v3042
        %v3044 = vpop.f32.mrf.mxu0
        %v3045 = vpop.f32.mrf.mxu0
        %v3046 = vadd.f32 %v2949, %v3045
        %v3047 = vpop.f32.mrf.mxu0
        %3048 = vmatprep.mubr.bf16.mxu0 %v2085
        %3049 = vmatmul.mubr.bf16.gmra.mxu0 %v886
        %v3050 = vpop.f32.mrf.mxu0
        %v3051 = vadd.f32 %v2954, %v3050
        %v3052 = vpop.f32.mrf.mxu0
        %v3053 = vpop.f32.mrf.mxu0
        %v3054 = vadd.f32 %v2957, %v3053
        %v3055 = vpop.f32.mrf.mxu0
        %3056 = vmatprep.mubr.bf16.mxu0 %v2086
        %3057 = vmatmul.mubr.bf16.gmra.mxu0 %v887
        %v3058 = vpop.f32.mrf.mxu0
        %v3059 = vadd.f32 %v2962, %v3058
        %v3060 = vpop.f32.mrf.mxu0
        %v3061 = vpop.f32.mrf.mxu0
        %v3062 = vadd.f32 %v2965, %v3061
        %v3063 = vpop.f32.mrf.mxu0
        %3064 = vdwg.mxu0
        %3065 = vmatprep.subr.bf16.mxu0 0
        %3066 = vmatpush1.bf16.msra.mxu0 %v2685
        %3067 = vmatprep.subr.bf16.mxu0 0
        %3068 = vmatpush1.bf16.msra.mxu0 %v2684
        %3069 = vmatprep.subr.bf16.mxu0 0
        %3070 = vmatpush1.bf16.msra.mxu0 %v2683
        %3071 = vmatprep.subr.bf16.mxu0 0
        %3072 = vmatpush1.bf16.msra.mxu0 %v2682
        %3073 = vmatprep.subr.bf16.mxu0 0
        %3074 = vmatpush1.bf16.msra.mxu0 %v2681
        %3075 = vmatprep.subr.bf16.mxu0 0
        %3076 = vmatpush1.bf16.msra.mxu0 %v2680
        %3077 = vmatprep.subr.bf16.mxu0 0
        %3078 = vmatpush1.bf16.msra.mxu0 %v2679
        %3079 = vmatprep.subr.bf16.mxu0 0
        %3080 = vmatpush1.bf16.msra.mxu0 %v2678
        %3081 = vmatprep.subr.bf16.mxu0 0
        %3082 = vmatpush2.bf16.msra.mxu0 %v2693
        %3083 = vmatprep.subr.bf16.mxu0 0
        %3084 = vmatpush2.bf16.msra.mxu0 %v2692
        %3085 = vmatprep.subr.bf16.mxu0 0
        %3086 = vmatpush2.bf16.msra.mxu0 %v2691
        %3087 = vmatprep.subr.bf16.mxu0 0
        %3088 = vmatpush2.bf16.msra.mxu0 %v2690
        %3089 = vmatprep.subr.bf16.mxu0 0
        %3090 = vmatpush2.bf16.msra.mxu0 %v2689
        %3091 = vmatprep.subr.bf16.mxu0 0
        %3092 = vmatpush2.bf16.msra.mxu0 %v2688
        %3093 = vmatprep.subr.bf16.mxu0 0
        %3094 = vmatpush2.bf16.msra.mxu0 %v2687
        %3095 = vmatprep.subr.bf16.mxu0 0
        %3096 = vmatpush2.bf16.msra.mxu0 %v2686
        %3097 = vmatprep.mubr.bf16.mxu0 %v2143
        %3098 = vmatmul.mubr.bf16.gmra.mxu0 %v2111
        %v3099 = vpop.f32.mrf.mxu0
        %v3100 = vadd.f32 %v3003, %v3099
        %v3101 = vpop.f32.mrf.mxu0
        %v3102 = vpop.f32.mrf.mxu0
        %v3103 = vadd.f32 %v3006, %v3102
        %v3104 = vpop.f32.mrf.mxu0
        %3105 = vmatprep.mubr.bf16.mxu0 %v2144
        %3106 = vmatmul.mubr.bf16.gmra.mxu0 %v2112
        %v3107 = vpop.f32.mrf.mxu0
        %v3108 = vadd.f32 %v3011, %v3107
        %v3109 = vpop.f32.mrf.mxu0
        %v3110 = vpop.f32.mrf.mxu0
        %v3111 = vadd.f32 %v3014, %v3110
        %v3112 = vpop.f32.mrf.mxu0
        %3113 = vmatprep.mubr.bf16.mxu0 %v2145
        %3114 = vmatmul.mubr.bf16.gmra.mxu0 %v2113
        %v3115 = vpop.f32.mrf.mxu0
        %v3116 = vadd.f32 %v3019, %v3115
        %v3117 = vpop.f32.mrf.mxu0
        %v3118 = vpop.f32.mrf.mxu0
        %v3119 = vadd.f32 %v3022, %v3118
        %v3120 = vpop.f32.mrf.mxu0
        %3121 = vmatprep.mubr.bf16.mxu0 %v2146
        %3122 = vmatmul.mubr.bf16.gmra.mxu0 %v2114
        %v3123 = vpop.f32.mrf.mxu0
        %v3124 = vadd.f32 %v3027, %v3123
        %v3125 = vpop.f32.mrf.mxu0
        %v3126 = vpop.f32.mrf.mxu0
        %v3127 = vadd.f32 %v3030, %v3126
        %v3128 = vpop.f32.mrf.mxu0
        %3129 = vmatprep.mubr.bf16.mxu0 %v2147
        %3130 = vmatmul.mubr.bf16.gmra.mxu0 %v2115
        %v3131 = vpop.f32.mrf.mxu0
        %v3132 = vadd.f32 %v3035, %v3131
        %v3133 = vpop.f32.mrf.mxu0
        %v3134 = vpop.f32.mrf.mxu0
        %v3135 = vadd.f32 %v3038, %v3134
        %v3136 = vpop.f32.mrf.mxu0
        %3137 = vmatprep.mubr.bf16.mxu0 %v2148
        %3138 = vmatmul.mubr.bf16.gmra.mxu0 %v2116
        %v3139 = vpop.f32.mrf.mxu0
        %v3140 = vadd.f32 %v3043, %v3139
        %v3141 = vpop.f32.mrf.mxu0
        %v3142 = vpop.f32.mrf.mxu0
        %v3143 = vadd.f32 %v3046, %v3142
        %v3144 = vpop.f32.mrf.mxu0
        %3145 = vmatprep.mubr.bf16.mxu0 %v2149
        %3146 = vmatmul.mubr.bf16.gmra.mxu0 %v2117
        %v3147 = vpop.f32.mrf.mxu0
        %v3148 = vadd.f32 %v3051, %v3147
        %v3149 = vpop.f32.mrf.mxu0
        %v3150 = vpop.f32.mrf.mxu0
        %v3151 = vadd.f32 %v3054, %v3150
        %v3152 = vpop.f32.mrf.mxu0
        %3153 = vmatprep.mubr.bf16.mxu0 %v2150
        %3154 = vmatmul.mubr.bf16.gmra.mxu0 %v2118
        %v3155 = vpop.f32.mrf.mxu0
        %v3156 = vadd.f32 %v3059, %v3155
        %v3157 = vpop.f32.mrf.mxu0
        %v3158 = vpop.f32.mrf.mxu0
        %v3159 = vadd.f32 %v3062, %v3158
        %v3160 = vpop.f32.mrf.mxu0
        %3161 = vdwg.mxu0
        %3162 = vmatprep.subr.bf16.mxu0 0
        %3163 = vmatpush1.bf16.msra.mxu0 %v2701
        %3164 = vmatprep.subr.bf16.mxu0 0
        %3165 = vmatpush1.bf16.msra.mxu0 %v2700
        %3166 = vmatprep.subr.bf16.mxu0 0
        %3167 = vmatpush1.bf16.msra.mxu0 %v2699
        %3168 = vmatprep.subr.bf16.mxu0 0
        %3169 = vmatpush1.bf16.msra.mxu0 %v2698
        %3170 = vmatprep.subr.bf16.mxu0 0
        %3171 = vmatpush1.bf16.msra.mxu0 %v2697
        %3172 = vmatprep.subr.bf16.mxu0 0
        %3173 = vmatpush1.bf16.msra.mxu0 %v2696
        %3174 = vmatprep.subr.bf16.mxu0 0
        %3175 = vmatpush1.bf16.msra.mxu0 %v2695
        %3176 = vmatprep.subr.bf16.mxu0 0
        %3177 = vmatpush1.bf16.msra.mxu0 %v2694
        %3178 = vmatprep.subr.bf16.mxu0 0
        %3179 = vmatpush2.bf16.msra.mxu0 0
        %3180 = vmatprep.subr.bf16.mxu0 0
        %3181 = vmatpush2.bf16.msra.mxu0 0
        %3182 = vmatprep.subr.bf16.mxu0 0
        %3183 = vmatpush2.bf16.msra.mxu0 0
        %3184 = vmatprep.subr.bf16.mxu0 0
        %3185 = vmatpush2.bf16.msra.mxu0 0
        %3186 = vmatprep.subr.bf16.mxu0 0
        %3187 = vmatpush2.bf16.msra.mxu0 0
        %3188 = vmatprep.subr.bf16.mxu0 0
        %3189 = vmatpush2.bf16.msra.mxu0 0
        %3190 = vmatprep.subr.bf16.mxu0 0
        %3191 = vmatpush2.bf16.msra.mxu0 0
        %3192 = vmatprep.subr.bf16.mxu0 0
        %3193 = vmatpush2.bf16.msra.mxu0 0
        %3194 = vmatprep.mubr.bf16.mxu0 0
        %3195 = vmatmul.mubr.bf16.gmra.mxu0 %v2175
        %v3196 = vpop.f32.mrf.mxu0
        %v3197 = vadd.f32 %v3100, %v3196
        %v3198 = vpop.f32.mrf.mxu0
        %v3199 = vpop.f32.mrf.mxu0
        %v3200 = vadd.f32 %v3103, %v3199
        %v3201 = vpop.f32.mrf.mxu0
        %3202 = vmatprep.mubr.bf16.mxu0 0
        %3203 = vmatmul.mubr.bf16.gmra.mxu0 %v2176
        %v3204 = vpop.f32.mrf.mxu0
        %v3205 = vadd.f32 %v3108, %v3204
        %v3206 = vpop.f32.mrf.mxu0
        %v3207 = vpop.f32.mrf.mxu0
        %v3208 = vadd.f32 %v3111, %v3207
        %v3209 = vpop.f32.mrf.mxu0
        %3210 = vmatprep.mubr.bf16.mxu0 0
        %3211 = vmatmul.mubr.bf16.gmra.mxu0 %v2177
        %v3212 = vpop.f32.mrf.mxu0
        %v3213 = vadd.f32 %v3116, %v3212
        %v3214 = vpop.f32.mrf.mxu0
        %v3215 = vpop.f32.mrf.mxu0
        %v3216 = vadd.f32 %v3119, %v3215
        %v3217 = vpop.f32.mrf.mxu0
        %3218 = vmatprep.mubr.bf16.mxu0 0
        %3219 = vmatmul.mubr.bf16.gmra.mxu0 %v2178
        %v3220 = vpop.f32.mrf.mxu0
        %v3221 = vadd.f32 %v3124, %v3220
        %v3222 = vpop.f32.mrf.mxu0
        %v3223 = vpop.f32.mrf.mxu0
        %v3224 = vadd.f32 %v3127, %v3223
        %v3225 = vpop.f32.mrf.mxu0
        %3226 = vmatprep.mubr.bf16.mxu0 0
        %3227 = vmatmul.mubr.bf16.gmra.mxu0 %v2179
        %v3228 = vpop.f32.mrf.mxu0
        %v3229 = vadd.f32 %v3132, %v3228
        %v3230 = vpop.f32.mrf.mxu0
        %v3231 = vpop.f32.mrf.mxu0
        %v3232 = vadd.f32 %v3135, %v3231
        %v3233 = vpop.f32.mrf.mxu0
        %3234 = vmatprep.mubr.bf16.mxu0 0
        %3235 = vmatmul.mubr.bf16.gmra.mxu0 %v2180
        %v3236 = vpop.f32.mrf.mxu0
        %v3237 = vadd.f32 %v3140, %v3236
        %v3238 = vpop.f32.mrf.mxu0
        %v3239 = vpop.f32.mrf.mxu0
        %v3240 = vadd.f32 %v3143, %v3239
        %v3241 = vpop.f32.mrf.mxu0
        %3242 = vmatprep.mubr.bf16.mxu0 0
        %3243 = vmatmul.mubr.bf16.gmra.mxu0 %v2181
        %v3244 = vpop.f32.mrf.mxu0
        %v3245 = vadd.f32 %v3148, %v3244
        %v3246 = vpop.f32.mrf.mxu0
        %v3247 = vpop.f32.mrf.mxu0
        %v3248 = vadd.f32 %v3151, %v3247
        %v3249 = vpop.f32.mrf.mxu0
        %3250 = vmatprep.mubr.bf16.mxu0 0
        %3251 = vmatmul.mubr.bf16.gmra.mxu0 %v2182
        %v3252 = vpop.f32.mrf.mxu0
        %v3253 = vadd.f32 %v3156, %v3252
        %v3254 = vpop.f32.mrf.mxu0
        %v3255 = vpop.f32.mrf.mxu0
        %v3256 = vadd.f32 %v3159, %v3255
        %v3257 = vpop.f32.mrf.mxu0
        %3258 = vdwg.mxu0
        %v3259 = vmax.f32 %v3197, 0.0
        %v3260 = vmax.f32 %v3200, 0.0
        %v3261 = vmax.f32 %v3205, 0.0
        %v3262 = vmax.f32 %v3208, 0.0
        %v3263 = vmax.f32 %v3213, 0.0
        %v3264 = vmax.f32 %v3216, 0.0
        %v3265 = vmax.f32 %v3221, 0.0
        %v3266 = vmax.f32 %v3224, 0.0
        %v3267 = vmax.f32 %v3229, 0.0
        %v3268 = vmax.f32 %v3232, 0.0
        %v3269 = vmax.f32 %v3237, 0.0
        %v3270 = vmax.f32 %v3240, 0.0
        %v3271 = vmax.f32 %v3245, 0.0
        %v3272 = vmax.f32 %v3248, 0.0
        %v3273 = vmax.f32 %v3253, 0.0
        %v3274 = vmax.f32 %v3256, 0.0
        %3275 = vst [vmem:[%s407 + $0x8] sm:$0xff] %v3259
        %3276 = vst [vmem:[%s407 + $0x30] sm:$0xff] %v3260
        %3277 = vst [vmem:[%s407 + $0x58] sm:$0xff] %v3261
        %3278 = vst [vmem:[%s407 + $0x80] sm:$0xff] %v3262
        %3279 = vst [vmem:[%s407 + $0xa8] sm:$0xff] %v3263
        %3280 = vst [vmem:[%s407 + $0xd0] sm:$0xff] %v3264
        %3281 = vst [vmem:[%s407 + $0xf8] sm:$0xff] %v3265
        %3282 = vst [vmem:[%s407 + $0x120] sm:$0xff] %v3266
        %3283 = vst [vmem:[%s407 + $0x148] sm:$0xff] %v3267
        %3284 = vst [vmem:[%s407 + $0x170] sm:$0xff] %v3268
        %3285 = vst [vmem:[%s407 + $0x198] sm:$0xff] %v3269
        %3286 = vst [vmem:[%s407 + $0x1c0] sm:$0xff] %v3270
        %3287 = vst [vmem:[%s407 + $0x1e8] sm:$0xff] %v3271
        %3288 = vst [vmem:[%s407 + $0x210] sm:$0xff] %v3272
        %3289 = vst [vmem:[%s407 + $0x238] sm:$0xff] %v3273
        %3290 = vst [vmem:[%s407 + $0x260] sm:$0xff] %v3274
        %vm3291 = vsmask.f32 3328
        %vm3292 = vsmask.f32 7440
        %vm3293 = vmor %vm3291, %vm3292
        %v3295 = vshrl.u32 %v450, 16
        %v3297 = vrot.slane %v3295, 4
        %v3298 = vshll.u32 %v450, 16
        %v3300 = vrot.slane %v3298, 5
        %v3301 = vor.u32 %v3297, %v3300
        %v3302 = vrot.slane %v3301, 4
        %v3304 = vshll.u32 %v451, 16
        %v3306 = vrot.slane %v3304, 5
        %v3307 = vsel %vm3293, %v3302, %v3306
        %v3308 = vshrl.u32 %v451, 16
        %v3310 = vrot.slane %v3308, 4
        %v3311 = vor.u32 %v3310, %v3306
        %v3312 = vrot.slane %v3311, 4
        %v3314 = vshll.u32 %v452, 16
        %v3316 = vrot.slane %v3314, 5
        %v3317 = vsel %vm3293, %v3312, %v3316
        %v3319 = vshrl.u32 %v453, 16
        %v3321 = vrot.slane %v3319, 4
        %v3322 = vshll.u32 %v453, 16
        %v3324 = vrot.slane %v3322, 5
        %v3325 = vor.u32 %v3321, %v3324
        %v3326 = vrot.slane %v3325, 4
        %v3328 = vshll.u32 %v454, 16
        %v3330 = vrot.slane %v3328, 5
        %v3331 = vsel %vm3293, %v3326, %v3330
        %v3332 = vshrl.u32 %v454, 16
        %v3334 = vrot.slane %v3332, 4
        %v3335 = vor.u32 %v3334, %v3330
        %v3336 = vrot.slane %v3335, 4
        %v3338 = vshll.u32 %v455, 16
        %v3340 = vrot.slane %v3338, 5
        %v3341 = vsel %vm3293, %v3336, %v3340
        %v3343 = vshrl.u32 %v456, 16
        %v3345 = vrot.slane %v3343, 4
        %v3346 = vshll.u32 %v456, 16
        %v3348 = vrot.slane %v3346, 5
        %v3349 = vor.u32 %v3345, %v3348
        %v3350 = vrot.slane %v3349, 4
        %v3352 = vshll.u32 %v457, 16
        %v3354 = vrot.slane %v3352, 5
        %v3355 = vsel %vm3293, %v3350, %v3354
        %v3356 = vshrl.u32 %v457, 16
        %v3358 = vrot.slane %v3356, 4
        %v3359 = vor.u32 %v3358, %v3354
        %v3360 = vrot.slane %v3359, 4
        %v3362 = vshll.u32 %v458, 16
        %v3364 = vrot.slane %v3362, 5
        %v3365 = vsel %vm3293, %v3360, %v3364
        %v3367 = vshrl.u32 %v459, 16
        %v3369 = vrot.slane %v3367, 4
        %v3370 = vshll.u32 %v459, 16
        %v3372 = vrot.slane %v3370, 5
        %v3373 = vor.u32 %v3369, %v3372
        %v3374 = vrot.slane %v3373, 4
        %v3376 = vshll.u32 %v460, 16
        %v3378 = vrot.slane %v3376, 5
        %v3379 = vsel %vm3293, %v3374, %v3378
        %v3380 = vshrl.u32 %v460, 16
        %v3382 = vrot.slane %v3380, 4
        %v3383 = vor.u32 %v3382, %v3378
        %v3384 = vrot.slane %v3383, 4
        %v3386 = vshll.u32 %v461, 16
        %v3388 = vrot.slane %v3386, 5
        %v3389 = vsel %vm3293, %v3384, %v3388
        %v3391 = vshrl.u32 %v462, 16
        %v3393 = vrot.slane %v3391, 4
        %v3394 = vshll.u32 %v462, 16
        %v3396 = vrot.slane %v3394, 5
        %v3397 = vor.u32 %v3393, %v3396
        %v3398 = vrot.slane %v3397, 4
        %v3400 = vshll.u32 %v463, 16
        %v3402 = vrot.slane %v3400, 5
        %v3403 = vsel %vm3293, %v3398, %v3402
        %v3404 = vshrl.u32 %v463, 16
        %v3406 = vrot.slane %v3404, 4
        %v3407 = vor.u32 %v3406, %v3402
        %v3408 = vrot.slane %v3407, 4
        %v3410 = vshll.u32 %v464, 16
        %v3412 = vrot.slane %v3410, 5
        %v3413 = vsel %vm3293, %v3408, %v3412
        %v3415 = vshrl.u32 %v465, 16
        %v3417 = vrot.slane %v3415, 4
        %v3418 = vshll.u32 %v465, 16
        %v3420 = vrot.slane %v3418, 5
        %v3421 = vor.u32 %v3417, %v3420
        %v3422 = vrot.slane %v3421, 4
        %v3424 = vshll.u32 %v466, 16
        %v3426 = vrot.slane %v3424, 5
        %v3427 = vsel %vm3293, %v3422, %v3426
        %v3428 = vshrl.u32 %v466, 16
        %v3430 = vrot.slane %v3428, 4
        %v3431 = vor.u32 %v3430, %v3426
        %v3432 = vrot.slane %v3431, 4
        %v3434 = vshll.u32 %v467, 16
        %v3436 = vrot.slane %v3434, 5
        %v3437 = vsel %vm3293, %v3432, %v3436
        %v3439 = vshrl.u32 %v468, 16
        %v3441 = vrot.slane %v3439, 4
        %v3442 = vshll.u32 %v468, 16
        %v3444 = vrot.slane %v3442, 5
        %v3445 = vor.u32 %v3441, %v3444
        %v3446 = vrot.slane %v3445, 4
        %v3448 = vshll.u32 %v469, 16
        %v3450 = vrot.slane %v3448, 5
        %v3451 = vsel %vm3293, %v3446, %v3450
        %v3452 = vshrl.u32 %v469, 16
        %v3454 = vrot.slane %v3452, 4
        %v3455 = vor.u32 %v3454, %v3450
        %v3456 = vrot.slane %v3455, 4
        %v3458 = vshll.u32 %v470, 16
        %v3460 = vrot.slane %v3458, 5
        %v3461 = vsel %vm3293, %v3456, %v3460
        %v3463 = vshrl.u32 %v471, 16
        %v3465 = vrot.slane %v3463, 4
        %v3466 = vshll.u32 %v471, 16
        %v3468 = vrot.slane %v3466, 5
        %v3469 = vor.u32 %v3465, %v3468
        %v3470 = vrot.slane %v3469, 4
        %v3472 = vshll.u32 %v472, 16
        %v3474 = vrot.slane %v3472, 5
        %v3475 = vsel %vm3293, %v3470, %v3474
        %v3476 = vshrl.u32 %v472, 16
        %v3478 = vrot.slane %v3476, 4
        %v3479 = vor.u32 %v3478, %v3474
        %v3480 = vrot.slane %v3479, 4
        %v3482 = vshll.u32 %v473, 16
        %v3484 = vrot.slane %v3482, 5
        %v3485 = vsel %vm3293, %v3480, %v3484
        %v3486 = vrot.slane %v3295, 5
        %v3487 = vrot.slane %v3298, 6
        %v3488 = vor.u32 %v3486, %v3487
        %v3489 = vrot.slane %v3488, 4
        %v3490 = vrot.slane %v3308, 5
        %v3491 = vrot.slane %v3304, 6
        %v3492 = vor.u32 %v3490, %v3491
        %v3493 = vsel %vm616, %v3489, %v3492
        %v3494 = vrot.slane %v3492, 4
        %v3495 = vshrl.u32 %v452, 16
        %v3497 = vrot.slane %v3495, 5
        %v3498 = vrot.slane %v3314, 6
        %v3499 = vor.u32 %v3497, %v3498
        %v3500 = vsel %vm616, %v3494, %v3499
        %v3501 = vrot.slane %v3319, 5
        %v3502 = vrot.slane %v3322, 6
        %v3503 = vor.u32 %v3501, %v3502
        %v3504 = vrot.slane %v3503, 4
        %v3505 = vrot.slane %v3332, 5
        %v3506 = vrot.slane %v3328, 6
        %v3507 = vor.u32 %v3505, %v3506
        %v3508 = vsel %vm616, %v3504, %v3507
        %v3509 = vrot.slane %v3507, 4
        %v3510 = vshrl.u32 %v455, 16
        %v3512 = vrot.slane %v3510, 5
        %v3513 = vrot.slane %v3338, 6
        %v3514 = vor.u32 %v3512, %v3513
        %v3515 = vsel %vm616, %v3509, %v3514
        %v3516 = vrot.slane %v3343, 5
        %v3517 = vrot.slane %v3346, 6
        %v3518 = vor.u32 %v3516, %v3517
        %v3519 = vrot.slane %v3518, 4
        %v3520 = vrot.slane %v3356, 5
        %v3521 = vrot.slane %v3352, 6
        %v3522 = vor.u32 %v3520, %v3521
        %v3523 = vsel %vm616, %v3519, %v3522
        %v3524 = vrot.slane %v3522, 4
        %v3525 = vshrl.u32 %v458, 16
        %v3527 = vrot.slane %v3525, 5
        %v3528 = vrot.slane %v3362, 6
        %v3529 = vor.u32 %v3527, %v3528
        %v3530 = vsel %vm616, %v3524, %v3529
        %v3531 = vrot.slane %v3367, 5
        %v3532 = vrot.slane %v3370, 6
        %v3533 = vor.u32 %v3531, %v3532
        %v3534 = vrot.slane %v3533, 4
        %v3535 = vrot.slane %v3380, 5
        %v3536 = vrot.slane %v3376, 6
        %v3537 = vor.u32 %v3535, %v3536
        %v3538 = vsel %vm616, %v3534, %v3537
        %v3539 = vrot.slane %v3537, 4
        %v3540 = vshrl.u32 %v461, 16
        %v3542 = vrot.slane %v3540, 5
        %v3543 = vrot.slane %v3386, 6
        %v3544 = vor.u32 %v3542, %v3543
        %v3545 = vsel %vm616, %v3539, %v3544
        %v3546 = vrot.slane %v3391, 5
        %v3547 = vrot.slane %v3394, 6
        %v3548 = vor.u32 %v3546, %v3547
        %v3549 = vrot.slane %v3548, 4
        %v3550 = vrot.slane %v3404, 5
        %v3551 = vrot.slane %v3400, 6
        %v3552 = vor.u32 %v3550, %v3551
        %v3553 = vsel %vm616, %v3549, %v3552
        %v3554 = vrot.slane %v3552, 4
        %v3555 = vshrl.u32 %v464, 16
        %v3557 = vrot.slane %v3555, 5
        %v3558 = vrot.slane %v3410, 6
        %v3559 = vor.u32 %v3557, %v3558
        %v3560 = vsel %vm616, %v3554, %v3559
        %v3561 = vrot.slane %v3415, 5
        %v3562 = vrot.slane %v3418, 6
        %v3563 = vor.u32 %v3561, %v3562
        %v3564 = vrot.slane %v3563, 4
        %v3565 = vrot.slane %v3428, 5
        %v3566 = vrot.slane %v3424, 6
        %v3567 = vor.u32 %v3565, %v3566
        %v3568 = vsel %vm616, %v3564, %v3567
        %v3569 = vrot.slane %v3567, 4
        %v3570 = vshrl.u32 %v467, 16
        %v3572 = vrot.slane %v3570, 5
        %v3573 = vrot.slane %v3434, 6
        %v3574 = vor.u32 %v3572, %v3573
        %v3575 = vsel %vm616, %v3569, %v3574
        %v3576 = vrot.slane %v3439, 5
        %v3577 = vrot.slane %v3442, 6
        %v3578 = vor.u32 %v3576, %v3577
        %v3579 = vrot.slane %v3578, 4
        %v3580 = vrot.slane %v3452, 5
        %v3581 = vrot.slane %v3448, 6
        %v3582 = vor.u32 %v3580, %v3581
        %v3583 = vsel %vm616, %v3579, %v3582
        %v3584 = vrot.slane %v3582, 4
        %v3585 = vshrl.u32 %v470, 16
        %v3587 = vrot.slane %v3585, 5
        %v3588 = vrot.slane %v3458, 6
        %v3589 = vor.u32 %v3587, %v3588
        %v3590 = vsel %vm616, %v3584, %v3589
        %v3591 = vrot.slane %v3463, 5
        %v3592 = vrot.slane %v3466, 6
        %v3593 = vor.u32 %v3591, %v3592
        %v3594 = vrot.slane %v3593, 4
        %v3595 = vrot.slane %v3476, 5
        %v3596 = vrot.slane %v3472, 6
        %v3597 = vor.u32 %v3595, %v3596
        %v3598 = vsel %vm616, %v3594, %v3597
        %v3599 = vrot.slane %v3597, 4
        %v3600 = vshrl.u32 %v473, 16
        %v3602 = vrot.slane %v3600, 5
        %v3603 = vrot.slane %v3482, 6
        %v3604 = vor.u32 %v3602, %v3603
        %v3605 = vsel %vm616, %v3599, %v3604
        %vm3606 = vsmask.f32 1280
        %vm3607 = vsmask.f32 5392
        %vm3608 = vmor %vm3606, %vm3607
        %v3609 = vrot.slane %v3295, 6
        %v3610 = vrot.slane %v3298, 7
        %v3611 = vor.u32 %v3609, %v3610
        %v3612 = vrot.slane %v3611, 4
        %v3613 = vrot.slane %v3308, 6
        %v3614 = vrot.slane %v3304, 7
        %v3615 = vor.u32 %v3613, %v3614
        %v3616 = vsel %vm3608, %v3612, %v3615
        %v3617 = vrot.slane %v3615, 4
        %v3618 = vrot.slane %v3495, 6
        %v3619 = vrot.slane %v3314, 7
        %v3620 = vor.u32 %v3618, %v3619
        %v3621 = vsel %vm3608, %v3617, %v3620
        %v3622 = vrot.slane %v3319, 6
        %v3623 = vrot.slane %v3322, 7
        %v3624 = vor.u32 %v3622, %v3623
        %v3625 = vrot.slane %v3624, 4
        %v3626 = vrot.slane %v3332, 6
        %v3627 = vrot.slane %v3328, 7
        %v3628 = vor.u32 %v3626, %v3627
        %v3629 = vsel %vm3608, %v3625, %v3628
        %v3630 = vrot.slane %v3628, 4
        %v3631 = vrot.slane %v3510, 6
        %v3632 = vrot.slane %v3338, 7
        %v3633 = vor.u32 %v3631, %v3632
        %v3634 = vsel %vm3608, %v3630, %v3633
        %v3635 = vrot.slane %v3343, 6
        %v3636 = vrot.slane %v3346, 7
        %v3637 = vor.u32 %v3635, %v3636
        %v3638 = vrot.slane %v3637, 4
        %v3639 = vrot.slane %v3356, 6
        %v3640 = vrot.slane %v3352, 7
        %v3641 = vor.u32 %v3639, %v3640
        %v3642 = vsel %vm3608, %v3638, %v3641
        %v3643 = vrot.slane %v3641, 4
        %v3644 = vrot.slane %v3525, 6
        %v3645 = vrot.slane %v3362, 7
        %v3646 = vor.u32 %v3644, %v3645
        %v3647 = vsel %vm3608, %v3643, %v3646
        %v3648 = vrot.slane %v3367, 6
        %v3649 = vrot.slane %v3370, 7
        %v3650 = vor.u32 %v3648, %v3649
        %v3651 = vrot.slane %v3650, 4
        %v3652 = vrot.slane %v3380, 6
        %v3653 = vrot.slane %v3376, 7
        %v3654 = vor.u32 %v3652, %v3653
        %v3655 = vsel %vm3608, %v3651, %v3654
        %v3656 = vrot.slane %v3654, 4
        %v3657 = vrot.slane %v3540, 6
        %v3658 = vrot.slane %v3386, 7
        %v3659 = vor.u32 %v3657, %v3658
        %v3660 = vsel %vm3608, %v3656, %v3659
        %v3661 = vrot.slane %v3391, 6
        %v3662 = vrot.slane %v3394, 7
        %v3663 = vor.u32 %v3661, %v3662
        %v3664 = vrot.slane %v3663, 4
        %v3665 = vrot.slane %v3404, 6
        %v3666 = vrot.slane %v3400, 7
        %v3667 = vor.u32 %v3665, %v3666
        %v3668 = vsel %vm3608, %v3664, %v3667
        %v3669 = vrot.slane %v3667, 4
        %v3670 = vrot.slane %v3555, 6
        %v3671 = vrot.slane %v3410, 7
        %v3672 = vor.u32 %v3670, %v3671
        %v3673 = vsel %vm3608, %v3669, %v3672
        %v3674 = vrot.slane %v3415, 6
        %v3675 = vrot.slane %v3418, 7
        %v3676 = vor.u32 %v3674, %v3675
        %v3677 = vrot.slane %v3676, 4
        %v3678 = vrot.slane %v3428, 6
        %v3679 = vrot.slane %v3424, 7
        %v3680 = vor.u32 %v3678, %v3679
        %v3681 = vsel %vm3608, %v3677, %v3680
        %v3682 = vrot.slane %v3680, 4
        %v3683 = vrot.slane %v3570, 6
        %v3684 = vrot.slane %v3434, 7
        %v3685 = vor.u32 %v3683, %v3684
        %v3686 = vsel %vm3608, %v3682, %v3685
        %v3687 = vrot.slane %v3439, 6
        %v3688 = vrot.slane %v3442, 7
        %v3689 = vor.u32 %v3687, %v3688
        %v3690 = vrot.slane %v3689, 4
        %v3691 = vrot.slane %v3452, 6
        %v3692 = vrot.slane %v3448, 7
        %v3693 = vor.u32 %v3691, %v3692
        %v3694 = vsel %vm3608, %v3690, %v3693
        %v3695 = vrot.slane %v3693, 4
        %v3696 = vrot.slane %v3585, 6
        %v3697 = vrot.slane %v3458, 7
        %v3698 = vor.u32 %v3696, %v3697
        %v3699 = vsel %vm3608, %v3695, %v3698
        %v3700 = vrot.slane %v3463, 6
        %v3701 = vrot.slane %v3466, 7
        %v3702 = vor.u32 %v3700, %v3701
        %v3703 = vrot.slane %v3702, 4
        %v3704 = vrot.slane %v3476, 6
        %v3705 = vrot.slane %v3472, 7
        %v3706 = vor.u32 %v3704, %v3705
        %v3707 = vsel %vm3608, %v3703, %v3706
        %v3708 = vrot.slane %v3706, 4
        %v3709 = vrot.slane %v3600, 6
        %v3710 = vrot.slane %v3482, 7
        %v3711 = vor.u32 %v3709, %v3710
        %v3712 = vsel %vm3608, %v3708, %v3711
        %v3713 = vrot.slane %v618, 4
        %v3714 = vrot.slane %v621, 5
        %v3715 = vor.u32 %v3713, %v3714
        %v3716 = vrot.slane %v3715, 4
        %v3717 = vrot.slane %v630, 5
        %v3718 = vsel %vm3293, %v3716, %v3717
        %v3719 = vrot.slane %v627, 4
        %v3720 = vor.u32 %v3719, %v3717
        %v3721 = vrot.slane %v3720, 4
        %v3722 = vrot.slane %v640, 5
        %v3723 = vsel %vm3293, %v3721, %v3722
        %v3724 = vrot.slane %v646, 4
        %v3725 = vrot.slane %v649, 5
        %v3726 = vor.u32 %v3724, %v3725
        %v3727 = vrot.slane %v3726, 4
        %v3728 = vrot.slane %v658, 5
        %v3729 = vsel %vm3293, %v3727, %v3728
        %v3730 = vrot.slane %v655, 4
        %v3731 = vor.u32 %v3730, %v3728
        %v3732 = vrot.slane %v3731, 4
        %v3733 = vrot.slane %v668, 5
        %v3734 = vsel %vm3293, %v3732, %v3733
        %v3735 = vrot.slane %v674, 4
        %v3736 = vrot.slane %v677, 5
        %v3737 = vor.u32 %v3735, %v3736
        %v3738 = vrot.slane %v3737, 4
        %v3739 = vrot.slane %v686, 5
        %v3740 = vsel %vm3293, %v3738, %v3739
        %v3741 = vrot.slane %v683, 4
        %v3742 = vor.u32 %v3741, %v3739
        %v3743 = vrot.slane %v3742, 4
        %v3744 = vrot.slane %v696, 5
        %v3745 = vsel %vm3293, %v3743, %v3744
        %v3746 = vrot.slane %v702, 4
        %v3747 = vrot.slane %v705, 5
        %v3748 = vor.u32 %v3746, %v3747
        %v3749 = vrot.slane %v3748, 4
        %v3750 = vrot.slane %v714, 5
        %v3751 = vsel %vm3293, %v3749, %v3750
        %v3752 = vrot.slane %v711, 4
        %v3753 = vor.u32 %v3752, %v3750
        %v3754 = vrot.slane %v3753, 4
        %v3755 = vrot.slane %v724, 5
        %v3756 = vsel %vm3293, %v3754, %v3755
        %v3757 = vrot.slane %v730, 4
        %v3758 = vrot.slane %v733, 5
        %v3759 = vor.u32 %v3757, %v3758
        %v3760 = vrot.slane %v3759, 4
        %v3761 = vrot.slane %v742, 5
        %v3762 = vsel %vm3293, %v3760, %v3761
        %v3763 = vrot.slane %v739, 4
        %v3764 = vor.u32 %v3763, %v3761
        %v3765 = vrot.slane %v3764, 4
        %v3766 = vrot.slane %v752, 5
        %v3767 = vsel %vm3293, %v3765, %v3766
        %v3768 = vrot.slane %v758, 4
        %v3769 = vrot.slane %v761, 5
        %v3770 = vor.u32 %v3768, %v3769
        %v3771 = vrot.slane %v3770, 4
        %v3772 = vrot.slane %v770, 5
        %v3773 = vsel %vm3293, %v3771, %v3772
        %v3774 = vrot.slane %v767, 4
        %v3775 = vor.u32 %v3774, %v3772
        %v3776 = vrot.slane %v3775, 4
        %v3777 = vrot.slane %v780, 5
        %v3778 = vsel %vm3293, %v3776, %v3777
        %v3779 = vrot.slane %v786, 4
        %v3780 = vrot.slane %v789, 5
        %v3781 = vor.u32 %v3779, %v3780
        %v3782 = vrot.slane %v3781, 4
        %v3783 = vrot.slane %v798, 5
        %v3784 = vsel %vm3293, %v3782, %v3783
        %v3785 = vrot.slane %v795, 4
        %v3786 = vor.u32 %v3785, %v3783
        %v3787 = vrot.slane %v3786, 4
        %v3788 = vrot.slane %v808, 5
        %v3789 = vsel %vm3293, %v3787, %v3788
        %v3790 = vrot.slane %v814, 4
        %v3791 = vrot.slane %v817, 5
        %v3792 = vor.u32 %v3790, %v3791
        %v3793 = vrot.slane %v3792, 4
        %v3794 = vrot.slane %v826, 5
        %v3795 = vsel %vm3293, %v3793, %v3794
        %v3796 = vrot.slane %v823, 4
        %v3797 = vor.u32 %v3796, %v3794
        %v3798 = vrot.slane %v3797, 4
        %v3799 = vrot.slane %v836, 5
        %v3800 = vsel %vm3293, %v3798, %v3799
        %v3801 = vrot.slane %v618, 6
        %v3802 = vrot.slane %v621, 7
        %v3803 = vor.u32 %v3801, %v3802
        %v3804 = vrot.slane %v3803, 4
        %v3805 = vrot.slane %v627, 6
        %v3806 = vrot.slane %v630, 7
        %v3807 = vor.u32 %v3805, %v3806
        %v3808 = vsel %vm3608, %v3804, %v3807
        %v3809 = vrot.slane %v3807, 4
        %v3810 = vrot.slane %v637, 6
        %v3811 = vrot.slane %v640, 7
        %v3812 = vor.u32 %v3810, %v3811
        %v3813 = vsel %vm3608, %v3809, %v3812
        %v3814 = vrot.slane %v646, 6
        %v3815 = vrot.slane %v649, 7
        %v3816 = vor.u32 %v3814, %v3815
        %v3817 = vrot.slane %v3816, 4
        %v3818 = vrot.slane %v655, 6
        %v3819 = vrot.slane %v658, 7
        %v3820 = vor.u32 %v3818, %v3819
        %v3821 = vsel %vm3608, %v3817, %v3820
        %v3822 = vrot.slane %v3820, 4
        %v3823 = vrot.slane %v665, 6
        %v3824 = vrot.slane %v668, 7
        %v3825 = vor.u32 %v3823, %v3824
        %v3826 = vsel %vm3608, %v3822, %v3825
        %v3827 = vrot.slane %v674, 6
        %v3828 = vrot.slane %v677, 7
        %v3829 = vor.u32 %v3827, %v3828
        %v3830 = vrot.slane %v3829, 4
        %v3831 = vrot.slane %v683, 6
        %v3832 = vrot.slane %v686, 7
        %v3833 = vor.u32 %v3831, %v3832
        %v3834 = vsel %vm3608, %v3830, %v3833
        %v3835 = vrot.slane %v3833, 4
        %v3836 = vrot.slane %v693, 6
        %v3837 = vrot.slane %v696, 7
        %v3838 = vor.u32 %v3836, %v3837
        %v3839 = vsel %vm3608, %v3835, %v3838
        %v3840 = vrot.slane %v702, 6
        %v3841 = vrot.slane %v705, 7
        %v3842 = vor.u32 %v3840, %v3841
        %v3843 = vrot.slane %v3842, 4
        %v3844 = vrot.slane %v711, 6
        %v3845 = vrot.slane %v714, 7
        %v3846 = vor.u32 %v3844, %v3845
        %v3847 = vsel %vm3608, %v3843, %v3846
        %v3848 = vrot.slane %v3846, 4
        %v3849 = vrot.slane %v721, 6
        %v3850 = vrot.slane %v724, 7
        %v3851 = vor.u32 %v3849, %v3850
        %v3852 = vsel %vm3608, %v3848, %v3851
        %v3853 = vrot.slane %v730, 6
        %v3854 = vrot.slane %v733, 7
        %v3855 = vor.u32 %v3853, %v3854
        %v3856 = vrot.slane %v3855, 4
        %v3857 = vrot.slane %v739, 6
        %v3858 = vrot.slane %v742, 7
        %v3859 = vor.u32 %v3857, %v3858
        %v3860 = vsel %vm3608, %v3856, %v3859
        %v3861 = vrot.slane %v3859, 4
        %v3862 = vrot.slane %v749, 6
        %v3863 = vrot.slane %v752, 7
        %v3864 = vor.u32 %v3862, %v3863
        %v3865 = vsel %vm3608, %v3861, %v3864
        %v3866 = vrot.slane %v758, 6
        %v3867 = vrot.slane %v761, 7
        %v3868 = vor.u32 %v3866, %v3867
        %v3869 = vrot.slane %v3868, 4
        %v3870 = vrot.slane %v767, 6
        %v3871 = vrot.slane %v770, 7
        %v3872 = vor.u32 %v3870, %v3871
        %v3873 = vsel %vm3608, %v3869, %v3872
        %v3874 = vrot.slane %v3872, 4
        %v3875 = vrot.slane %v777, 6
        %v3876 = vrot.slane %v780, 7
        %v3877 = vor.u32 %v3875, %v3876
        %v3878 = vsel %vm3608, %v3874, %v3877
        %v3879 = vrot.slane %v786, 6
        %v3880 = vrot.slane %v789, 7
        %v3881 = vor.u32 %v3879, %v3880
        %v3882 = vrot.slane %v3881, 4
        %v3883 = vrot.slane %v795, 6
        %v3884 = vrot.slane %v798, 7
        %v3885 = vor.u32 %v3883, %v3884
        %v3886 = vsel %vm3608, %v3882, %v3885
        %v3887 = vrot.slane %v3885, 4
        %v3888 = vrot.slane %v805, 6
        %v3889 = vrot.slane %v808, 7
        %v3890 = vor.u32 %v3888, %v3889
        %v3891 = vsel %vm3608, %v3887, %v3890
        %v3892 = vrot.slane %v814, 6
        %v3893 = vrot.slane %v817, 7
        %v3894 = vor.u32 %v3892, %v3893
        %v3895 = vrot.slane %v3894, 4
        %v3896 = vrot.slane %v823, 6
        %v3897 = vrot.slane %v826, 7
        %v3898 = vor.u32 %v3896, %v3897
        %v3899 = vsel %vm3608, %v3895, %v3898
        %v3900 = vrot.slane %v3898, 4
        %v3901 = vrot.slane %v833, 6
        %v3902 = vrot.slane %v836, 7
        %v3903 = vor.u32 %v3901, %v3902
        %v3904 = vsel %vm3608, %v3900, %v3903
        %v3906 = vshrl.u32 %v562, 16
        %v3908 = vrot.slane %v3906, 4
        %v3909 = vshll.u32 %v562, 16
        %v3911 = vrot.slane %v3909, 5
        %v3912 = vor.u32 %v3908, %v3911
        %v3913 = vrot.slane %v3912, 4
        %v3915 = vshll.u32 %v563, 16
        %v3917 = vrot.slane %v3915, 5
        %v3918 = vsel %vm3293, %v3913, %v3917
        %v3919 = vshrl.u32 %v563, 16
        %v3921 = vrot.slane %v3919, 4
        %v3922 = vor.u32 %v3921, %v3917
        %v3923 = vrot.slane %v3922, 4
        %v3925 = vshll.u32 %v564, 16
        %v3927 = vrot.slane %v3925, 5
        %v3928 = vsel %vm3293, %v3923, %v3927
        %v3930 = vshrl.u32 %v565, 16
        %v3932 = vrot.slane %v3930, 4
        %v3933 = vshll.u32 %v565, 16
        %v3935 = vrot.slane %v3933, 5
        %v3936 = vor.u32 %v3932, %v3935
        %v3937 = vrot.slane %v3936, 4
        %v3939 = vshll.u32 %v566, 16
        %v3941 = vrot.slane %v3939, 5
        %v3942 = vsel %vm3293, %v3937, %v3941
        %v3943 = vshrl.u32 %v566, 16
        %v3945 = vrot.slane %v3943, 4
        %v3946 = vor.u32 %v3945, %v3941
        %v3947 = vrot.slane %v3946, 4
        %v3949 = vshll.u32 %v567, 16
        %v3951 = vrot.slane %v3949, 5
        %v3952 = vsel %vm3293, %v3947, %v3951
        %v3954 = vshrl.u32 %v568, 16
        %v3956 = vrot.slane %v3954, 4
        %v3957 = vshll.u32 %v568, 16
        %v3959 = vrot.slane %v3957, 5
        %v3960 = vor.u32 %v3956, %v3959
        %v3961 = vrot.slane %v3960, 4
        %v3963 = vshll.u32 %v569, 16
        %v3965 = vrot.slane %v3963, 5
        %v3966 = vsel %vm3293, %v3961, %v3965
        %v3967 = vshrl.u32 %v569, 16
        %v3969 = vrot.slane %v3967, 4
        %v3970 = vor.u32 %v3969, %v3965
        %v3971 = vrot.slane %v3970, 4
        %v3973 = vshll.u32 %v570, 16
        %v3975 = vrot.slane %v3973, 5
        %v3976 = vsel %vm3293, %v3971, %v3975
        %v3978 = vshrl.u32 %v571, 16
        %v3980 = vrot.slane %v3978, 4
        %v3981 = vshll.u32 %v571, 16
        %v3983 = vrot.slane %v3981, 5
        %v3984 = vor.u32 %v3980, %v3983
        %v3985 = vrot.slane %v3984, 4
        %v3987 = vshll.u32 %v572, 16
        %v3989 = vrot.slane %v3987, 5
        %v3990 = vsel %vm3293, %v3985, %v3989
        %v3991 = vshrl.u32 %v572, 16
        %v3993 = vrot.slane %v3991, 4
        %v3994 = vor.u32 %v3993, %v3989
        %v3995 = vrot.slane %v3994, 4
        %v3997 = vshll.u32 %v573, 16
        %v3999 = vrot.slane %v3997, 5
        %v4000 = vsel %vm3293, %v3995, %v3999
        %v4002 = vshrl.u32 %v574, 16
        %v4004 = vrot.slane %v4002, 4
        %v4005 = vshll.u32 %v574, 16
        %v4007 = vrot.slane %v4005, 5
        %v4008 = vor.u32 %v4004, %v4007
        %v4009 = vrot.slane %v4008, 4
        %v4011 = vshll.u32 %v575, 16
        %v4013 = vrot.slane %v4011, 5
        %v4014 = vsel %vm3293, %v4009, %v4013
        %v4015 = vshrl.u32 %v575, 16
        %v4017 = vrot.slane %v4015, 4
        %v4018 = vor.u32 %v4017, %v4013
        %v4019 = vrot.slane %v4018, 4
        %v4021 = vshll.u32 %v576, 16
        %v4023 = vrot.slane %v4021, 5
        %v4024 = vsel %vm3293, %v4019, %v4023
        %v4026 = vshrl.u32 %v577, 16
        %v4028 = vrot.slane %v4026, 4
        %v4029 = vshll.u32 %v577, 16
        %v4031 = vrot.slane %v4029, 5
        %v4032 = vor.u32 %v4028, %v4031
        %v4033 = vrot.slane %v4032, 4
        %v4035 = vshll.u32 %v578, 16
        %v4037 = vrot.slane %v4035, 5
        %v4038 = vsel %vm3293, %v4033, %v4037
        %v4039 = vshrl.u32 %v578, 16
        %v4041 = vrot.slane %v4039, 4
        %v4042 = vor.u32 %v4041, %v4037
        %v4043 = vrot.slane %v4042, 4
        %v4045 = vshll.u32 %v579, 16
        %v4047 = vrot.slane %v4045, 5
        %v4048 = vsel %vm3293, %v4043, %v4047
        %v4050 = vshrl.u32 %v580, 16
        %v4052 = vrot.slane %v4050, 4
        %v4053 = vshll.u32 %v580, 16
        %v4055 = vrot.slane %v4053, 5
        %v4056 = vor.u32 %v4052, %v4055
        %v4057 = vrot.slane %v4056, 4
        %v4059 = vshll.u32 %v581, 16
        %v4061 = vrot.slane %v4059, 5
        %v4062 = vsel %vm3293, %v4057, %v4061
        %v4063 = vshrl.u32 %v581, 16
        %v4065 = vrot.slane %v4063, 4
        %v4066 = vor.u32 %v4065, %v4061
        %v4067 = vrot.slane %v4066, 4
        %v4069 = vshll.u32 %v582, 16
        %v4071 = vrot.slane %v4069, 5
        %v4072 = vsel %vm3293, %v4067, %v4071
        %v4074 = vshrl.u32 %v583, 16
        %v4076 = vrot.slane %v4074, 4
        %v4077 = vshll.u32 %v583, 16
        %v4079 = vrot.slane %v4077, 5
        %v4080 = vor.u32 %v4076, %v4079
        %v4081 = vrot.slane %v4080, 4
        %v4083 = vshll.u32 %v584, 16
        %v4085 = vrot.slane %v4083, 5
        %v4086 = vsel %vm3293, %v4081, %v4085
        %v4087 = vshrl.u32 %v584, 16
        %v4089 = vrot.slane %v4087, 4
        %v4090 = vor.u32 %v4089, %v4085
        %v4091 = vrot.slane %v4090, 4
        %v4093 = vshll.u32 %v585, 16
        %v4095 = vrot.slane %v4093, 5
        %v4096 = vsel %vm3293, %v4091, %v4095
        %v4097 = vrot.slane %v3906, 5
        %v4098 = vrot.slane %v3909, 6
        %v4099 = vor.u32 %v4097, %v4098
        %v4100 = vrot.slane %v4099, 4
        %v4101 = vrot.slane %v3919, 5
        %v4102 = vrot.slane %v3915, 6
        %v4103 = vor.u32 %v4101, %v4102
        %v4104 = vsel %vm616, %v4100, %v4103
        %v4105 = vrot.slane %v4103, 4
        %v4106 = vshrl.u32 %v564, 16
        %v4108 = vrot.slane %v4106, 5
        %v4109 = vrot.slane %v3925, 6
        %v4110 = vor.u32 %v4108, %v4109
        %v4111 = vsel %vm616, %v4105, %v4110
        %v4112 = vrot.slane %v3930, 5
        %v4113 = vrot.slane %v3933, 6
        %v4114 = vor.u32 %v4112, %v4113
        %v4115 = vrot.slane %v4114, 4
        %v4116 = vrot.slane %v3943, 5
        %v4117 = vrot.slane %v3939, 6
        %v4118 = vor.u32 %v4116, %v4117
        %v4119 = vsel %vm616, %v4115, %v4118
        %v4120 = vrot.slane %v4118, 4
        %v4121 = vshrl.u32 %v567, 16
        %v4123 = vrot.slane %v4121, 5
        %v4124 = vrot.slane %v3949, 6
        %v4125 = vor.u32 %v4123, %v4124
        %v4126 = vsel %vm616, %v4120, %v4125
        %v4127 = vrot.slane %v3954, 5
        %v4128 = vrot.slane %v3957, 6
        %v4129 = vor.u32 %v4127, %v4128
        %v4130 = vrot.slane %v4129, 4
        %v4131 = vrot.slane %v3967, 5
        %v4132 = vrot.slane %v3963, 6
        %v4133 = vor.u32 %v4131, %v4132
        %v4134 = vsel %vm616, %v4130, %v4133
        %v4135 = vrot.slane %v4133, 4
        %v4136 = vshrl.u32 %v570, 16
        %v4138 = vrot.slane %v4136, 5
        %v4139 = vrot.slane %v3973, 6
        %v4140 = vor.u32 %v4138, %v4139
        %v4141 = vsel %vm616, %v4135, %v4140
        %v4142 = vrot.slane %v3978, 5
        %v4143 = vrot.slane %v3981, 6
        %v4144 = vor.u32 %v4142, %v4143
        %v4145 = vrot.slane %v4144, 4
        %v4146 = vrot.slane %v3991, 5
        %v4147 = vrot.slane %v3987, 6
        %v4148 = vor.u32 %v4146, %v4147
        %v4149 = vsel %vm616, %v4145, %v4148
        %v4150 = vrot.slane %v4148, 4
        %v4151 = vshrl.u32 %v573, 16
        %v4153 = vrot.slane %v4151, 5
        %v4154 = vrot.slane %v3997, 6
        %v4155 = vor.u32 %v4153, %v4154
        %v4156 = vsel %vm616, %v4150, %v4155
        %v4157 = vrot.slane %v4002, 5
        %v4158 = vrot.slane %v4005, 6
        %v4159 = vor.u32 %v4157, %v4158
        %v4160 = vrot.slane %v4159, 4
        %v4161 = vrot.slane %v4015, 5
        %v4162 = vrot.slane %v4011, 6
        %v4163 = vor.u32 %v4161, %v4162
        %v4164 = vsel %vm616, %v4160, %v4163
        %v4165 = vrot.slane %v4163, 4
        %v4166 = vshrl.u32 %v576, 16
        %v4168 = vrot.slane %v4166, 5
        %v4169 = vrot.slane %v4021, 6
        %v4170 = vor.u32 %v4168, %v4169
        %v4171 = vsel %vm616, %v4165, %v4170
        %v4172 = vrot.slane %v4026, 5
        %v4173 = vrot.slane %v4029, 6
        %v4174 = vor.u32 %v4172, %v4173
        %v4175 = vrot.slane %v4174, 4
        %v4176 = vrot.slane %v4039, 5
        %v4177 = vrot.slane %v4035, 6
        %v4178 = vor.u32 %v4176, %v4177
        %v4179 = vsel %vm616, %v4175, %v4178
        %v4180 = vrot.slane %v4178, 4
        %v4181 = vshrl.u32 %v579, 16
        %v4183 = vrot.slane %v4181, 5
        %v4184 = vrot.slane %v4045, 6
        %v4185 = vor.u32 %v4183, %v4184
        %v4186 = vsel %vm616, %v4180, %v4185
        %v4187 = vrot.slane %v4050, 5
        %v4188 = vrot.slane %v4053, 6
        %v4189 = vor.u32 %v4187, %v4188
        %v4190 = vrot.slane %v4189, 4
        %v4191 = vrot.slane %v4063, 5
        %v4192 = vrot.slane %v4059, 6
        %v4193 = vor.u32 %v4191, %v4192
        %v4194 = vsel %vm616, %v4190, %v4193
        %v4195 = vrot.slane %v4193, 4
        %v4196 = vshrl.u32 %v582, 16
        %v4198 = vrot.slane %v4196, 5
        %v4199 = vrot.slane %v4069, 6
        %v4200 = vor.u32 %v4198, %v4199
        %v4201 = vsel %vm616, %v4195, %v4200
        %v4202 = vrot.slane %v4074, 5
        %v4203 = vrot.slane %v4077, 6
        %v4204 = vor.u32 %v4202, %v4203
        %v4205 = vrot.slane %v4204, 4
        %v4206 = vrot.slane %v4087, 5
        %v4207 = vrot.slane %v4083, 6
        %v4208 = vor.u32 %v4206, %v4207
        %v4209 = vsel %vm616, %v4205, %v4208
        %v4210 = vrot.slane %v4208, 4
        %v4211 = vshrl.u32 %v585, 16
        %v4213 = vrot.slane %v4211, 5
        %v4214 = vrot.slane %v4093, 6
        %v4215 = vor.u32 %v4213, %v4214
        %v4216 = vsel %vm616, %v4210, %v4215
        %v4217 = vrot.slane %v3906, 6
        %v4218 = vrot.slane %v3909, 7
        %v4219 = vor.u32 %v4217, %v4218
        %v4220 = vrot.slane %v4219, 4
        %v4221 = vrot.slane %v3919, 6
        %v4222 = vrot.slane %v3915, 7
        %v4223 = vor.u32 %v4221, %v4222
        %v4224 = vsel %vm3608, %v4220, %v4223
        %v4225 = vrot.slane %v4223, 4
        %v4226 = vrot.slane %v4106, 6
        %v4227 = vrot.slane %v3925, 7
        %v4228 = vor.u32 %v4226, %v4227
        %v4229 = vsel %vm3608, %v4225, %v4228
        %v4230 = vrot.slane %v3930, 6
        %v4231 = vrot.slane %v3933, 7
        %v4232 = vor.u32 %v4230, %v4231
        %v4233 = vrot.slane %v4232, 4
        %v4234 = vrot.slane %v3943, 6
        %v4235 = vrot.slane %v3939, 7
        %v4236 = vor.u32 %v4234, %v4235
        %v4237 = vsel %vm3608, %v4233, %v4236
        %v4238 = vrot.slane %v4236, 4
        %v4239 = vrot.slane %v4121, 6
        %v4240 = vrot.slane %v3949, 7
        %v4241 = vor.u32 %v4239, %v4240
        %v4242 = vsel %vm3608, %v4238, %v4241
        %v4243 = vrot.slane %v3954, 6
        %v4244 = vrot.slane %v3957, 7
        %v4245 = vor.u32 %v4243, %v4244
        %v4246 = vrot.slane %v4245, 4
        %v4247 = vrot.slane %v3967, 6
        %v4248 = vrot.slane %v3963, 7
        %v4249 = vor.u32 %v4247, %v4248
        %v4250 = vsel %vm3608, %v4246, %v4249
        %v4251 = vrot.slane %v4249, 4
        %v4252 = vrot.slane %v4136, 6
        %v4253 = vrot.slane %v3973, 7
        %v4254 = vor.u32 %v4252, %v4253
        %v4255 = vsel %vm3608, %v4251, %v4254
        %v4256 = vrot.slane %v3978, 6
        %v4257 = vrot.slane %v3981, 7
        %v4258 = vor.u32 %v4256, %v4257
        %v4259 = vrot.slane %v4258, 4
        %v4260 = vrot.slane %v3991, 6
        %v4261 = vrot.slane %v3987, 7
        %v4262 = vor.u32 %v4260, %v4261
        %v4263 = vsel %vm3608, %v4259, %v4262
        %v4264 = vrot.slane %v4262, 4
        %v4265 = vrot.slane %v4151, 6
        %v4266 = vrot.slane %v3997, 7
        %v4267 = vor.u32 %v4265, %v4266
        %v4268 = vsel %vm3608, %v4264, %v4267
        %v4269 = vrot.slane %v4002, 6
        %v4270 = vrot.slane %v4005, 7
        %v4271 = vor.u32 %v4269, %v4270
        %v4272 = vrot.slane %v4271, 4
        %v4273 = vrot.slane %v4015, 6
        %v4274 = vrot.slane %v4011, 7
        %v4275 = vor.u32 %v4273, %v4274
        %v4276 = vsel %vm3608, %v4272, %v4275
        %v4277 = vrot.slane %v4275, 4
        %v4278 = vrot.slane %v4166, 6
        %v4279 = vrot.slane %v4021, 7
        %v4280 = vor.u32 %v4278, %v4279
        %v4281 = vsel %vm3608, %v4277, %v4280
        %v4282 = vrot.slane %v4026, 6
        %v4283 = vrot.slane %v4029, 7
        %v4284 = vor.u32 %v4282, %v4283
        %v4285 = vrot.slane %v4284, 4
        %v4286 = vrot.slane %v4039, 6
        %v4287 = vrot.slane %v4035, 7
        %v4288 = vor.u32 %v4286, %v4287
        %v4289 = vsel %vm3608, %v4285, %v4288
        %v4290 = vrot.slane %v4288, 4
        %v4291 = vrot.slane %v4181, 6
        %v4292 = vrot.slane %v4045, 7
        %v4293 = vor.u32 %v4291, %v4292
        %v4294 = vsel %vm3608, %v4290, %v4293
        %v4295 = vrot.slane %v4050, 6
        %v4296 = vrot.slane %v4053, 7
        %v4297 = vor.u32 %v4295, %v4296
        %v4298 = vrot.slane %v4297, 4
        %v4299 = vrot.slane %v4063, 6
        %v4300 = vrot.slane %v4059, 7
        %v4301 = vor.u32 %v4299, %v4300
        %v4302 = vsel %vm3608, %v4298, %v4301
        %v4303 = vrot.slane %v4301, 4
        %v4304 = vrot.slane %v4196, 6
        %v4305 = vrot.slane %v4069, 7
        %v4306 = vor.u32 %v4304, %v4305
        %v4307 = vsel %vm3608, %v4303, %v4306
        %v4308 = vrot.slane %v4074, 6
        %v4309 = vrot.slane %v4077, 7
        %v4310 = vor.u32 %v4308, %v4309
        %v4311 = vrot.slane %v4310, 4
        %v4312 = vrot.slane %v4087, 6
        %v4313 = vrot.slane %v4083, 7
        %v4314 = vor.u32 %v4312, %v4313
        %v4315 = vsel %vm3608, %v4311, %v4314
        %v4316 = vrot.slane %v4314, 4
        %v4317 = vrot.slane %v4211, 6
        %v4318 = vrot.slane %v4093, 7
        %v4319 = vor.u32 %v4317, %v4318
        %v4320 = vsel %vm3608, %v4316, %v4319
        %v4321 = vunpack.c.l.b16 %v3307
        %v4322 = vunpack.c.l.b16 %v3317
        %v4323 = vunpack.c.l.b16 %v3331
        %v4324 = vunpack.c.l.b16 %v3341
        %v4325 = vunpack.c.l.b16 %v3355
        %v4326 = vunpack.c.l.b16 %v3365
        %v4327 = vunpack.c.l.b16 %v3379
        %v4328 = vunpack.c.l.b16 %v3389
        %v4329 = vunpack.c.l.b16 %v3403
        %v4330 = vunpack.c.l.b16 %v3413
        %v4331 = vunpack.c.l.b16 %v3427
        %v4332 = vunpack.c.l.b16 %v3437
        %v4333 = vunpack.c.l.b16 %v3451
        %v4334 = vunpack.c.l.b16 %v3461
        %v4335 = vunpack.c.l.b16 %v3475
        %v4336 = vunpack.c.l.b16 %v3485
        %v4337 = vpack.c.b16 %v4322, %v4321
        %v4338 = vpack.c.b16 %v4324, %v4323
        %v4339 = vpack.c.b16 %v4326, %v4325
        %v4340 = vpack.c.b16 %v4328, %v4327
        %v4341 = vpack.c.b16 %v4330, %v4329
        %v4342 = vpack.c.b16 %v4332, %v4331
        %v4343 = vpack.c.b16 %v4334, %v4333
        %v4344 = vpack.c.b16 %v4336, %v4335
        %v4353 = vunpack.c.l.b16 %v3493
        %v4354 = vunpack.c.l.b16 %v3500
        %v4355 = vunpack.c.l.b16 %v3508
        %v4356 = vunpack.c.l.b16 %v3515
        %v4357 = vunpack.c.l.b16 %v3523
        %v4358 = vunpack.c.l.b16 %v3530
        %v4359 = vunpack.c.l.b16 %v3538
        %v4360 = vunpack.c.l.b16 %v3545
        %v4361 = vunpack.c.l.b16 %v3553
        %v4362 = vunpack.c.l.b16 %v3560
        %v4363 = vunpack.c.l.b16 %v3568
        %v4364 = vunpack.c.l.b16 %v3575
        %v4365 = vunpack.c.l.b16 %v3583
        %v4366 = vunpack.c.l.b16 %v3590
        %v4367 = vunpack.c.l.b16 %v3598
        %v4368 = vunpack.c.l.b16 %v3605
        %v4369 = vpack.c.b16 %v4354, %v4353
        %v4370 = vpack.c.b16 %v4356, %v4355
        %v4371 = vpack.c.b16 %v4358, %v4357
        %v4372 = vpack.c.b16 %v4360, %v4359
        %v4373 = vpack.c.b16 %v4362, %v4361
        %v4374 = vpack.c.b16 %v4364, %v4363
        %v4375 = vpack.c.b16 %v4366, %v4365
        %v4376 = vpack.c.b16 %v4368, %v4367
        %v4385 = vunpack.c.l.b16 %v3616
        %v4386 = vunpack.c.l.b16 %v3621
        %v4387 = vunpack.c.l.b16 %v3629
        %v4388 = vunpack.c.l.b16 %v3634
        %v4389 = vunpack.c.l.b16 %v3642
        %v4390 = vunpack.c.l.b16 %v3647
        %v4391 = vunpack.c.l.b16 %v3655
        %v4392 = vunpack.c.l.b16 %v3660
        %v4393 = vunpack.c.l.b16 %v3668
        %v4394 = vunpack.c.l.b16 %v3673
        %v4395 = vunpack.c.l.b16 %v3681
        %v4396 = vunpack.c.l.b16 %v3686
        %v4397 = vunpack.c.l.b16 %v3694
        %v4398 = vunpack.c.l.b16 %v3699
        %v4399 = vunpack.c.l.b16 %v3707
        %v4400 = vunpack.c.l.b16 %v3712
        %v4401 = vpack.c.b16 %v4386, %v4385
        %v4402 = vpack.c.b16 %v4388, %v4387
        %v4403 = vpack.c.b16 %v4390, %v4389
        %v4404 = vpack.c.b16 %v4392, %v4391
        %v4405 = vpack.c.b16 %v4394, %v4393
        %v4406 = vpack.c.b16 %v4396, %v4395
        %v4407 = vpack.c.b16 %v4398, %v4397
        %v4408 = vpack.c.b16 %v4400, %v4399
        %v4417 = vunpack.c.l.b16 %v3718
        %v4418 = vunpack.c.l.b16 %v3723
        %v4419 = vunpack.c.l.b16 %v3729
        %v4420 = vunpack.c.l.b16 %v3734
        %v4421 = vunpack.c.l.b16 %v3740
        %v4422 = vunpack.c.l.b16 %v3745
        %v4423 = vunpack.c.l.b16 %v3751
        %v4424 = vunpack.c.l.b16 %v3756
        %v4425 = vunpack.c.l.b16 %v3762
        %v4426 = vunpack.c.l.b16 %v3767
        %v4427 = vunpack.c.l.b16 %v3773
        %v4428 = vunpack.c.l.b16 %v3778
        %v4429 = vunpack.c.l.b16 %v3784
        %v4430 = vunpack.c.l.b16 %v3789
        %v4431 = vunpack.c.l.b16 %v3795
        %v4432 = vunpack.c.l.b16 %v3800
        %v4433 = vpack.c.b16 %v4418, %v4417
        %v4434 = vpack.c.b16 %v4420, %v4419
        %v4435 = vpack.c.b16 %v4422, %v4421
        %v4436 = vpack.c.b16 %v4424, %v4423
        %v4437 = vpack.c.b16 %v4426, %v4425
        %v4438 = vpack.c.b16 %v4428, %v4427
        %v4439 = vpack.c.b16 %v4430, %v4429
        %v4440 = vpack.c.b16 %v4432, %v4431
        %v4449 = vunpack.c.l.b16 %v3808
        %v4450 = vunpack.c.l.b16 %v3813
        %v4451 = vunpack.c.l.b16 %v3821
        %v4452 = vunpack.c.l.b16 %v3826
        %v4453 = vunpack.c.l.b16 %v3834
        %v4454 = vunpack.c.l.b16 %v3839
        %v4455 = vunpack.c.l.b16 %v3847
        %v4456 = vunpack.c.l.b16 %v3852
        %v4457 = vunpack.c.l.b16 %v3860
        %v4458 = vunpack.c.l.b16 %v3865
        %v4459 = vunpack.c.l.b16 %v3873
        %v4460 = vunpack.c.l.b16 %v3878
        %v4461 = vunpack.c.l.b16 %v3886
        %v4462 = vunpack.c.l.b16 %v3891
        %v4463 = vunpack.c.l.b16 %v3899
        %v4464 = vunpack.c.l.b16 %v3904
        %v4465 = vpack.c.b16 %v4450, %v4449
        %v4466 = vpack.c.b16 %v4452, %v4451
        %v4467 = vpack.c.b16 %v4454, %v4453
        %v4468 = vpack.c.b16 %v4456, %v4455
        %v4469 = vpack.c.b16 %v4458, %v4457
        %v4470 = vpack.c.b16 %v4460, %v4459
        %v4471 = vpack.c.b16 %v4462, %v4461
        %v4472 = vpack.c.b16 %v4464, %v4463
        %v4481 = vunpack.c.l.b16 %v3918
        %v4482 = vunpack.c.l.b16 %v3928
        %v4483 = vunpack.c.l.b16 %v3942
        %v4484 = vunpack.c.l.b16 %v3952
        %v4485 = vunpack.c.l.b16 %v3966
        %v4486 = vunpack.c.l.b16 %v3976
        %v4487 = vunpack.c.l.b16 %v3990
        %v4488 = vunpack.c.l.b16 %v4000
        %v4489 = vunpack.c.l.b16 %v4014
        %v4490 = vunpack.c.l.b16 %v4024
        %v4491 = vunpack.c.l.b16 %v4038
        %v4492 = vunpack.c.l.b16 %v4048
        %v4493 = vunpack.c.l.b16 %v4062
        %v4494 = vunpack.c.l.b16 %v4072
        %v4495 = vunpack.c.l.b16 %v4086
        %v4496 = vunpack.c.l.b16 %v4096
        %v4497 = vpack.c.b16 %v4482, %v4481
        %v4498 = vpack.c.b16 %v4484, %v4483
        %v4499 = vpack.c.b16 %v4486, %v4485
        %v4500 = vpack.c.b16 %v4488, %v4487
        %v4501 = vpack.c.b16 %v4490, %v4489
        %v4502 = vpack.c.b16 %v4492, %v4491
        %v4503 = vpack.c.b16 %v4494, %v4493
        %v4504 = vpack.c.b16 %v4496, %v4495
        %v4513 = vunpack.c.l.b16 %v4104
        %v4514 = vunpack.c.l.b16 %v4111
        %v4515 = vunpack.c.l.b16 %v4119
        %v4516 = vunpack.c.l.b16 %v4126
        %v4517 = vunpack.c.l.b16 %v4134
        %v4518 = vunpack.c.l.b16 %v4141
        %v4519 = vunpack.c.l.b16 %v4149
        %v4520 = vunpack.c.l.b16 %v4156
        %v4521 = vunpack.c.l.b16 %v4164
        %v4522 = vunpack.c.l.b16 %v4171
        %v4523 = vunpack.c.l.b16 %v4179
        %v4524 = vunpack.c.l.b16 %v4186
        %v4525 = vunpack.c.l.b16 %v4194
        %v4526 = vunpack.c.l.b16 %v4201
        %v4527 = vunpack.c.l.b16 %v4209
        %v4528 = vunpack.c.l.b16 %v4216
        %v4529 = vpack.c.b16 %v4514, %v4513
        %v4530 = vpack.c.b16 %v4516, %v4515
        %v4531 = vpack.c.b16 %v4518, %v4517
        %v4532 = vpack.c.b16 %v4520, %v4519
        %v4533 = vpack.c.b16 %v4522, %v4521
        %v4534 = vpack.c.b16 %v4524, %v4523
        %v4535 = vpack.c.b16 %v4526, %v4525
        %v4536 = vpack.c.b16 %v4528, %v4527
        %v4545 = vunpack.c.l.b16 %v4224
        %v4546 = vunpack.c.l.b16 %v4229
        %v4547 = vunpack.c.l.b16 %v4237
        %v4548 = vunpack.c.l.b16 %v4242
        %v4549 = vunpack.c.l.b16 %v4250
        %v4550 = vunpack.c.l.b16 %v4255
        %v4551 = vunpack.c.l.b16 %v4263
        %v4552 = vunpack.c.l.b16 %v4268
        %v4553 = vunpack.c.l.b16 %v4276
        %v4554 = vunpack.c.l.b16 %v4281
        %v4555 = vunpack.c.l.b16 %v4289
        %v4556 = vunpack.c.l.b16 %v4294
        %v4557 = vunpack.c.l.b16 %v4302
        %v4558 = vunpack.c.l.b16 %v4307
        %v4559 = vunpack.c.l.b16 %v4315
        %v4560 = vunpack.c.l.b16 %v4320
        %v4561 = vpack.c.b16 %v4546, %v4545
        %v4562 = vpack.c.b16 %v4548, %v4547
        %v4563 = vpack.c.b16 %v4550, %v4549
        %v4564 = vpack.c.b16 %v4552, %v4551
        %v4565 = vpack.c.b16 %v4554, %v4553
        %v4566 = vpack.c.b16 %v4556, %v4555
        %v4567 = vpack.c.b16 %v4558, %v4557
        %v4568 = vpack.c.b16 %v4560, %v4559
        %s4577 = scalar_lea.vmem [#allocation7], 576
        %v4578 = vld [vmem:[%s4577] sm:$0xf]
        %v4579 = vld [vmem:[%s4577 + $0x4] sm:$0xf]
        %v4580 = vld [vmem:[%s4577 + $0x8] sm:$0xf]
        %v4581 = vld [vmem:[%s4577 + $0xc] sm:$0xf]
        %v4582 = vld [vmem:[%s4577 + $0x10] sm:$0xf]
        %v4583 = vld [vmem:[%s4577 + $0x14] sm:$0xf]
        %v4584 = vld [vmem:[%s4577 + $0x18] sm:$0xf]
        %v4585 = vld [vmem:[%s4577 + $0x1c] sm:$0xf]
        %v4586 = vld [vmem:[%s4577 + $0x20] sm:$0xf]
        %v4587 = vld [vmem:[%s4577 + $0x24] sm:$0xf]
        %v4588 = vld [vmem:[%s4577 + $0x28] sm:$0xf]
        %v4589 = vld [vmem:[%s4577 + $0x2c] sm:$0xf]
        %v4590 = vld [vmem:[%s4577 + $0x30] sm:$0xf]
        %v4591 = vld [vmem:[%s4577 + $0x34] sm:$0xf]
        %v4592 = vld [vmem:[%s4577 + $0x38] sm:$0xf]
        %v4593 = vld [vmem:[%s4577 + $0x3c] sm:$0xf]
        %v4594 = vld [vmem:[%s4577 + $0x40] sm:$0xf]
        %v4595 = vld [vmem:[%s4577 + $0x44] sm:$0xf]
        %v4596 = vld [vmem:[%s4577 + $0x48] sm:$0xf]
        %v4597 = vld [vmem:[%s4577 + $0x4c] sm:$0xf]
        %v4598 = vld [vmem:[%s4577 + $0x50] sm:$0xf]
        %v4599 = vld [vmem:[%s4577 + $0x54] sm:$0xf]
        %v4600 = vld [vmem:[%s4577 + $0x58] sm:$0xf]
        %v4601 = vld [vmem:[%s4577 + $0x5c] sm:$0xf]
        %v4602 = vld [vmem:[%s4577 + $0x60] sm:$0xf]
        %v4603 = vld [vmem:[%s4577 + $0x64] sm:$0xf]
        %v4604 = vld [vmem:[%s4577 + $0x68] sm:$0xf]
        %v4605 = vld [vmem:[%s4577 + $0x6c] sm:$0xf]
        %v4606 = vld [vmem:[%s4577 + $0x70] sm:$0xf]
        %v4607 = vld [vmem:[%s4577 + $0x74] sm:$0xf]
        %v4608 = vld [vmem:[%s4577 + $0x78] sm:$0xf]
        %v4609 = vld [vmem:[%s4577 + $0x7c] sm:$0xf]
        %v4610 = vld [vmem:[%s4577 + $0x80] sm:$0xf]
        %v4611 = vld [vmem:[%s4577 + $0x84] sm:$0xf]
        %v4612 = vld [vmem:[%s4577 + $0x88] sm:$0xf]
        %v4613 = vld [vmem:[%s4577 + $0x8c] sm:$0xf]
        %v4614 = vld [vmem:[%s4577 + $0x90] sm:$0xf]
        %v4615 = vld [vmem:[%s4577 + $0x94] sm:$0xf]
        %v4616 = vld [vmem:[%s4577 + $0x98] sm:$0xf]
        %v4617 = vld [vmem:[%s4577 + $0x9c] sm:$0xf]
        %v4618 = vld [vmem:[%s4577 + $0xa0] sm:$0xf]
        %v4619 = vld [vmem:[%s4577 + $0xa4] sm:$0xf]
        %v4620 = vld [vmem:[%s4577 + $0xa8] sm:$0xf]
        %v4621 = vld [vmem:[%s4577 + $0xac] sm:$0xf]
        %v4622 = vld [vmem:[%s4577 + $0xb0] sm:$0xf]
        %v4623 = vld [vmem:[%s4577 + $0xb4] sm:$0xf]
        %v4624 = vld [vmem:[%s4577 + $0xb8] sm:$0xf]
        %v4625 = vld [vmem:[%s4577 + $0xbc] sm:$0xf]
        %v4626 = vld [vmem:[%s4577 + $0xc0] sm:$0xf]
        %v4627 = vld [vmem:[%s4577 + $0xc4] sm:$0xf]
        %v4628 = vld [vmem:[%s4577 + $0xc8] sm:$0xf]
        %v4629 = vld [vmem:[%s4577 + $0xcc] sm:$0xf]
        %v4630 = vld [vmem:[%s4577 + $0xd0] sm:$0xf]
        %v4631 = vld [vmem:[%s4577 + $0xd4] sm:$0xf]
        %v4632 = vld [vmem:[%s4577 + $0xd8] sm:$0xf]
        %v4633 = vld [vmem:[%s4577 + $0xdc] sm:$0xf]
        %v4634 = vld [vmem:[%s4577 + $0xe0] sm:$0xf]
        %v4635 = vld [vmem:[%s4577 + $0xe4] sm:$0xf]
        %v4636 = vld [vmem:[%s4577 + $0xe8] sm:$0xf]
        %v4637 = vld [vmem:[%s4577 + $0xec] sm:$0xf]
        %v4638 = vld [vmem:[%s4577 + $0xf0] sm:$0xf]
        %v4639 = vld [vmem:[%s4577 + $0xf4] sm:$0xf]
        %v4640 = vld [vmem:[%s4577 + $0xf8] sm:$0xf]
        %v4641 = vld [vmem:[%s4577 + $0xfc] sm:$0xf]
        %v4642 = vld [vmem:[%s4577 + $0x100] sm:$0xf]
        %v4643 = vld [vmem:[%s4577 + $0x104] sm:$0xf]
        %v4644 = vld [vmem:[%s4577 + $0x108] sm:$0xf]
        %v4645 = vld [vmem:[%s4577 + $0x10c] sm:$0xf]
        %v4646 = vld [vmem:[%s4577 + $0x110] sm:$0xf]
        %v4647 = vld [vmem:[%s4577 + $0x114] sm:$0xf]
        %v4648 = vld [vmem:[%s4577 + $0x118] sm:$0xf]
        %v4649 = vld [vmem:[%s4577 + $0x11c] sm:$0xf]
        %v4650 = vld [vmem:[%s4577 + $0x120] sm:$0xf]
        %v4651 = vld [vmem:[%s4577 + $0x124] sm:$0xf]
        %v4652 = vld [vmem:[%s4577 + $0x128] sm:$0xf]
        %v4653 = vld [vmem:[%s4577 + $0x12c] sm:$0xf]
        %v4654 = vld [vmem:[%s4577 + $0x130] sm:$0xf]
        %v4655 = vld [vmem:[%s4577 + $0x134] sm:$0xf]
        %v4656 = vld [vmem:[%s4577 + $0x138] sm:$0xf]
        %v4657 = vld [vmem:[%s4577 + $0x13c] sm:$0xf]
        %v4658 = vld [vmem:[%s4577 + $0x140] sm:$0xf]
        %v4659 = vld [vmem:[%s4577 + $0x144] sm:$0xf]
        %v4660 = vld [vmem:[%s4577 + $0x148] sm:$0xf]
        %v4661 = vld [vmem:[%s4577 + $0x14c] sm:$0xf]
        %v4662 = vld [vmem:[%s4577 + $0x150] sm:$0xf]
        %v4663 = vld [vmem:[%s4577 + $0x154] sm:$0xf]
        %v4664 = vld [vmem:[%s4577 + $0x158] sm:$0xf]
        %v4665 = vld [vmem:[%s4577 + $0x15c] sm:$0xf]
        %v4666 = vld [vmem:[%s4577 + $0x160] sm:$0xf]
        %v4667 = vld [vmem:[%s4577 + $0x164] sm:$0xf]
        %v4668 = vld [vmem:[%s4577 + $0x168] sm:$0xf]
        %v4669 = vld [vmem:[%s4577 + $0x16c] sm:$0xf]
        %v4670 = vld [vmem:[%s4577 + $0x170] sm:$0xf]
        %v4671 = vld [vmem:[%s4577 + $0x174] sm:$0xf]
        %v4672 = vld [vmem:[%s4577 + $0x178] sm:$0xf]
        %v4673 = vld [vmem:[%s4577 + $0x17c] sm:$0xf]
        %v4674 = vld [vmem:[%s4577 + $0x180] sm:$0xf]
        %v4675 = vld [vmem:[%s4577 + $0x184] sm:$0xf]
        %v4676 = vld [vmem:[%s4577 + $0x188] sm:$0xf]
        %v4677 = vld [vmem:[%s4577 + $0x18c] sm:$0xf]
        %v4678 = vld [vmem:[%s4577 + $0x190] sm:$0xf]
        %v4679 = vld [vmem:[%s4577 + $0x194] sm:$0xf]
        %v4680 = vld [vmem:[%s4577 + $0x198] sm:$0xf]
        %v4681 = vld [vmem:[%s4577 + $0x19c] sm:$0xf]
        %v4682 = vld [vmem:[%s4577 + $0x1a0] sm:$0xf]
        %v4683 = vld [vmem:[%s4577 + $0x1a4] sm:$0xf]
        %v4684 = vld [vmem:[%s4577 + $0x1a8] sm:$0xf]
        %v4685 = vld [vmem:[%s4577 + $0x1ac] sm:$0xf]
        %v4686 = vld [vmem:[%s4577 + $0x1b0] sm:$0xf]
        %v4687 = vld [vmem:[%s4577 + $0x1b4] sm:$0xf]
        %v4688 = vld [vmem:[%s4577 + $0x1b8] sm:$0xf]
        %v4689 = vld [vmem:[%s4577 + $0x1bc] sm:$0xf]
        %v4690 = vld [vmem:[%s4577 + $0x1c0] sm:$0xf]
        %v4691 = vld [vmem:[%s4577 + $0x1c4] sm:$0xf]
        %v4692 = vld [vmem:[%s4577 + $0x1c8] sm:$0xf]
        %v4693 = vld [vmem:[%s4577 + $0x1cc] sm:$0xf]
        %v4694 = vld [vmem:[%s4577 + $0x1d0] sm:$0xf]
        %v4695 = vld [vmem:[%s4577 + $0x1d4] sm:$0xf]
        %v4696 = vld [vmem:[%s4577 + $0x1d8] sm:$0xf]
        %v4697 = vld [vmem:[%s4577 + $0x1dc] sm:$0xf]
        %v4698 = vld [vmem:[%s4577 + $0x1e0] sm:$0xf]
        %v4699 = vld [vmem:[%s4577 + $0x1e4] sm:$0xf]
        %v4700 = vld [vmem:[%s4577 + $0x1e8] sm:$0xf]
        %v4701 = vld [vmem:[%s4577 + $0x1ec] sm:$0xf]
        %v4702 = vld [vmem:[%s4577 + $0x1f0] sm:$0xf]
        %v4703 = vld [vmem:[%s4577 + $0x1f4] sm:$0xf]
        %v4704 = vld [vmem:[%s4577 + $0x1f8] sm:$0xf]
        %v4705 = vld [vmem:[%s4577 + $0x1fc] sm:$0xf]
        %v4706 = vld [vmem:[%s4577 + $0x200] sm:$0xf]
        %v4707 = vld [vmem:[%s4577 + $0x204] sm:$0xf]
        %v4708 = vld [vmem:[%s4577 + $0x208] sm:$0xf]
        %v4709 = vld [vmem:[%s4577 + $0x20c] sm:$0xf]
        %v4710 = vld [vmem:[%s4577 + $0x210] sm:$0xf]
        %v4711 = vld [vmem:[%s4577 + $0x214] sm:$0xf]
        %v4712 = vld [vmem:[%s4577 + $0x218] sm:$0xf]
        %v4713 = vld [vmem:[%s4577 + $0x21c] sm:$0xf]
        %v4714 = vld [vmem:[%s4577 + $0x220] sm:$0xf]
        %v4715 = vld [vmem:[%s4577 + $0x224] sm:$0xf]
        %v4716 = vld [vmem:[%s4577 + $0x228] sm:$0xf]
        %v4717 = vld [vmem:[%s4577 + $0x22c] sm:$0xf]
        %v4718 = vld [vmem:[%s4577 + $0x230] sm:$0xf]
        %v4719 = vld [vmem:[%s4577 + $0x234] sm:$0xf]
        %v4720 = vld [vmem:[%s4577 + $0x238] sm:$0xf]
        %v4721 = vld [vmem:[%s4577 + $0x23c] sm:$0xf]
        %s4722 = scalar_lea.vmem [#allocation8], 1
        %v4723 = vld [vmem:[%s4722] sm:$0x1]
        %v4725 = vlaneseq
        %v4726 = vshrl.u32 %v4725, 7
        %v4727 = vsub.s32 0, %v4726
        %v4728 = vrot.slane %v4723, %v4727
        %v4874 = vunpack.c.l.b16 %v4578
        %v4875 = vunpack.c.l.b16 %v4579
        %v4876 = vunpack.c.l.b16 %v4580
        %v4877 = vunpack.c.l.b16 %v4581
        %v4878 = vunpack.c.l.b16 %v4582
        %v4879 = vunpack.c.l.b16 %v4583
        %v4880 = vunpack.c.l.b16 %v4584
        %v4881 = vunpack.c.l.b16 %v4585
        %v4882 = vunpack.c.l.b16 %v4586
        %v4883 = vunpack.c.l.b16 %v4587
        %v4884 = vunpack.c.l.b16 %v4588
        %v4885 = vunpack.c.l.b16 %v4589
        %v4886 = vunpack.c.l.b16 %v4590
        %v4887 = vunpack.c.l.b16 %v4591
        %v4888 = vunpack.c.l.b16 %v4592
        %v4889 = vunpack.c.l.b16 %v4593
        %v4890 = vunpack.c.l.b16 %v4594
        %v4891 = vunpack.c.l.b16 %v4595
        %v4892 = vunpack.c.l.b16 %v4596
        %v4893 = vunpack.c.l.b16 %v4597
        %v4894 = vunpack.c.l.b16 %v4598
        %v4895 = vunpack.c.l.b16 %v4599
        %v4896 = vunpack.c.l.b16 %v4600
        %v4897 = vunpack.c.l.b16 %v4601
        %v4898 = vunpack.c.l.b16 %v4602
        %v4899 = vunpack.c.l.b16 %v4603
        %v4900 = vunpack.c.l.b16 %v4604
        %v4901 = vunpack.c.l.b16 %v4605
        %v4902 = vunpack.c.l.b16 %v4606
        %v4903 = vunpack.c.l.b16 %v4607
        %v4904 = vunpack.c.l.b16 %v4608
        %v4905 = vunpack.c.l.b16 %v4609
        %v4906 = vunpack.c.l.b16 %v4610
        %v4907 = vunpack.c.l.b16 %v4611
        %v4908 = vunpack.c.l.b16 %v4612
        %v4909 = vunpack.c.l.b16 %v4613
        %v4910 = vunpack.c.l.b16 %v4614
        %v4911 = vunpack.c.l.b16 %v4615
        %v4912 = vunpack.c.l.b16 %v4616
        %v4913 = vunpack.c.l.b16 %v4617
        %v4914 = vunpack.c.l.b16 %v4618
        %v4915 = vunpack.c.l.b16 %v4619
        %v4916 = vunpack.c.l.b16 %v4620
        %v4917 = vunpack.c.l.b16 %v4621
        %v4918 = vunpack.c.l.b16 %v4622
        %v4919 = vunpack.c.l.b16 %v4623
        %v4920 = vunpack.c.l.b16 %v4624
        %v4921 = vunpack.c.l.b16 %v4625
        %v4922 = vunpack.c.l.b16 %v4626
        %v4923 = vunpack.c.l.b16 %v4627
        %v4924 = vunpack.c.l.b16 %v4628
        %v4925 = vunpack.c.l.b16 %v4629
        %v4926 = vunpack.c.l.b16 %v4630
        %v4927 = vunpack.c.l.b16 %v4631
        %v4928 = vunpack.c.l.b16 %v4632
        %v4929 = vunpack.c.l.b16 %v4633
        %v4930 = vunpack.c.l.b16 %v4634
        %v4931 = vunpack.c.l.b16 %v4635
        %v4932 = vunpack.c.l.b16 %v4636
        %v4933 = vunpack.c.l.b16 %v4637
        %v4934 = vunpack.c.l.b16 %v4638
        %v4935 = vunpack.c.l.b16 %v4639
        %v4936 = vunpack.c.l.b16 %v4640
        %v4937 = vunpack.c.l.b16 %v4641
        %v4938 = vunpack.c.l.b16 %v4642
        %v4939 = vunpack.c.l.b16 %v4643
        %v4940 = vunpack.c.l.b16 %v4644
        %v4941 = vunpack.c.l.b16 %v4645
        %v4942 = vunpack.c.l.b16 %v4646
        %v4943 = vunpack.c.l.b16 %v4647
        %v4944 = vunpack.c.l.b16 %v4648
        %v4945 = vunpack.c.l.b16 %v4649
        %v4946 = vunpack.c.l.b16 %v4650
        %v4947 = vunpack.c.l.b16 %v4651
        %v4948 = vunpack.c.l.b16 %v4652
        %v4949 = vunpack.c.l.b16 %v4653
        %v4950 = vunpack.c.l.b16 %v4654
        %v4951 = vunpack.c.l.b16 %v4655
        %v4952 = vunpack.c.l.b16 %v4656
        %v4953 = vunpack.c.l.b16 %v4657
        %v4954 = vunpack.c.l.b16 %v4658
        %v4955 = vunpack.c.l.b16 %v4659
        %v4956 = vunpack.c.l.b16 %v4660
        %v4957 = vunpack.c.l.b16 %v4661
        %v4958 = vunpack.c.l.b16 %v4662
        %v4959 = vunpack.c.l.b16 %v4663
        %v4960 = vunpack.c.l.b16 %v4664
        %v4961 = vunpack.c.l.b16 %v4665
        %v4962 = vunpack.c.l.b16 %v4666
        %v4963 = vunpack.c.l.b16 %v4667
        %v4964 = vunpack.c.l.b16 %v4668
        %v4965 = vunpack.c.l.b16 %v4669
        %v4966 = vunpack.c.l.b16 %v4670
        %v4967 = vunpack.c.l.b16 %v4671
        %v4968 = vunpack.c.l.b16 %v4672
        %v4969 = vunpack.c.l.b16 %v4673
        %v4970 = vunpack.c.l.b16 %v4674
        %v4971 = vunpack.c.l.b16 %v4675
        %v4972 = vunpack.c.l.b16 %v4676
        %v4973 = vunpack.c.l.b16 %v4677
        %v4974 = vunpack.c.l.b16 %v4678
        %v4975 = vunpack.c.l.b16 %v4679
        %v4976 = vunpack.c.l.b16 %v4680
        %v4977 = vunpack.c.l.b16 %v4681
        %v4978 = vunpack.c.l.b16 %v4682
        %v4979 = vunpack.c.l.b16 %v4683
        %v4980 = vunpack.c.l.b16 %v4684
        %v4981 = vunpack.c.l.b16 %v4685
        %v4982 = vunpack.c.l.b16 %v4686
        %v4983 = vunpack.c.l.b16 %v4687
        %v4984 = vunpack.c.l.b16 %v4688
        %v4985 = vunpack.c.l.b16 %v4689
        %v4986 = vunpack.c.l.b16 %v4690
        %v4987 = vunpack.c.l.b16 %v4691
        %v4988 = vunpack.c.l.b16 %v4692
        %v4989 = vunpack.c.l.b16 %v4693
        %v4990 = vunpack.c.l.b16 %v4694
        %v4991 = vunpack.c.l.b16 %v4695
        %v4992 = vunpack.c.l.b16 %v4696
        %v4993 = vunpack.c.l.b16 %v4697
        %v4994 = vunpack.c.l.b16 %v4698
        %v4995 = vunpack.c.l.b16 %v4699
        %v4996 = vunpack.c.l.b16 %v4700
        %v4997 = vunpack.c.l.b16 %v4701
        %v4998 = vunpack.c.l.b16 %v4702
        %v4999 = vunpack.c.l.b16 %v4703
        %v5000 = vunpack.c.l.b16 %v4704
        %v5001 = vunpack.c.l.b16 %v4705
        %v5002 = vunpack.c.l.b16 %v4706
        %v5003 = vunpack.c.l.b16 %v4707
        %v5004 = vunpack.c.l.b16 %v4708
        %v5005 = vunpack.c.l.b16 %v4709
        %v5006 = vunpack.c.l.b16 %v4710
        %v5007 = vunpack.c.l.b16 %v4711
        %v5008 = vunpack.c.l.b16 %v4712
        %v5009 = vunpack.c.l.b16 %v4713
        %v5010 = vunpack.c.l.b16 %v4714
        %v5011 = vunpack.c.l.b16 %v4715
        %v5012 = vunpack.c.l.b16 %v4716
        %v5013 = vunpack.c.l.b16 %v4717
        %v5014 = vunpack.c.l.b16 %v4718
        %v5015 = vunpack.c.l.b16 %v4719
        %v5016 = vunpack.c.l.b16 %v4720
        %v5017 = vunpack.c.l.b16 %v4721
        %v5018 = vpack.c.b16 %v4875, %v4874
        %v5019 = vpack.c.b16 %v4877, %v4876
        %v5020 = vpack.c.b16 %v4879, %v4878
        %v5021 = vpack.c.b16 %v4881, %v4880
        %v5022 = vpack.c.b16 %v4883, %v4882
        %v5023 = vpack.c.b16 %v4885, %v4884
        %v5024 = vpack.c.b16 %v4887, %v4886
        %v5025 = vpack.c.b16 %v4889, %v4888
        %v5026 = vpack.c.b16 %v4891, %v4890
        %v5027 = vpack.c.b16 %v4893, %v4892
        %v5028 = vpack.c.b16 %v4895, %v4894
        %v5029 = vpack.c.b16 %v4897, %v4896
        %v5030 = vpack.c.b16 %v4899, %v4898
        %v5031 = vpack.c.b16 %v4901, %v4900
        %v5032 = vpack.c.b16 %v4903, %v4902
        %v5033 = vpack.c.b16 %v4905, %v4904
        %v5034 = vpack.c.b16 %v4907, %v4906
        %v5035 = vpack.c.b16 %v4909, %v4908
        %v5036 = vpack.c.b16 %v4911, %v4910
        %v5037 = vpack.c.b16 %v4913, %v4912
        %v5038 = vpack.c.b16 %v4915, %v4914
        %v5039 = vpack.c.b16 %v4917, %v4916
        %v5040 = vpack.c.b16 %v4919, %v4918
        %v5041 = vpack.c.b16 %v4921, %v4920
        %v5042 = vpack.c.b16 %v4923, %v4922
        %v5043 = vpack.c.b16 %v4925, %v4924
        %v5044 = vpack.c.b16 %v4927, %v4926
        %v5045 = vpack.c.b16 %v4929, %v4928
        %v5046 = vpack.c.b16 %v4931, %v4930
        %v5047 = vpack.c.b16 %v4933, %v4932
        %v5048 = vpack.c.b16 %v4935, %v4934
        %v5049 = vpack.c.b16 %v4937, %v4936
        %v5050 = vpack.c.b16 %v4939, %v4938
        %v5051 = vpack.c.b16 %v4941, %v4940
        %v5052 = vpack.c.b16 %v4943, %v4942
        %v5053 = vpack.c.b16 %v4945, %v4944
        %v5054 = vpack.c.b16 %v4947, %v4946
        %v5055 = vpack.c.b16 %v4949, %v4948
        %v5056 = vpack.c.b16 %v4951, %v4950
        %v5057 = vpack.c.b16 %v4953, %v4952
        %v5058 = vpack.c.b16 %v4955, %v4954
        %v5059 = vpack.c.b16 %v4957, %v4956
        %v5060 = vpack.c.b16 %v4959, %v4958
        %v5061 = vpack.c.b16 %v4961, %v4960
        %v5062 = vpack.c.b16 %v4963, %v4962
        %v5063 = vpack.c.b16 %v4965, %v4964
        %v5064 = vpack.c.b16 %v4967, %v4966
        %v5065 = vpack.c.b16 %v4969, %v4968
        %v5066 = vpack.c.b16 %v4971, %v4970
        %v5067 = vpack.c.b16 %v4973, %v4972
        %v5068 = vpack.c.b16 %v4975, %v4974
        %v5069 = vpack.c.b16 %v4977, %v4976
        %v5070 = vpack.c.b16 %v4979, %v4978
        %v5071 = vpack.c.b16 %v4981, %v4980
        %v5072 = vpack.c.b16 %v4983, %v4982
        %v5073 = vpack.c.b16 %v4985, %v4984
        %v5074 = vpack.c.b16 %v4987, %v4986
        %v5075 = vpack.c.b16 %v4989, %v4988
        %v5076 = vpack.c.b16 %v4991, %v4990
        %v5077 = vpack.c.b16 %v4993, %v4992
        %v5078 = vpack.c.b16 %v4995, %v4994
        %v5079 = vpack.c.b16 %v4997, %v4996
        %v5080 = vpack.c.b16 %v4999, %v4998
        %v5081 = vpack.c.b16 %v5001, %v5000
        %v5082 = vpack.c.b16 %v5003, %v5002
        %v5083 = vpack.c.b16 %v5005, %v5004
        %v5084 = vpack.c.b16 %v5007, %v5006
        %v5085 = vpack.c.b16 %v5009, %v5008
        %v5086 = vpack.c.b16 %v5011, %v5010
        %v5087 = vpack.c.b16 %v5013, %v5012
        %v5088 = vpack.c.b16 %v5015, %v5014
        %v5089 = vpack.c.b16 %v5017, %v5016
        %5162 = vmatprep.subr.bf16.mxu0 0
        %5163 = vmatpush1.bf16.msra.mxu0 %v5025
        %5164 = vmatprep.subr.bf16.mxu0 0
        %5165 = vmatpush1.bf16.msra.mxu0 %v5024
        %5166 = vmatprep.subr.bf16.mxu0 0
        %5167 = vmatpush1.bf16.msra.mxu0 %v5023
        %5168 = vmatprep.subr.bf16.mxu0 0
        %5169 = vmatpush1.bf16.msra.mxu0 %v5022
        %5170 = vmatprep.subr.bf16.mxu0 0
        %5171 = vmatpush1.bf16.msra.mxu0 %v5021
        %5172 = vmatprep.subr.bf16.mxu0 0
        %5173 = vmatpush1.bf16.msra.mxu0 %v5020
        %5174 = vmatprep.subr.bf16.mxu0 0
        %5175 = vmatpush1.bf16.msra.mxu0 %v5019
        %5176 = vmatprep.subr.bf16.mxu0 0
        %5177 = vmatpush1.bf16.msra.mxu0 %v5018
        %5178 = vmatprep.subr.bf16.mxu0 0
        %5179 = vmatpush2.bf16.msra.mxu0 %v5033
        %5180 = vmatprep.subr.bf16.mxu0 0
        %5181 = vmatpush2.bf16.msra.mxu0 %v5032
        %5182 = vmatprep.subr.bf16.mxu0 0
        %5183 = vmatpush2.bf16.msra.mxu0 %v5031
        %5184 = vmatprep.subr.bf16.mxu0 0
        %5185 = vmatpush2.bf16.msra.mxu0 %v5030
        %5186 = vmatprep.subr.bf16.mxu0 0
        %5187 = vmatpush2.bf16.msra.mxu0 %v5029
        %5188 = vmatprep.subr.bf16.mxu0 0
        %5189 = vmatpush2.bf16.msra.mxu0 %v5028
        %5190 = vmatprep.subr.bf16.mxu0 0
        %5191 = vmatpush2.bf16.msra.mxu0 %v5027
        %5192 = vmatprep.subr.bf16.mxu0 0
        %5193 = vmatpush2.bf16.msra.mxu0 %v5026
        %5194 = vmatprep.mubr.bf16.mxu0 %v4369
        %5195 = vmatmul.mubr.bf16.gmra.mxu0 %v4337
        %v5196 = vpop.f32.mrf.mxu0
        %v5197 = vadd.f32 %v4728, %v5196
        %v5198 = vpop.f32.mrf.mxu0
        %v5199 = vpop.f32.mrf.mxu0
        %v5200 = vadd.f32 %v4728, %v5199
        %v5201 = vpop.f32.mrf.mxu0
        %5202 = vmatprep.mubr.bf16.mxu0 %v4370
        %5203 = vmatmul.mubr.bf16.gmra.mxu0 %v4338
        %v5204 = vpop.f32.mrf.mxu0
        %v5205 = vadd.f32 %v4728, %v5204
        %v5206 = vpop.f32.mrf.mxu0
        %v5207 = vpop.f32.mrf.mxu0
        %v5208 = vadd.f32 %v4728, %v5207
        %v5209 = vpop.f32.mrf.mxu0
        %5210 = vmatprep.mubr.bf16.mxu0 %v4371
        %5211 = vmatmul.mubr.bf16.gmra.mxu0 %v4339
        %v5212 = vpop.f32.mrf.mxu0
        %v5213 = vadd.f32 %v4728, %v5212
        %v5214 = vpop.f32.mrf.mxu0
        %v5215 = vpop.f32.mrf.mxu0
        %v5216 = vadd.f32 %v4728, %v5215
        %v5217 = vpop.f32.mrf.mxu0
        %5218 = vmatprep.mubr.bf16.mxu0 %v4372
        %5219 = vmatmul.mubr.bf16.gmra.mxu0 %v4340
        %v5220 = vpop.f32.mrf.mxu0
        %v5221 = vadd.f32 %v4728, %v5220
        %v5222 = vpop.f32.mrf.mxu0
        %v5223 = vpop.f32.mrf.mxu0
        %v5224 = vadd.f32 %v4728, %v5223
        %v5225 = vpop.f32.mrf.mxu0
        %5226 = vmatprep.mubr.bf16.mxu0 %v4373
        %5227 = vmatmul.mubr.bf16.gmra.mxu0 %v4341
        %v5228 = vpop.f32.mrf.mxu0
        %v5229 = vadd.f32 %v4728, %v5228
        %v5230 = vpop.f32.mrf.mxu0
        %v5231 = vpop.f32.mrf.mxu0
        %v5232 = vadd.f32 %v4728, %v5231
        %v5233 = vpop.f32.mrf.mxu0
        %5234 = vmatprep.mubr.bf16.mxu0 %v4374
        %5235 = vmatmul.mubr.bf16.gmra.mxu0 %v4342
        %v5236 = vpop.f32.mrf.mxu0
        %v5237 = vadd.f32 %v4728, %v5236
        %v5238 = vpop.f32.mrf.mxu0
        %v5239 = vpop.f32.mrf.mxu0
        %v5240 = vadd.f32 %v4728, %v5239
        %v5241 = vpop.f32.mrf.mxu0
        %5242 = vmatprep.mubr.bf16.mxu0 %v4375
        %5243 = vmatmul.mubr.bf16.gmra.mxu0 %v4343
        %v5244 = vpop.f32.mrf.mxu0
        %v5245 = vadd.f32 %v4728, %v5244
        %v5246 = vpop.f32.mrf.mxu0
        %v5247 = vpop.f32.mrf.mxu0
        %v5248 = vadd.f32 %v4728, %v5247
        %v5249 = vpop.f32.mrf.mxu0
        %5250 = vmatprep.mubr.bf16.mxu0 %v4376
        %5251 = vmatmul.mubr.bf16.gmra.mxu0 %v4344
        %v5252 = vpop.f32.mrf.mxu0
        %v5253 = vadd.f32 %v4728, %v5252
        %v5254 = vpop.f32.mrf.mxu0
        %v5255 = vpop.f32.mrf.mxu0
        %v5256 = vadd.f32 %v4728, %v5255
        %v5257 = vpop.f32.mrf.mxu0
        %5258 = vdwg.mxu0
        %5259 = vmatprep.subr.bf16.mxu0 0
        %5260 = vmatpush1.bf16.msra.mxu0 %v5041
        %5261 = vmatprep.subr.bf16.mxu0 0
        %5262 = vmatpush1.bf16.msra.mxu0 %v5040
        %5263 = vmatprep.subr.bf16.mxu0 0
        %5264 = vmatpush1.bf16.msra.mxu0 %v5039
        %5265 = vmatprep.subr.bf16.mxu0 0
        %5266 = vmatpush1.bf16.msra.mxu0 %v5038
        %5267 = vmatprep.subr.bf16.mxu0 0
        %5268 = vmatpush1.bf16.msra.mxu0 %v5037
        %5269 = vmatprep.subr.bf16.mxu0 0
        %5270 = vmatpush1.bf16.msra.mxu0 %v5036
        %5271 = vmatprep.subr.bf16.mxu0 0
        %5272 = vmatpush1.bf16.msra.mxu0 %v5035
        %5273 = vmatprep.subr.bf16.mxu0 0
        %5274 = vmatpush1.bf16.msra.mxu0 %v5034
        %5275 = vmatprep.subr.bf16.mxu0 0
        %5276 = vmatpush2.bf16.msra.mxu0 %v5049
        %5277 = vmatprep.subr.bf16.mxu0 0
        %5278 = vmatpush2.bf16.msra.mxu0 %v5048
        %5279 = vmatprep.subr.bf16.mxu0 0
        %5280 = vmatpush2.bf16.msra.mxu0 %v5047
        %5281 = vmatprep.subr.bf16.mxu0 0
        %5282 = vmatpush2.bf16.msra.mxu0 %v5046
        %5283 = vmatprep.subr.bf16.mxu0 0
        %5284 = vmatpush2.bf16.msra.mxu0 %v5045
        %5285 = vmatprep.subr.bf16.mxu0 0
        %5286 = vmatpush2.bf16.msra.mxu0 %v5044
        %5287 = vmatprep.subr.bf16.mxu0 0
        %5288 = vmatpush2.bf16.msra.mxu0 %v5043
        %5289 = vmatprep.subr.bf16.mxu0 0
        %5290 = vmatpush2.bf16.msra.mxu0 %v5042
        %5291 = vmatprep.mubr.bf16.mxu0 %v4433
        %5292 = vmatmul.mubr.bf16.gmra.mxu0 %v4401
        %v5293 = vpop.f32.mrf.mxu0
        %v5294 = vadd.f32 %v5197, %v5293
        %v5295 = vpop.f32.mrf.mxu0
        %v5296 = vpop.f32.mrf.mxu0
        %v5297 = vadd.f32 %v5200, %v5296
        %v5298 = vpop.f32.mrf.mxu0
        %5299 = vmatprep.mubr.bf16.mxu0 %v4434
        %5300 = vmatmul.mubr.bf16.gmra.mxu0 %v4402
        %v5301 = vpop.f32.mrf.mxu0
        %v5302 = vadd.f32 %v5205, %v5301
        %v5303 = vpop.f32.mrf.mxu0
        %v5304 = vpop.f32.mrf.mxu0
        %v5305 = vadd.f32 %v5208, %v5304
        %v5306 = vpop.f32.mrf.mxu0
        %5307 = vmatprep.mubr.bf16.mxu0 %v4435
        %5308 = vmatmul.mubr.bf16.gmra.mxu0 %v4403
        %v5309 = vpop.f32.mrf.mxu0
        %v5310 = vadd.f32 %v5213, %v5309
        %v5311 = vpop.f32.mrf.mxu0
        %v5312 = vpop.f32.mrf.mxu0
        %v5313 = vadd.f32 %v5216, %v5312
        %v5314 = vpop.f32.mrf.mxu0
        %5315 = vmatprep.mubr.bf16.mxu0 %v4436
        %5316 = vmatmul.mubr.bf16.gmra.mxu0 %v4404
        %v5317 = vpop.f32.mrf.mxu0
        %v5318 = vadd.f32 %v5221, %v5317
        %v5319 = vpop.f32.mrf.mxu0
        %v5320 = vpop.f32.mrf.mxu0
        %v5321 = vadd.f32 %v5224, %v5320
        %v5322 = vpop.f32.mrf.mxu0
        %5323 = vmatprep.mubr.bf16.mxu0 %v4437
        %5324 = vmatmul.mubr.bf16.gmra.mxu0 %v4405
        %v5325 = vpop.f32.mrf.mxu0
        %v5326 = vadd.f32 %v5229, %v5325
        %v5327 = vpop.f32.mrf.mxu0
        %v5328 = vpop.f32.mrf.mxu0
        %v5329 = vadd.f32 %v5232, %v5328
        %v5330 = vpop.f32.mrf.mxu0
        %5331 = vmatprep.mubr.bf16.mxu0 %v4438
        %5332 = vmatmul.mubr.bf16.gmra.mxu0 %v4406
        %v5333 = vpop.f32.mrf.mxu0
        %v5334 = vadd.f32 %v5237, %v5333
        %v5335 = vpop.f32.mrf.mxu0
        %v5336 = vpop.f32.mrf.mxu0
        %v5337 = vadd.f32 %v5240, %v5336
        %v5338 = vpop.f32.mrf.mxu0
        %5339 = vmatprep.mubr.bf16.mxu0 %v4439
        %5340 = vmatmul.mubr.bf16.gmra.mxu0 %v4407
        %v5341 = vpop.f32.mrf.mxu0
        %v5342 = vadd.f32 %v5245, %v5341
        %v5343 = vpop.f32.mrf.mxu0
        %v5344 = vpop.f32.mrf.mxu0
        %v5345 = vadd.f32 %v5248, %v5344
        %v5346 = vpop.f32.mrf.mxu0
        %5347 = vmatprep.mubr.bf16.mxu0 %v4440
        %5348 = vmatmul.mubr.bf16.gmra.mxu0 %v4408
        %v5349 = vpop.f32.mrf.mxu0
        %v5350 = vadd.f32 %v5253, %v5349
        %v5351 = vpop.f32.mrf.mxu0
        %v5352 = vpop.f32.mrf.mxu0
        %v5353 = vadd.f32 %v5256, %v5352
        %v5354 = vpop.f32.mrf.mxu0
        %5355 = vdwg.mxu0
        %5356 = vmatprep.subr.bf16.mxu0 0
        %5357 = vmatpush1.bf16.msra.mxu0 %v5057
        %5358 = vmatprep.subr.bf16.mxu0 0
        %5359 = vmatpush1.bf16.msra.mxu0 %v5056
        %5360 = vmatprep.subr.bf16.mxu0 0
        %5361 = vmatpush1.bf16.msra.mxu0 %v5055
        %5362 = vmatprep.subr.bf16.mxu0 0
        %5363 = vmatpush1.bf16.msra.mxu0 %v5054
        %5364 = vmatprep.subr.bf16.mxu0 0
        %5365 = vmatpush1.bf16.msra.mxu0 %v5053
        %5366 = vmatprep.subr.bf16.mxu0 0
        %5367 = vmatpush1.bf16.msra.mxu0 %v5052
        %5368 = vmatprep.subr.bf16.mxu0 0
        %5369 = vmatpush1.bf16.msra.mxu0 %v5051
        %5370 = vmatprep.subr.bf16.mxu0 0
        %5371 = vmatpush1.bf16.msra.mxu0 %v5050
        %5372 = vmatprep.subr.bf16.mxu0 0
        %5373 = vmatpush2.bf16.msra.mxu0 %v5065
        %5374 = vmatprep.subr.bf16.mxu0 0
        %5375 = vmatpush2.bf16.msra.mxu0 %v5064
        %5376 = vmatprep.subr.bf16.mxu0 0
        %5377 = vmatpush2.bf16.msra.mxu0 %v5063
        %5378 = vmatprep.subr.bf16.mxu0 0
        %5379 = vmatpush2.bf16.msra.mxu0 %v5062
        %5380 = vmatprep.subr.bf16.mxu0 0
        %5381 = vmatpush2.bf16.msra.mxu0 %v5061
        %5382 = vmatprep.subr.bf16.mxu0 0
        %5383 = vmatpush2.bf16.msra.mxu0 %v5060
        %5384 = vmatprep.subr.bf16.mxu0 0
        %5385 = vmatpush2.bf16.msra.mxu0 %v5059
        %5386 = vmatprep.subr.bf16.mxu0 0
        %5387 = vmatpush2.bf16.msra.mxu0 %v5058
        %5388 = vmatprep.mubr.bf16.mxu0 %v4465
        %5389 = vmatmul.mubr.bf16.gmra.mxu0 %v880
        %v5390 = vpop.f32.mrf.mxu0
        %v5391 = vadd.f32 %v5294, %v5390
        %v5392 = vpop.f32.mrf.mxu0
        %v5393 = vpop.f32.mrf.mxu0
        %v5394 = vadd.f32 %v5297, %v5393
        %v5395 = vpop.f32.mrf.mxu0
        %5396 = vmatprep.mubr.bf16.mxu0 %v4466
        %5397 = vmatmul.mubr.bf16.gmra.mxu0 %v881
        %v5398 = vpop.f32.mrf.mxu0
        %v5399 = vadd.f32 %v5302, %v5398
        %v5400 = vpop.f32.mrf.mxu0
        %v5401 = vpop.f32.mrf.mxu0
        %v5402 = vadd.f32 %v5305, %v5401
        %v5403 = vpop.f32.mrf.mxu0
        %5404 = vmatprep.mubr.bf16.mxu0 %v4467
        %5405 = vmatmul.mubr.bf16.gmra.mxu0 %v882
        %v5406 = vpop.f32.mrf.mxu0
        %v5407 = vadd.f32 %v5310, %v5406
        %v5408 = vpop.f32.mrf.mxu0
        %v5409 = vpop.f32.mrf.mxu0
        %v5410 = vadd.f32 %v5313, %v5409
        %v5411 = vpop.f32.mrf.mxu0
        %5412 = vmatprep.mubr.bf16.mxu0 %v4468
        %5413 = vmatmul.mubr.bf16.gmra.mxu0 %v883
        %v5414 = vpop.f32.mrf.mxu0
        %v5415 = vadd.f32 %v5318, %v5414
        %v5416 = vpop.f32.mrf.mxu0
        %v5417 = vpop.f32.mrf.mxu0
        %v5418 = vadd.f32 %v5321, %v5417
        %v5419 = vpop.f32.mrf.mxu0
        %5420 = vmatprep.mubr.bf16.mxu0 %v4469
        %5421 = vmatmul.mubr.bf16.gmra.mxu0 %v884
        %v5422 = vpop.f32.mrf.mxu0
        %v5423 = vadd.f32 %v5326, %v5422
        %v5424 = vpop.f32.mrf.mxu0
        %v5425 = vpop.f32.mrf.mxu0
        %v5426 = vadd.f32 %v5329, %v5425
        %v5427 = vpop.f32.mrf.mxu0
        %5428 = vmatprep.mubr.bf16.mxu0 %v4470
        %5429 = vmatmul.mubr.bf16.gmra.mxu0 %v885
        %v5430 = vpop.f32.mrf.mxu0
        %v5431 = vadd.f32 %v5334, %v5430
        %v5432 = vpop.f32.mrf.mxu0
        %v5433 = vpop.f32.mrf.mxu0
        %v5434 = vadd.f32 %v5337, %v5433
        %v5435 = vpop.f32.mrf.mxu0
        %5436 = vmatprep.mubr.bf16.mxu0 %v4471
        %5437 = vmatmul.mubr.bf16.gmra.mxu0 %v886
        %v5438 = vpop.f32.mrf.mxu0
        %v5439 = vadd.f32 %v5342, %v5438
        %v5440 = vpop.f32.mrf.mxu0
        %v5441 = vpop.f32.mrf.mxu0
        %v5442 = vadd.f32 %v5345, %v5441
        %v5443 = vpop.f32.mrf.mxu0
        %5444 = vmatprep.mubr.bf16.mxu0 %v4472
        %5445 = vmatmul.mubr.bf16.gmra.mxu0 %v887
        %v5446 = vpop.f32.mrf.mxu0
        %v5447 = vadd.f32 %v5350, %v5446
        %v5448 = vpop.f32.mrf.mxu0
        %v5449 = vpop.f32.mrf.mxu0
        %v5450 = vadd.f32 %v5353, %v5449
        %v5451 = vpop.f32.mrf.mxu0
        %5452 = vdwg.mxu0
        %5453 = vmatprep.subr.bf16.mxu0 0
        %5454 = vmatpush1.bf16.msra.mxu0 %v5073
        %5455 = vmatprep.subr.bf16.mxu0 0
        %5456 = vmatpush1.bf16.msra.mxu0 %v5072
        %5457 = vmatprep.subr.bf16.mxu0 0
        %5458 = vmatpush1.bf16.msra.mxu0 %v5071
        %5459 = vmatprep.subr.bf16.mxu0 0
        %5460 = vmatpush1.bf16.msra.mxu0 %v5070
        %5461 = vmatprep.subr.bf16.mxu0 0
        %5462 = vmatpush1.bf16.msra.mxu0 %v5069
        %5463 = vmatprep.subr.bf16.mxu0 0
        %5464 = vmatpush1.bf16.msra.mxu0 %v5068
        %5465 = vmatprep.subr.bf16.mxu0 0
        %5466 = vmatpush1.bf16.msra.mxu0 %v5067
        %5467 = vmatprep.subr.bf16.mxu0 0
        %5468 = vmatpush1.bf16.msra.mxu0 %v5066
        %5469 = vmatprep.subr.bf16.mxu0 0
        %5470 = vmatpush2.bf16.msra.mxu0 %v5081
        %5471 = vmatprep.subr.bf16.mxu0 0
        %5472 = vmatpush2.bf16.msra.mxu0 %v5080
        %5473 = vmatprep.subr.bf16.mxu0 0
        %5474 = vmatpush2.bf16.msra.mxu0 %v5079
        %5475 = vmatprep.subr.bf16.mxu0 0
        %5476 = vmatpush2.bf16.msra.mxu0 %v5078
        %5477 = vmatprep.subr.bf16.mxu0 0
        %5478 = vmatpush2.bf16.msra.mxu0 %v5077
        %5479 = vmatprep.subr.bf16.mxu0 0
        %5480 = vmatpush2.bf16.msra.mxu0 %v5076
        %5481 = vmatprep.subr.bf16.mxu0 0
        %5482 = vmatpush2.bf16.msra.mxu0 %v5075
        %5483 = vmatprep.subr.bf16.mxu0 0
        %5484 = vmatpush2.bf16.msra.mxu0 %v5074
        %5485 = vmatprep.mubr.bf16.mxu0 %v4529
        %5486 = vmatmul.mubr.bf16.gmra.mxu0 %v4497
        %v5487 = vpop.f32.mrf.mxu0
        %v5488 = vadd.f32 %v5391, %v5487
        %v5489 = vpop.f32.mrf.mxu0
        %v5490 = vpop.f32.mrf.mxu0
        %v5491 = vadd.f32 %v5394, %v5490
        %v5492 = vpop.f32.mrf.mxu0
        %5493 = vmatprep.mubr.bf16.mxu0 %v4530
        %5494 = vmatmul.mubr.bf16.gmra.mxu0 %v4498
        %v5495 = vpop.f32.mrf.mxu0
        %v5496 = vadd.f32 %v5399, %v5495
        %v5497 = vpop.f32.mrf.mxu0
        %v5498 = vpop.f32.mrf.mxu0
        %v5499 = vadd.f32 %v5402, %v5498
        %v5500 = vpop.f32.mrf.mxu0
        %5501 = vmatprep.mubr.bf16.mxu0 %v4531
        %5502 = vmatmul.mubr.bf16.gmra.mxu0 %v4499
        %v5503 = vpop.f32.mrf.mxu0
        %v5504 = vadd.f32 %v5407, %v5503
        %v5505 = vpop.f32.mrf.mxu0
        %v5506 = vpop.f32.mrf.mxu0
        %v5507 = vadd.f32 %v5410, %v5506
        %v5508 = vpop.f32.mrf.mxu0
        %5509 = vmatprep.mubr.bf16.mxu0 %v4532
        %5510 = vmatmul.mubr.bf16.gmra.mxu0 %v4500
        %v5511 = vpop.f32.mrf.mxu0
        %v5512 = vadd.f32 %v5415, %v5511
        %v5513 = vpop.f32.mrf.mxu0
        %v5514 = vpop.f32.mrf.mxu0
        %v5515 = vadd.f32 %v5418, %v5514
        %v5516 = vpop.f32.mrf.mxu0
        %5517 = vmatprep.mubr.bf16.mxu0 %v4533
        %5518 = vmatmul.mubr.bf16.gmra.mxu0 %v4501
        %v5519 = vpop.f32.mrf.mxu0
        %v5520 = vadd.f32 %v5423, %v5519
        %v5521 = vpop.f32.mrf.mxu0
        %v5522 = vpop.f32.mrf.mxu0
        %v5523 = vadd.f32 %v5426, %v5522
        %v5524 = vpop.f32.mrf.mxu0
        %5525 = vmatprep.mubr.bf16.mxu0 %v4534
        %5526 = vmatmul.mubr.bf16.gmra.mxu0 %v4502
        %v5527 = vpop.f32.mrf.mxu0
        %v5528 = vadd.f32 %v5431, %v5527
        %v5529 = vpop.f32.mrf.mxu0
        %v5530 = vpop.f32.mrf.mxu0
        %v5531 = vadd.f32 %v5434, %v5530
        %v5532 = vpop.f32.mrf.mxu0
        %5533 = vmatprep.mubr.bf16.mxu0 %v4535
        %5534 = vmatmul.mubr.bf16.gmra.mxu0 %v4503
        %v5535 = vpop.f32.mrf.mxu0
        %v5536 = vadd.f32 %v5439, %v5535
        %v5537 = vpop.f32.mrf.mxu0
        %v5538 = vpop.f32.mrf.mxu0
        %v5539 = vadd.f32 %v5442, %v5538
        %v5540 = vpop.f32.mrf.mxu0
        %5541 = vmatprep.mubr.bf16.mxu0 %v4536
        %5542 = vmatmul.mubr.bf16.gmra.mxu0 %v4504
        %v5543 = vpop.f32.mrf.mxu0
        %v5544 = vadd.f32 %v5447, %v5543
        %v5545 = vpop.f32.mrf.mxu0
        %v5546 = vpop.f32.mrf.mxu0
        %v5547 = vadd.f32 %v5450, %v5546
        %v5548 = vpop.f32.mrf.mxu0
        %5549 = vdwg.mxu0
        %5550 = vmatprep.subr.bf16.mxu0 0
        %5551 = vmatpush1.bf16.msra.mxu0 %v5089
        %5552 = vmatprep.subr.bf16.mxu0 0
        %5553 = vmatpush1.bf16.msra.mxu0 %v5088
        %5554 = vmatprep.subr.bf16.mxu0 0
        %5555 = vmatpush1.bf16.msra.mxu0 %v5087
        %5556 = vmatprep.subr.bf16.mxu0 0
        %5557 = vmatpush1.bf16.msra.mxu0 %v5086
        %5558 = vmatprep.subr.bf16.mxu0 0
        %5559 = vmatpush1.bf16.msra.mxu0 %v5085
        %5560 = vmatprep.subr.bf16.mxu0 0
        %5561 = vmatpush1.bf16.msra.mxu0 %v5084
        %5562 = vmatprep.subr.bf16.mxu0 0
        %5563 = vmatpush1.bf16.msra.mxu0 %v5083
        %5564 = vmatprep.subr.bf16.mxu0 0
        %5565 = vmatpush1.bf16.msra.mxu0 %v5082
        %5566 = vmatprep.subr.bf16.mxu0 0
        %5567 = vmatpush2.bf16.msra.mxu0 0
        %5568 = vmatprep.subr.bf16.mxu0 0
        %5569 = vmatpush2.bf16.msra.mxu0 0
        %5570 = vmatprep.subr.bf16.mxu0 0
        %5571 = vmatpush2.bf16.msra.mxu0 0
        %5572 = vmatprep.subr.bf16.mxu0 0
        %5573 = vmatpush2.bf16.msra.mxu0 0
        %5574 = vmatprep.subr.bf16.mxu0 0
        %5575 = vmatpush2.bf16.msra.mxu0 0
        %5576 = vmatprep.subr.bf16.mxu0 0
        %5577 = vmatpush2.bf16.msra.mxu0 0
        %5578 = vmatprep.subr.bf16.mxu0 0
        %5579 = vmatpush2.bf16.msra.mxu0 0
        %5580 = vmatprep.subr.bf16.mxu0 0
        %5581 = vmatpush2.bf16.msra.mxu0 0
        %5582 = vmatprep.mubr.bf16.mxu0 0
        %5583 = vmatmul.mubr.bf16.gmra.mxu0 %v4561
        %v5584 = vpop.f32.mrf.mxu0
        %v5585 = vadd.f32 %v5488, %v5584
        %v5586 = vpop.f32.mrf.mxu0
        %v5587 = vpop.f32.mrf.mxu0
        %v5588 = vadd.f32 %v5491, %v5587
        %v5589 = vpop.f32.mrf.mxu0
        %5590 = vmatprep.mubr.bf16.mxu0 0
        %5591 = vmatmul.mubr.bf16.gmra.mxu0 %v4562
        %v5592 = vpop.f32.mrf.mxu0
        %v5593 = vadd.f32 %v5496, %v5592
        %v5594 = vpop.f32.mrf.mxu0
        %v5595 = vpop.f32.mrf.mxu0
        %v5596 = vadd.f32 %v5499, %v5595
        %v5597 = vpop.f32.mrf.mxu0
        %5598 = vmatprep.mubr.bf16.mxu0 0
        %5599 = vmatmul.mubr.bf16.gmra.mxu0 %v4563
        %v5600 = vpop.f32.mrf.mxu0
        %v5601 = vadd.f32 %v5504, %v5600
        %v5602 = vpop.f32.mrf.mxu0
        %v5603 = vpop.f32.mrf.mxu0
        %v5604 = vadd.f32 %v5507, %v5603
        %v5605 = vpop.f32.mrf.mxu0
        %5606 = vmatprep.mubr.bf16.mxu0 0
        %5607 = vmatmul.mubr.bf16.gmra.mxu0 %v4564
        %v5608 = vpop.f32.mrf.mxu0
        %v5609 = vadd.f32 %v5512, %v5608
        %v5610 = vpop.f32.mrf.mxu0
        %v5611 = vpop.f32.mrf.mxu0
        %v5612 = vadd.f32 %v5515, %v5611
        %v5613 = vpop.f32.mrf.mxu0
        %5614 = vmatprep.mubr.bf16.mxu0 0
        %5615 = vmatmul.mubr.bf16.gmra.mxu0 %v4565
        %v5616 = vpop.f32.mrf.mxu0
        %v5617 = vadd.f32 %v5520, %v5616
        %v5618 = vpop.f32.mrf.mxu0
        %v5619 = vpop.f32.mrf.mxu0
        %v5620 = vadd.f32 %v5523, %v5619
        %v5621 = vpop.f32.mrf.mxu0
        %5622 = vmatprep.mubr.bf16.mxu0 0
        %5623 = vmatmul.mubr.bf16.gmra.mxu0 %v4566
        %v5624 = vpop.f32.mrf.mxu0
        %v5625 = vadd.f32 %v5528, %v5624
        %v5626 = vpop.f32.mrf.mxu0
        %v5627 = vpop.f32.mrf.mxu0
        %v5628 = vadd.f32 %v5531, %v5627
        %v5629 = vpop.f32.mrf.mxu0
        %5630 = vmatprep.mubr.bf16.mxu0 0
        %5631 = vmatmul.mubr.bf16.gmra.mxu0 %v4567
        %v5632 = vpop.f32.mrf.mxu0
        %v5633 = vadd.f32 %v5536, %v5632
        %v5634 = vpop.f32.mrf.mxu0
        %v5635 = vpop.f32.mrf.mxu0
        %v5636 = vadd.f32 %v5539, %v5635
        %v5637 = vpop.f32.mrf.mxu0
        %5638 = vmatprep.mubr.bf16.mxu0 0
        %5639 = vmatmul.mubr.bf16.gmra.mxu0 %v4568
        %v5640 = vpop.f32.mrf.mxu0
        %v5641 = vadd.f32 %v5544, %v5640
        %v5642 = vpop.f32.mrf.mxu0
        %v5643 = vpop.f32.mrf.mxu0
        %v5644 = vadd.f32 %v5547, %v5643
        %v5645 = vpop.f32.mrf.mxu0
        %5646 = vdwg.mxu0
        %v5647 = vmax.f32 %v5585, 0.0
        %v5648 = vmax.f32 %v5588, 0.0
        %v5649 = vmax.f32 %v5593, 0.0
        %v5650 = vmax.f32 %v5596, 0.0
        %v5651 = vmax.f32 %v5601, 0.0
        %v5652 = vmax.f32 %v5604, 0.0
        %v5653 = vmax.f32 %v5609, 0.0
        %v5654 = vmax.f32 %v5612, 0.0
        %v5655 = vmax.f32 %v5617, 0.0
        %v5656 = vmax.f32 %v5620, 0.0
        %v5657 = vmax.f32 %v5625, 0.0
        %v5658 = vmax.f32 %v5628, 0.0
        %v5659 = vmax.f32 %v5633, 0.0
        %v5660 = vmax.f32 %v5636, 0.0
        %v5661 = vmax.f32 %v5641, 0.0
        %v5662 = vmax.f32 %v5644, 0.0
        %5663 = vst [vmem:[%s407 + $0x10] sm:$0xff] %v5647
        %5664 = vst [vmem:[%s407 + $0x38] sm:$0xff] %v5648
        %5665 = vst [vmem:[%s407 + $0x60] sm:$0xff] %v5649
        %5666 = vst [vmem:[%s407 + $0x88] sm:$0xff] %v5650
        %5667 = vst [vmem:[%s407 + $0xb0] sm:$0xff] %v5651
        %5668 = vst [vmem:[%s407 + $0xd8] sm:$0xff] %v5652
        %5669 = vst [vmem:[%s407 + $0x100] sm:$0xff] %v5653
        %5670 = vst [vmem:[%s407 + $0x128] sm:$0xff] %v5654
        %5671 = vst [vmem:[%s407 + $0x150] sm:$0xff] %v5655
        %5672 = vst [vmem:[%s407 + $0x178] sm:$0xff] %v5656
        %5673 = vst [vmem:[%s407 + $0x1a0] sm:$0xff] %v5657
        %5674 = vst [vmem:[%s407 + $0x1c8] sm:$0xff] %v5658
        %5675 = vst [vmem:[%s407 + $0x1f0] sm:$0xff] %v5659
        %5676 = vst [vmem:[%s407 + $0x218] sm:$0xff] %v5660
        %5677 = vst [vmem:[%s407 + $0x240] sm:$0xff] %v5661
        %5678 = vst [vmem:[%s407 + $0x268] sm:$0xff] %v5662
        %v5680 = vshrl.u32 %v422, 16
        %v5682 = vrot.slane %v5680, 5
        %v5683 = vshll.u32 %v422, 16
        %v5685 = vrot.slane %v5683, 6
        %v5686 = vor.u32 %v5682, %v5685
        %v5687 = vrot.slane %v5686, 4
        %v5689 = vshrl.u32 %v423, 16
        %v5691 = vrot.slane %v5689, 5
        %v5692 = vshll.u32 %v423, 16
        %v5694 = vrot.slane %v5692, 6
        %v5695 = vor.u32 %v5691, %v5694
        %v5696 = vsel %vm616, %v5687, %v5695
        %v5697 = vrot.slane %v5695, 4
        %v5699 = vshrl.u32 %v424, 16
        %v5701 = vrot.slane %v5699, 5
        %v5702 = vshll.u32 %v424, 16
        %v5704 = vrot.slane %v5702, 6
        %v5705 = vor.u32 %v5701, %v5704
        %v5706 = vsel %vm616, %v5697, %v5705
        %v5708 = vshrl.u32 %v425, 16
        %v5710 = vrot.slane %v5708, 5
        %v5711 = vshll.u32 %v425, 16
        %v5713 = vrot.slane %v5711, 6
        %v5714 = vor.u32 %v5710, %v5713
        %v5715 = vrot.slane %v5714, 4
        %v5717 = vshrl.u32 %v426, 16
        %v5719 = vrot.slane %v5717, 5
        %v5720 = vshll.u32 %v426, 16
        %v5722 = vrot.slane %v5720, 6
        %v5723 = vor.u32 %v5719, %v5722
        %v5724 = vsel %vm616, %v5715, %v5723
        %v5725 = vrot.slane %v5723, 4
        %v5727 = vshrl.u32 %v427, 16
        %v5729 = vrot.slane %v5727, 5
        %v5730 = vshll.u32 %v427, 16
        %v5732 = vrot.slane %v5730, 6
        %v5733 = vor.u32 %v5729, %v5732
        %v5734 = vsel %vm616, %v5725, %v5733
        %v5736 = vshrl.u32 %v428, 16
        %v5738 = vrot.slane %v5736, 5
        %v5739 = vshll.u32 %v428, 16
        %v5741 = vrot.slane %v5739, 6
        %v5742 = vor.u32 %v5738, %v5741
        %v5743 = vrot.slane %v5742, 4
        %v5745 = vshrl.u32 %v429, 16
        %v5747 = vrot.slane %v5745, 5
        %v5748 = vshll.u32 %v429, 16
        %v5750 = vrot.slane %v5748, 6
        %v5751 = vor.u32 %v5747, %v5750
        %v5752 = vsel %vm616, %v5743, %v5751
        %v5753 = vrot.slane %v5751, 4
        %v5755 = vshrl.u32 %v430, 16
        %v5757 = vrot.slane %v5755, 5
        %v5758 = vshll.u32 %v430, 16
        %v5760 = vrot.slane %v5758, 6
        %v5761 = vor.u32 %v5757, %v5760
        %v5762 = vsel %vm616, %v5753, %v5761
        %v5764 = vshrl.u32 %v431, 16
        %v5766 = vrot.slane %v5764, 5
        %v5767 = vshll.u32 %v431, 16
        %v5769 = vrot.slane %v5767, 6
        %v5770 = vor.u32 %v5766, %v5769
        %v5771 = vrot.slane %v5770, 4
        %v5773 = vshrl.u32 %v432, 16
        %v5775 = vrot.slane %v5773, 5
        %v5776 = vshll.u32 %v432, 16
        %v5778 = vrot.slane %v5776, 6
        %v5779 = vor.u32 %v5775, %v5778
        %v5780 = vsel %vm616, %v5771, %v5779
        %v5781 = vrot.slane %v5779, 4
        %v5783 = vshrl.u32 %v433, 16
        %v5785 = vrot.slane %v5783, 5
        %v5786 = vshll.u32 %v433, 16
        %v5788 = vrot.slane %v5786, 6
        %v5789 = vor.u32 %v5785, %v5788
        %v5790 = vsel %vm616, %v5781, %v5789
        %v5792 = vshrl.u32 %v434, 16
        %v5794 = vrot.slane %v5792, 5
        %v5795 = vshll.u32 %v434, 16
        %v5797 = vrot.slane %v5795, 6
        %v5798 = vor.u32 %v5794, %v5797
        %v5799 = vrot.slane %v5798, 4
        %v5801 = vshrl.u32 %v435, 16
        %v5803 = vrot.slane %v5801, 5
        %v5804 = vshll.u32 %v435, 16
        %v5806 = vrot.slane %v5804, 6
        %v5807 = vor.u32 %v5803, %v5806
        %v5808 = vsel %vm616, %v5799, %v5807
        %v5809 = vrot.slane %v5807, 4
        %v5811 = vshrl.u32 %v436, 16
        %v5813 = vrot.slane %v5811, 5
        %v5814 = vshll.u32 %v436, 16
        %v5816 = vrot.slane %v5814, 6
        %v5817 = vor.u32 %v5813, %v5816
        %v5818 = vsel %vm616, %v5809, %v5817
        %v5820 = vshrl.u32 %v437, 16
        %v5822 = vrot.slane %v5820, 5
        %v5823 = vshll.u32 %v437, 16
        %v5825 = vrot.slane %v5823, 6
        %v5826 = vor.u32 %v5822, %v5825
        %v5827 = vrot.slane %v5826, 4
        %v5829 = vshrl.u32 %v438, 16
        %v5831 = vrot.slane %v5829, 5
        %v5832 = vshll.u32 %v438, 16
        %v5834 = vrot.slane %v5832, 6
        %v5835 = vor.u32 %v5831, %v5834
        %v5836 = vsel %vm616, %v5827, %v5835
        %v5837 = vrot.slane %v5835, 4
        %v5839 = vshrl.u32 %v439, 16
        %v5841 = vrot.slane %v5839, 5
        %v5842 = vshll.u32 %v439, 16
        %v5844 = vrot.slane %v5842, 6
        %v5845 = vor.u32 %v5841, %v5844
        %v5846 = vsel %vm616, %v5837, %v5845
        %v5848 = vshrl.u32 %v440, 16
        %v5850 = vrot.slane %v5848, 5
        %v5851 = vshll.u32 %v440, 16
        %v5853 = vrot.slane %v5851, 6
        %v5854 = vor.u32 %v5850, %v5853
        %v5855 = vrot.slane %v5854, 4
        %v5857 = vshrl.u32 %v441, 16
        %v5859 = vrot.slane %v5857, 5
        %v5860 = vshll.u32 %v441, 16
        %v5862 = vrot.slane %v5860, 6
        %v5863 = vor.u32 %v5859, %v5862
        %v5864 = vsel %vm616, %v5855, %v5863
        %v5865 = vrot.slane %v5863, 4
        %v5867 = vshrl.u32 %v442, 16
        %v5869 = vrot.slane %v5867, 5
        %v5870 = vshll.u32 %v442, 16
        %v5872 = vrot.slane %v5870, 6
        %v5873 = vor.u32 %v5869, %v5872
        %v5874 = vsel %vm616, %v5865, %v5873
        %v5876 = vshrl.u32 %v443, 16
        %v5878 = vrot.slane %v5876, 5
        %v5879 = vshll.u32 %v443, 16
        %v5881 = vrot.slane %v5879, 6
        %v5882 = vor.u32 %v5878, %v5881
        %v5883 = vrot.slane %v5882, 4
        %v5885 = vshrl.u32 %v444, 16
        %v5887 = vrot.slane %v5885, 5
        %v5888 = vshll.u32 %v444, 16
        %v5890 = vrot.slane %v5888, 6
        %v5891 = vor.u32 %v5887, %v5890
        %v5892 = vsel %vm616, %v5883, %v5891
        %v5893 = vrot.slane %v5891, 4
        %v5895 = vshrl.u32 %v445, 16
        %v5897 = vrot.slane %v5895, 5
        %v5898 = vshll.u32 %v445, 16
        %v5900 = vrot.slane %v5898, 6
        %v5901 = vor.u32 %v5897, %v5900
        %v5902 = vsel %vm616, %v5893, %v5901
        %vm5927 = vcmask 1040384
        %vm5928 = vcmask 1044484
        %vm5929 = vmor %vm5927, %vm5928
        %v5930 = vrot.slane %v422, 7
        %v5931 = vrot.slane %v5930, 4
        %v5932 = vrot.slane %v423, 7
        %v5933 = vsel %vm5929, %v5931, %v5932
        %v5934 = vrot.slane %v5932, 4
        %v5935 = vrot.slane %v424, 7
        %v5936 = vsel %vm5929, %v5934, %v5935
        %v5937 = vrot.slane %v425, 7
        %v5938 = vrot.slane %v5937, 4
        %v5939 = vrot.slane %v426, 7
        %v5940 = vsel %vm5929, %v5938, %v5939
        %v5941 = vrot.slane %v5939, 4
        %v5942 = vrot.slane %v427, 7
        %v5943 = vsel %vm5929, %v5941, %v5942
        %v5944 = vrot.slane %v428, 7
        %v5945 = vrot.slane %v5944, 4
        %v5946 = vrot.slane %v429, 7
        %v5947 = vsel %vm5929, %v5945, %v5946
        %v5948 = vrot.slane %v5946, 4
        %v5949 = vrot.slane %v430, 7
        %v5950 = vsel %vm5929, %v5948, %v5949
        %v5951 = vrot.slane %v431, 7
        %v5952 = vrot.slane %v5951, 4
        %v5953 = vrot.slane %v432, 7
        %v5954 = vsel %vm5929, %v5952, %v5953
        %v5955 = vrot.slane %v5953, 4
        %v5956 = vrot.slane %v433, 7
        %v5957 = vsel %vm5929, %v5955, %v5956
        %v5958 = vrot.slane %v434, 7
        %v5959 = vrot.slane %v5958, 4
        %v5960 = vrot.slane %v435, 7
        %v5961 = vsel %vm5929, %v5959, %v5960
        %v5962 = vrot.slane %v5960, 4
        %v5963 = vrot.slane %v436, 7
        %v5964 = vsel %vm5929, %v5962, %v5963
        %v5965 = vrot.slane %v437, 7
        %v5966 = vrot.slane %v5965, 4
        %v5967 = vrot.slane %v438, 7
        %v5968 = vsel %vm5929, %v5966, %v5967
        %v5969 = vrot.slane %v5967, 4
        %v5970 = vrot.slane %v439, 7
        %v5971 = vsel %vm5929, %v5969, %v5970
        %v5972 = vrot.slane %v440, 7
        %v5973 = vrot.slane %v5972, 4
        %v5974 = vrot.slane %v441, 7
        %v5975 = vsel %vm5929, %v5973, %v5974
        %v5976 = vrot.slane %v5974, 4
        %v5977 = vrot.slane %v442, 7
        %v5978 = vsel %vm5929, %v5976, %v5977
        %v5979 = vrot.slane %v443, 7
        %v5980 = vrot.slane %v5979, 4
        %v5981 = vrot.slane %v444, 7
        %v5982 = vsel %vm5929, %v5980, %v5981
        %v5983 = vrot.slane %v5981, 4
        %v5984 = vrot.slane %v445, 7
        %v5985 = vsel %vm5929, %v5983, %v5984
        %v5986 = vrot.slane %v506, 7
        %v5987 = vrot.slane %v5986, 4
        %v5988 = vrot.slane %v507, 7
        %v5989 = vsel %vm5929, %v5987, %v5988
        %v5990 = vrot.slane %v5988, 4
        %v5991 = vrot.slane %v508, 7
        %v5992 = vsel %vm5929, %v5990, %v5991
        %v5993 = vrot.slane %v509, 7
        %v5994 = vrot.slane %v5993, 4
        %v5995 = vrot.slane %v510, 7
        %v5996 = vsel %vm5929, %v5994, %v5995
        %v5997 = vrot.slane %v5995, 4
        %v5998 = vrot.slane %v511, 7
        %v5999 = vsel %vm5929, %v5997, %v5998
        %v6000 = vrot.slane %v512, 7
        %v6001 = vrot.slane %v6000, 4
        %v6002 = vrot.slane %v513, 7
        %v6003 = vsel %vm5929, %v6001, %v6002
        %v6004 = vrot.slane %v6002, 4
        %v6005 = vrot.slane %v514, 7
        %v6006 = vsel %vm5929, %v6004, %v6005
        %v6007 = vrot.slane %v515, 7
        %v6008 = vrot.slane %v6007, 4
        %v6009 = vrot.slane %v516, 7
        %v6010 = vsel %vm5929, %v6008, %v6009
        %v6011 = vrot.slane %v6009, 4
        %v6012 = vrot.slane %v517, 7
        %v6013 = vsel %vm5929, %v6011, %v6012
        %v6014 = vrot.slane %v518, 7
        %v6015 = vrot.slane %v6014, 4
        %v6016 = vrot.slane %v519, 7
        %v6017 = vsel %vm5929, %v6015, %v6016
        %v6018 = vrot.slane %v6016, 4
        %v6019 = vrot.slane %v520, 7
        %v6020 = vsel %vm5929, %v6018, %v6019
        %v6021 = vrot.slane %v521, 7
        %v6022 = vrot.slane %v6021, 4
        %v6023 = vrot.slane %v522, 7
        %v6024 = vsel %vm5929, %v6022, %v6023
        %v6025 = vrot.slane %v6023, 4
        %v6026 = vrot.slane %v523, 7
        %v6027 = vsel %vm5929, %v6025, %v6026
        %v6028 = vrot.slane %v524, 7
        %v6029 = vrot.slane %v6028, 4
        %v6030 = vrot.slane %v525, 7
        %v6031 = vsel %vm5929, %v6029, %v6030
        %v6032 = vrot.slane %v6030, 4
        %v6033 = vrot.slane %v526, 7
        %v6034 = vsel %vm5929, %v6032, %v6033
        %v6035 = vrot.slane %v527, 7
        %v6036 = vrot.slane %v6035, 4
        %v6037 = vrot.slane %v528, 7
        %v6038 = vsel %vm5929, %v6036, %v6037
        %v6039 = vrot.slane %v6037, 4
        %v6040 = vrot.slane %v529, 7
        %v6041 = vsel %vm5929, %v6039, %v6040
        %v6043 = vshrl.u32 %v590, 16
        %v6045 = vrot.slane %v6043, 5
        %v6046 = vshll.u32 %v590, 16
        %v6048 = vrot.slane %v6046, 6
        %v6049 = vor.u32 %v6045, %v6048
        %v6050 = vrot.slane %v6049, 4
        %v6052 = vshrl.u32 %v591, 16
        %v6054 = vrot.slane %v6052, 5
        %v6055 = vshll.u32 %v591, 16
        %v6057 = vrot.slane %v6055, 6
        %v6058 = vor.u32 %v6054, %v6057
        %v6059 = vsel %vm616, %v6050, %v6058
        %v6060 = vrot.slane %v6058, 4
        %v6062 = vshrl.u32 %v592, 16
        %v6064 = vrot.slane %v6062, 5
        %v6065 = vshll.u32 %v592, 16
        %v6067 = vrot.slane %v6065, 6
        %v6068 = vor.u32 %v6064, %v6067
        %v6069 = vsel %vm616, %v6060, %v6068
        %v6071 = vshrl.u32 %v593, 16
        %v6073 = vrot.slane %v6071, 5
        %v6074 = vshll.u32 %v593, 16
        %v6076 = vrot.slane %v6074, 6
        %v6077 = vor.u32 %v6073, %v6076
        %v6078 = vrot.slane %v6077, 4
        %v6080 = vshrl.u32 %v594, 16
        %v6082 = vrot.slane %v6080, 5
        %v6083 = vshll.u32 %v594, 16
        %v6085 = vrot.slane %v6083, 6
        %v6086 = vor.u32 %v6082, %v6085
        %v6087 = vsel %vm616, %v6078, %v6086
        %v6088 = vrot.slane %v6086, 4
        %v6090 = vshrl.u32 %v595, 16
        %v6092 = vrot.slane %v6090, 5
        %v6093 = vshll.u32 %v595, 16
        %v6095 = vrot.slane %v6093, 6
        %v6096 = vor.u32 %v6092, %v6095
        %v6097 = vsel %vm616, %v6088, %v6096
        %v6099 = vshrl.u32 %v596, 16
        %v6101 = vrot.slane %v6099, 5
        %v6102 = vshll.u32 %v596, 16
        %v6104 = vrot.slane %v6102, 6
        %v6105 = vor.u32 %v6101, %v6104
        %v6106 = vrot.slane %v6105, 4
        %v6108 = vshrl.u32 %v597, 16
        %v6110 = vrot.slane %v6108, 5
        %v6111 = vshll.u32 %v597, 16
        %v6113 = vrot.slane %v6111, 6
        %v6114 = vor.u32 %v6110, %v6113
        %v6115 = vsel %vm616, %v6106, %v6114
        %v6116 = vrot.slane %v6114, 4
        %v6118 = vshrl.u32 %v598, 16
        %v6120 = vrot.slane %v6118, 5
        %v6121 = vshll.u32 %v598, 16
        %v6123 = vrot.slane %v6121, 6
        %v6124 = vor.u32 %v6120, %v6123
        %v6125 = vsel %vm616, %v6116, %v6124
        %v6127 = vshrl.u32 %v599, 16
        %v6129 = vrot.slane %v6127, 5
        %v6130 = vshll.u32 %v599, 16
        %v6132 = vrot.slane %v6130, 6
        %v6133 = vor.u32 %v6129, %v6132
        %v6134 = vrot.slane %v6133, 4
        %v6136 = vshrl.u32 %v600, 16
        %v6138 = vrot.slane %v6136, 5
        %v6139 = vshll.u32 %v600, 16
        %v6141 = vrot.slane %v6139, 6
        %v6142 = vor.u32 %v6138, %v6141
        %v6143 = vsel %vm616, %v6134, %v6142
        %v6144 = vrot.slane %v6142, 4
        %v6146 = vshrl.u32 %v601, 16
        %v6148 = vrot.slane %v6146, 5
        %v6149 = vshll.u32 %v601, 16
        %v6151 = vrot.slane %v6149, 6
        %v6152 = vor.u32 %v6148, %v6151
        %v6153 = vsel %vm616, %v6144, %v6152
        %v6155 = vshrl.u32 %v602, 16
        %v6157 = vrot.slane %v6155, 5
        %v6158 = vshll.u32 %v602, 16
        %v6160 = vrot.slane %v6158, 6
        %v6161 = vor.u32 %v6157, %v6160
        %v6162 = vrot.slane %v6161, 4
        %v6164 = vshrl.u32 %v603, 16
        %v6166 = vrot.slane %v6164, 5
        %v6167 = vshll.u32 %v603, 16
        %v6169 = vrot.slane %v6167, 6
        %v6170 = vor.u32 %v6166, %v6169
        %v6171 = vsel %vm616, %v6162, %v6170
        %v6172 = vrot.slane %v6170, 4
        %v6174 = vshrl.u32 %v604, 16
        %v6176 = vrot.slane %v6174, 5
        %v6177 = vshll.u32 %v604, 16
        %v6179 = vrot.slane %v6177, 6
        %v6180 = vor.u32 %v6176, %v6179
        %v6181 = vsel %vm616, %v6172, %v6180
        %v6183 = vshrl.u32 %v605, 16
        %v6185 = vrot.slane %v6183, 5
        %v6186 = vshll.u32 %v605, 16
        %v6188 = vrot.slane %v6186, 6
        %v6189 = vor.u32 %v6185, %v6188
        %v6190 = vrot.slane %v6189, 4
        %v6192 = vshrl.u32 %v606, 16
        %v6194 = vrot.slane %v6192, 5
        %v6195 = vshll.u32 %v606, 16
        %v6197 = vrot.slane %v6195, 6
        %v6198 = vor.u32 %v6194, %v6197
        %v6199 = vsel %vm616, %v6190, %v6198
        %v6200 = vrot.slane %v6198, 4
        %v6202 = vshrl.u32 %v607, 16
        %v6204 = vrot.slane %v6202, 5
        %v6205 = vshll.u32 %v607, 16
        %v6207 = vrot.slane %v6205, 6
        %v6208 = vor.u32 %v6204, %v6207
        %v6209 = vsel %vm616, %v6200, %v6208
        %v6211 = vshrl.u32 %v608, 16
        %v6213 = vrot.slane %v6211, 5
        %v6214 = vshll.u32 %v608, 16
        %v6216 = vrot.slane %v6214, 6
        %v6217 = vor.u32 %v6213, %v6216
        %v6218 = vrot.slane %v6217, 4
        %v6220 = vshrl.u32 %v609, 16
        %v6222 = vrot.slane %v6220, 5
        %v6223 = vshll.u32 %v609, 16
        %v6225 = vrot.slane %v6223, 6
        %v6226 = vor.u32 %v6222, %v6225
        %v6227 = vsel %vm616, %v6218, %v6226
        %v6228 = vrot.slane %v6226, 4
        %v6230 = vshrl.u32 %v610, 16
        %v6232 = vrot.slane %v6230, 5
        %v6233 = vshll.u32 %v610, 16
        %v6235 = vrot.slane %v6233, 6
        %v6236 = vor.u32 %v6232, %v6235
        %v6237 = vsel %vm616, %v6228, %v6236
        %v6239 = vshrl.u32 %v611, 16
        %v6241 = vrot.slane %v6239, 5
        %v6242 = vshll.u32 %v611, 16
        %v6244 = vrot.slane %v6242, 6
        %v6245 = vor.u32 %v6241, %v6244
        %v6246 = vrot.slane %v6245, 4
        %v6248 = vshrl.u32 %v612, 16
        %v6250 = vrot.slane %v6248, 5
        %v6251 = vshll.u32 %v612, 16
        %v6253 = vrot.slane %v6251, 6
        %v6254 = vor.u32 %v6250, %v6253
        %v6255 = vsel %vm616, %v6246, %v6254
        %v6256 = vrot.slane %v6254, 4
        %v6258 = vshrl.u32 %v613, 16
        %v6260 = vrot.slane %v6258, 5
        %v6261 = vshll.u32 %v613, 16
        %v6263 = vrot.slane %v6261, 6
        %v6264 = vor.u32 %v6260, %v6263
        %v6265 = vsel %vm616, %v6256, %v6264
        %v6290 = vrot.slane %v590, 7
        %v6291 = vrot.slane %v6290, 4
        %v6292 = vrot.slane %v591, 7
        %v6293 = vsel %vm5929, %v6291, %v6292
        %v6294 = vrot.slane %v6292, 4
        %v6295 = vrot.slane %v592, 7
        %v6296 = vsel %vm5929, %v6294, %v6295
        %v6297 = vrot.slane %v593, 7
        %v6298 = vrot.slane %v6297, 4
        %v6299 = vrot.slane %v594, 7
        %v6300 = vsel %vm5929, %v6298, %v6299
        %v6301 = vrot.slane %v6299, 4
        %v6302 = vrot.slane %v595, 7
        %v6303 = vsel %vm5929, %v6301, %v6302
        %v6304 = vrot.slane %v596, 7
        %v6305 = vrot.slane %v6304, 4
        %v6306 = vrot.slane %v597, 7
        %v6307 = vsel %vm5929, %v6305, %v6306
        %v6308 = vrot.slane %v6306, 4
        %v6309 = vrot.slane %v598, 7
        %v6310 = vsel %vm5929, %v6308, %v6309
        %v6311 = vrot.slane %v599, 7
        %v6312 = vrot.slane %v6311, 4
        %v6313 = vrot.slane %v600, 7
        %v6314 = vsel %vm5929, %v6312, %v6313
        %v6315 = vrot.slane %v6313, 4
        %v6316 = vrot.slane %v601, 7
        %v6317 = vsel %vm5929, %v6315, %v6316
        %v6318 = vrot.slane %v602, 7
        %v6319 = vrot.slane %v6318, 4
        %v6320 = vrot.slane %v603, 7
        %v6321 = vsel %vm5929, %v6319, %v6320
        %v6322 = vrot.slane %v6320, 4
        %v6323 = vrot.slane %v604, 7
        %v6324 = vsel %vm5929, %v6322, %v6323
        %v6325 = vrot.slane %v605, 7
        %v6326 = vrot.slane %v6325, 4
        %v6327 = vrot.slane %v606, 7
        %v6328 = vsel %vm5929, %v6326, %v6327
        %v6329 = vrot.slane %v6327, 4
        %v6330 = vrot.slane %v607, 7
        %v6331 = vsel %vm5929, %v6329, %v6330
        %v6332 = vrot.slane %v608, 7
        %v6333 = vrot.slane %v6332, 4
        %v6334 = vrot.slane %v609, 7
        %v6335 = vsel %vm5929, %v6333, %v6334
        %v6336 = vrot.slane %v6334, 4
        %v6337 = vrot.slane %v610, 7
        %v6338 = vsel %vm5929, %v6336, %v6337
        %v6339 = vrot.slane %v611, 7
        %v6340 = vrot.slane %v6339, 4
        %v6341 = vrot.slane %v612, 7
        %v6342 = vsel %vm5929, %v6340, %v6341
        %v6343 = vrot.slane %v6341, 4
        %v6344 = vrot.slane %v613, 7
        %v6345 = vsel %vm5929, %v6343, %v6344
        %v6346 = vunpack.c.l.b16 %v422
        %v6347 = vunpack.c.l.b16 %v423
        %v6348 = vunpack.c.l.b16 %v425
        %v6349 = vunpack.c.l.b16 %v426
        %v6350 = vunpack.c.l.b16 %v428
        %v6351 = vunpack.c.l.b16 %v429
        %v6352 = vunpack.c.l.b16 %v431
        %v6353 = vunpack.c.l.b16 %v432
        %v6354 = vunpack.c.l.b16 %v434
        %v6355 = vunpack.c.l.b16 %v435
        %v6356 = vunpack.c.l.b16 %v437
        %v6357 = vunpack.c.l.b16 %v438
        %v6358 = vunpack.c.l.b16 %v440
        %v6359 = vunpack.c.l.b16 %v441
        %v6360 = vunpack.c.l.b16 %v443
        %v6361 = vunpack.c.l.b16 %v444
        %v6362 = vpack.c.b16 %v6347, %v6346
        %v6363 = vpack.c.b16 %v6349, %v6348
        %v6364 = vpack.c.b16 %v6351, %v6350
        %v6365 = vpack.c.b16 %v6353, %v6352
        %v6366 = vpack.c.b16 %v6355, %v6354
        %v6367 = vpack.c.b16 %v6357, %v6356
        %v6368 = vpack.c.b16 %v6359, %v6358
        %v6369 = vpack.c.b16 %v6361, %v6360
        %v6378 = vunpack.c.l.b16 %v5696
        %v6379 = vunpack.c.l.b16 %v5706
        %v6380 = vunpack.c.l.b16 %v5724
        %v6381 = vunpack.c.l.b16 %v5734
        %v6382 = vunpack.c.l.b16 %v5752
        %v6383 = vunpack.c.l.b16 %v5762
        %v6384 = vunpack.c.l.b16 %v5780
        %v6385 = vunpack.c.l.b16 %v5790
        %v6386 = vunpack.c.l.b16 %v5808
        %v6387 = vunpack.c.l.b16 %v5818
        %v6388 = vunpack.c.l.b16 %v5836
        %v6389 = vunpack.c.l.b16 %v5846
        %v6390 = vunpack.c.l.b16 %v5864
        %v6391 = vunpack.c.l.b16 %v5874
        %v6392 = vunpack.c.l.b16 %v5892
        %v6393 = vunpack.c.l.b16 %v5902
        %v6394 = vpack.c.b16 %v6379, %v6378
        %v6395 = vpack.c.b16 %v6381, %v6380
        %v6396 = vpack.c.b16 %v6383, %v6382
        %v6397 = vpack.c.b16 %v6385, %v6384
        %v6398 = vpack.c.b16 %v6387, %v6386
        %v6399 = vpack.c.b16 %v6389, %v6388
        %v6400 = vpack.c.b16 %v6391, %v6390
        %v6401 = vpack.c.b16 %v6393, %v6392
        %v6410 = vunpack.c.l.b16 %v5933
        %v6411 = vunpack.c.l.b16 %v5936
        %v6412 = vunpack.c.l.b16 %v5940
        %v6413 = vunpack.c.l.b16 %v5943
        %v6414 = vunpack.c.l.b16 %v5947
        %v6415 = vunpack.c.l.b16 %v5950
        %v6416 = vunpack.c.l.b16 %v5954
        %v6417 = vunpack.c.l.b16 %v5957
        %v6418 = vunpack.c.l.b16 %v5961
        %v6419 = vunpack.c.l.b16 %v5964
        %v6420 = vunpack.c.l.b16 %v5968
        %v6421 = vunpack.c.l.b16 %v5971
        %v6422 = vunpack.c.l.b16 %v5975
        %v6423 = vunpack.c.l.b16 %v5978
        %v6424 = vunpack.c.l.b16 %v5982
        %v6425 = vunpack.c.l.b16 %v5985
        %v6426 = vpack.c.b16 %v6411, %v6410
        %v6427 = vpack.c.b16 %v6413, %v6412
        %v6428 = vpack.c.b16 %v6415, %v6414
        %v6429 = vpack.c.b16 %v6417, %v6416
        %v6430 = vpack.c.b16 %v6419, %v6418
        %v6431 = vpack.c.b16 %v6421, %v6420
        %v6432 = vpack.c.b16 %v6423, %v6422
        %v6433 = vpack.c.b16 %v6425, %v6424
        %v6442 = vunpack.c.l.b16 %v506
        %v6443 = vunpack.c.l.b16 %v507
        %v6444 = vunpack.c.l.b16 %v509
        %v6445 = vunpack.c.l.b16 %v510
        %v6446 = vunpack.c.l.b16 %v512
        %v6447 = vunpack.c.l.b16 %v513
        %v6448 = vunpack.c.l.b16 %v515
        %v6449 = vunpack.c.l.b16 %v516
        %v6450 = vunpack.c.l.b16 %v518
        %v6451 = vunpack.c.l.b16 %v519
        %v6452 = vunpack.c.l.b16 %v521
        %v6453 = vunpack.c.l.b16 %v522
        %v6454 = vunpack.c.l.b16 %v524
        %v6455 = vunpack.c.l.b16 %v525
        %v6456 = vunpack.c.l.b16 %v527
        %v6457 = vunpack.c.l.b16 %v528
        %v6458 = vpack.c.b16 %v6443, %v6442
        %v6459 = vpack.c.b16 %v6445, %v6444
        %v6460 = vpack.c.b16 %v6447, %v6446
        %v6461 = vpack.c.b16 %v6449, %v6448
        %v6462 = vpack.c.b16 %v6451, %v6450
        %v6463 = vpack.c.b16 %v6453, %v6452
        %v6464 = vpack.c.b16 %v6455, %v6454
        %v6465 = vpack.c.b16 %v6457, %v6456
        %v6474 = vunpack.c.l.b16 %v5989
        %v6475 = vunpack.c.l.b16 %v5992
        %v6476 = vunpack.c.l.b16 %v5996
        %v6477 = vunpack.c.l.b16 %v5999
        %v6478 = vunpack.c.l.b16 %v6003
        %v6479 = vunpack.c.l.b16 %v6006
        %v6480 = vunpack.c.l.b16 %v6010
        %v6481 = vunpack.c.l.b16 %v6013
        %v6482 = vunpack.c.l.b16 %v6017
        %v6483 = vunpack.c.l.b16 %v6020
        %v6484 = vunpack.c.l.b16 %v6024
        %v6485 = vunpack.c.l.b16 %v6027
        %v6486 = vunpack.c.l.b16 %v6031
        %v6487 = vunpack.c.l.b16 %v6034
        %v6488 = vunpack.c.l.b16 %v6038
        %v6489 = vunpack.c.l.b16 %v6041
        %v6490 = vpack.c.b16 %v6475, %v6474
        %v6491 = vpack.c.b16 %v6477, %v6476
        %v6492 = vpack.c.b16 %v6479, %v6478
        %v6493 = vpack.c.b16 %v6481, %v6480
        %v6494 = vpack.c.b16 %v6483, %v6482
        %v6495 = vpack.c.b16 %v6485, %v6484
        %v6496 = vpack.c.b16 %v6487, %v6486
        %v6497 = vpack.c.b16 %v6489, %v6488
        %v6506 = vunpack.c.l.b16 %v590
        %v6507 = vunpack.c.l.b16 %v591
        %v6508 = vunpack.c.l.b16 %v593
        %v6509 = vunpack.c.l.b16 %v594
        %v6510 = vunpack.c.l.b16 %v596
        %v6511 = vunpack.c.l.b16 %v597
        %v6512 = vunpack.c.l.b16 %v599
        %v6513 = vunpack.c.l.b16 %v600
        %v6514 = vunpack.c.l.b16 %v602
        %v6515 = vunpack.c.l.b16 %v603
        %v6516 = vunpack.c.l.b16 %v605
        %v6517 = vunpack.c.l.b16 %v606
        %v6518 = vunpack.c.l.b16 %v608
        %v6519 = vunpack.c.l.b16 %v609
        %v6520 = vunpack.c.l.b16 %v611
        %v6521 = vunpack.c.l.b16 %v612
        %v6522 = vpack.c.b16 %v6507, %v6506
        %v6523 = vpack.c.b16 %v6509, %v6508
        %v6524 = vpack.c.b16 %v6511, %v6510
        %v6525 = vpack.c.b16 %v6513, %v6512
        %v6526 = vpack.c.b16 %v6515, %v6514
        %v6527 = vpack.c.b16 %v6517, %v6516
        %v6528 = vpack.c.b16 %v6519, %v6518
        %v6529 = vpack.c.b16 %v6521, %v6520
        %v6538 = vunpack.c.l.b16 %v6059
        %v6539 = vunpack.c.l.b16 %v6069
        %v6540 = vunpack.c.l.b16 %v6087
        %v6541 = vunpack.c.l.b16 %v6097
        %v6542 = vunpack.c.l.b16 %v6115
        %v6543 = vunpack.c.l.b16 %v6125
        %v6544 = vunpack.c.l.b16 %v6143
        %v6545 = vunpack.c.l.b16 %v6153
        %v6546 = vunpack.c.l.b16 %v6171
        %v6547 = vunpack.c.l.b16 %v6181
        %v6548 = vunpack.c.l.b16 %v6199
        %v6549 = vunpack.c.l.b16 %v6209
        %v6550 = vunpack.c.l.b16 %v6227
        %v6551 = vunpack.c.l.b16 %v6237
        %v6552 = vunpack.c.l.b16 %v6255
        %v6553 = vunpack.c.l.b16 %v6265
        %v6554 = vpack.c.b16 %v6539, %v6538
        %v6555 = vpack.c.b16 %v6541, %v6540
        %v6556 = vpack.c.b16 %v6543, %v6542
        %v6557 = vpack.c.b16 %v6545, %v6544
        %v6558 = vpack.c.b16 %v6547, %v6546
        %v6559 = vpack.c.b16 %v6549, %v6548
        %v6560 = vpack.c.b16 %v6551, %v6550
        %v6561 = vpack.c.b16 %v6553, %v6552
        %v6570 = vunpack.c.l.b16 %v6293
        %v6571 = vunpack.c.l.b16 %v6296
        %v6572 = vunpack.c.l.b16 %v6300
        %v6573 = vunpack.c.l.b16 %v6303
        %v6574 = vunpack.c.l.b16 %v6307
        %v6575 = vunpack.c.l.b16 %v6310
        %v6576 = vunpack.c.l.b16 %v6314
        %v6577 = vunpack.c.l.b16 %v6317
        %v6578 = vunpack.c.l.b16 %v6321
        %v6579 = vunpack.c.l.b16 %v6324
        %v6580 = vunpack.c.l.b16 %v6328
        %v6581 = vunpack.c.l.b16 %v6331
        %v6582 = vunpack.c.l.b16 %v6335
        %v6583 = vunpack.c.l.b16 %v6338
        %v6584 = vunpack.c.l.b16 %v6342
        %v6585 = vunpack.c.l.b16 %v6345
        %v6586 = vpack.c.b16 %v6571, %v6570
        %v6587 = vpack.c.b16 %v6573, %v6572
        %v6588 = vpack.c.b16 %v6575, %v6574
        %v6589 = vpack.c.b16 %v6577, %v6576
        %v6590 = vpack.c.b16 %v6579, %v6578
        %v6591 = vpack.c.b16 %v6581, %v6580
        %v6592 = vpack.c.b16 %v6583, %v6582
        %v6593 = vpack.c.b16 %v6585, %v6584
        %s6602 = scalar_lea.vmem [#allocation7], 1152
        %v6603 = vld [vmem:[%s6602] sm:$0xf]
        %v6604 = vld [vmem:[%s6602 + $0x4] sm:$0xf]
        %v6605 = vld [vmem:[%s6602 + $0x8] sm:$0xf]
        %v6606 = vld [vmem:[%s6602 + $0xc] sm:$0xf]
        %v6607 = vld [vmem:[%s6602 + $0x10] sm:$0xf]
        %v6608 = vld [vmem:[%s6602 + $0x14] sm:$0xf]
        %v6609 = vld [vmem:[%s6602 + $0x18] sm:$0xf]
        %v6610 = vld [vmem:[%s6602 + $0x1c] sm:$0xf]
        %v6611 = vld [vmem:[%s6602 + $0x20] sm:$0xf]
        %v6612 = vld [vmem:[%s6602 + $0x24] sm:$0xf]
        %v6613 = vld [vmem:[%s6602 + $0x28] sm:$0xf]
        %v6614 = vld [vmem:[%s6602 + $0x2c] sm:$0xf]
        %v6615 = vld [vmem:[%s6602 + $0x30] sm:$0xf]
        %v6616 = vld [vmem:[%s6602 + $0x34] sm:$0xf]
        %v6617 = vld [vmem:[%s6602 + $0x38] sm:$0xf]
        %v6618 = vld [vmem:[%s6602 + $0x3c] sm:$0xf]
        %v6619 = vld [vmem:[%s6602 + $0x40] sm:$0xf]
        %v6620 = vld [vmem:[%s6602 + $0x44] sm:$0xf]
        %v6621 = vld [vmem:[%s6602 + $0x48] sm:$0xf]
        %v6622 = vld [vmem:[%s6602 + $0x4c] sm:$0xf]
        %v6623 = vld [vmem:[%s6602 + $0x50] sm:$0xf]
        %v6624 = vld [vmem:[%s6602 + $0x54] sm:$0xf]
        %v6625 = vld [vmem:[%s6602 + $0x58] sm:$0xf]
        %v6626 = vld [vmem:[%s6602 + $0x5c] sm:$0xf]
        %v6627 = vld [vmem:[%s6602 + $0x60] sm:$0xf]
        %v6628 = vld [vmem:[%s6602 + $0x64] sm:$0xf]
        %v6629 = vld [vmem:[%s6602 + $0x68] sm:$0xf]
        %v6630 = vld [vmem:[%s6602 + $0x6c] sm:$0xf]
        %v6631 = vld [vmem:[%s6602 + $0x70] sm:$0xf]
        %v6632 = vld [vmem:[%s6602 + $0x74] sm:$0xf]
        %v6633 = vld [vmem:[%s6602 + $0x78] sm:$0xf]
        %v6634 = vld [vmem:[%s6602 + $0x7c] sm:$0xf]
        %v6635 = vld [vmem:[%s6602 + $0x80] sm:$0xf]
        %v6636 = vld [vmem:[%s6602 + $0x84] sm:$0xf]
        %v6637 = vld [vmem:[%s6602 + $0x88] sm:$0xf]
        %v6638 = vld [vmem:[%s6602 + $0x8c] sm:$0xf]
        %v6639 = vld [vmem:[%s6602 + $0x90] sm:$0xf]
        %v6640 = vld [vmem:[%s6602 + $0x94] sm:$0xf]
        %v6641 = vld [vmem:[%s6602 + $0x98] sm:$0xf]
        %v6642 = vld [vmem:[%s6602 + $0x9c] sm:$0xf]
        %v6643 = vld [vmem:[%s6602 + $0xa0] sm:$0xf]
        %v6644 = vld [vmem:[%s6602 + $0xa4] sm:$0xf]
        %v6645 = vld [vmem:[%s6602 + $0xa8] sm:$0xf]
        %v6646 = vld [vmem:[%s6602 + $0xac] sm:$0xf]
        %v6647 = vld [vmem:[%s6602 + $0xb0] sm:$0xf]
        %v6648 = vld [vmem:[%s6602 + $0xb4] sm:$0xf]
        %v6649 = vld [vmem:[%s6602 + $0xb8] sm:$0xf]
        %v6650 = vld [vmem:[%s6602 + $0xbc] sm:$0xf]
        %v6651 = vld [vmem:[%s6602 + $0xc0] sm:$0xf]
        %v6652 = vld [vmem:[%s6602 + $0xc4] sm:$0xf]
        %v6653 = vld [vmem:[%s6602 + $0xc8] sm:$0xf]
        %v6654 = vld [vmem:[%s6602 + $0xcc] sm:$0xf]
        %v6655 = vld [vmem:[%s6602 + $0xd0] sm:$0xf]
        %v6656 = vld [vmem:[%s6602 + $0xd4] sm:$0xf]
        %v6657 = vld [vmem:[%s6602 + $0xd8] sm:$0xf]
        %v6658 = vld [vmem:[%s6602 + $0xdc] sm:$0xf]
        %v6659 = vld [vmem:[%s6602 + $0xe0] sm:$0xf]
        %v6660 = vld [vmem:[%s6602 + $0xe4] sm:$0xf]
        %v6661 = vld [vmem:[%s6602 + $0xe8] sm:$0xf]
        %v6662 = vld [vmem:[%s6602 + $0xec] sm:$0xf]
        %v6663 = vld [vmem:[%s6602 + $0xf0] sm:$0xf]
        %v6664 = vld [vmem:[%s6602 + $0xf4] sm:$0xf]
        %v6665 = vld [vmem:[%s6602 + $0xf8] sm:$0xf]
        %v6666 = vld [vmem:[%s6602 + $0xfc] sm:$0xf]
        %v6667 = vld [vmem:[%s6602 + $0x100] sm:$0xf]
        %v6668 = vld [vmem:[%s6602 + $0x104] sm:$0xf]
        %v6669 = vld [vmem:[%s6602 + $0x108] sm:$0xf]
        %v6670 = vld [vmem:[%s6602 + $0x10c] sm:$0xf]
        %v6671 = vld [vmem:[%s6602 + $0x110] sm:$0xf]
        %v6672 = vld [vmem:[%s6602 + $0x114] sm:$0xf]
        %v6673 = vld [vmem:[%s6602 + $0x118] sm:$0xf]
        %v6674 = vld [vmem:[%s6602 + $0x11c] sm:$0xf]
        %v6675 = vld [vmem:[%s6602 + $0x120] sm:$0xf]
        %v6676 = vld [vmem:[%s6602 + $0x124] sm:$0xf]
        %v6677 = vld [vmem:[%s6602 + $0x128] sm:$0xf]
        %v6678 = vld [vmem:[%s6602 + $0x12c] sm:$0xf]
        %v6679 = vld [vmem:[%s6602 + $0x130] sm:$0xf]
        %v6680 = vld [vmem:[%s6602 + $0x134] sm:$0xf]
        %v6681 = vld [vmem:[%s6602 + $0x138] sm:$0xf]
        %v6682 = vld [vmem:[%s6602 + $0x13c] sm:$0xf]
        %v6683 = vld [vmem:[%s6602 + $0x140] sm:$0xf]
        %v6684 = vld [vmem:[%s6602 + $0x144] sm:$0xf]
        %v6685 = vld [vmem:[%s6602 + $0x148] sm:$0xf]
        %v6686 = vld [vmem:[%s6602 + $0x14c] sm:$0xf]
        %v6687 = vld [vmem:[%s6602 + $0x150] sm:$0xf]
        %v6688 = vld [vmem:[%s6602 + $0x154] sm:$0xf]
        %v6689 = vld [vmem:[%s6602 + $0x158] sm:$0xf]
        %v6690 = vld [vmem:[%s6602 + $0x15c] sm:$0xf]
        %v6691 = vld [vmem:[%s6602 + $0x160] sm:$0xf]
        %v6692 = vld [vmem:[%s6602 + $0x164] sm:$0xf]
        %v6693 = vld [vmem:[%s6602 + $0x168] sm:$0xf]
        %v6694 = vld [vmem:[%s6602 + $0x16c] sm:$0xf]
        %v6695 = vld [vmem:[%s6602 + $0x170] sm:$0xf]
        %v6696 = vld [vmem:[%s6602 + $0x174] sm:$0xf]
        %v6697 = vld [vmem:[%s6602 + $0x178] sm:$0xf]
        %v6698 = vld [vmem:[%s6602 + $0x17c] sm:$0xf]
        %v6699 = vld [vmem:[%s6602 + $0x180] sm:$0xf]
        %v6700 = vld [vmem:[%s6602 + $0x184] sm:$0xf]
        %v6701 = vld [vmem:[%s6602 + $0x188] sm:$0xf]
        %v6702 = vld [vmem:[%s6602 + $0x18c] sm:$0xf]
        %v6703 = vld [vmem:[%s6602 + $0x190] sm:$0xf]
        %v6704 = vld [vmem:[%s6602 + $0x194] sm:$0xf]
        %v6705 = vld [vmem:[%s6602 + $0x198] sm:$0xf]
        %v6706 = vld [vmem:[%s6602 + $0x19c] sm:$0xf]
        %v6707 = vld [vmem:[%s6602 + $0x1a0] sm:$0xf]
        %v6708 = vld [vmem:[%s6602 + $0x1a4] sm:$0xf]
        %v6709 = vld [vmem:[%s6602 + $0x1a8] sm:$0xf]
        %v6710 = vld [vmem:[%s6602 + $0x1ac] sm:$0xf]
        %v6711 = vld [vmem:[%s6602 + $0x1b0] sm:$0xf]
        %v6712 = vld [vmem:[%s6602 + $0x1b4] sm:$0xf]
        %v6713 = vld [vmem:[%s6602 + $0x1b8] sm:$0xf]
        %v6714 = vld [vmem:[%s6602 + $0x1bc] sm:$0xf]
        %v6715 = vld [vmem:[%s6602 + $0x1c0] sm:$0xf]
        %v6716 = vld [vmem:[%s6602 + $0x1c4] sm:$0xf]
        %v6717 = vld [vmem:[%s6602 + $0x1c8] sm:$0xf]
        %v6718 = vld [vmem:[%s6602 + $0x1cc] sm:$0xf]
        %v6719 = vld [vmem:[%s6602 + $0x1d0] sm:$0xf]
        %v6720 = vld [vmem:[%s6602 + $0x1d4] sm:$0xf]
        %v6721 = vld [vmem:[%s6602 + $0x1d8] sm:$0xf]
        %v6722 = vld [vmem:[%s6602 + $0x1dc] sm:$0xf]
        %v6723 = vld [vmem:[%s6602 + $0x1e0] sm:$0xf]
        %v6724 = vld [vmem:[%s6602 + $0x1e4] sm:$0xf]
        %v6725 = vld [vmem:[%s6602 + $0x1e8] sm:$0xf]
        %v6726 = vld [vmem:[%s6602 + $0x1ec] sm:$0xf]
        %v6727 = vld [vmem:[%s6602 + $0x1f0] sm:$0xf]
        %v6728 = vld [vmem:[%s6602 + $0x1f4] sm:$0xf]
        %v6729 = vld [vmem:[%s6602 + $0x1f8] sm:$0xf]
        %v6730 = vld [vmem:[%s6602 + $0x1fc] sm:$0xf]
        %v6731 = vld [vmem:[%s6602 + $0x200] sm:$0xf]
        %v6732 = vld [vmem:[%s6602 + $0x204] sm:$0xf]
        %v6733 = vld [vmem:[%s6602 + $0x208] sm:$0xf]
        %v6734 = vld [vmem:[%s6602 + $0x20c] sm:$0xf]
        %v6735 = vld [vmem:[%s6602 + $0x210] sm:$0xf]
        %v6736 = vld [vmem:[%s6602 + $0x214] sm:$0xf]
        %v6737 = vld [vmem:[%s6602 + $0x218] sm:$0xf]
        %v6738 = vld [vmem:[%s6602 + $0x21c] sm:$0xf]
        %v6739 = vld [vmem:[%s6602 + $0x220] sm:$0xf]
        %v6740 = vld [vmem:[%s6602 + $0x224] sm:$0xf]
        %v6741 = vld [vmem:[%s6602 + $0x228] sm:$0xf]
        %v6742 = vld [vmem:[%s6602 + $0x22c] sm:$0xf]
        %v6743 = vld [vmem:[%s6602 + $0x230] sm:$0xf]
        %v6744 = vld [vmem:[%s6602 + $0x234] sm:$0xf]
        %v6745 = vld [vmem:[%s6602 + $0x238] sm:$0xf]
        %v6746 = vld [vmem:[%s6602 + $0x23c] sm:$0xf]
        %s6747 = scalar_lea.vmem [#allocation8], 2
        %v6748 = vld [vmem:[%s6747] sm:$0x1]
        %v6750 = vlaneseq
        %v6751 = vshrl.u32 %v6750, 7
        %v6752 = vsub.s32 0, %v6751
        %v6753 = vrot.slane %v6748, %v6752
        %v6899 = vunpack.c.l.b16 %v6603
        %v6900 = vunpack.c.l.b16 %v6604
        %v6901 = vunpack.c.l.b16 %v6605
        %v6902 = vunpack.c.l.b16 %v6606
        %v6903 = vunpack.c.l.b16 %v6607
        %v6904 = vunpack.c.l.b16 %v6608
        %v6905 = vunpack.c.l.b16 %v6609
        %v6906 = vunpack.c.l.b16 %v6610
        %v6907 = vunpack.c.l.b16 %v6611
        %v6908 = vunpack.c.l.b16 %v6612
        %v6909 = vunpack.c.l.b16 %v6613
        %v6910 = vunpack.c.l.b16 %v6614
        %v6911 = vunpack.c.l.b16 %v6615
        %v6912 = vunpack.c.l.b16 %v6616
        %v6913 = vunpack.c.l.b16 %v6617
        %v6914 = vunpack.c.l.b16 %v6618
        %v6915 = vunpack.c.l.b16 %v6619
        %v6916 = vunpack.c.l.b16 %v6620
        %v6917 = vunpack.c.l.b16 %v6621
        %v6918 = vunpack.c.l.b16 %v6622
        %v6919 = vunpack.c.l.b16 %v6623
        %v6920 = vunpack.c.l.b16 %v6624
        %v6921 = vunpack.c.l.b16 %v6625
        %v6922 = vunpack.c.l.b16 %v6626
        %v6923 = vunpack.c.l.b16 %v6627
        %v6924 = vunpack.c.l.b16 %v6628
        %v6925 = vunpack.c.l.b16 %v6629
        %v6926 = vunpack.c.l.b16 %v6630
        %v6927 = vunpack.c.l.b16 %v6631
        %v6928 = vunpack.c.l.b16 %v6632
        %v6929 = vunpack.c.l.b16 %v6633
        %v6930 = vunpack.c.l.b16 %v6634
        %v6931 = vunpack.c.l.b16 %v6635
        %v6932 = vunpack.c.l.b16 %v6636
        %v6933 = vunpack.c.l.b16 %v6637
        %v6934 = vunpack.c.l.b16 %v6638
        %v6935 = vunpack.c.l.b16 %v6639
        %v6936 = vunpack.c.l.b16 %v6640
        %v6937 = vunpack.c.l.b16 %v6641
        %v6938 = vunpack.c.l.b16 %v6642
        %v6939 = vunpack.c.l.b16 %v6643
        %v6940 = vunpack.c.l.b16 %v6644
        %v6941 = vunpack.c.l.b16 %v6645
        %v6942 = vunpack.c.l.b16 %v6646
        %v6943 = vunpack.c.l.b16 %v6647
        %v6944 = vunpack.c.l.b16 %v6648
        %v6945 = vunpack.c.l.b16 %v6649
        %v6946 = vunpack.c.l.b16 %v6650
        %v6947 = vunpack.c.l.b16 %v6651
        %v6948 = vunpack.c.l.b16 %v6652
        %v6949 = vunpack.c.l.b16 %v6653
        %v6950 = vunpack.c.l.b16 %v6654
        %v6951 = vunpack.c.l.b16 %v6655
        %v6952 = vunpack.c.l.b16 %v6656
        %v6953 = vunpack.c.l.b16 %v6657
        %v6954 = vunpack.c.l.b16 %v6658
        %v6955 = vunpack.c.l.b16 %v6659
        %v6956 = vunpack.c.l.b16 %v6660
        %v6957 = vunpack.c.l.b16 %v6661
        %v6958 = vunpack.c.l.b16 %v6662
        %v6959 = vunpack.c.l.b16 %v6663
        %v6960 = vunpack.c.l.b16 %v6664
        %v6961 = vunpack.c.l.b16 %v6665
        %v6962 = vunpack.c.l.b16 %v6666
        %v6963 = vunpack.c.l.b16 %v6667
        %v6964 = vunpack.c.l.b16 %v6668
        %v6965 = vunpack.c.l.b16 %v6669
        %v6966 = vunpack.c.l.b16 %v6670
        %v6967 = vunpack.c.l.b16 %v6671
        %v6968 = vunpack.c.l.b16 %v6672
        %v6969 = vunpack.c.l.b16 %v6673
        %v6970 = vunpack.c.l.b16 %v6674
        %v6971 = vunpack.c.l.b16 %v6675
        %v6972 = vunpack.c.l.b16 %v6676
        %v6973 = vunpack.c.l.b16 %v6677
        %v6974 = vunpack.c.l.b16 %v6678
        %v6975 = vunpack.c.l.b16 %v6679
        %v6976 = vunpack.c.l.b16 %v6680
        %v6977 = vunpack.c.l.b16 %v6681
        %v6978 = vunpack.c.l.b16 %v6682
        %v6979 = vunpack.c.l.b16 %v6683
        %v6980 = vunpack.c.l.b16 %v6684
        %v6981 = vunpack.c.l.b16 %v6685
        %v6982 = vunpack.c.l.b16 %v6686
        %v6983 = vunpack.c.l.b16 %v6687
        %v6984 = vunpack.c.l.b16 %v6688
        %v6985 = vunpack.c.l.b16 %v6689
        %v6986 = vunpack.c.l.b16 %v6690
        %v6987 = vunpack.c.l.b16 %v6691
        %v6988 = vunpack.c.l.b16 %v6692
        %v6989 = vunpack.c.l.b16 %v6693
        %v6990 = vunpack.c.l.b16 %v6694
        %v6991 = vunpack.c.l.b16 %v6695
        %v6992 = vunpack.c.l.b16 %v6696
        %v6993 = vunpack.c.l.b16 %v6697
        %v6994 = vunpack.c.l.b16 %v6698
        %v6995 = vunpack.c.l.b16 %v6699
        %v6996 = vunpack.c.l.b16 %v6700
        %v6997 = vunpack.c.l.b16 %v6701
        %v6998 = vunpack.c.l.b16 %v6702
        %v6999 = vunpack.c.l.b16 %v6703
        %v7000 = vunpack.c.l.b16 %v6704
        %v7001 = vunpack.c.l.b16 %v6705
        %v7002 = vunpack.c.l.b16 %v6706
        %v7003 = vunpack.c.l.b16 %v6707
        %v7004 = vunpack.c.l.b16 %v6708
        %v7005 = vunpack.c.l.b16 %v6709
        %v7006 = vunpack.c.l.b16 %v6710
        %v7007 = vunpack.c.l.b16 %v6711
        %v7008 = vunpack.c.l.b16 %v6712
        %v7009 = vunpack.c.l.b16 %v6713
        %v7010 = vunpack.c.l.b16 %v6714
        %v7011 = vunpack.c.l.b16 %v6715
        %v7012 = vunpack.c.l.b16 %v6716
        %v7013 = vunpack.c.l.b16 %v6717
        %v7014 = vunpack.c.l.b16 %v6718
        %v7015 = vunpack.c.l.b16 %v6719
        %v7016 = vunpack.c.l.b16 %v6720
        %v7017 = vunpack.c.l.b16 %v6721
        %v7018 = vunpack.c.l.b16 %v6722
        %v7019 = vunpack.c.l.b16 %v6723
        %v7020 = vunpack.c.l.b16 %v6724
        %v7021 = vunpack.c.l.b16 %v6725
        %v7022 = vunpack.c.l.b16 %v6726
        %v7023 = vunpack.c.l.b16 %v6727
        %v7024 = vunpack.c.l.b16 %v6728
        %v7025 = vunpack.c.l.b16 %v6729
        %v7026 = vunpack.c.l.b16 %v6730
        %v7027 = vunpack.c.l.b16 %v6731
        %v7028 = vunpack.c.l.b16 %v6732
        %v7029 = vunpack.c.l.b16 %v6733
        %v7030 = vunpack.c.l.b16 %v6734
        %v7031 = vunpack.c.l.b16 %v6735
        %v7032 = vunpack.c.l.b16 %v6736
        %v7033 = vunpack.c.l.b16 %v6737
        %v7034 = vunpack.c.l.b16 %v6738
        %v7035 = vunpack.c.l.b16 %v6739
        %v7036 = vunpack.c.l.b16 %v6740
        %v7037 = vunpack.c.l.b16 %v6741
        %v7038 = vunpack.c.l.b16 %v6742
        %v7039 = vunpack.c.l.b16 %v6743
        %v7040 = vunpack.c.l.b16 %v6744
        %v7041 = vunpack.c.l.b16 %v6745
        %v7042 = vunpack.c.l.b16 %v6746
        %v7043 = vpack.c.b16 %v6900, %v6899
        %v7044 = vpack.c.b16 %v6902, %v6901
        %v7045 = vpack.c.b16 %v6904, %v6903
        %v7046 = vpack.c.b16 %v6906, %v6905
        %v7047 = vpack.c.b16 %v6908, %v6907
        %v7048 = vpack.c.b16 %v6910, %v6909
        %v7049 = vpack.c.b16 %v6912, %v6911
        %v7050 = vpack.c.b16 %v6914, %v6913
        %v7051 = vpack.c.b16 %v6916, %v6915
        %v7052 = vpack.c.b16 %v6918, %v6917
        %v7053 = vpack.c.b16 %v6920, %v6919
        %v7054 = vpack.c.b16 %v6922, %v6921
        %v7055 = vpack.c.b16 %v6924, %v6923
        %v7056 = vpack.c.b16 %v6926, %v6925
        %v7057 = vpack.c.b16 %v6928, %v6927
        %v7058 = vpack.c.b16 %v6930, %v6929
        %v7059 = vpack.c.b16 %v6932, %v6931
        %v7060 = vpack.c.b16 %v6934, %v6933
        %v7061 = vpack.c.b16 %v6936, %v6935
        %v7062 = vpack.c.b16 %v6938, %v6937
        %v7063 = vpack.c.b16 %v6940, %v6939
        %v7064 = vpack.c.b16 %v6942, %v6941
        %v7065 = vpack.c.b16 %v6944, %v6943
        %v7066 = vpack.c.b16 %v6946, %v6945
        %v7067 = vpack.c.b16 %v6948, %v6947
        %v7068 = vpack.c.b16 %v6950, %v6949
        %v7069 = vpack.c.b16 %v6952, %v6951
        %v7070 = vpack.c.b16 %v6954, %v6953
        %v7071 = vpack.c.b16 %v6956, %v6955
        %v7072 = vpack.c.b16 %v6958, %v6957
        %v7073 = vpack.c.b16 %v6960, %v6959
        %v7074 = vpack.c.b16 %v6962, %v6961
        %v7075 = vpack.c.b16 %v6964, %v6963
        %v7076 = vpack.c.b16 %v6966, %v6965
        %v7077 = vpack.c.b16 %v6968, %v6967
        %v7078 = vpack.c.b16 %v6970, %v6969
        %v7079 = vpack.c.b16 %v6972, %v6971
        %v7080 = vpack.c.b16 %v6974, %v6973
        %v7081 = vpack.c.b16 %v6976, %v6975
        %v7082 = vpack.c.b16 %v6978, %v6977
        %v7083 = vpack.c.b16 %v6980, %v6979
        %v7084 = vpack.c.b16 %v6982, %v6981
        %v7085 = vpack.c.b16 %v6984, %v6983
        %v7086 = vpack.c.b16 %v6986, %v6985
        %v7087 = vpack.c.b16 %v6988, %v6987
        %v7088 = vpack.c.b16 %v6990, %v6989
        %v7089 = vpack.c.b16 %v6992, %v6991
        %v7090 = vpack.c.b16 %v6994, %v6993
        %v7091 = vpack.c.b16 %v6996, %v6995
        %v7092 = vpack.c.b16 %v6998, %v6997
        %v7093 = vpack.c.b16 %v7000, %v6999
        %v7094 = vpack.c.b16 %v7002, %v7001
        %v7095 = vpack.c.b16 %v7004, %v7003
        %v7096 = vpack.c.b16 %v7006, %v7005
        %v7097 = vpack.c.b16 %v7008, %v7007
        %v7098 = vpack.c.b16 %v7010, %v7009
        %v7099 = vpack.c.b16 %v7012, %v7011
        %v7100 = vpack.c.b16 %v7014, %v7013
        %v7101 = vpack.c.b16 %v7016, %v7015
        %v7102 = vpack.c.b16 %v7018, %v7017
        %v7103 = vpack.c.b16 %v7020, %v7019
        %v7104 = vpack.c.b16 %v7022, %v7021
        %v7105 = vpack.c.b16 %v7024, %v7023
        %v7106 = vpack.c.b16 %v7026, %v7025
        %v7107 = vpack.c.b16 %v7028, %v7027
        %v7108 = vpack.c.b16 %v7030, %v7029
        %v7109 = vpack.c.b16 %v7032, %v7031
        %v7110 = vpack.c.b16 %v7034, %v7033
        %v7111 = vpack.c.b16 %v7036, %v7035
        %v7112 = vpack.c.b16 %v7038, %v7037
        %v7113 = vpack.c.b16 %v7040, %v7039
        %v7114 = vpack.c.b16 %v7042, %v7041
        %7187 = vmatprep.subr.bf16.mxu0 0
        %7188 = vmatpush1.bf16.msra.mxu0 %v7050
        %7189 = vmatprep.subr.bf16.mxu0 0
        %7190 = vmatpush1.bf16.msra.mxu0 %v7049
        %7191 = vmatprep.subr.bf16.mxu0 0
        %7192 = vmatpush1.bf16.msra.mxu0 %v7048
        %7193 = vmatprep.subr.bf16.mxu0 0
        %7194 = vmatpush1.bf16.msra.mxu0 %v7047
        %7195 = vmatprep.subr.bf16.mxu0 0
        %7196 = vmatpush1.bf16.msra.mxu0 %v7046
        %7197 = vmatprep.subr.bf16.mxu0 0
        %7198 = vmatpush1.bf16.msra.mxu0 %v7045
        %7199 = vmatprep.subr.bf16.mxu0 0
        %7200 = vmatpush1.bf16.msra.mxu0 %v7044
        %7201 = vmatprep.subr.bf16.mxu0 0
        %7202 = vmatpush1.bf16.msra.mxu0 %v7043
        %7203 = vmatprep.subr.bf16.mxu0 0
        %7204 = vmatpush2.bf16.msra.mxu0 %v7058
        %7205 = vmatprep.subr.bf16.mxu0 0
        %7206 = vmatpush2.bf16.msra.mxu0 %v7057
        %7207 = vmatprep.subr.bf16.mxu0 0
        %7208 = vmatpush2.bf16.msra.mxu0 %v7056
        %7209 = vmatprep.subr.bf16.mxu0 0
        %7210 = vmatpush2.bf16.msra.mxu0 %v7055
        %7211 = vmatprep.subr.bf16.mxu0 0
        %7212 = vmatpush2.bf16.msra.mxu0 %v7054
        %7213 = vmatprep.subr.bf16.mxu0 0
        %7214 = vmatpush2.bf16.msra.mxu0 %v7053
        %7215 = vmatprep.subr.bf16.mxu0 0
        %7216 = vmatpush2.bf16.msra.mxu0 %v7052
        %7217 = vmatprep.subr.bf16.mxu0 0
        %7218 = vmatpush2.bf16.msra.mxu0 %v7051
        %7219 = vmatprep.mubr.bf16.mxu0 %v6394
        %7220 = vmatmul.mubr.bf16.gmra.mxu0 %v6362
        %v7221 = vpop.f32.mrf.mxu0
        %v7222 = vadd.f32 %v6753, %v7221
        %v7223 = vpop.f32.mrf.mxu0
        %v7224 = vpop.f32.mrf.mxu0
        %v7225 = vadd.f32 %v6753, %v7224
        %v7226 = vpop.f32.mrf.mxu0
        %7227 = vmatprep.mubr.bf16.mxu0 %v6395
        %7228 = vmatmul.mubr.bf16.gmra.mxu0 %v6363
        %v7229 = vpop.f32.mrf.mxu0
        %v7230 = vadd.f32 %v6753, %v7229
        %v7231 = vpop.f32.mrf.mxu0
        %v7232 = vpop.f32.mrf.mxu0
        %v7233 = vadd.f32 %v6753, %v7232
        %v7234 = vpop.f32.mrf.mxu0
        %7235 = vmatprep.mubr.bf16.mxu0 %v6396
        %7236 = vmatmul.mubr.bf16.gmra.mxu0 %v6364
        %v7237 = vpop.f32.mrf.mxu0
        %v7238 = vadd.f32 %v6753, %v7237
        %v7239 = vpop.f32.mrf.mxu0
        %v7240 = vpop.f32.mrf.mxu0
        %v7241 = vadd.f32 %v6753, %v7240
        %v7242 = vpop.f32.mrf.mxu0
        %7243 = vmatprep.mubr.bf16.mxu0 %v6397
        %7244 = vmatmul.mubr.bf16.gmra.mxu0 %v6365
        %v7245 = vpop.f32.mrf.mxu0
        %v7246 = vadd.f32 %v6753, %v7245
        %v7247 = vpop.f32.mrf.mxu0
        %v7248 = vpop.f32.mrf.mxu0
        %v7249 = vadd.f32 %v6753, %v7248
        %v7250 = vpop.f32.mrf.mxu0
        %7251 = vmatprep.mubr.bf16.mxu0 %v6398
        %7252 = vmatmul.mubr.bf16.gmra.mxu0 %v6366
        %v7253 = vpop.f32.mrf.mxu0
        %v7254 = vadd.f32 %v6753, %v7253
        %v7255 = vpop.f32.mrf.mxu0
        %v7256 = vpop.f32.mrf.mxu0
        %v7257 = vadd.f32 %v6753, %v7256
        %v7258 = vpop.f32.mrf.mxu0
        %7259 = vmatprep.mubr.bf16.mxu0 %v6399
        %7260 = vmatmul.mubr.bf16.gmra.mxu0 %v6367
        %v7261 = vpop.f32.mrf.mxu0
        %v7262 = vadd.f32 %v6753, %v7261
        %v7263 = vpop.f32.mrf.mxu0
        %v7264 = vpop.f32.mrf.mxu0
        %v7265 = vadd.f32 %v6753, %v7264
        %v7266 = vpop.f32.mrf.mxu0
        %7267 = vmatprep.mubr.bf16.mxu0 %v6400
        %7268 = vmatmul.mubr.bf16.gmra.mxu0 %v6368
        %v7269 = vpop.f32.mrf.mxu0
        %v7270 = vadd.f32 %v6753, %v7269
        %v7271 = vpop.f32.mrf.mxu0
        %v7272 = vpop.f32.mrf.mxu0
        %v7273 = vadd.f32 %v6753, %v7272
        %v7274 = vpop.f32.mrf.mxu0
        %7275 = vmatprep.mubr.bf16.mxu0 %v6401
        %7276 = vmatmul.mubr.bf16.gmra.mxu0 %v6369
        %v7277 = vpop.f32.mrf.mxu0
        %v7278 = vadd.f32 %v6753, %v7277
        %v7279 = vpop.f32.mrf.mxu0
        %v7280 = vpop.f32.mrf.mxu0
        %v7281 = vadd.f32 %v6753, %v7280
        %v7282 = vpop.f32.mrf.mxu0
        %7283 = vdwg.mxu0
        %7284 = vmatprep.subr.bf16.mxu0 0
        %7285 = vmatpush1.bf16.msra.mxu0 %v7066
        %7286 = vmatprep.subr.bf16.mxu0 0
        %7287 = vmatpush1.bf16.msra.mxu0 %v7065
        %7288 = vmatprep.subr.bf16.mxu0 0
        %7289 = vmatpush1.bf16.msra.mxu0 %v7064
        %7290 = vmatprep.subr.bf16.mxu0 0
        %7291 = vmatpush1.bf16.msra.mxu0 %v7063
        %7292 = vmatprep.subr.bf16.mxu0 0
        %7293 = vmatpush1.bf16.msra.mxu0 %v7062
        %7294 = vmatprep.subr.bf16.mxu0 0
        %7295 = vmatpush1.bf16.msra.mxu0 %v7061
        %7296 = vmatprep.subr.bf16.mxu0 0
        %7297 = vmatpush1.bf16.msra.mxu0 %v7060
        %7298 = vmatprep.subr.bf16.mxu0 0
        %7299 = vmatpush1.bf16.msra.mxu0 %v7059
        %7300 = vmatprep.subr.bf16.mxu0 0
        %7301 = vmatpush2.bf16.msra.mxu0 %v7074
        %7302 = vmatprep.subr.bf16.mxu0 0
        %7303 = vmatpush2.bf16.msra.mxu0 %v7073
        %7304 = vmatprep.subr.bf16.mxu0 0
        %7305 = vmatpush2.bf16.msra.mxu0 %v7072
        %7306 = vmatprep.subr.bf16.mxu0 0
        %7307 = vmatpush2.bf16.msra.mxu0 %v7071
        %7308 = vmatprep.subr.bf16.mxu0 0
        %7309 = vmatpush2.bf16.msra.mxu0 %v7070
        %7310 = vmatprep.subr.bf16.mxu0 0
        %7311 = vmatpush2.bf16.msra.mxu0 %v7069
        %7312 = vmatprep.subr.bf16.mxu0 0
        %7313 = vmatpush2.bf16.msra.mxu0 %v7068
        %7314 = vmatprep.subr.bf16.mxu0 0
        %7315 = vmatpush2.bf16.msra.mxu0 %v7067
        %7316 = vmatprep.mubr.bf16.mxu0 %v6458
        %7317 = vmatmul.mubr.bf16.gmra.mxu0 %v6426
        %v7318 = vpop.f32.mrf.mxu0
        %v7319 = vadd.f32 %v7222, %v7318
        %v7320 = vpop.f32.mrf.mxu0
        %v7321 = vpop.f32.mrf.mxu0
        %v7322 = vadd.f32 %v7225, %v7321
        %v7323 = vpop.f32.mrf.mxu0
        %7324 = vmatprep.mubr.bf16.mxu0 %v6459
        %7325 = vmatmul.mubr.bf16.gmra.mxu0 %v6427
        %v7326 = vpop.f32.mrf.mxu0
        %v7327 = vadd.f32 %v7230, %v7326
        %v7328 = vpop.f32.mrf.mxu0
        %v7329 = vpop.f32.mrf.mxu0
        %v7330 = vadd.f32 %v7233, %v7329
        %v7331 = vpop.f32.mrf.mxu0
        %7332 = vmatprep.mubr.bf16.mxu0 %v6460
        %7333 = vmatmul.mubr.bf16.gmra.mxu0 %v6428
        %v7334 = vpop.f32.mrf.mxu0
        %v7335 = vadd.f32 %v7238, %v7334
        %v7336 = vpop.f32.mrf.mxu0
        %v7337 = vpop.f32.mrf.mxu0
        %v7338 = vadd.f32 %v7241, %v7337
        %v7339 = vpop.f32.mrf.mxu0
        %7340 = vmatprep.mubr.bf16.mxu0 %v6461
        %7341 = vmatmul.mubr.bf16.gmra.mxu0 %v6429
        %v7342 = vpop.f32.mrf.mxu0
        %v7343 = vadd.f32 %v7246, %v7342
        %v7344 = vpop.f32.mrf.mxu0
        %v7345 = vpop.f32.mrf.mxu0
        %v7346 = vadd.f32 %v7249, %v7345
        %v7347 = vpop.f32.mrf.mxu0
        %7348 = vmatprep.mubr.bf16.mxu0 %v6462
        %7349 = vmatmul.mubr.bf16.gmra.mxu0 %v6430
        %v7350 = vpop.f32.mrf.mxu0
        %v7351 = vadd.f32 %v7254, %v7350
        %v7352 = vpop.f32.mrf.mxu0
        %v7353 = vpop.f32.mrf.mxu0
        %v7354 = vadd.f32 %v7257, %v7353
        %v7355 = vpop.f32.mrf.mxu0
        %7356 = vmatprep.mubr.bf16.mxu0 %v6463
        %7357 = vmatmul.mubr.bf16.gmra.mxu0 %v6431
        %v7358 = vpop.f32.mrf.mxu0
        %v7359 = vadd.f32 %v7262, %v7358
        %v7360 = vpop.f32.mrf.mxu0
        %v7361 = vpop.f32.mrf.mxu0
        %v7362 = vadd.f32 %v7265, %v7361
        %v7363 = vpop.f32.mrf.mxu0
        %7364 = vmatprep.mubr.bf16.mxu0 %v6464
        %7365 = vmatmul.mubr.bf16.gmra.mxu0 %v6432
        %v7366 = vpop.f32.mrf.mxu0
        %v7367 = vadd.f32 %v7270, %v7366
        %v7368 = vpop.f32.mrf.mxu0
        %v7369 = vpop.f32.mrf.mxu0
        %v7370 = vadd.f32 %v7273, %v7369
        %v7371 = vpop.f32.mrf.mxu0
        %7372 = vmatprep.mubr.bf16.mxu0 %v6465
        %7373 = vmatmul.mubr.bf16.gmra.mxu0 %v6433
        %v7374 = vpop.f32.mrf.mxu0
        %v7375 = vadd.f32 %v7278, %v7374
        %v7376 = vpop.f32.mrf.mxu0
        %v7377 = vpop.f32.mrf.mxu0
        %v7378 = vadd.f32 %v7281, %v7377
        %v7379 = vpop.f32.mrf.mxu0
        %7380 = vdwg.mxu0
        %7381 = vmatprep.subr.bf16.mxu0 0
        %7382 = vmatpush1.bf16.msra.mxu0 %v7082
        %7383 = vmatprep.subr.bf16.mxu0 0
        %7384 = vmatpush1.bf16.msra.mxu0 %v7081
        %7385 = vmatprep.subr.bf16.mxu0 0
        %7386 = vmatpush1.bf16.msra.mxu0 %v7080
        %7387 = vmatprep.subr.bf16.mxu0 0
        %7388 = vmatpush1.bf16.msra.mxu0 %v7079
        %7389 = vmatprep.subr.bf16.mxu0 0
        %7390 = vmatpush1.bf16.msra.mxu0 %v7078
        %7391 = vmatprep.subr.bf16.mxu0 0
        %7392 = vmatpush1.bf16.msra.mxu0 %v7077
        %7393 = vmatprep.subr.bf16.mxu0 0
        %7394 = vmatpush1.bf16.msra.mxu0 %v7076
        %7395 = vmatprep.subr.bf16.mxu0 0
        %7396 = vmatpush1.bf16.msra.mxu0 %v7075
        %7397 = vmatprep.subr.bf16.mxu0 0
        %7398 = vmatpush2.bf16.msra.mxu0 %v7090
        %7399 = vmatprep.subr.bf16.mxu0 0
        %7400 = vmatpush2.bf16.msra.mxu0 %v7089
        %7401 = vmatprep.subr.bf16.mxu0 0
        %7402 = vmatpush2.bf16.msra.mxu0 %v7088
        %7403 = vmatprep.subr.bf16.mxu0 0
        %7404 = vmatpush2.bf16.msra.mxu0 %v7087
        %7405 = vmatprep.subr.bf16.mxu0 0
        %7406 = vmatpush2.bf16.msra.mxu0 %v7086
        %7407 = vmatprep.subr.bf16.mxu0 0
        %7408 = vmatpush2.bf16.msra.mxu0 %v7085
        %7409 = vmatprep.subr.bf16.mxu0 0
        %7410 = vmatpush2.bf16.msra.mxu0 %v7084
        %7411 = vmatprep.subr.bf16.mxu0 0
        %7412 = vmatpush2.bf16.msra.mxu0 %v7083
        %7413 = vmatprep.mubr.bf16.mxu0 %v6490
        %7414 = vmatmul.mubr.bf16.gmra.mxu0 %v880
        %v7415 = vpop.f32.mrf.mxu0
        %v7416 = vadd.f32 %v7319, %v7415
        %v7417 = vpop.f32.mrf.mxu0
        %v7418 = vpop.f32.mrf.mxu0
        %v7419 = vadd.f32 %v7322, %v7418
        %v7420 = vpop.f32.mrf.mxu0
        %7421 = vmatprep.mubr.bf16.mxu0 %v6491
        %7422 = vmatmul.mubr.bf16.gmra.mxu0 %v881
        %v7423 = vpop.f32.mrf.mxu0
        %v7424 = vadd.f32 %v7327, %v7423
        %v7425 = vpop.f32.mrf.mxu0
        %v7426 = vpop.f32.mrf.mxu0
        %v7427 = vadd.f32 %v7330, %v7426
        %v7428 = vpop.f32.mrf.mxu0
        %7429 = vmatprep.mubr.bf16.mxu0 %v6492
        %7430 = vmatmul.mubr.bf16.gmra.mxu0 %v882
        %v7431 = vpop.f32.mrf.mxu0
        %v7432 = vadd.f32 %v7335, %v7431
        %v7433 = vpop.f32.mrf.mxu0
        %v7434 = vpop.f32.mrf.mxu0
        %v7435 = vadd.f32 %v7338, %v7434
        %v7436 = vpop.f32.mrf.mxu0
        %7437 = vmatprep.mubr.bf16.mxu0 %v6493
        %7438 = vmatmul.mubr.bf16.gmra.mxu0 %v883
        %v7439 = vpop.f32.mrf.mxu0
        %v7440 = vadd.f32 %v7343, %v7439
        %v7441 = vpop.f32.mrf.mxu0
        %v7442 = vpop.f32.mrf.mxu0
        %v7443 = vadd.f32 %v7346, %v7442
        %v7444 = vpop.f32.mrf.mxu0
        %7445 = vmatprep.mubr.bf16.mxu0 %v6494
        %7446 = vmatmul.mubr.bf16.gmra.mxu0 %v884
        %v7447 = vpop.f32.mrf.mxu0
        %v7448 = vadd.f32 %v7351, %v7447
        %v7449 = vpop.f32.mrf.mxu0
        %v7450 = vpop.f32.mrf.mxu0
        %v7451 = vadd.f32 %v7354, %v7450
        %v7452 = vpop.f32.mrf.mxu0
        %7453 = vmatprep.mubr.bf16.mxu0 %v6495
        %7454 = vmatmul.mubr.bf16.gmra.mxu0 %v885
        %v7455 = vpop.f32.mrf.mxu0
        %v7456 = vadd.f32 %v7359, %v7455
        %v7457 = vpop.f32.mrf.mxu0
        %v7458 = vpop.f32.mrf.mxu0
        %v7459 = vadd.f32 %v7362, %v7458
        %v7460 = vpop.f32.mrf.mxu0
        %7461 = vmatprep.mubr.bf16.mxu0 %v6496
        %7462 = vmatmul.mubr.bf16.gmra.mxu0 %v886
        %v7463 = vpop.f32.mrf.mxu0
        %v7464 = vadd.f32 %v7367, %v7463
        %v7465 = vpop.f32.mrf.mxu0
        %v7466 = vpop.f32.mrf.mxu0
        %v7467 = vadd.f32 %v7370, %v7466
        %v7468 = vpop.f32.mrf.mxu0
        %7469 = vmatprep.mubr.bf16.mxu0 %v6497
        %7470 = vmatmul.mubr.bf16.gmra.mxu0 %v887
        %v7471 = vpop.f32.mrf.mxu0
        %v7472 = vadd.f32 %v7375, %v7471
        %v7473 = vpop.f32.mrf.mxu0
        %v7474 = vpop.f32.mrf.mxu0
        %v7475 = vadd.f32 %v7378, %v7474
        %v7476 = vpop.f32.mrf.mxu0
        %7477 = vdwg.mxu0
        %7478 = vmatprep.subr.bf16.mxu0 0
        %7479 = vmatpush1.bf16.msra.mxu0 %v7098
        %7480 = vmatprep.subr.bf16.mxu0 0
        %7481 = vmatpush1.bf16.msra.mxu0 %v7097
        %7482 = vmatprep.subr.bf16.mxu0 0
        %7483 = vmatpush1.bf16.msra.mxu0 %v7096
        %7484 = vmatprep.subr.bf16.mxu0 0
        %7485 = vmatpush1.bf16.msra.mxu0 %v7095
        %7486 = vmatprep.subr.bf16.mxu0 0
        %7487 = vmatpush1.bf16.msra.mxu0 %v7094
        %7488 = vmatprep.subr.bf16.mxu0 0
        %7489 = vmatpush1.bf16.msra.mxu0 %v7093
        %7490 = vmatprep.subr.bf16.mxu0 0
        %7491 = vmatpush1.bf16.msra.mxu0 %v7092
        %7492 = vmatprep.subr.bf16.mxu0 0
        %7493 = vmatpush1.bf16.msra.mxu0 %v7091
        %7494 = vmatprep.subr.bf16.mxu0 0
        %7495 = vmatpush2.bf16.msra.mxu0 %v7106
        %7496 = vmatprep.subr.bf16.mxu0 0
        %7497 = vmatpush2.bf16.msra.mxu0 %v7105
        %7498 = vmatprep.subr.bf16.mxu0 0
        %7499 = vmatpush2.bf16.msra.mxu0 %v7104
        %7500 = vmatprep.subr.bf16.mxu0 0
        %7501 = vmatpush2.bf16.msra.mxu0 %v7103
        %7502 = vmatprep.subr.bf16.mxu0 0
        %7503 = vmatpush2.bf16.msra.mxu0 %v7102
        %7504 = vmatprep.subr.bf16.mxu0 0
        %7505 = vmatpush2.bf16.msra.mxu0 %v7101
        %7506 = vmatprep.subr.bf16.mxu0 0
        %7507 = vmatpush2.bf16.msra.mxu0 %v7100
        %7508 = vmatprep.subr.bf16.mxu0 0
        %7509 = vmatpush2.bf16.msra.mxu0 %v7099
        %7510 = vmatprep.mubr.bf16.mxu0 %v6554
        %7511 = vmatmul.mubr.bf16.gmra.mxu0 %v6522
        %v7512 = vpop.f32.mrf.mxu0
        %v7513 = vadd.f32 %v7416, %v7512
        %v7514 = vpop.f32.mrf.mxu0
        %v7515 = vpop.f32.mrf.mxu0
        %v7516 = vadd.f32 %v7419, %v7515
        %v7517 = vpop.f32.mrf.mxu0
        %7518 = vmatprep.mubr.bf16.mxu0 %v6555
        %7519 = vmatmul.mubr.bf16.gmra.mxu0 %v6523
        %v7520 = vpop.f32.mrf.mxu0
        %v7521 = vadd.f32 %v7424, %v7520
        %v7522 = vpop.f32.mrf.mxu0
        %v7523 = vpop.f32.mrf.mxu0
        %v7524 = vadd.f32 %v7427, %v7523
        %v7525 = vpop.f32.mrf.mxu0
        %7526 = vmatprep.mubr.bf16.mxu0 %v6556
        %7527 = vmatmul.mubr.bf16.gmra.mxu0 %v6524
        %v7528 = vpop.f32.mrf.mxu0
        %v7529 = vadd.f32 %v7432, %v7528
        %v7530 = vpop.f32.mrf.mxu0
        %v7531 = vpop.f32.mrf.mxu0
        %v7532 = vadd.f32 %v7435, %v7531
        %v7533 = vpop.f32.mrf.mxu0
        %7534 = vmatprep.mubr.bf16.mxu0 %v6557
        %7535 = vmatmul.mubr.bf16.gmra.mxu0 %v6525
        %v7536 = vpop.f32.mrf.mxu0
        %v7537 = vadd.f32 %v7440, %v7536
        %v7538 = vpop.f32.mrf.mxu0
        %v7539 = vpop.f32.mrf.mxu0
        %v7540 = vadd.f32 %v7443, %v7539
        %v7541 = vpop.f32.mrf.mxu0
        %7542 = vmatprep.mubr.bf16.mxu0 %v6558
        %7543 = vmatmul.mubr.bf16.gmra.mxu0 %v6526
        %v7544 = vpop.f32.mrf.mxu0
        %v7545 = vadd.f32 %v7448, %v7544
        %v7546 = vpop.f32.mrf.mxu0
        %v7547 = vpop.f32.mrf.mxu0
        %v7548 = vadd.f32 %v7451, %v7547
        %v7549 = vpop.f32.mrf.mxu0
        %7550 = vmatprep.mubr.bf16.mxu0 %v6559
        %7551 = vmatmul.mubr.bf16.gmra.mxu0 %v6527
        %v7552 = vpop.f32.mrf.mxu0
        %v7553 = vadd.f32 %v7456, %v7552
        %v7554 = vpop.f32.mrf.mxu0
        %v7555 = vpop.f32.mrf.mxu0
        %v7556 = vadd.f32 %v7459, %v7555
        %v7557 = vpop.f32.mrf.mxu0
        %7558 = vmatprep.mubr.bf16.mxu0 %v6560
        %7559 = vmatmul.mubr.bf16.gmra.mxu0 %v6528
        %v7560 = vpop.f32.mrf.mxu0
        %v7561 = vadd.f32 %v7464, %v7560
        %v7562 = vpop.f32.mrf.mxu0
        %v7563 = vpop.f32.mrf.mxu0
        %v7564 = vadd.f32 %v7467, %v7563
        %v7565 = vpop.f32.mrf.mxu0
        %7566 = vmatprep.mubr.bf16.mxu0 %v6561
        %7567 = vmatmul.mubr.bf16.gmra.mxu0 %v6529
        %v7568 = vpop.f32.mrf.mxu0
        %v7569 = vadd.f32 %v7472, %v7568
        %v7570 = vpop.f32.mrf.mxu0
        %v7571 = vpop.f32.mrf.mxu0
        %v7572 = vadd.f32 %v7475, %v7571
        %v7573 = vpop.f32.mrf.mxu0
        %7574 = vdwg.mxu0
        %7575 = vmatprep.subr.bf16.mxu0 0
        %7576 = vmatpush1.bf16.msra.mxu0 %v7114
        %7577 = vmatprep.subr.bf16.mxu0 0
        %7578 = vmatpush1.bf16.msra.mxu0 %v7113
        %7579 = vmatprep.subr.bf16.mxu0 0
        %7580 = vmatpush1.bf16.msra.mxu0 %v7112
        %7581 = vmatprep.subr.bf16.mxu0 0
        %7582 = vmatpush1.bf16.msra.mxu0 %v7111
        %7583 = vmatprep.subr.bf16.mxu0 0
        %7584 = vmatpush1.bf16.msra.mxu0 %v7110
        %7585 = vmatprep.subr.bf16.mxu0 0
        %7586 = vmatpush1.bf16.msra.mxu0 %v7109
        %7587 = vmatprep.subr.bf16.mxu0 0
        %7588 = vmatpush1.bf16.msra.mxu0 %v7108
        %7589 = vmatprep.subr.bf16.mxu0 0
        %7590 = vmatpush1.bf16.msra.mxu0 %v7107
        %7591 = vmatprep.subr.bf16.mxu0 0
        %7592 = vmatpush2.bf16.msra.mxu0 0
        %7593 = vmatprep.subr.bf16.mxu0 0
        %7594 = vmatpush2.bf16.msra.mxu0 0
        %7595 = vmatprep.subr.bf16.mxu0 0
        %7596 = vmatpush2.bf16.msra.mxu0 0
        %7597 = vmatprep.subr.bf16.mxu0 0
        %7598 = vmatpush2.bf16.msra.mxu0 0
        %7599 = vmatprep.subr.bf16.mxu0 0
        %7600 = vmatpush2.bf16.msra.mxu0 0
        %7601 = vmatprep.subr.bf16.mxu0 0
        %7602 = vmatpush2.bf16.msra.mxu0 0
        %7603 = vmatprep.subr.bf16.mxu0 0
        %7604 = vmatpush2.bf16.msra.mxu0 0
        %7605 = vmatprep.subr.bf16.mxu0 0
        %7606 = vmatpush2.bf16.msra.mxu0 0
        %7607 = vmatprep.mubr.bf16.mxu0 0
        %7608 = vmatmul.mubr.bf16.gmra.mxu0 %v6586
        %v7609 = vpop.f32.mrf.mxu0
        %v7610 = vadd.f32 %v7513, %v7609
        %v7611 = vpop.f32.mrf.mxu0
        %v7612 = vpop.f32.mrf.mxu0
        %v7613 = vadd.f32 %v7516, %v7612
        %v7614 = vpop.f32.mrf.mxu0
        %7615 = vmatprep.mubr.bf16.mxu0 0
        %7616 = vmatmul.mubr.bf16.gmra.mxu0 %v6587
        %v7617 = vpop.f32.mrf.mxu0
        %v7618 = vadd.f32 %v7521, %v7617
        %v7619 = vpop.f32.mrf.mxu0
        %v7620 = vpop.f32.mrf.mxu0
        %v7621 = vadd.f32 %v7524, %v7620
        %v7622 = vpop.f32.mrf.mxu0
        %7623 = vmatprep.mubr.bf16.mxu0 0
        %7624 = vmatmul.mubr.bf16.gmra.mxu0 %v6588
        %v7625 = vpop.f32.mrf.mxu0
        %v7626 = vadd.f32 %v7529, %v7625
        %v7627 = vpop.f32.mrf.mxu0
        %v7628 = vpop.f32.mrf.mxu0
        %v7629 = vadd.f32 %v7532, %v7628
        %v7630 = vpop.f32.mrf.mxu0
        %7631 = vmatprep.mubr.bf16.mxu0 0
        %7632 = vmatmul.mubr.bf16.gmra.mxu0 %v6589
        %v7633 = vpop.f32.mrf.mxu0
        %v7634 = vadd.f32 %v7537, %v7633
        %v7635 = vpop.f32.mrf.mxu0
        %v7636 = vpop.f32.mrf.mxu0
        %v7637 = vadd.f32 %v7540, %v7636
        %v7638 = vpop.f32.mrf.mxu0
        %7639 = vmatprep.mubr.bf16.mxu0 0
        %7640 = vmatmul.mubr.bf16.gmra.mxu0 %v6590
        %v7641 = vpop.f32.mrf.mxu0
        %v7642 = vadd.f32 %v7545, %v7641
        %v7643 = vpop.f32.mrf.mxu0
        %v7644 = vpop.f32.mrf.mxu0
        %v7645 = vadd.f32 %v7548, %v7644
        %v7646 = vpop.f32.mrf.mxu0
        %7647 = vmatprep.mubr.bf16.mxu0 0
        %7648 = vmatmul.mubr.bf16.gmra.mxu0 %v6591
        %v7649 = vpop.f32.mrf.mxu0
        %v7650 = vadd.f32 %v7553, %v7649
        %v7651 = vpop.f32.mrf.mxu0
        %v7652 = vpop.f32.mrf.mxu0
        %v7653 = vadd.f32 %v7556, %v7652
        %v7654 = vpop.f32.mrf.mxu0
        %7655 = vmatprep.mubr.bf16.mxu0 0
        %7656 = vmatmul.mubr.bf16.gmra.mxu0 %v6592
        %v7657 = vpop.f32.mrf.mxu0
        %v7658 = vadd.f32 %v7561, %v7657
        %v7659 = vpop.f32.mrf.mxu0
        %v7660 = vpop.f32.mrf.mxu0
        %v7661 = vadd.f32 %v7564, %v7660
        %v7662 = vpop.f32.mrf.mxu0
        %7663 = vmatprep.mubr.bf16.mxu0 0
        %7664 = vmatmul.mubr.bf16.gmra.mxu0 %v6593
        %v7665 = vpop.f32.mrf.mxu0
        %v7666 = vadd.f32 %v7569, %v7665
        %v7667 = vpop.f32.mrf.mxu0
        %v7668 = vpop.f32.mrf.mxu0
        %v7669 = vadd.f32 %v7572, %v7668
        %v7670 = vpop.f32.mrf.mxu0
        %7671 = vdwg.mxu0
        %v7672 = vmax.f32 %v7610, 0.0
        %v7673 = vmax.f32 %v7613, 0.0
        %v7674 = vmax.f32 %v7618, 0.0
        %v7675 = vmax.f32 %v7621, 0.0
        %v7676 = vmax.f32 %v7626, 0.0
        %v7677 = vmax.f32 %v7629, 0.0
        %v7678 = vmax.f32 %v7634, 0.0
        %v7679 = vmax.f32 %v7637, 0.0
        %v7680 = vmax.f32 %v7642, 0.0
        %v7681 = vmax.f32 %v7645, 0.0
        %v7682 = vmax.f32 %v7650, 0.0
        %v7683 = vmax.f32 %v7653, 0.0
        %v7684 = vmax.f32 %v7658, 0.0
        %v7685 = vmax.f32 %v7661, 0.0
        %v7686 = vmax.f32 %v7666, 0.0
        %v7687 = vmax.f32 %v7669, 0.0
        %7688 = vst [vmem:[%s407 + $0x18] sm:$0xff] %v7672
        %7689 = vst [vmem:[%s407 + $0x40] sm:$0xff] %v7673
        %7690 = vst [vmem:[%s407 + $0x68] sm:$0xff] %v7674
        %7691 = vst [vmem:[%s407 + $0x90] sm:$0xff] %v7675
        %7692 = vst [vmem:[%s407 + $0xb8] sm:$0xff] %v7676
        %7693 = vst [vmem:[%s407 + $0xe0] sm:$0xff] %v7677
        %7694 = vst [vmem:[%s407 + $0x108] sm:$0xff] %v7678
        %7695 = vst [vmem:[%s407 + $0x130] sm:$0xff] %v7679
        %7696 = vst [vmem:[%s407 + $0x158] sm:$0xff] %v7680
        %7697 = vst [vmem:[%s407 + $0x180] sm:$0xff] %v7681
        %7698 = vst [vmem:[%s407 + $0x1a8] sm:$0xff] %v7682
        %7699 = vst [vmem:[%s407 + $0x1d0] sm:$0xff] %v7683
        %7700 = vst [vmem:[%s407 + $0x1f8] sm:$0xff] %v7684
        %7701 = vst [vmem:[%s407 + $0x220] sm:$0xff] %v7685
        %7702 = vst [vmem:[%s407 + $0x248] sm:$0xff] %v7686
        %7703 = vst [vmem:[%s407 + $0x270] sm:$0xff] %v7687
        %v7704 = vld [vmem:[%s415] sm:$0x1]
        %v7705 = vld [vmem:[#allocation10] sm:$0xf]
        %v7706 = vld [vmem:[#allocation10 + $0x4] sm:$0xf]
        %v7707 = vld [vmem:[#allocation10 + $0x8] sm:$0xf]
        %v7708 = vld [vmem:[#allocation10 + $0xc] sm:$0xf]
        %v7709 = vld [vmem:[#allocation10 + $0x10] sm:$0xf]
        %v7710 = vld [vmem:[#allocation10 + $0x14] sm:$0xf]
        %v7711 = vld [vmem:[#allocation10 + $0x18] sm:$0xf]
        %v7712 = vld [vmem:[#allocation10 + $0x1c] sm:$0xf]
        %v7713 = vld [vmem:[#allocation10 + $0x20] sm:$0xf]
        %v7714 = vld [vmem:[#allocation10 + $0x24] sm:$0xf]
        %v7715 = vld [vmem:[#allocation10 + $0x28] sm:$0xf]
        %v7716 = vld [vmem:[#allocation10 + $0x2c] sm:$0xf]
        %v7717 = vld [vmem:[#allocation10 + $0x30] sm:$0xf]
        %v7718 = vld [vmem:[#allocation10 + $0x34] sm:$0xf]
        %v7719 = vld [vmem:[#allocation10 + $0x38] sm:$0xf]
        %v7720 = vld [vmem:[#allocation10 + $0x3c] sm:$0xf]
        %v7721 = vld [vmem:[#allocation11] sm:$0x1]
        %v7738 = vunpack.c.l.b16 %v7705
        %v7739 = vunpack.c.l.b16 %v7706
        %v7740 = vunpack.c.l.b16 %v7707
        %v7741 = vunpack.c.l.b16 %v7708
        %v7742 = vunpack.c.l.b16 %v7709
        %v7743 = vunpack.c.l.b16 %v7710
        %v7744 = vunpack.c.l.b16 %v7711
        %v7745 = vunpack.c.l.b16 %v7712
        %v7746 = vunpack.c.l.b16 %v7713
        %v7747 = vunpack.c.l.b16 %v7714
        %v7748 = vunpack.c.l.b16 %v7715
        %v7749 = vunpack.c.l.b16 %v7716
        %v7750 = vunpack.c.l.b16 %v7717
        %v7751 = vunpack.c.l.b16 %v7718
        %v7752 = vunpack.c.l.b16 %v7719
        %v7753 = vunpack.c.l.b16 %v7720
        %v7754 = vpack.c.b16 %v7739, %v7738
        %v7755 = vpack.c.b16 %v7741, %v7740
        %v7756 = vpack.c.b16 %v7743, %v7742
        %v7757 = vpack.c.b16 %v7745, %v7744
        %v7758 = vpack.c.b16 %v7747, %v7746
        %v7759 = vpack.c.b16 %v7749, %v7748
        %v7760 = vpack.c.b16 %v7751, %v7750
        %v7761 = vpack.c.b16 %v7753, %v7752
        %7770 = vmatprep.subr.bf16.mxu0 0
        %7771 = vmatpush1.bf16.msra.mxu0 %v7761
        %7772 = vmatprep.subr.bf16.mxu0 0
        %7773 = vmatpush1.bf16.msra.mxu0 %v7760
        %7774 = vmatprep.subr.bf16.mxu0 0
        %7775 = vmatpush1.bf16.msra.mxu0 %v7759
        %7776 = vmatprep.subr.bf16.mxu0 0
        %7777 = vmatpush1.bf16.msra.mxu0 %v7758
        %7778 = vmatprep.subr.bf16.mxu0 0
        %7779 = vmatpush1.bf16.msra.mxu0 %v7757
        %7780 = vmatprep.subr.bf16.mxu0 0
        %7781 = vmatpush1.bf16.msra.mxu0 %v7756
        %7782 = vmatprep.subr.bf16.mxu0 0
        %7783 = vmatpush1.bf16.msra.mxu0 %v7755
        %7784 = vmatprep.subr.bf16.mxu0 0
        %7785 = vmatpush1.bf16.msra.mxu0 %v7754
        %7786 = vmatprep.subr.bf16.mxu0 0
        %7787 = vmatpush2.bf16.msra.mxu0 0
        %7788 = vmatprep.subr.bf16.mxu0 0
        %7789 = vmatpush2.bf16.msra.mxu0 0
        %7790 = vmatprep.subr.bf16.mxu0 0
        %7791 = vmatpush2.bf16.msra.mxu0 0
        %7792 = vmatprep.subr.bf16.mxu0 0
        %7793 = vmatpush2.bf16.msra.mxu0 0
        %7794 = vmatprep.subr.bf16.mxu0 0
        %7795 = vmatpush2.bf16.msra.mxu0 0
        %7796 = vmatprep.subr.bf16.mxu0 0
        %7797 = vmatpush2.bf16.msra.mxu0 0
        %7798 = vmatprep.subr.bf16.mxu0 0
        %7799 = vmatpush2.bf16.msra.mxu0 0
        %7800 = vmatprep.subr.bf16.mxu0 0
        %7801 = vmatpush2.bf16.msra.mxu0 0
        %7802 = vmatprep.mubr.bf16.mxu0 0
        %7803 = vmatmul.mubr.bf16.gmra.mxu0 %v7704
        %v7804 = vpop.f32.mrf.mxu0
        %v7805 = vadd.f32 %v7721, %v7804
        %v7806 = vpop.f32.mrf.mxu0
        %v7807 = vpop.f32.mrf.mxu0
        %v7808 = vpop.f32.mrf.mxu0
        %7809 = vdwg.mxu0
        %v7810 = vmax.f32 %v7805, 0.0
        %v7811 = vlaneseq
        %v7812 = vshrl.u32 %v7811, 7
        %v7813 = vsub.s32 0, %v7812
        %v7814 = vrot.slane %v7810, %v7813
        %7815 = vst [vmem:[%s407 + $0x20] sm:$0xff] %v7814
        %7816 = vst [vmem:[%s407 + $0x48] sm:$0xff] %v7814
        %7817 = vst [vmem:[%s407 + $0x70] sm:$0xff] %v7814
        %7818 = vst [vmem:[%s407 + $0x98] sm:$0xff] %v7814
        %7819 = vst [vmem:[%s407 + $0xc0] sm:$0xff] %v7814
        %7820 = vst [vmem:[%s407 + $0xe8] sm:$0xff] %v7814
        %7821 = vst [vmem:[%s407 + $0x110] sm:$0xff] %v7814
        %7822 = vst [vmem:[%s407 + $0x138] sm:$0xff] %v7814
        %7823 = vst [vmem:[%s407 + $0x160] sm:$0xff] %v7814
        %7824 = vst [vmem:[%s407 + $0x188] sm:$0xff] %v7814
        %7825 = vst [vmem:[%s407 + $0x1b0] sm:$0xff] %v7814
        %7826 = vst [vmem:[%s407 + $0x1d8] sm:$0xff] %v7814
        %7827 = vst [vmem:[%s407 + $0x200] sm:$0xff] %v7814
        %7828 = vst [vmem:[%s407 + $0x228] sm:$0xff] %v7814
        %7829 = vst [vmem:[%s407 + $0x250] sm:$0xff] %v7814
        %7830 = vst [vmem:[%s407 + $0x278] sm:$0xff] %v7814
        %s7831 = sand.u32 %s226, 1
        %s7832 = scalar_lea.sflag [#allocation4], %s7831
        %s7833 = sand.u32 %s226, 1
        %s7834 = smul.addr %s7833, 640
        %s7835 = scalar_lea.vmem [#allocation13], %s7834
        // Predicated region
        $region77: #{tpu_custom_call.1} parent=51 // pred_check
          %p7836 = pneg %p236
        $region78: #{tpu_custom_call.1} parent=51 // pred_check_branch
          %7838 = sbr.rel (%p7836) target = $region80
        $region79: #{tpu_custom_call.1} parent=51 // pred_region
          %s7839 = smul.u32 8, %s31
          %s7841 = ssub.s32 10240, 10240
          %7842 = vsyncadd %s7832, %s7841
          %s7843 = smul.addr %s7839, 10
          %s7844 = smul.addr %s30, 160
          %s7845 = sadd.s32 %s7843, %s7844
          %s7846 = smul.addr %s7845, 128
          %s7847 = scalar_lea.hbm %s8, %s7846
          %s7848 = sshll.u32 %s7835, 4
          %s7849 = int_to_ptr.vmem [resolvable:$true] %s7848
          %7854 = dma.vmem_to_hbm [thread:$0]  %s7849, 10240, %s7847, %s7832, 640, 640, 40
        $region80: #{tpu_custom_call.1} parent=51 // pred_fallthru
          _
      $region52: #{tpu_custom_call.1} parent=5 // pred_fallthru
        _
      %p7855 = scmp.le.s32.totalorder 2, %s21
      // Predicated region
      $region81: #{tpu_custom_call.1} parent=5 // pred_check
        %p7856 = pneg %p7855
      $region82: #{tpu_custom_call.1} parent=5 // pred_check_branch
        %7858 = sbr.rel (%p7856) target = $region84
      $region83: #{tpu_custom_call.1} parent=5 // pred_region
        %s7859 = ssub.s32 %s21, 2
        // Predicated region
        $region85: #{tpu_custom_call.1} parent=83 // pred_check
          %p7860 = pneg %p242
        $region86: #{tpu_custom_call.1} parent=83 // pred_check_branch
          %7862 = sbr.rel (%p7860) target = $region88
        $region87: #{tpu_custom_call.1} parent=83 // pred_region
          %s7863 = sand.u32 %s227, 1
          %s7864 = scalar_lea.sflag [#allocation4], %s7863
          %s7865 = sand.u32 %s227, 1
          %s7866 = smul.addr %s7865, 640
          %s7867 = scalar_lea.vmem [#allocation13], %s7866
          %7868 = dma.done %s7864, 10240
        $region88: #{tpu_custom_call.1} parent=83 // pred_fallthru
          _
      $region84: #{tpu_custom_call.1} parent=5 // pred_fallthru
        _
    $region6: #{tpu_custom_call.1} parent=1 // loop_footer
      %s25 = sadd.s32 1, %s21
    $region7: #{tpu_custom_call.1} parent=1 // loop_footer_branch
      %20 = sbr.rel target = $region3
    $region8: #{tpu_custom_call.1} parent=1 // loop_exit
      _
    %7869 = vsyncpa [#allocation3], 1
    %s7870 = scalar_lea.sflag [#allocation3], 1
    %7871 = vsyncpa %s7870, 1
    %7872 = vsyncpa [#allocation6], 1
    %7873 = vsyncpa [#allocation9], 1
    %7874 = vsyncpa [#allocation12], 1
    %7875 = vsyncpa [#allocation4], 1
    %s7876 = scalar_lea.sflag [#allocation4], 1
    %7877 = vsyncpa %s7876, 1

</llo_original>
